<compile_context>
chip_gen: v7x
topology: tpu7x:2x2x1
jax: 0.10.0
libtpu: 0.0.40
codegen_flags: <defaults>
</compile_context>

<pallas_src>
import jax
import jax.numpy as jnp
from jax.experimental import pallas as pl
from jax.experimental.pallas import tpu as pltpu


# ----------------------------------------------------------------------------
# Kernel 1: Conv2d(1,10,k=3,p=1) + bias + ReLU + MaxPool2x2, fused.
# Inputs are the four even/odd parity planes of the zero-padded 30x30 image, so
# every pooled conv tap is a contiguous (14,14) slice (no strided ops in-kernel).
# ----------------------------------------------------------------------------
def _conv1_pool_kernel(p00, p01, p10, p11, w_ref, b_ref, o_ref):
    planes = ((p00, p01), (p10, p11))
    w = w_ref[...]                                   # (9, 10)  [kh*3+kw, cout]
    taps = []
    for p in range(2):                               # 2x2 pooling-window phase
        for q in range(2):
            acc = jnp.zeros((14, 14, 10), jnp.float32)
            for kh in range(3):
                for kw in range(3):
                    r, s = p + kh, q + kw
                    plane = planes[r % 2][s % 2]     # (1, 15, 15, 1) block
                    slab = plane[0, r // 2:r // 2 + 14, s // 2:s // 2 + 14, :]
                    acc = acc + slab * w[kh * 3 + kw]        # (14,14,1)*(10,)->(14,14,10)
            taps.append(acc)
    m = jnp.maximum(jnp.maximum(taps[0], taps[1]), jnp.maximum(taps[2], taps[3]))
    # max / (+bias) / relu commute (bias is per-channel, relu monotone)
    o_ref[0] = jnp.maximum(m + b_ref[...], 0.0)      # (14, 14, 10) channels-last


def conv1_relu_pool(planes, w1p, b1):
    B = planes[0].shape[0]
    return pl.pallas_call(
        _conv1_pool_kernel,
        out_shape=jax.ShapeDtypeStruct((B, 14, 14, 10), jnp.float32),
        grid=(B,),
        in_specs=[pl.BlockSpec((1, 15, 15, 1), lambda b: (b, 0, 0, 0))] * 4
                 + [pl.BlockSpec((9, 10), lambda b: (0, 0)),
                    pl.BlockSpec((1, 10), lambda b: (0, 0))],
        out_specs=pl.BlockSpec((1, 14, 14, 10), lambda b: (b, 0, 0, 0)),
        compiler_params=pltpu.CompilerParams(dimension_semantics=("parallel",)),
    )(*planes, w1p, b1)


# ----------------------------------------------------------------------------
# Kernel 2: Conv2d(10,32,k=5,p=0) + bias + ReLU, patches built in-kernel.
# Grid = (batch, output_row); the (1,14,14,10) input block is revisited across
# the row axis so it stays resident in VMEM.
# ----------------------------------------------------------------------------
def _conv2_kernel(x_ref, w_ref, b_ref, o_ref):
    oh = pl.program_id(1)
    acc = jnp.zeros((10, 32), jnp.float32)
    for kh in range(5):
        for kw in range(5):
            a = x_ref[0, oh + kh, pl.ds(kw, 10), :]                  # (ow=10, cin=10)
            wk = w_ref[kh * 5 + kw]                                  # (cin=10, cout=32)
            acc = acc + jnp.dot(a, wk, preferred_element_type=jnp.float32)
    o_ref[0, 0] = jnp.maximum(acc + b_ref[...], 0.0)                 # (10, 32)


def conv2_relu(pooled, w2p, b2):
    B = pooled.shape[0]
    return pl.pallas_call(
        _conv2_kernel,
        out_shape=jax.ShapeDtypeStruct((B, 10, 10, 32), jnp.float32),
        grid=(B, 10),
        in_specs=[
            pl.BlockSpec((1, 14, 14, 10), lambda b, oh: (b, 0, 0, 0)),
            pl.BlockSpec((25, 10, 32), lambda b, oh: (0, 0, 0)),
            pl.BlockSpec((1, 32), lambda b, oh: (0, 0)),
        ],
        out_specs=pl.BlockSpec((1, 1, 10, 32), lambda b, oh: (b, oh, 0, 0)),
        compiler_params=pltpu.CompilerParams(
            dimension_semantics=("parallel", "parallel")),
    )(pooled, w2p, b2)


# ----------------------------------------------------------------------------
# Kernel 3: Linear(3200,20)+ReLU -> Linear(20,10)+Softmax, fused; M-tiled batch.
# ----------------------------------------------------------------------------
def _fc_head_kernel(x_ref, w3_ref, b3_ref, w4_ref, b4_ref, o_ref):
    h = jnp.dot(x_ref[...], w3_ref[...], preferred_element_type=jnp.float32)
    h = jnp.maximum(h + b3_ref[...], 0.0)                            # (TM, 20)
    z = jnp.dot(h, w4_ref[...], preferred_element_type=jnp.float32) + b4_ref[...]
    z = z - jnp.max(z, axis=-1, keepdims=True)
    e = jnp.exp(z)
    o_ref[...] = e * pl.reciprocal(jnp.sum(e, axis=-1, keepdims=True), approx=True)


def fc_head(xf, w3p, b3, w4p, b4):
    B, K = xf.shape
    N1, N2 = w3p.shape[1], w4p.shape[1]
    TM = B if B <= 256 else 256            # full-array block for small B (keeps M<8 legal)
    pad = (-B) % TM
    if pad:
        xf = jnp.pad(xf, ((0, pad), (0, 0)))
    Bp = B + pad
    out = pl.pallas_call(
        _fc_head_kernel,
        out_shape=jax.ShapeDtypeStruct((Bp, N2), jnp.float32),
        grid=(Bp // TM,),
        in_specs=[
            pl.BlockSpec((TM, K), lambda i: (i, 0)),
            pl.BlockSpec((K, N1), lambda i: (0, 0)),
            pl.BlockSpec((1, N1), lambda i: (0, 0)),
            pl.BlockSpec((N1, N2), lambda i: (0, 0)),
            pl.BlockSpec((1, N2), lambda i: (0, 0)),
        ],
        out_specs=pl.BlockSpec((TM, N2), lambda i: (i, 0)),
        compiler_params=pltpu.CompilerParams(dimension_semantics=("parallel",)),
    )(xf, w3p, b3, w4p, b4)
    return out[:B]


# ----------------------------------------------------------------------------
# Parameter init (torch-layout) and one-time weight packing (outside hot path)
# ----------------------------------------------------------------------------
def init_params(key, num_classes=10):
    ks = jax.random.split(key, 8)
    scale = 0.05
    return {
        "w1": jax.random.normal(ks[0], (10, 1, 3, 3), jnp.float32) * scale,
        "b1": jax.random.normal(ks[1], (10,), jnp.float32) * scale,
        "w2": jax.random.normal(ks[2], (32, 10, 5, 5), jnp.float32) * scale,
        "b2": jax.random.normal(ks[3], (32,), jnp.float32) * scale,
        "w3": jax.random.normal(ks[4], (20, 10 * 10 * 32), jnp.float32) * scale,
        "b3": jax.random.normal(ks[5], (20,), jnp.float32) * scale,
        "w4": jax.random.normal(ks[6], (num_classes, 20), jnp.float32) * scale,
        "b4": jax.random.normal(ks[7], (num_classes,), jnp.float32) * scale,
    }


def pack_params(p):
    """Pre-pack torch-layout weights into the kernel layouts (done once)."""
    nc = p["w4"].shape[0]
    # fc1 columns permuted from torch (c,h,w) flatten order to channels-last (h,w,c)
    w3p = (p["w3"].reshape(20, 32, 10, 10).transpose(0, 2, 3, 1)
           .reshape(20, 3200).T)                                   # (3200, 20)
    return {
        "w1": p["w1"].reshape(10, 9).T,                            # (9, 10)   [k, cout]
        "b1": p["b1"].reshape(1, 10),
        "w2": p["w2"].transpose(2, 3, 1, 0).reshape(25, 10, 32),   # (25, cin, cout)
        "b2": p["b2"].reshape(1, 32),
        "w3": w3p,
        "b3": p["b3"].reshape(1, 20),
        "w4": p["w4"].T,                                           # (20, nc)
        "b4": p["b4"].reshape(1, nc),
    }


# ----------------------------------------------------------------------------
# Forward pass (glue is only padding / parity split / free row-major reshape)
# ----------------------------------------------------------------------------
def convnet_forward(packed, x):
    """x: (B, 1, 28, 28) float32 NCHW -> (B, num_classes) softmax probs."""
    B = x.shape[0]
    # layer1 + layer2: conv(1->10,k3,p1) + ReLU + 2x2 maxpool (fused kernel)
    xp = jnp.pad(x[:, 0], ((0, 0), (1, 1), (1, 1)))                # (B, 30, 30)
    planes = [xp[:, i::2, j::2][..., None] for i in (0, 1) for j in (0, 1)]
    pooled = conv1_relu_pool(planes, packed["w1"], packed["b1"])   # (B,14,14,10) NHWC

    # layer3: conv(10->32,k5,p0) + ReLU, patches built inside the kernel
    y = conv2_relu(pooled, packed["w2"], packed["b2"])             # (B,10,10,32) NHWC

    # flatten channels-last (fc1 weights were permuted to match this order)
    flat = y.reshape(B, 10 * 10 * 32)                              # (B, 3200)

    # layer4 + layer5: fc1+ReLU+fc2+softmax fused
    return fc_head(flat, packed["w3"], packed["b3"], packed["w4"], packed["b4"])


# ----------------------------------------------------------------------------
# Pure-JAX reference (for a correctness sanity check)
# ----------------------------------------------------------------------------
def reference_forward(params, x):
    y = jax.lax.conv_general_dilated(x, params["w1"], (1, 1), ((1, 1), (1, 1)),
                                     dimension_numbers=("NCHW", "OIHW", "NCHW"))
    y = jax.nn.relu(y + params["b1"].reshape(1, -1, 1, 1))
    B, C, H, W = y.shape
    y = y.reshape(B, C, H // 2, 2, W // 2, 2).max(axis=(3, 5))
    y = jax.lax.conv_general_dilated(y, params["w2"], (1, 1), ((0, 0), (0, 0)),
                                     dimension_numbers=("NCHW", "OIHW", "NCHW"))
    y = jax.nn.relu(y + params["b2"].reshape(1, -1, 1, 1))
    y = y.reshape(B, -1)
    y = jax.nn.relu(y @ params["w3"].T + params["b3"])
    y = y @ params["w4"].T + params["b4"]
    return jax.nn.softmax(y, axis=-1)


if __name__ == "__main__":
    key = jax.random.PRNGKey(0)
    pkey, xkey = jax.random.split(key)
    params = init_params(pkey, num_classes=10)
    packed = pack_params(params)

    # Spatial size is dictated by the fc layer (10*10*32): 28x28 MNIST-like input.
    x = jax.random.normal(xkey, (2, 1, 28, 28), jnp.float32)

    out = jax.jit(convnet_forward)(packed, x)
    out = jax.block_until_ready(out)

    assert out.shape == (2, 10), out.shape
    # softmax rows sum to ~1 (approx reciprocal on the EUP -> loose tolerance)
    assert jnp.allclose(jnp.sum(out, axis=-1), 1.0, atol=1e-2)
    # match the plain-JAX reference
    ref = reference_forward(params, x)
    assert jnp.allclose(out, ref, atol=5e-3), float(jnp.max(jnp.abs(out - ref)))
    print("KERNEL_OK")
</pallas_src>

<mosaic_0001>
module attributes {stable_mosaic.version = 11 : i64} {
  func.func @_conv2_kernel(%arg0: i32, %arg1: i32, %arg2: memref<1x14x14x10xf32, #tpu.memory_space<vmem>>, %arg3: memref<25x10x32xf32, #tpu.memory_space<vmem>>, %arg4: memref<1x32xf32, #tpu.memory_space<vmem>>, %arg5: memref<1x1x10x32xf32, #tpu.memory_space<vmem>>) attributes {dimension_semantics = [#tpu.dimension_semantics<parallel>, #tpu.dimension_semantics<parallel>], iteration_bounds = array<i64: 2, 10>, scalar_prefetch = 0 : i64, scratch_operands = 0 : i64, tpu.core_type = #tpu.core_type<tc>, window_params = [{transform_indices = @transform_0, window_bounds = array<i64: 1, 14, 14, 10>}, {pipeline_mode = #tpu.pipeline_mode<synchronous>, transform_indices = @transform_1, window_bounds = array<i64: 25, 10, 32>}, {pipeline_mode = #tpu.pipeline_mode<synchronous>, transform_indices = @transform_2, window_bounds = array<i64: 1, 32>}, {transform_indices = @transform_3, window_bounds = array<i64: 1, 1, 10, 32>}]} {
    %cst = arith.constant 0.000000e+00 : f32
    %0 = vector.broadcast %cst : f32 to vector<10x32xf32>
    %c0_i32 = arith.constant 0 : i32
    %1 = arith.addi %arg1, %c0_i32 : i32
    %c0 = arith.constant 0 : index
    %2 = arith.index_cast %1 : i32 to index
    %c0_0 = arith.constant 0 : index
    %c0_1 = arith.constant 0 : index
    %3 = vector.load %arg2[%c0, %2, %c0_0, %c0_1] : memref<1x14x14x10xf32, #tpu.memory_space<vmem>>, vector<1x1x10x10xf32>
    %4 = vector.shape_cast %3 : vector<1x1x10x10xf32> to vector<10x10xf32>
    %c0_2 = arith.constant 0 : index
    %c0_3 = arith.constant 0 : index
    %c0_4 = arith.constant 0 : index
    %5 = vector.load %arg3[%c0_2, %c0_3, %c0_4] : memref<25x10x32xf32, #tpu.memory_space<vmem>>, vector<1x10x32xf32>
    %6 = vector.shape_cast %5 : vector<1x10x32xf32> to vector<10x32xf32>
    %cst_5 = arith.constant dense<0.000000e+00> : vector<10x32xf32>
    %7 = tpu.matmul %4, %6, %cst_5 {dimension_numbers = #tpu.dot_dimension_numbers<[1], [0], [0], [1], [0, 0, 1, 1], [], []>} : vector<10x10xf32>, vector<10x32xf32>, vector<10x32xf32> -> vector<10x32xf32>
    %8 = arith.addf %0, %7 : vector<10x32xf32>
    %c0_i32_6 = arith.constant 0 : i32
    %9 = arith.addi %arg1, %c0_i32_6 : i32
    %c0_7 = arith.constant 0 : index
    %10 = arith.index_cast %9 : i32 to index
    %c1 = arith.constant 1 : index
    %c0_8 = arith.constant 0 : index
    %11 = vector.load %arg2[%c0_7, %10, %c1, %c0_8] : memref<1x14x14x10xf32, #tpu.memory_space<vmem>>, vector<1x1x10x10xf32>
    %12 = vector.shape_cast %11 : vector<1x1x10x10xf32> to vector<10x10xf32>
    %c1_9 = arith.constant 1 : index
    %c0_10 = arith.constant 0 : index
    %c0_11 = arith.constant 0 : index
    %13 = vector.load %arg3[%c1_9, %c0_10, %c0_11] : memref<25x10x32xf32, #tpu.memory_space<vmem>>, vector<1x10x32xf32>
    %14 = vector.shape_cast %13 : vector<1x10x32xf32> to vector<10x32xf32>
    %cst_12 = arith.constant dense<0.000000e+00> : vector<10x32xf32>
    %15 = tpu.matmul %12, %14, %cst_12 {dimension_numbers = #tpu.dot_dimension_numbers<[1], [0], [0], [1], [0, 0, 1, 1], [], []>} : vector<10x10xf32>, vector<10x32xf32>, vector<10x32xf32> -> vector<10x32xf32>
    %16 = arith.addf %8, %15 : vector<10x32xf32>
    %c0_i32_13 = arith.constant 0 : i32
    %17 = arith.addi %arg1, %c0_i32_13 : i32
    %c0_14 = arith.constant 0 : index
    %18 = arith.index_cast %17 : i32 to index
    %c2 = arith.constant 2 : index
    %c0_15 = arith.constant 0 : index
    %19 = vector.load %arg2[%c0_14, %18, %c2, %c0_15] : memref<1x14x14x10xf32, #tpu.memory_space<vmem>>, vector<1x1x10x10xf32>
    %20 = vector.shape_cast %19 : vector<1x1x10x10xf32> to vector<10x10xf32>
    %c2_16 = arith.constant 2 : index
    %c0_17 = arith.constant 0 : index
    %c0_18 = arith.constant 0 : index
    %21 = vector.load %arg3[%c2_16, %c0_17, %c0_18] : memref<25x10x32xf32, #tpu.memory_space<vmem>>, vector<1x10x32xf32>
    %22 = vector.shape_cast %21 : vector<1x10x32xf32> to vector<10x32xf32>
    %cst_19 = arith.constant dense<0.000000e+00> : vector<10x32xf32>
    %23 = tpu.matmul %20, %22, %cst_19 {dimension_numbers = #tpu.dot_dimension_numbers<[1], [0], [0], [1], [0, 0, 1, 1], [], []>} : vector<10x10xf32>, vector<10x32xf32>, vector<10x32xf32> -> vector<10x32xf32>
    %24 = arith.addf %16, %23 : vector<10x32xf32>
    %c0_i32_20 = arith.constant 0 : i32
    %25 = arith.addi %arg1, %c0_i32_20 : i32
    %c0_21 = arith.constant 0 : index
    %26 = arith.index_cast %25 : i32 to index
    %c3 = arith.constant 3 : index
    %c0_22 = arith.constant 0 : index
    %27 = vector.load %arg2[%c0_21, %26, %c3, %c0_22] : memref<1x14x14x10xf32, #tpu.memory_space<vmem>>, vector<1x1x10x10xf32>
    %28 = vector.shape_cast %27 : vector<1x1x10x10xf32> to vector<10x10xf32>
    %c3_23 = arith.constant 3 : index
    %c0_24 = arith.constant 0 : index
    %c0_25 = arith.constant 0 : index
    %29 = vector.load %arg3[%c3_23, %c0_24, %c0_25] : memref<25x10x32xf32, #tpu.memory_space<vmem>>, vector<1x10x32xf32>
    %30 = vector.shape_cast %29 : vector<1x10x32xf32> to vector<10x32xf32>
    %cst_26 = arith.constant dense<0.000000e+00> : vector<10x32xf32>
    %31 = tpu.matmul %28, %30, %cst_26 {dimension_numbers = #tpu.dot_dimension_numbers<[1], [0], [0], [1], [0, 0, 1, 1], [], []>} : vector<10x10xf32>, vector<10x32xf32>, vector<10x32xf32> -> vector<10x32xf32>
    %32 = arith.addf %24, %31 : vector<10x32xf32>
    %c0_i32_27 = arith.constant 0 : i32
    %33 = arith.addi %arg1, %c0_i32_27 : i32
    %c0_28 = arith.constant 0 : index
    %34 = arith.index_cast %33 : i32 to index
    %c4 = arith.constant 4 : index
    %c0_29 = arith.constant 0 : index
    %35 = vector.load %arg2[%c0_28, %34, %c4, %c0_29] : memref<1x14x14x10xf32, #tpu.memory_space<vmem>>, vector<1x1x10x10xf32>
    %36 = vector.shape_cast %35 : vector<1x1x10x10xf32> to vector<10x10xf32>
    %c4_30 = arith.constant 4 : index
    %c0_31 = arith.constant 0 : index
    %c0_32 = arith.constant 0 : index
    %37 = vector.load %arg3[%c4_30, %c0_31, %c0_32] : memref<25x10x32xf32, #tpu.memory_space<vmem>>, vector<1x10x32xf32>
    %38 = vector.shape_cast %37 : vector<1x10x32xf32> to vector<10x32xf32>
    %cst_33 = arith.constant dense<0.000000e+00> : vector<10x32xf32>
    %39 = tpu.matmul %36, %38, %cst_33 {dimension_numbers = #tpu.dot_dimension_numbers<[1], [0], [0], [1], [0, 0, 1, 1], [], []>} : vector<10x10xf32>, vector<10x32xf32>, vector<10x32xf32> -> vector<10x32xf32>
    %40 = arith.addf %32, %39 : vector<10x32xf32>
    %c1_i32 = arith.constant 1 : i32
    %41 = arith.addi %arg1, %c1_i32 : i32
    %c0_34 = arith.constant 0 : index
    %42 = arith.index_cast %41 : i32 to index
    %c0_35 = arith.constant 0 : index
    %c0_36 = arith.constant 0 : index
    %43 = vector.load %arg2[%c0_34, %42, %c0_35, %c0_36] : memref<1x14x14x10xf32, #tpu.memory_space<vmem>>, vector<1x1x10x10xf32>
    %44 = vector.shape_cast %43 : vector<1x1x10x10xf32> to vector<10x10xf32>
    %c5 = arith.constant 5 : index
    %c0_37 = arith.constant 0 : index
    %c0_38 = arith.constant 0 : index
    %45 = vector.load %arg3[%c5, %c0_37, %c0_38] : memref<25x10x32xf32, #tpu.memory_space<vmem>>, vector<1x10x32xf32>
    %46 = vector.shape_cast %45 : vector<1x10x32xf32> to vector<10x32xf32>
    %cst_39 = arith.constant dense<0.000000e+00> : vector<10x32xf32>
    %47 = tpu.matmul %44, %46, %cst_39 {dimension_numbers = #tpu.dot_dimension_numbers<[1], [0], [0], [1], [0, 0, 1, 1], [], []>} : vector<10x10xf32>, vector<10x32xf32>, vector<10x32xf32> -> vector<10x32xf32>
    %48 = arith.addf %40, %47 : vector<10x32xf32>
    %c1_i32_40 = arith.constant 1 : i32
    %49 = arith.addi %arg1, %c1_i32_40 : i32
    %c0_41 = arith.constant 0 : index
    %50 = arith.index_cast %49 : i32 to index
    %c1_42 = arith.constant 1 : index
    %c0_43 = arith.constant 0 : index
    %51 = vector.load %arg2[%c0_41, %50, %c1_42, %c0_43] : memref<1x14x14x10xf32, #tpu.memory_space<vmem>>, vector<1x1x10x10xf32>
    %52 = vector.shape_cast %51 : vector<1x1x10x10xf32> to vector<10x10xf32>
    %c6 = arith.constant 6 : index
    %c0_44 = arith.constant 0 : index
    %c0_45 = arith.constant 0 : index
    %53 = vector.load %arg3[%c6, %c0_44, %c0_45] : memref<25x10x32xf32, #tpu.memory_space<vmem>>, vector<1x10x32xf32>
    %54 = vector.shape_cast %53 : vector<1x10x32xf32> to vector<10x32xf32>
    %cst_46 = arith.constant dense<0.000000e+00> : vector<10x32xf32>
    %55 = tpu.matmul %52, %54, %cst_46 {dimension_numbers = #tpu.dot_dimension_numbers<[1], [0], [0], [1], [0, 0, 1, 1], [], []>} : vector<10x10xf32>, vector<10x32xf32>, vector<10x32xf32> -> vector<10x32xf32>
    %56 = arith.addf %48, %55 : vector<10x32xf32>
    %c1_i32_47 = arith.constant 1 : i32
    %57 = arith.addi %arg1, %c1_i32_47 : i32
    %c0_48 = arith.constant 0 : index
    %58 = arith.index_cast %57 : i32 to index
    %c2_49 = arith.constant 2 : index
    %c0_50 = arith.constant 0 : index
    %59 = vector.load %arg2[%c0_48, %58, %c2_49, %c0_50] : memref<1x14x14x10xf32, #tpu.memory_space<vmem>>, vector<1x1x10x10xf32>
    %60 = vector.shape_cast %59 : vector<1x1x10x10xf32> to vector<10x10xf32>
    %c7 = arith.constant 7 : index
    %c0_51 = arith.constant 0 : index
    %c0_52 = arith.constant 0 : index
    %61 = vector.load %arg3[%c7, %c0_51, %c0_52] : memref<25x10x32xf32, #tpu.memory_space<vmem>>, vector<1x10x32xf32>
    %62 = vector.shape_cast %61 : vector<1x10x32xf32> to vector<10x32xf32>
    %cst_53 = arith.constant dense<0.000000e+00> : vector<10x32xf32>
    %63 = tpu.matmul %60, %62, %cst_53 {dimension_numbers = #tpu.dot_dimension_numbers<[1], [0], [0], [1], [0, 0, 1, 1], [], []>} : vector<10x10xf32>, vector<10x32xf32>, vector<10x32xf32> -> vector<10x32xf32>
    %64 = arith.addf %56, %63 : vector<10x32xf32>
    %c1_i32_54 = arith.constant 1 : i32
    %65 = arith.addi %arg1, %c1_i32_54 : i32
    %c0_55 = arith.constant 0 : index
    %66 = arith.index_cast %65 : i32 to index
    %c3_56 = arith.constant 3 : index
    %c0_57 = arith.constant 0 : index
    %67 = vector.load %arg2[%c0_55, %66, %c3_56, %c0_57] : memref<1x14x14x10xf32, #tpu.memory_space<vmem>>, vector<1x1x10x10xf32>
    %68 = vector.shape_cast %67 : vector<1x1x10x10xf32> to vector<10x10xf32>
    %c8 = arith.constant 8 : index
    %c0_58 = arith.constant 0 : index
    %c0_59 = arith.constant 0 : index
    %69 = vector.load %arg3[%c8, %c0_58, %c0_59] : memref<25x10x32xf32, #tpu.memory_space<vmem>>, vector<1x10x32xf32>
    %70 = vector.shape_cast %69 : vector<1x10x32xf32> to vector<10x32xf32>
    %cst_60 = arith.constant dense<0.000000e+00> : vector<10x32xf32>
    %71 = tpu.matmul %68, %70, %cst_60 {dimension_numbers = #tpu.dot_dimension_numbers<[1], [0], [0], [1], [0, 0, 1, 1], [], []>} : vector<10x10xf32>, vector<10x32xf32>, vector<10x32xf32> -> vector<10x32xf32>
    %72 = arith.addf %64, %71 : vector<10x32xf32>
    %c1_i32_61 = arith.constant 1 : i32
    %73 = arith.addi %arg1, %c1_i32_61 : i32
    %c0_62 = arith.constant 0 : index
    %74 = arith.index_cast %73 : i32 to index
    %c4_63 = arith.constant 4 : index
    %c0_64 = arith.constant 0 : index
    %75 = vector.load %arg2[%c0_62, %74, %c4_63, %c0_64] : memref<1x14x14x10xf32, #tpu.memory_space<vmem>>, vector<1x1x10x10xf32>
    %76 = vector.shape_cast %75 : vector<1x1x10x10xf32> to vector<10x10xf32>
    %c9 = arith.constant 9 : index
    %c0_65 = arith.constant 0 : index
    %c0_66 = arith.constant 0 : index
    %77 = vector.load %arg3[%c9, %c0_65, %c0_66] : memref<25x10x32xf32, #tpu.memory_space<vmem>>, vector<1x10x32xf32>
    %78 = vector.shape_cast %77 : vector<1x10x32xf32> to vector<10x32xf32>
    %cst_67 = arith.constant dense<0.000000e+00> : vector<10x32xf32>
    %79 = tpu.matmul %76, %78, %cst_67 {dimension_numbers = #tpu.dot_dimension_numbers<[1], [0], [0], [1], [0, 0, 1, 1], [], []>} : vector<10x10xf32>, vector<10x32xf32>, vector<10x32xf32> -> vector<10x32xf32>
    %80 = arith.addf %72, %79 : vector<10x32xf32>
    %c2_i32 = arith.constant 2 : i32
    %81 = arith.addi %arg1, %c2_i32 : i32
    %c0_68 = arith.constant 0 : index
    %82 = arith.index_cast %81 : i32 to index
    %c0_69 = arith.constant 0 : index
    %c0_70 = arith.constant 0 : index
    %83 = vector.load %arg2[%c0_68, %82, %c0_69, %c0_70] : memref<1x14x14x10xf32, #tpu.memory_space<vmem>>, vector<1x1x10x10xf32>
    %84 = vector.shape_cast %83 : vector<1x1x10x10xf32> to vector<10x10xf32>
    %c10 = arith.constant 10 : index
    %c0_71 = arith.constant 0 : index
    %c0_72 = arith.constant 0 : index
    %85 = vector.load %arg3[%c10, %c0_71, %c0_72] : memref<25x10x32xf32, #tpu.memory_space<vmem>>, vector<1x10x32xf32>
    %86 = vector.shape_cast %85 : vector<1x10x32xf32> to vector<10x32xf32>
    %cst_73 = arith.constant dense<0.000000e+00> : vector<10x32xf32>
    %87 = tpu.matmul %84, %86, %cst_73 {dimension_numbers = #tpu.dot_dimension_numbers<[1], [0], [0], [1], [0, 0, 1, 1], [], []>} : vector<10x10xf32>, vector<10x32xf32>, vector<10x32xf32> -> vector<10x32xf32>
    %88 = arith.addf %80, %87 : vector<10x32xf32>
    %c2_i32_74 = arith.constant 2 : i32
    %89 = arith.addi %arg1, %c2_i32_74 : i32
    %c0_75 = arith.constant 0 : index
    %90 = arith.index_cast %89 : i32 to index
    %c1_76 = arith.constant 1 : index
    %c0_77 = arith.constant 0 : index
    %91 = vector.load %arg2[%c0_75, %90, %c1_76, %c0_77] : memref<1x14x14x10xf32, #tpu.memory_space<vmem>>, vector<1x1x10x10xf32>
    %92 = vector.shape_cast %91 : vector<1x1x10x10xf32> to vector<10x10xf32>
    %c11 = arith.constant 11 : index
    %c0_78 = arith.constant 0 : index
    %c0_79 = arith.constant 0 : index
    %93 = vector.load %arg3[%c11, %c0_78, %c0_79] : memref<25x10x32xf32, #tpu.memory_space<vmem>>, vector<1x10x32xf32>
    %94 = vector.shape_cast %93 : vector<1x10x32xf32> to vector<10x32xf32>
    %cst_80 = arith.constant dense<0.000000e+00> : vector<10x32xf32>
    %95 = tpu.matmul %92, %94, %cst_80 {dimension_numbers = #tpu.dot_dimension_numbers<[1], [0], [0], [1], [0, 0, 1, 1], [], []>} : vector<10x10xf32>, vector<10x32xf32>, vector<10x32xf32> -> vector<10x32xf32>
    %96 = arith.addf %88, %95 : vector<10x32xf32>
    %c2_i32_81 = arith.constant 2 : i32
    %97 = arith.addi %arg1, %c2_i32_81 : i32
    %c0_82 = arith.constant 0 : index
    %98 = arith.index_cast %97 : i32 to index
    %c2_83 = arith.constant 2 : index
    %c0_84 = arith.constant 0 : index
    %99 = vector.load %arg2[%c0_82, %98, %c2_83, %c0_84] : memref<1x14x14x10xf32, #tpu.memory_space<vmem>>, vector<1x1x10x10xf32>
    %100 = vector.shape_cast %99 : vector<1x1x10x10xf32> to vector<10x10xf32>
    %c12 = arith.constant 12 : index
    %c0_85 = arith.constant 0 : index
    %c0_86 = arith.constant 0 : index
    %101 = vector.load %arg3[%c12, %c0_85, %c0_86] : memref<25x10x32xf32, #tpu.memory_space<vmem>>, vector<1x10x32xf32>
    %102 = vector.shape_cast %101 : vector<1x10x32xf32> to vector<10x32xf32>
    %cst_87 = arith.constant dense<0.000000e+00> : vector<10x32xf32>
    %103 = tpu.matmul %100, %102, %cst_87 {dimension_numbers = #tpu.dot_dimension_numbers<[1], [0], [0], [1], [0, 0, 1, 1], [], []>} : vector<10x10xf32>, vector<10x32xf32>, vector<10x32xf32> -> vector<10x32xf32>
    %104 = arith.addf %96, %103 : vector<10x32xf32>
    %c2_i32_88 = arith.constant 2 : i32
    %105 = arith.addi %arg1, %c2_i32_88 : i32
    %c0_89 = arith.constant 0 : index
    %106 = arith.index_cast %105 : i32 to index
    %c3_90 = arith.constant 3 : index
    %c0_91 = arith.constant 0 : index
    %107 = vector.load %arg2[%c0_89, %106, %c3_90, %c0_91] : memref<1x14x14x10xf32, #tpu.memory_space<vmem>>, vector<1x1x10x10xf32>
    %108 = vector.shape_cast %107 : vector<1x1x10x10xf32> to vector<10x10xf32>
    %c13 = arith.constant 13 : index
    %c0_92 = arith.constant 0 : index
    %c0_93 = arith.constant 0 : index
    %109 = vector.load %arg3[%c13, %c0_92, %c0_93] : memref<25x10x32xf32, #tpu.memory_space<vmem>>, vector<1x10x32xf32>
    %110 = vector.shape_cast %109 : vector<1x10x32xf32> to vector<10x32xf32>
    %cst_94 = arith.constant dense<0.000000e+00> : vector<10x32xf32>
    %111 = tpu.matmul %108, %110, %cst_94 {dimension_numbers = #tpu.dot_dimension_numbers<[1], [0], [0], [1], [0, 0, 1, 1], [], []>} : vector<10x10xf32>, vector<10x32xf32>, vector<10x32xf32> -> vector<10x32xf32>
    %112 = arith.addf %104, %111 : vector<10x32xf32>
    %c2_i32_95 = arith.constant 2 : i32
    %113 = arith.addi %arg1, %c2_i32_95 : i32
    %c0_96 = arith.constant 0 : index
    %114 = arith.index_cast %113 : i32 to index
    %c4_97 = arith.constant 4 : index
    %c0_98 = arith.constant 0 : index
    %115 = vector.load %arg2[%c0_96, %114, %c4_97, %c0_98] : memref<1x14x14x10xf32, #tpu.memory_space<vmem>>, vector<1x1x10x10xf32>
    %116 = vector.shape_cast %115 : vector<1x1x10x10xf32> to vector<10x10xf32>
    %c14 = arith.constant 14 : index
    %c0_99 = arith.constant 0 : index
    %c0_100 = arith.constant 0 : index
    %117 = vector.load %arg3[%c14, %c0_99, %c0_100] : memref<25x10x32xf32, #tpu.memory_space<vmem>>, vector<1x10x32xf32>
    %118 = vector.shape_cast %117 : vector<1x10x32xf32> to vector<10x32xf32>
    %cst_101 = arith.constant dense<0.000000e+00> : vector<10x32xf32>
    %119 = tpu.matmul %116, %118, %cst_101 {dimension_numbers = #tpu.dot_dimension_numbers<[1], [0], [0], [1], [0, 0, 1, 1], [], []>} : vector<10x10xf32>, vector<10x32xf32>, vector<10x32xf32> -> vector<10x32xf32>
    %120 = arith.addf %112, %119 : vector<10x32xf32>
    %c3_i32 = arith.constant 3 : i32
    %121 = arith.addi %arg1, %c3_i32 : i32
    %c0_102 = arith.constant 0 : index
    %122 = arith.index_cast %121 : i32 to index
    %c0_103 = arith.constant 0 : index
    %c0_104 = arith.constant 0 : index
    %123 = vector.load %arg2[%c0_102, %122, %c0_103, %c0_104] : memref<1x14x14x10xf32, #tpu.memory_space<vmem>>, vector<1x1x10x10xf32>
    %124 = vector.shape_cast %123 : vector<1x1x10x10xf32> to vector<10x10xf32>
    %c15 = arith.constant 15 : index
    %c0_105 = arith.constant 0 : index
    %c0_106 = arith.constant 0 : index
    %125 = vector.load %arg3[%c15, %c0_105, %c0_106] : memref<25x10x32xf32, #tpu.memory_space<vmem>>, vector<1x10x32xf32>
    %126 = vector.shape_cast %125 : vector<1x10x32xf32> to vector<10x32xf32>
    %cst_107 = arith.constant dense<0.000000e+00> : vector<10x32xf32>
    %127 = tpu.matmul %124, %126, %cst_107 {dimension_numbers = #tpu.dot_dimension_numbers<[1], [0], [0], [1], [0, 0, 1, 1], [], []>} : vector<10x10xf32>, vector<10x32xf32>, vector<10x32xf32> -> vector<10x32xf32>
    %128 = arith.addf %120, %127 : vector<10x32xf32>
    %c3_i32_108 = arith.constant 3 : i32
    %129 = arith.addi %arg1, %c3_i32_108 : i32
    %c0_109 = arith.constant 0 : index
    %130 = arith.index_cast %129 : i32 to index
    %c1_110 = arith.constant 1 : index
    %c0_111 = arith.constant 0 : index
    %131 = vector.load %arg2[%c0_109, %130, %c1_110, %c0_111] : memref<1x14x14x10xf32, #tpu.memory_space<vmem>>, vector<1x1x10x10xf32>
    %132 = vector.shape_cast %131 : vector<1x1x10x10xf32> to vector<10x10xf32>
    %c16 = arith.constant 16 : index
    %c0_112 = arith.constant 0 : index
    %c0_113 = arith.constant 0 : index
    %133 = vector.load %arg3[%c16, %c0_112, %c0_113] : memref<25x10x32xf32, #tpu.memory_space<vmem>>, vector<1x10x32xf32>
    %134 = vector.shape_cast %133 : vector<1x10x32xf32> to vector<10x32xf32>
    %cst_114 = arith.constant dense<0.000000e+00> : vector<10x32xf32>
    %135 = tpu.matmul %132, %134, %cst_114 {dimension_numbers = #tpu.dot_dimension_numbers<[1], [0], [0], [1], [0, 0, 1, 1], [], []>} : vector<10x10xf32>, vector<10x32xf32>, vector<10x32xf32> -> vector<10x32xf32>
    %136 = arith.addf %128, %135 : vector<10x32xf32>
    %c3_i32_115 = arith.constant 3 : i32
    %137 = arith.addi %arg1, %c3_i32_115 : i32
    %c0_116 = arith.constant 0 : index
    %138 = arith.index_cast %137 : i32 to index
    %c2_117 = arith.constant 2 : index
    %c0_118 = arith.constant 0 : index
    %139 = vector.load %arg2[%c0_116, %138, %c2_117, %c0_118] : memref<1x14x14x10xf32, #tpu.memory_space<vmem>>, vector<1x1x10x10xf32>
    %140 = vector.shape_cast %139 : vector<1x1x10x10xf32> to vector<10x10xf32>
    %c17 = arith.constant 17 : index
    %c0_119 = arith.constant 0 : index
    %c0_120 = arith.constant 0 : index
    %141 = vector.load %arg3[%c17, %c0_119, %c0_120] : memref<25x10x32xf32, #tpu.memory_space<vmem>>, vector<1x10x32xf32>
    %142 = vector.shape_cast %141 : vector<1x10x32xf32> to vector<10x32xf32>
    %cst_121 = arith.constant dense<0.000000e+00> : vector<10x32xf32>
    %143 = tpu.matmul %140, %142, %cst_121 {dimension_numbers = #tpu.dot_dimension_numbers<[1], [0], [0], [1], [0, 0, 1, 1], [], []>} : vector<10x10xf32>, vector<10x32xf32>, vector<10x32xf32> -> vector<10x32xf32>
    %144 = arith.addf %136, %143 : vector<10x32xf32>
    %c3_i32_122 = arith.constant 3 : i32
    %145 = arith.addi %arg1, %c3_i32_122 : i32
    %c0_123 = arith.constant 0 : index
    %146 = arith.index_cast %145 : i32 to index
    %c3_124 = arith.constant 3 : index
    %c0_125 = arith.constant 0 : index
    %147 = vector.load %arg2[%c0_123, %146, %c3_124, %c0_125] : memref<1x14x14x10xf32, #tpu.memory_space<vmem>>, vector<1x1x10x10xf32>
    %148 = vector.shape_cast %147 : vector<1x1x10x10xf32> to vector<10x10xf32>
    %c18 = arith.constant 18 : index
    %c0_126 = arith.constant 0 : index
    %c0_127 = arith.constant 0 : index
    %149 = vector.load %arg3[%c18, %c0_126, %c0_127] : memref<25x10x32xf32, #tpu.memory_space<vmem>>, vector<1x10x32xf32>
    %150 = vector.shape_cast %149 : vector<1x10x32xf32> to vector<10x32xf32>
    %cst_128 = arith.constant dense<0.000000e+00> : vector<10x32xf32>
    %151 = tpu.matmul %148, %150, %cst_128 {dimension_numbers = #tpu.dot_dimension_numbers<[1], [0], [0], [1], [0, 0, 1, 1], [], []>} : vector<10x10xf32>, vector<10x32xf32>, vector<10x32xf32> -> vector<10x32xf32>
    %152 = arith.addf %144, %151 : vector<10x32xf32>
    %c3_i32_129 = arith.constant 3 : i32
    %153 = arith.addi %arg1, %c3_i32_129 : i32
    %c0_130 = arith.constant 0 : index
    %154 = arith.index_cast %153 : i32 to index
    %c4_131 = arith.constant 4 : index
    %c0_132 = arith.constant 0 : index
    %155 = vector.load %arg2[%c0_130, %154, %c4_131, %c0_132] : memref<1x14x14x10xf32, #tpu.memory_space<vmem>>, vector<1x1x10x10xf32>
    %156 = vector.shape_cast %155 : vector<1x1x10x10xf32> to vector<10x10xf32>
    %c19 = arith.constant 19 : index
    %c0_133 = arith.constant 0 : index
    %c0_134 = arith.constant 0 : index
    %157 = vector.load %arg3[%c19, %c0_133, %c0_134] : memref<25x10x32xf32, #tpu.memory_space<vmem>>, vector<1x10x32xf32>
    %158 = vector.shape_cast %157 : vector<1x10x32xf32> to vector<10x32xf32>
    %cst_135 = arith.constant dense<0.000000e+00> : vector<10x32xf32>
    %159 = tpu.matmul %156, %158, %cst_135 {dimension_numbers = #tpu.dot_dimension_numbers<[1], [0], [0], [1], [0, 0, 1, 1], [], []>} : vector<10x10xf32>, vector<10x32xf32>, vector<10x32xf32> -> vector<10x32xf32>
    %160 = arith.addf %152, %159 : vector<10x32xf32>
    %c4_i32 = arith.constant 4 : i32
    %161 = arith.addi %arg1, %c4_i32 : i32
    %c0_136 = arith.constant 0 : index
    %162 = arith.index_cast %161 : i32 to index
    %c0_137 = arith.constant 0 : index
    %c0_138 = arith.constant 0 : index
    %163 = vector.load %arg2[%c0_136, %162, %c0_137, %c0_138] : memref<1x14x14x10xf32, #tpu.memory_space<vmem>>, vector<1x1x10x10xf32>
    %164 = vector.shape_cast %163 : vector<1x1x10x10xf32> to vector<10x10xf32>
    %c20 = arith.constant 20 : index
    %c0_139 = arith.constant 0 : index
    %c0_140 = arith.constant 0 : index
    %165 = vector.load %arg3[%c20, %c0_139, %c0_140] : memref<25x10x32xf32, #tpu.memory_space<vmem>>, vector<1x10x32xf32>
    %166 = vector.shape_cast %165 : vector<1x10x32xf32> to vector<10x32xf32>
    %cst_141 = arith.constant dense<0.000000e+00> : vector<10x32xf32>
    %167 = tpu.matmul %164, %166, %cst_141 {dimension_numbers = #tpu.dot_dimension_numbers<[1], [0], [0], [1], [0, 0, 1, 1], [], []>} : vector<10x10xf32>, vector<10x32xf32>, vector<10x32xf32> -> vector<10x32xf32>
    %168 = arith.addf %160, %167 : vector<10x32xf32>
    %c4_i32_142 = arith.constant 4 : i32
    %169 = arith.addi %arg1, %c4_i32_142 : i32
    %c0_143 = arith.constant 0 : index
    %170 = arith.index_cast %169 : i32 to index
    %c1_144 = arith.constant 1 : index
    %c0_145 = arith.constant 0 : index
    %171 = vector.load %arg2[%c0_143, %170, %c1_144, %c0_145] : memref<1x14x14x10xf32, #tpu.memory_space<vmem>>, vector<1x1x10x10xf32>
    %172 = vector.shape_cast %171 : vector<1x1x10x10xf32> to vector<10x10xf32>
    %c21 = arith.constant 21 : index
    %c0_146 = arith.constant 0 : index
    %c0_147 = arith.constant 0 : index
    %173 = vector.load %arg3[%c21, %c0_146, %c0_147] : memref<25x10x32xf32, #tpu.memory_space<vmem>>, vector<1x10x32xf32>
    %174 = vector.shape_cast %173 : vector<1x10x32xf32> to vector<10x32xf32>
    %cst_148 = arith.constant dense<0.000000e+00> : vector<10x32xf32>
    %175 = tpu.matmul %172, %174, %cst_148 {dimension_numbers = #tpu.dot_dimension_numbers<[1], [0], [0], [1], [0, 0, 1, 1], [], []>} : vector<10x10xf32>, vector<10x32xf32>, vector<10x32xf32> -> vector<10x32xf32>
    %176 = arith.addf %168, %175 : vector<10x32xf32>
    %c4_i32_149 = arith.constant 4 : i32
    %177 = arith.addi %arg1, %c4_i32_149 : i32
    %c0_150 = arith.constant 0 : index
    %178 = arith.index_cast %177 : i32 to index
    %c2_151 = arith.constant 2 : index
    %c0_152 = arith.constant 0 : index
    %179 = vector.load %arg2[%c0_150, %178, %c2_151, %c0_152] : memref<1x14x14x10xf32, #tpu.memory_space<vmem>>, vector<1x1x10x10xf32>
    %180 = vector.shape_cast %179 : vector<1x1x10x10xf32> to vector<10x10xf32>
    %c22 = arith.constant 22 : index
    %c0_153 = arith.constant 0 : index
    %c0_154 = arith.constant 0 : index
    %181 = vector.load %arg3[%c22, %c0_153, %c0_154] : memref<25x10x32xf32, #tpu.memory_space<vmem>>, vector<1x10x32xf32>
    %182 = vector.shape_cast %181 : vector<1x10x32xf32> to vector<10x32xf32>
    %cst_155 = arith.constant dense<0.000000e+00> : vector<10x32xf32>
    %183 = tpu.matmul %180, %182, %cst_155 {dimension_numbers = #tpu.dot_dimension_numbers<[1], [0], [0], [1], [0, 0, 1, 1], [], []>} : vector<10x10xf32>, vector<10x32xf32>, vector<10x32xf32> -> vector<10x32xf32>
    %184 = arith.addf %176, %183 : vector<10x32xf32>
    %c4_i32_156 = arith.constant 4 : i32
    %185 = arith.addi %arg1, %c4_i32_156 : i32
    %c0_157 = arith.constant 0 : index
    %186 = arith.index_cast %185 : i32 to index
    %c3_158 = arith.constant 3 : index
    %c0_159 = arith.constant 0 : index
    %187 = vector.load %arg2[%c0_157, %186, %c3_158, %c0_159] : memref<1x14x14x10xf32, #tpu.memory_space<vmem>>, vector<1x1x10x10xf32>
    %188 = vector.shape_cast %187 : vector<1x1x10x10xf32> to vector<10x10xf32>
    %c23 = arith.constant 23 : index
    %c0_160 = arith.constant 0 : index
    %c0_161 = arith.constant 0 : index
    %189 = vector.load %arg3[%c23, %c0_160, %c0_161] : memref<25x10x32xf32, #tpu.memory_space<vmem>>, vector<1x10x32xf32>
    %190 = vector.shape_cast %189 : vector<1x10x32xf32> to vector<10x32xf32>
    %cst_162 = arith.constant dense<0.000000e+00> : vector<10x32xf32>
    %191 = tpu.matmul %188, %190, %cst_162 {dimension_numbers = #tpu.dot_dimension_numbers<[1], [0], [0], [1], [0, 0, 1, 1], [], []>} : vector<10x10xf32>, vector<10x32xf32>, vector<10x32xf32> -> vector<10x32xf32>
    %192 = arith.addf %184, %191 : vector<10x32xf32>
    %c4_i32_163 = arith.constant 4 : i32
    %193 = arith.addi %arg1, %c4_i32_163 : i32
    %c0_164 = arith.constant 0 : index
    %194 = arith.index_cast %193 : i32 to index
    %c4_165 = arith.constant 4 : index
    %c0_166 = arith.constant 0 : index
    %195 = vector.load %arg2[%c0_164, %194, %c4_165, %c0_166] : memref<1x14x14x10xf32, #tpu.memory_space<vmem>>, vector<1x1x10x10xf32>
    %196 = vector.shape_cast %195 : vector<1x1x10x10xf32> to vector<10x10xf32>
    %c24 = arith.constant 24 : index
    %c0_167 = arith.constant 0 : index
    %c0_168 = arith.constant 0 : index
    %197 = vector.load %arg3[%c24, %c0_167, %c0_168] : memref<25x10x32xf32, #tpu.memory_space<vmem>>, vector<1x10x32xf32>
    %198 = vector.shape_cast %197 : vector<1x10x32xf32> to vector<10x32xf32>
    %cst_169 = arith.constant dense<0.000000e+00> : vector<10x32xf32>
    %199 = tpu.matmul %196, %198, %cst_169 {dimension_numbers = #tpu.dot_dimension_numbers<[1], [0], [0], [1], [0, 0, 1, 1], [], []>} : vector<10x10xf32>, vector<10x32xf32>, vector<10x32xf32> -> vector<10x32xf32>
    %200 = arith.addf %192, %199 : vector<10x32xf32>
    %c0_170 = arith.constant 0 : index
    %c0_171 = arith.constant 0 : index
    %201 = vector.load %arg4[%c0_170, %c0_171] : memref<1x32xf32, #tpu.memory_space<vmem>>, vector<1x32xf32>
    %202 = vector.broadcast %201 : vector<1x32xf32> to vector<10x32xf32>
    %203 = arith.addf %200, %202 : vector<10x32xf32>
    %cst_172 = arith.constant 0.000000e+00 : f32
    %204 = vector.broadcast %cst_172 : f32 to vector<10x32xf32>
    %205 = arith.maximumf %203, %204 : vector<10x32xf32>
    %c0_173 = arith.constant 0 : index
    %c0_174 = arith.constant 0 : index
    %c0_175 = arith.constant 0 : index
    %c0_176 = arith.constant 0 : index
    %206 = vector.load %arg5[%c0_173, %c0_174, %c0_175, %c0_176] : memref<1x1x10x32xf32, #tpu.memory_space<vmem>>, vector<1x1x10x32xf32>
    %207 = vector.shape_cast %206 : vector<1x1x10x32xf32> to vector<10x32xf32>
    %208 = vector.shape_cast %205 : vector<10x32xf32> to vector<1x1x10x32xf32>
    tpu.vector_store %arg5[%c0_173, %c0_174, %c0_175, %c0_176], %208 {strides = array<i32>} : memref<1x1x10x32xf32, #tpu.memory_space<vmem>>, vector<1x1x10x32xf32>,
    return
  }
  func.func @transform_0(%arg0: i32, %arg1: i32) -> (i32, i32, i32, i32) {
    %c0_i32 = arith.constant 0 : i32
    %c0_i32_0 = arith.constant 0 : i32
    %c0_i32_1 = arith.constant 0 : i32
    %c0_i32_2 = arith.constant 0 : i32
    return %arg0, %c0_i32, %c0_i32_0, %c0_i32_1 : i32, i32, i32, i32
  }
  func.func @transform_1(%arg0: i32, %arg1: i32) -> (i32, i32, i32) {
    %c0_i32 = arith.constant 0 : i32
    %c0_i32_0 = arith.constant 0 : i32
    %c0_i32_1 = arith.constant 0 : i32
    %c0_i32_2 = arith.constant 0 : i32
    return %c0_i32, %c0_i32_0, %c0_i32_1 : i32, i32, i32
  }
  func.func @transform_2(%arg0: i32, %arg1: i32) -> (i32, i32) {
    %c0_i32 = arith.constant 0 : i32
    %c0_i32_0 = arith.constant 0 : i32
    %c0_i32_1 = arith.constant 0 : i32
    return %c0_i32, %c0_i32_0 : i32, i32
  }
  func.func @transform_3(%arg0: i32, %arg1: i32) -> (i32, i32, i32, i32) {
    %c0_i32 = arith.constant 0 : i32
    %c0_i32_0 = arith.constant 0 : i32
    %c0_i32_1 = arith.constant 0 : i32
    return %arg0, %arg1, %c0_i32, %c0_i32_0 : i32, i32, i32, i32
  }
}

module attributes {stable_mosaic.version = 11 : i64} {
  func.func @_conv1_pool_kernel(%arg0: i32, %arg1: memref<1x15x15x1xf32, #tpu.memory_space<vmem>>, %arg2: memref<1x15x15x1xf32, #tpu.memory_space<vmem>>, %arg3: memref<1x15x15x1xf32, #tpu.memory_space<vmem>>, %arg4: memref<1x15x15x1xf32, #tpu.memory_space<vmem>>, %arg5: memref<9x10xf32, #tpu.memory_space<vmem>>, %arg6: memref<1x10xf32, #tpu.memory_space<vmem>>, %arg7: memref<1x14x14x10xf32, #tpu.memory_space<vmem>>) attributes {dimension_semantics = [#tpu.dimension_semantics<parallel>], iteration_bounds = array<i64: 2>, scalar_prefetch = 0 : i64, scratch_operands = 0 : i64, tpu.core_type = #tpu.core_type<tc>, window_params = [{transform_indices = @transform_0, window_bounds = array<i64: 1, 15, 15, 1>}, {transform_indices = @transform_1, window_bounds = array<i64: 1, 15, 15, 1>}, {transform_indices = @transform_2, window_bounds = array<i64: 1, 15, 15, 1>}, {transform_indices = @transform_3, window_bounds = array<i64: 1, 15, 15, 1>}, {pipeline_mode = #tpu.pipeline_mode<synchronous>, transform_indices = @transform_4, window_bounds = array<i64: 9, 10>}, {pipeline_mode = #tpu.pipeline_mode<synchronous>, transform_indices = @transform_5, window_bounds = array<i64: 1, 10>}, {transform_indices = @transform_6, window_bounds = array<i64: 1, 14, 14, 10>}]} {
    %c0 = arith.constant 0 : index
    %c0_0 = arith.constant 0 : index
    %0 = vector.load %arg5[%c0, %c0_0] : memref<9x10xf32, #tpu.memory_space<vmem>>, vector<9x10xf32>
    %cst = arith.constant 0.000000e+00 : f32
    %1 = vector.broadcast %cst : f32 to vector<14x14x10xf32>
    %c0_1 = arith.constant 0 : index
    %c0_2 = arith.constant 0 : index
    %c0_3 = arith.constant 0 : index
    %c0_4 = arith.constant 0 : index
    %2 = vector.load %arg1[%c0_1, %c0_2, %c0_3, %c0_4] : memref<1x15x15x1xf32, #tpu.memory_space<vmem>>, vector<1x14x14x1xf32>
    %3 = vector.shape_cast %2 : vector<1x14x14x1xf32> to vector<14x14x1xf32>
    %4 = vector.extract_strided_slice %0 {offsets = [0, 0], sizes = [1, 10], strides = [1, 1]} : vector<9x10xf32> to vector<1x10xf32>
    %5 = vector.shape_cast %4 : vector<1x10xf32> to vector<10xf32>
    %6 = vector.shape_cast %5 : vector<10xf32> to vector<1x1x10xf32>
    %7 = vector.broadcast %3 : vector<14x14x1xf32> to vector<14x14x10xf32>
    %8 = vector.broadcast %6 : vector<1x1x10xf32> to vector<14x14x10xf32>
    %9 = arith.mulf %7, %8 : vector<14x14x10xf32>
    %10 = arith.addf %1, %9 : vector<14x14x10xf32>
    %c0_5 = arith.constant 0 : index
    %c0_6 = arith.constant 0 : index
    %c0_7 = arith.constant 0 : index
    %c0_8 = arith.constant 0 : index
    %11 = vector.load %arg2[%c0_5, %c0_6, %c0_7, %c0_8] : memref<1x15x15x1xf32, #tpu.memory_space<vmem>>, vector<1x14x14x1xf32>
    %12 = vector.shape_cast %11 : vector<1x14x14x1xf32> to vector<14x14x1xf32>
    %13 = vector.extract_strided_slice %0 {offsets = [1, 0], sizes = [1, 10], strides = [1, 1]} : vector<9x10xf32> to vector<1x10xf32>
    %14 = vector.shape_cast %13 : vector<1x10xf32> to vector<10xf32>
    %15 = vector.shape_cast %14 : vector<10xf32> to vector<1x1x10xf32>
    %16 = vector.broadcast %12 : vector<14x14x1xf32> to vector<14x14x10xf32>
    %17 = vector.broadcast %15 : vector<1x1x10xf32> to vector<14x14x10xf32>
    %18 = arith.mulf %16, %17 : vector<14x14x10xf32>
    %19 = arith.addf %10, %18 : vector<14x14x10xf32>
    %c0_9 = arith.constant 0 : index
    %c0_10 = arith.constant 0 : index
    %c1 = arith.constant 1 : index
    %c0_11 = arith.constant 0 : index
    %20 = vector.load %arg1[%c0_9, %c0_10, %c1, %c0_11] : memref<1x15x15x1xf32, #tpu.memory_space<vmem>>, vector<1x14x14x1xf32>
    %21 = vector.shape_cast %20 : vector<1x14x14x1xf32> to vector<14x14x1xf32>
    %22 = vector.extract_strided_slice %0 {offsets = [2, 0], sizes = [1, 10], strides = [1, 1]} : vector<9x10xf32> to vector<1x10xf32>
    %23 = vector.shape_cast %22 : vector<1x10xf32> to vector<10xf32>
    %24 = vector.shape_cast %23 : vector<10xf32> to vector<1x1x10xf32>
    %25 = vector.broadcast %21 : vector<14x14x1xf32> to vector<14x14x10xf32>
    %26 = vector.broadcast %24 : vector<1x1x10xf32> to vector<14x14x10xf32>
    %27 = arith.mulf %25, %26 : vector<14x14x10xf32>
    %28 = arith.addf %19, %27 : vector<14x14x10xf32>
    %c0_12 = arith.constant 0 : index
    %c0_13 = arith.constant 0 : index
    %c0_14 = arith.constant 0 : index
    %c0_15 = arith.constant 0 : index
    %29 = vector.load %arg3[%c0_12, %c0_13, %c0_14, %c0_15] : memref<1x15x15x1xf32, #tpu.memory_space<vmem>>, vector<1x14x14x1xf32>
    %30 = vector.shape_cast %29 : vector<1x14x14x1xf32> to vector<14x14x1xf32>
    %31 = vector.extract_strided_slice %0 {offsets = [3, 0], sizes = [1, 10], strides = [1, 1]} : vector<9x10xf32> to vector<1x10xf32>
    %32 = vector.shape_cast %31 : vector<1x10xf32> to vector<10xf32>
    %33 = vector.shape_cast %32 : vector<10xf32> to vector<1x1x10xf32>
    %34 = vector.broadcast %30 : vector<14x14x1xf32> to vector<14x14x10xf32>
    %35 = vector.broadcast %33 : vector<1x1x10xf32> to vector<14x14x10xf32>
    %36 = arith.mulf %34, %35 : vector<14x14x10xf32>
    %37 = arith.addf %28, %36 : vector<14x14x10xf32>
    %c0_16 = arith.constant 0 : index
    %c0_17 = arith.constant 0 : index
    %c0_18 = arith.constant 0 : index
    %c0_19 = arith.constant 0 : index
    %38 = vector.load %arg4[%c0_16, %c0_17, %c0_18, %c0_19] : memref<1x15x15x1xf32, #tpu.memory_space<vmem>>, vector<1x14x14x1xf32>
    %39 = vector.shape_cast %38 : vector<1x14x14x1xf32> to vector<14x14x1xf32>
    %40 = vector.extract_strided_slice %0 {offsets = [4, 0], sizes = [1, 10], strides = [1, 1]} : vector<9x10xf32> to vector<1x10xf32>
    %41 = vector.shape_cast %40 : vector<1x10xf32> to vector<10xf32>
    %42 = vector.shape_cast %41 : vector<10xf32> to vector<1x1x10xf32>
    %43 = vector.broadcast %39 : vector<14x14x1xf32> to vector<14x14x10xf32>
    %44 = vector.broadcast %42 : vector<1x1x10xf32> to vector<14x14x10xf32>
    %45 = arith.mulf %43, %44 : vector<14x14x10xf32>
    %46 = arith.addf %37, %45 : vector<14x14x10xf32>
    %c0_20 = arith.constant 0 : index
    %c0_21 = arith.constant 0 : index
    %c1_22 = arith.constant 1 : index
    %c0_23 = arith.constant 0 : index
    %47 = vector.load %arg3[%c0_20, %c0_21, %c1_22, %c0_23] : memref<1x15x15x1xf32, #tpu.memory_space<vmem>>, vector<1x14x14x1xf32>
    %48 = vector.shape_cast %47 : vector<1x14x14x1xf32> to vector<14x14x1xf32>
    %49 = vector.extract_strided_slice %0 {offsets = [5, 0], sizes = [1, 10], strides = [1, 1]} : vector<9x10xf32> to vector<1x10xf32>
    %50 = vector.shape_cast %49 : vector<1x10xf32> to vector<10xf32>
    %51 = vector.shape_cast %50 : vector<10xf32> to vector<1x1x10xf32>
    %52 = vector.broadcast %48 : vector<14x14x1xf32> to vector<14x14x10xf32>
    %53 = vector.broadcast %51 : vector<1x1x10xf32> to vector<14x14x10xf32>
    %54 = arith.mulf %52, %53 : vector<14x14x10xf32>
    %55 = arith.addf %46, %54 : vector<14x14x10xf32>
    %c0_24 = arith.constant 0 : index
    %c1_25 = arith.constant 1 : index
    %c0_26 = arith.constant 0 : index
    %c0_27 = arith.constant 0 : index
    %56 = vector.load %arg1[%c0_24, %c1_25, %c0_26, %c0_27] : memref<1x15x15x1xf32, #tpu.memory_space<vmem>>, vector<1x14x14x1xf32>
    %57 = vector.shape_cast %56 : vector<1x14x14x1xf32> to vector<14x14x1xf32>
    %58 = vector.extract_strided_slice %0 {offsets = [6, 0], sizes = [1, 10], strides = [1, 1]} : vector<9x10xf32> to vector<1x10xf32>
    %59 = vector.shape_cast %58 : vector<1x10xf32> to vector<10xf32>
    %60 = vector.shape_cast %59 : vector<10xf32> to vector<1x1x10xf32>
    %61 = vector.broadcast %57 : vector<14x14x1xf32> to vector<14x14x10xf32>
    %62 = vector.broadcast %60 : vector<1x1x10xf32> to vector<14x14x10xf32>
    %63 = arith.mulf %61, %62 : vector<14x14x10xf32>
    %64 = arith.addf %55, %63 : vector<14x14x10xf32>
    %c0_28 = arith.constant 0 : index
    %c1_29 = arith.constant 1 : index
    %c0_30 = arith.constant 0 : index
    %c0_31 = arith.constant 0 : index
    %65 = vector.load %arg2[%c0_28, %c1_29, %c0_30, %c0_31] : memref<1x15x15x1xf32, #tpu.memory_space<vmem>>, vector<1x14x14x1xf32>
    %66 = vector.shape_cast %65 : vector<1x14x14x1xf32> to vector<14x14x1xf32>
    %67 = vector.extract_strided_slice %0 {offsets = [7, 0], sizes = [1, 10], strides = [1, 1]} : vector<9x10xf32> to vector<1x10xf32>
    %68 = vector.shape_cast %67 : vector<1x10xf32> to vector<10xf32>
    %69 = vector.shape_cast %68 : vector<10xf32> to vector<1x1x10xf32>
    %70 = vector.broadcast %66 : vector<14x14x1xf32> to vector<14x14x10xf32>
    %71 = vector.broadcast %69 : vector<1x1x10xf32> to vector<14x14x10xf32>
    %72 = arith.mulf %70, %71 : vector<14x14x10xf32>
    %73 = arith.addf %64, %72 : vector<14x14x10xf32>
    %c0_32 = arith.constant 0 : index
    %c1_33 = arith.constant 1 : index
    %c1_34 = arith.constant 1 : index
    %c0_35 = arith.constant 0 : index
    %74 = vector.load %arg1[%c0_32, %c1_33, %c1_34, %c0_35] : memref<1x15x15x1xf32, #tpu.memory_space<vmem>>, vector<1x14x14x1xf32>
    %75 = vector.shape_cast %74 : vector<1x14x14x1xf32> to vector<14x14x1xf32>
    %76 = vector.extract_strided_slice %0 {offsets = [8, 0], sizes = [1, 10], strides = [1, 1]} : vector<9x10xf32> to vector<1x10xf32>
    %77 = vector.shape_cast %76 : vector<1x10xf32> to vector<10xf32>
    %78 = vector.shape_cast %77 : vector<10xf32> to vector<1x1x10xf32>
    %79 = vector.broadcast %75 : vector<14x14x1xf32> to vector<14x14x10xf32>
    %80 = vector.broadcast %78 : vector<1x1x10xf32> to vector<14x14x10xf32>
    %81 = arith.mulf %79, %80 : vector<14x14x10xf32>
    %82 = arith.addf %73, %81 : vector<14x14x10xf32>
    %cst_36 = arith.constant 0.000000e+00 : f32
    %83 = vector.broadcast %cst_36 : f32 to vector<14x14x10xf32>
    %c0_37 = arith.constant 0 : index
    %c0_38 = arith.constant 0 : index
    %c0_39 = arith.constant 0 : index
    %c0_40 = arith.constant 0 : index
    %84 = vector.load %arg2[%c0_37, %c0_38, %c0_39, %c0_40] : memref<1x15x15x1xf32, #tpu.memory_space<vmem>>, vector<1x14x14x1xf32>
    %85 = vector.shape_cast %84 : vector<1x14x14x1xf32> to vector<14x14x1xf32>
    %86 = vector.extract_strided_slice %0 {offsets = [0, 0], sizes = [1, 10], strides = [1, 1]} : vector<9x10xf32> to vector<1x10xf32>
    %87 = vector.shape_cast %86 : vector<1x10xf32> to vector<10xf32>
    %88 = vector.shape_cast %87 : vector<10xf32> to vector<1x1x10xf32>
    %89 = vector.broadcast %85 : vector<14x14x1xf32> to vector<14x14x10xf32>
    %90 = vector.broadcast %88 : vector<1x1x10xf32> to vector<14x14x10xf32>
    %91 = arith.mulf %89, %90 : vector<14x14x10xf32>
    %92 = arith.addf %83, %91 : vector<14x14x10xf32>
    %c0_41 = arith.constant 0 : index
    %c0_42 = arith.constant 0 : index
    %c1_43 = arith.constant 1 : index
    %c0_44 = arith.constant 0 : index
    %93 = vector.load %arg1[%c0_41, %c0_42, %c1_43, %c0_44] : memref<1x15x15x1xf32, #tpu.memory_space<vmem>>, vector<1x14x14x1xf32>
    %94 = vector.shape_cast %93 : vector<1x14x14x1xf32> to vector<14x14x1xf32>
    %95 = vector.extract_strided_slice %0 {offsets = [1, 0], sizes = [1, 10], strides = [1, 1]} : vector<9x10xf32> to vector<1x10xf32>
    %96 = vector.shape_cast %95 : vector<1x10xf32> to vector<10xf32>
    %97 = vector.shape_cast %96 : vector<10xf32> to vector<1x1x10xf32>
    %98 = vector.broadcast %94 : vector<14x14x1xf32> to vector<14x14x10xf32>
    %99 = vector.broadcast %97 : vector<1x1x10xf32> to vector<14x14x10xf32>
    %100 = arith.mulf %98, %99 : vector<14x14x10xf32>
    %101 = arith.addf %92, %100 : vector<14x14x10xf32>
    %c0_45 = arith.constant 0 : index
    %c0_46 = arith.constant 0 : index
    %c1_47 = arith.constant 1 : index
    %c0_48 = arith.constant 0 : index
    %102 = vector.load %arg2[%c0_45, %c0_46, %c1_47, %c0_48] : memref<1x15x15x1xf32, #tpu.memory_space<vmem>>, vector<1x14x14x1xf32>
    %103 = vector.shape_cast %102 : vector<1x14x14x1xf32> to vector<14x14x1xf32>
    %104 = vector.extract_strided_slice %0 {offsets = [2, 0], sizes = [1, 10], strides = [1, 1]} : vector<9x10xf32> to vector<1x10xf32>
    %105 = vector.shape_cast %104 : vector<1x10xf32> to vector<10xf32>
    %106 = vector.shape_cast %105 : vector<10xf32> to vector<1x1x10xf32>
    %107 = vector.broadcast %103 : vector<14x14x1xf32> to vector<14x14x10xf32>
    %108 = vector.broadcast %106 : vector<1x1x10xf32> to vector<14x14x10xf32>
    %109 = arith.mulf %107, %108 : vector<14x14x10xf32>
    %110 = arith.addf %101, %109 : vector<14x14x10xf32>
    %c0_49 = arith.constant 0 : index
    %c0_50 = arith.constant 0 : index
    %c0_51 = arith.constant 0 : index
    %c0_52 = arith.constant 0 : index
    %111 = vector.load %arg4[%c0_49, %c0_50, %c0_51, %c0_52] : memref<1x15x15x1xf32, #tpu.memory_space<vmem>>, vector<1x14x14x1xf32>
    %112 = vector.shape_cast %111 : vector<1x14x14x1xf32> to vector<14x14x1xf32>
    %113 = vector.extract_strided_slice %0 {offsets = [3, 0], sizes = [1, 10], strides = [1, 1]} : vector<9x10xf32> to vector<1x10xf32>
    %114 = vector.shape_cast %113 : vector<1x10xf32> to vector<10xf32>
    %115 = vector.shape_cast %114 : vector<10xf32> to vector<1x1x10xf32>
    %116 = vector.broadcast %112 : vector<14x14x1xf32> to vector<14x14x10xf32>
    %117 = vector.broadcast %115 : vector<1x1x10xf32> to vector<14x14x10xf32>
    %118 = arith.mulf %116, %117 : vector<14x14x10xf32>
    %119 = arith.addf %110, %118 : vector<14x14x10xf32>
    %c0_53 = arith.constant 0 : index
    %c0_54 = arith.constant 0 : index
    %c1_55 = arith.constant 1 : index
    %c0_56 = arith.constant 0 : index
    %120 = vector.load %arg3[%c0_53, %c0_54, %c1_55, %c0_56] : memref<1x15x15x1xf32, #tpu.memory_space<vmem>>, vector<1x14x14x1xf32>
    %121 = vector.shape_cast %120 : vector<1x14x14x1xf32> to vector<14x14x1xf32>
    %122 = vector.extract_strided_slice %0 {offsets = [4, 0], sizes = [1, 10], strides = [1, 1]} : vector<9x10xf32> to vector<1x10xf32>
    %123 = vector.shape_cast %122 : vector<1x10xf32> to vector<10xf32>
    %124 = vector.shape_cast %123 : vector<10xf32> to vector<1x1x10xf32>
    %125 = vector.broadcast %121 : vector<14x14x1xf32> to vector<14x14x10xf32>
    %126 = vector.broadcast %124 : vector<1x1x10xf32> to vector<14x14x10xf32>
    %127 = arith.mulf %125, %126 : vector<14x14x10xf32>
    %128 = arith.addf %119, %127 : vector<14x14x10xf32>
    %c0_57 = arith.constant 0 : index
    %c0_58 = arith.constant 0 : index
    %c1_59 = arith.constant 1 : index
    %c0_60 = arith.constant 0 : index
    %129 = vector.load %arg4[%c0_57, %c0_58, %c1_59, %c0_60] : memref<1x15x15x1xf32, #tpu.memory_space<vmem>>, vector<1x14x14x1xf32>
    %130 = vector.shape_cast %129 : vector<1x14x14x1xf32> to vector<14x14x1xf32>
    %131 = vector.extract_strided_slice %0 {offsets = [5, 0], sizes = [1, 10], strides = [1, 1]} : vector<9x10xf32> to vector<1x10xf32>
    %132 = vector.shape_cast %131 : vector<1x10xf32> to vector<10xf32>
    %133 = vector.shape_cast %132 : vector<10xf32> to vector<1x1x10xf32>
    %134 = vector.broadcast %130 : vector<14x14x1xf32> to vector<14x14x10xf32>
    %135 = vector.broadcast %133 : vector<1x1x10xf32> to vector<14x14x10xf32>
    %136 = arith.mulf %134, %135 : vector<14x14x10xf32>
    %137 = arith.addf %128, %136 : vector<14x14x10xf32>
    %c0_61 = arith.constant 0 : index
    %c1_62 = arith.constant 1 : index
    %c0_63 = arith.constant 0 : index
    %c0_64 = arith.constant 0 : index
    %138 = vector.load %arg2[%c0_61, %c1_62, %c0_63, %c0_64] : memref<1x15x15x1xf32, #tpu.memory_space<vmem>>, vector<1x14x14x1xf32>
    %139 = vector.shape_cast %138 : vector<1x14x14x1xf32> to vector<14x14x1xf32>
    %140 = vector.extract_strided_slice %0 {offsets = [6, 0], sizes = [1, 10], strides = [1, 1]} : vector<9x10xf32> to vector<1x10xf32>
    %141 = vector.shape_cast %140 : vector<1x10xf32> to vector<10xf32>
    %142 = vector.shape_cast %141 : vector<10xf32> to vector<1x1x10xf32>
    %143 = vector.broadcast %139 : vector<14x14x1xf32> to vector<14x14x10xf32>
    %144 = vector.broadcast %142 : vector<1x1x10xf32> to vector<14x14x10xf32>
    %145 = arith.mulf %143, %144 : vector<14x14x10xf32>
    %146 = arith.addf %137, %145 : vector<14x14x10xf32>
    %c0_65 = arith.constant 0 : index
    %c1_66 = arith.constant 1 : index
    %c1_67 = arith.constant 1 : index
    %c0_68 = arith.constant 0 : index
    %147 = vector.load %arg1[%c0_65, %c1_66, %c1_67, %c0_68] : memref<1x15x15x1xf32, #tpu.memory_space<vmem>>, vector<1x14x14x1xf32>
    %148 = vector.shape_cast %147 : vector<1x14x14x1xf32> to vector<14x14x1xf32>
    %149 = vector.extract_strided_slice %0 {offsets = [7, 0], sizes = [1, 10], strides = [1, 1]} : vector<9x10xf32> to vector<1x10xf32>
    %150 = vector.shape_cast %149 : vector<1x10xf32> to vector<10xf32>
    %151 = vector.shape_cast %150 : vector<10xf32> to vector<1x1x10xf32>
    %152 = vector.broadcast %148 : vector<14x14x1xf32> to vector<14x14x10xf32>
    %153 = vector.broadcast %151 : vector<1x1x10xf32> to vector<14x14x10xf32>
    %154 = arith.mulf %152, %153 : vector<14x14x10xf32>
    %155 = arith.addf %146, %154 : vector<14x14x10xf32>
    %c0_69 = arith.constant 0 : index
    %c1_70 = arith.constant 1 : index
    %c1_71 = arith.constant 1 : index
    %c0_72 = arith.constant 0 : index
    %156 = vector.load %arg2[%c0_69, %c1_70, %c1_71, %c0_72] : memref<1x15x15x1xf32, #tpu.memory_space<vmem>>, vector<1x14x14x1xf32>
    %157 = vector.shape_cast %156 : vector<1x14x14x1xf32> to vector<14x14x1xf32>
    %158 = vector.extract_strided_slice %0 {offsets = [8, 0], sizes = [1, 10], strides = [1, 1]} : vector<9x10xf32> to vector<1x10xf32>
    %159 = vector.shape_cast %158 : vector<1x10xf32> to vector<10xf32>
    %160 = vector.shape_cast %159 : vector<10xf32> to vector<1x1x10xf32>
    %161 = vector.broadcast %157 : vector<14x14x1xf32> to vector<14x14x10xf32>
    %162 = vector.broadcast %160 : vector<1x1x10xf32> to vector<14x14x10xf32>
    %163 = arith.mulf %161, %162 : vector<14x14x10xf32>
    %164 = arith.addf %155, %163 : vector<14x14x10xf32>
    %cst_73 = arith.constant 0.000000e+00 : f32
    %165 = vector.broadcast %cst_73 : f32 to vector<14x14x10xf32>
    %c0_74 = arith.constant 0 : index
    %c0_75 = arith.constant 0 : index
    %c0_76 = arith.constant 0 : index
    %c0_77 = arith.constant 0 : index
    %166 = vector.load %arg3[%c0_74, %c0_75, %c0_76, %c0_77] : memref<1x15x15x1xf32, #tpu.memory_space<vmem>>, vector<1x14x14x1xf32>
    %167 = vector.shape_cast %166 : vector<1x14x14x1xf32> to vector<14x14x1xf32>
    %168 = vector.extract_strided_slice %0 {offsets = [0, 0], sizes = [1, 10], strides = [1, 1]} : vector<9x10xf32> to vector<1x10xf32>
    %169 = vector.shape_cast %168 : vector<1x10xf32> to vector<10xf32>
    %170 = vector.shape_cast %169 : vector<10xf32> to vector<1x1x10xf32>
    %171 = vector.broadcast %167 : vector<14x14x1xf32> to vector<14x14x10xf32>
    %172 = vector.broadcast %170 : vector<1x1x10xf32> to vector<14x14x10xf32>
    %173 = arith.mulf %171, %172 : vector<14x14x10xf32>
    %174 = arith.addf %165, %173 : vector<14x14x10xf32>
    %c0_78 = arith.constant 0 : index
    %c0_79 = arith.constant 0 : index
    %c0_80 = arith.constant 0 : index
    %c0_81 = arith.constant 0 : index
    %175 = vector.load %arg4[%c0_78, %c0_79, %c0_80, %c0_81] : memref<1x15x15x1xf32, #tpu.memory_space<vmem>>, vector<1x14x14x1xf32>
    %176 = vector.shape_cast %175 : vector<1x14x14x1xf32> to vector<14x14x1xf32>
    %177 = vector.extract_strided_slice %0 {offsets = [1, 0], sizes = [1, 10], strides = [1, 1]} : vector<9x10xf32> to vector<1x10xf32>
    %178 = vector.shape_cast %177 : vector<1x10xf32> to vector<10xf32>
    %179 = vector.shape_cast %178 : vector<10xf32> to vector<1x1x10xf32>
    %180 = vector.broadcast %176 : vector<14x14x1xf32> to vector<14x14x10xf32>
    %181 = vector.broadcast %179 : vector<1x1x10xf32> to vector<14x14x10xf32>
    %182 = arith.mulf %180, %181 : vector<14x14x10xf32>
    %183 = arith.addf %174, %182 : vector<14x14x10xf32>
    %c0_82 = arith.constant 0 : index
    %c0_83 = arith.constant 0 : index
    %c1_84 = arith.constant 1 : index
    %c0_85 = arith.constant 0 : index
    %184 = vector.load %arg3[%c0_82, %c0_83, %c1_84, %c0_85] : memref<1x15x15x1xf32, #tpu.memory_space<vmem>>, vector<1x14x14x1xf32>
    %185 = vector.shape_cast %184 : vector<1x14x14x1xf32> to vector<14x14x1xf32>
    %186 = vector.extract_strided_slice %0 {offsets = [2, 0], sizes = [1, 10], strides = [1, 1]} : vector<9x10xf32> to vector<1x10xf32>
    %187 = vector.shape_cast %186 : vector<1x10xf32> to vector<10xf32>
    %188 = vector.shape_cast %187 : vector<10xf32> to vector<1x1x10xf32>
    %189 = vector.broadcast %185 : vector<14x14x1xf32> to vector<14x14x10xf32>
    %190 = vector.broadcast %188 : vector<1x1x10xf32> to vector<14x14x10xf32>
    %191 = arith.mulf %189, %190 : vector<14x14x10xf32>
    %192 = arith.addf %183, %191 : vector<14x14x10xf32>
    %c0_86 = arith.constant 0 : index
    %c1_87 = arith.constant 1 : index
    %c0_88 = arith.constant 0 : index
    %c0_89 = arith.constant 0 : index
    %193 = vector.load %arg1[%c0_86, %c1_87, %c0_88, %c0_89] : memref<1x15x15x1xf32, #tpu.memory_space<vmem>>, vector<1x14x14x1xf32>
    %194 = vector.shape_cast %193 : vector<1x14x14x1xf32> to vector<14x14x1xf32>
    %195 = vector.extract_strided_slice %0 {offsets = [3, 0], sizes = [1, 10], strides = [1, 1]} : vector<9x10xf32> to vector<1x10xf32>
    %196 = vector.shape_cast %195 : vector<1x10xf32> to vector<10xf32>
    %197 = vector.shape_cast %196 : vector<10xf32> to vector<1x1x10xf32>
    %198 = vector.broadcast %194 : vector<14x14x1xf32> to vector<14x14x10xf32>
    %199 = vector.broadcast %197 : vector<1x1x10xf32> to vector<14x14x10xf32>
    %200 = arith.mulf %198, %199 : vector<14x14x10xf32>
    %201 = arith.addf %192, %200 : vector<14x14x10xf32>
    %c0_90 = arith.constant 0 : index
    %c1_91 = arith.constant 1 : index
    %c0_92 = arith.constant 0 : index
    %c0_93 = arith.constant 0 : index
    %202 = vector.load %arg2[%c0_90, %c1_91, %c0_92, %c0_93] : memref<1x15x15x1xf32, #tpu.memory_space<vmem>>, vector<1x14x14x1xf32>
    %203 = vector.shape_cast %202 : vector<1x14x14x1xf32> to vector<14x14x1xf32>
    %204 = vector.extract_strided_slice %0 {offsets = [4, 0], sizes = [1, 10], strides = [1, 1]} : vector<9x10xf32> to vector<1x10xf32>
    %205 = vector.shape_cast %204 : vector<1x10xf32> to vector<10xf32>
    %206 = vector.shape_cast %205 : vector<10xf32> to vector<1x1x10xf32>
    %207 = vector.broadcast %203 : vector<14x14x1xf32> to vector<14x14x10xf32>
    %208 = vector.broadcast %206 : vector<1x1x10xf32> to vector<14x14x10xf32>
    %209 = arith.mulf %207, %208 : vector<14x14x10xf32>
    %210 = arith.addf %201, %209 : vector<14x14x10xf32>
    %c0_94 = arith.constant 0 : index
    %c1_95 = arith.constant 1 : index
    %c1_96 = arith.constant 1 : index
    %c0_97 = arith.constant 0 : index
    %211 = vector.load %arg1[%c0_94, %c1_95, %c1_96, %c0_97] : memref<1x15x15x1xf32, #tpu.memory_space<vmem>>, vector<1x14x14x1xf32>
    %212 = vector.shape_cast %211 : vector<1x14x14x1xf32> to vector<14x14x1xf32>
    %213 = vector.extract_strided_slice %0 {offsets = [5, 0], sizes = [1, 10], strides = [1, 1]} : vector<9x10xf32> to vector<1x10xf32>
    %214 = vector.shape_cast %213 : vector<1x10xf32> to vector<10xf32>
    %215 = vector.shape_cast %214 : vector<10xf32> to vector<1x1x10xf32>
    %216 = vector.broadcast %212 : vector<14x14x1xf32> to vector<14x14x10xf32>
    %217 = vector.broadcast %215 : vector<1x1x10xf32> to vector<14x14x10xf32>
    %218 = arith.mulf %216, %217 : vector<14x14x10xf32>
    %219 = arith.addf %210, %218 : vector<14x14x10xf32>
    %c0_98 = arith.constant 0 : index
    %c1_99 = arith.constant 1 : index
    %c0_100 = arith.constant 0 : index
    %c0_101 = arith.constant 0 : index
    %220 = vector.load %arg3[%c0_98, %c1_99, %c0_100, %c0_101] : memref<1x15x15x1xf32, #tpu.memory_space<vmem>>, vector<1x14x14x1xf32>
    %221 = vector.shape_cast %220 : vector<1x14x14x1xf32> to vector<14x14x1xf32>
    %222 = vector.extract_strided_slice %0 {offsets = [6, 0], sizes = [1, 10], strides = [1, 1]} : vector<9x10xf32> to vector<1x10xf32>
    %223 = vector.shape_cast %222 : vector<1x10xf32> to vector<10xf32>
    %224 = vector.shape_cast %223 : vector<10xf32> to vector<1x1x10xf32>
    %225 = vector.broadcast %221 : vector<14x14x1xf32> to vector<14x14x10xf32>
    %226 = vector.broadcast %224 : vector<1x1x10xf32> to vector<14x14x10xf32>
    %227 = arith.mulf %225, %226 : vector<14x14x10xf32>
    %228 = arith.addf %219, %227 : vector<14x14x10xf32>
    %c0_102 = arith.constant 0 : index
    %c1_103 = arith.constant 1 : index
    %c0_104 = arith.constant 0 : index
    %c0_105 = arith.constant 0 : index
    %229 = vector.load %arg4[%c0_102, %c1_103, %c0_104, %c0_105] : memref<1x15x15x1xf32, #tpu.memory_space<vmem>>, vector<1x14x14x1xf32>
    %230 = vector.shape_cast %229 : vector<1x14x14x1xf32> to vector<14x14x1xf32>
    %231 = vector.extract_strided_slice %0 {offsets = [7, 0], sizes = [1, 10], strides = [1, 1]} : vector<9x10xf32> to vector<1x10xf32>
    %232 = vector.shape_cast %231 : vector<1x10xf32> to vector<10xf32>
    %233 = vector.shape_cast %232 : vector<10xf32> to vector<1x1x10xf32>
    %234 = vector.broadcast %230 : vector<14x14x1xf32> to vector<14x14x10xf32>
    %235 = vector.broadcast %233 : vector<1x1x10xf32> to vector<14x14x10xf32>
    %236 = arith.mulf %234, %235 : vector<14x14x10xf32>
    %237 = arith.addf %228, %236 : vector<14x14x10xf32>
    %c0_106 = arith.constant 0 : index
    %c1_107 = arith.constant 1 : index
    %c1_108 = arith.constant 1 : index
    %c0_109 = arith.constant 0 : index
    %238 = vector.load %arg3[%c0_106, %c1_107, %c1_108, %c0_109] : memref<1x15x15x1xf32, #tpu.memory_space<vmem>>, vector<1x14x14x1xf32>
    %239 = vector.shape_cast %238 : vector<1x14x14x1xf32> to vector<14x14x1xf32>
    %240 = vector.extract_strided_slice %0 {offsets = [8, 0], sizes = [1, 10], strides = [1, 1]} : vector<9x10xf32> to vector<1x10xf32>
    %241 = vector.shape_cast %240 : vector<1x10xf32> to vector<10xf32>
    %242 = vector.shape_cast %241 : vector<10xf32> to vector<1x1x10xf32>
    %243 = vector.broadcast %239 : vector<14x14x1xf32> to vector<14x14x10xf32>
    %244 = vector.broadcast %242 : vector<1x1x10xf32> to vector<14x14x10xf32>
    %245 = arith.mulf %243, %244 : vector<14x14x10xf32>
    %246 = arith.addf %237, %245 : vector<14x14x10xf32>
    %cst_110 = arith.constant 0.000000e+00 : f32
    %247 = vector.broadcast %cst_110 : f32 to vector<14x14x10xf32>
    %c0_111 = arith.constant 0 : index
    %c0_112 = arith.constant 0 : index
    %c0_113 = arith.constant 0 : index
    %c0_114 = arith.constant 0 : index
    %248 = vector.load %arg4[%c0_111, %c0_112, %c0_113, %c0_114] : memref<1x15x15x1xf32, #tpu.memory_space<vmem>>, vector<1x14x14x1xf32>
    %249 = vector.shape_cast %248 : vector<1x14x14x1xf32> to vector<14x14x1xf32>
    %250 = vector.extract_strided_slice %0 {offsets = [0, 0], sizes = [1, 10], strides = [1, 1]} : vector<9x10xf32> to vector<1x10xf32>
    %251 = vector.shape_cast %250 : vector<1x10xf32> to vector<10xf32>
    %252 = vector.shape_cast %251 : vector<10xf32> to vector<1x1x10xf32>
    %253 = vector.broadcast %249 : vector<14x14x1xf32> to vector<14x14x10xf32>
    %254 = vector.broadcast %252 : vector<1x1x10xf32> to vector<14x14x10xf32>
    %255 = arith.mulf %253, %254 : vector<14x14x10xf32>
    %256 = arith.addf %247, %255 : vector<14x14x10xf32>
    %c0_115 = arith.constant 0 : index
    %c0_116 = arith.constant 0 : index
    %c1_117 = arith.constant 1 : index
    %c0_118 = arith.constant 0 : index
    %257 = vector.load %arg3[%c0_115, %c0_116, %c1_117, %c0_118] : memref<1x15x15x1xf32, #tpu.memory_space<vmem>>, vector<1x14x14x1xf32>
    %258 = vector.shape_cast %257 : vector<1x14x14x1xf32> to vector<14x14x1xf32>
    %259 = vector.extract_strided_slice %0 {offsets = [1, 0], sizes = [1, 10], strides = [1, 1]} : vector<9x10xf32> to vector<1x10xf32>
    %260 = vector.shape_cast %259 : vector<1x10xf32> to vector<10xf32>
    %261 = vector.shape_cast %260 : vector<10xf32> to vector<1x1x10xf32>
    %262 = vector.broadcast %258 : vector<14x14x1xf32> to vector<14x14x10xf32>
    %263 = vector.broadcast %261 : vector<1x1x10xf32> to vector<14x14x10xf32>
    %264 = arith.mulf %262, %263 : vector<14x14x10xf32>
    %265 = arith.addf %256, %264 : vector<14x14x10xf32>
    %c0_119 = arith.constant 0 : index
    %c0_120 = arith.constant 0 : index
    %c1_121 = arith.constant 1 : index
    %c0_122 = arith.constant 0 : index
    %266 = vector.load %arg4[%c0_119, %c0_120, %c1_121, %c0_122] : memref<1x15x15x1xf32, #tpu.memory_space<vmem>>, vector<1x14x14x1xf32>
    %267 = vector.shape_cast %266 : vector<1x14x14x1xf32> to vector<14x14x1xf32>
    %268 = vector.extract_strided_slice %0 {offsets = [2, 0], sizes = [1, 10], strides = [1, 1]} : vector<9x10xf32> to vector<1x10xf32>
    %269 = vector.shape_cast %268 : vector<1x10xf32> to vector<10xf32>
    %270 = vector.shape_cast %269 : vector<10xf32> to vector<1x1x10xf32>
    %271 = vector.broadcast %267 : vector<14x14x1xf32> to vector<14x14x10xf32>
    %272 = vector.broadcast %270 : vector<1x1x10xf32> to vector<14x14x10xf32>
    %273 = arith.mulf %271, %272 : vector<14x14x10xf32>
    %274 = arith.addf %265, %273 : vector<14x14x10xf32>
    %c0_123 = arith.constant 0 : index
    %c1_124 = arith.constant 1 : index
    %c0_125 = arith.constant 0 : index
    %c0_126 = arith.constant 0 : index
    %275 = vector.load %arg2[%c0_123, %c1_124, %c0_125, %c0_126] : memref<1x15x15x1xf32, #tpu.memory_space<vmem>>, vector<1x14x14x1xf32>
    %276 = vector.shape_cast %275 : vector<1x14x14x1xf32> to vector<14x14x1xf32>
    %277 = vector.extract_strided_slice %0 {offsets = [3, 0], sizes = [1, 10], strides = [1, 1]} : vector<9x10xf32> to vector<1x10xf32>
    %278 = vector.shape_cast %277 : vector<1x10xf32> to vector<10xf32>
    %279 = vector.shape_cast %278 : vector<10xf32> to vector<1x1x10xf32>
    %280 = vector.broadcast %276 : vector<14x14x1xf32> to vector<14x14x10xf32>
    %281 = vector.broadcast %279 : vector<1x1x10xf32> to vector<14x14x10xf32>
    %282 = arith.mulf %280, %281 : vector<14x14x10xf32>
    %283 = arith.addf %274, %282 : vector<14x14x10xf32>
    %c0_127 = arith.constant 0 : index
    %c1_128 = arith.constant 1 : index
    %c1_129 = arith.constant 1 : index
    %c0_130 = arith.constant 0 : index
    %284 = vector.load %arg1[%c0_127, %c1_128, %c1_129, %c0_130] : memref<1x15x15x1xf32, #tpu.memory_space<vmem>>, vector<1x14x14x1xf32>
    %285 = vector.shape_cast %284 : vector<1x14x14x1xf32> to vector<14x14x1xf32>
    %286 = vector.extract_strided_slice %0 {offsets = [4, 0], sizes = [1, 10], strides = [1, 1]} : vector<9x10xf32> to vector<1x10xf32>
    %287 = vector.shape_cast %286 : vector<1x10xf32> to vector<10xf32>
    %288 = vector.shape_cast %287 : vector<10xf32> to vector<1x1x10xf32>
    %289 = vector.broadcast %285 : vector<14x14x1xf32> to vector<14x14x10xf32>
    %290 = vector.broadcast %288 : vector<1x1x10xf32> to vector<14x14x10xf32>
    %291 = arith.mulf %289, %290 : vector<14x14x10xf32>
    %292 = arith.addf %283, %291 : vector<14x14x10xf32>
    %c0_131 = arith.constant 0 : index
    %c1_132 = arith.constant 1 : index
    %c1_133 = arith.constant 1 : index
    %c0_134 = arith.constant 0 : index
    %293 = vector.load %arg2[%c0_131, %c1_132, %c1_133, %c0_134] : memref<1x15x15x1xf32, #tpu.memory_space<vmem>>, vector<1x14x14x1xf32>
    %294 = vector.shape_cast %293 : vector<1x14x14x1xf32> to vector<14x14x1xf32>
    %295 = vector.extract_strided_slice %0 {offsets = [5, 0], sizes = [1, 10], strides = [1, 1]} : vector<9x10xf32> to vector<1x10xf32>
    %296 = vector.shape_cast %295 : vector<1x10xf32> to vector<10xf32>
    %297 = vector.shape_cast %296 : vector<10xf32> to vector<1x1x10xf32>
    %298 = vector.broadcast %294 : vector<14x14x1xf32> to vector<14x14x10xf32>
    %299 = vector.broadcast %297 : vector<1x1x10xf32> to vector<14x14x10xf32>
    %300 = arith.mulf %298, %299 : vector<14x14x10xf32>
    %301 = arith.addf %292, %300 : vector<14x14x10xf32>
    %c0_135 = arith.constant 0 : index
    %c1_136 = arith.constant 1 : index
    %c0_137 = arith.constant 0 : index
    %c0_138 = arith.constant 0 : index
    %302 = vector.load %arg4[%c0_135, %c1_136, %c0_137, %c0_138] : memref<1x15x15x1xf32, #tpu.memory_space<vmem>>, vector<1x14x14x1xf32>
    %303 = vector.shape_cast %302 : vector<1x14x14x1xf32> to vector<14x14x1xf32>
    %304 = vector.extract_strided_slice %0 {offsets = [6, 0], sizes = [1, 10], strides = [1, 1]} : vector<9x10xf32> to vector<1x10xf32>
    %305 = vector.shape_cast %304 : vector<1x10xf32> to vector<10xf32>
    %306 = vector.shape_cast %305 : vector<10xf32> to vector<1x1x10xf32>
    %307 = vector.broadcast %303 : vector<14x14x1xf32> to vector<14x14x10xf32>
    %308 = vector.broadcast %306 : vector<1x1x10xf32> to vector<14x14x10xf32>
    %309 = arith.mulf %307, %308 : vector<14x14x10xf32>
    %310 = arith.addf %301, %309 : vector<14x14x10xf32>
    %c0_139 = arith.constant 0 : index
    %c1_140 = arith.constant 1 : index
    %c1_141 = arith.constant 1 : index
    %c0_142 = arith.constant 0 : index
    %311 = vector.load %arg3[%c0_139, %c1_140, %c1_141, %c0_142] : memref<1x15x15x1xf32, #tpu.memory_space<vmem>>, vector<1x14x14x1xf32>
    %312 = vector.shape_cast %311 : vector<1x14x14x1xf32> to vector<14x14x1xf32>
    %313 = vector.extract_strided_slice %0 {offsets = [7, 0], sizes = [1, 10], strides = [1, 1]} : vector<9x10xf32> to vector<1x10xf32>
    %314 = vector.shape_cast %313 : vector<1x10xf32> to vector<10xf32>
    %315 = vector.shape_cast %314 : vector<10xf32> to vector<1x1x10xf32>
    %316 = vector.broadcast %312 : vector<14x14x1xf32> to vector<14x14x10xf32>
    %317 = vector.broadcast %315 : vector<1x1x10xf32> to vector<14x14x10xf32>
    %318 = arith.mulf %316, %317 : vector<14x14x10xf32>
    %319 = arith.addf %310, %318 : vector<14x14x10xf32>
    %c0_143 = arith.constant 0 : index
    %c1_144 = arith.constant 1 : index
    %c1_145 = arith.constant 1 : index
    %c0_146 = arith.constant 0 : index
    %320 = vector.load %arg4[%c0_143, %c1_144, %c1_145, %c0_146] : memref<1x15x15x1xf32, #tpu.memory_space<vmem>>, vector<1x14x14x1xf32>
    %321 = vector.shape_cast %320 : vector<1x14x14x1xf32> to vector<14x14x1xf32>
    %322 = vector.extract_strided_slice %0 {offsets = [8, 0], sizes = [1, 10], strides = [1, 1]} : vector<9x10xf32> to vector<1x10xf32>
    %323 = vector.shape_cast %322 : vector<1x10xf32> to vector<10xf32>
    %324 = vector.shape_cast %323 : vector<10xf32> to vector<1x1x10xf32>
    %325 = vector.broadcast %321 : vector<14x14x1xf32> to vector<14x14x10xf32>
    %326 = vector.broadcast %324 : vector<1x1x10xf32> to vector<14x14x10xf32>
    %327 = arith.mulf %325, %326 : vector<14x14x10xf32>
    %328 = arith.addf %319, %327 : vector<14x14x10xf32>
    %329 = arith.maximumf %82, %164 : vector<14x14x10xf32>
    %330 = arith.maximumf %246, %328 : vector<14x14x10xf32>
    %331 = arith.maximumf %329, %330 : vector<14x14x10xf32>
    %c0_147 = arith.constant 0 : index
    %c0_148 = arith.constant 0 : index
    %332 = vector.load %arg6[%c0_147, %c0_148] : memref<1x10xf32, #tpu.memory_space<vmem>>, vector<1x10xf32>
    %333 = vector.shape_cast %332 : vector<1x10xf32> to vector<1x1x10xf32>
    %334 = vector.broadcast %333 : vector<1x1x10xf32> to vector<14x14x10xf32>
    %335 = arith.addf %331, %334 : vector<14x14x10xf32>
    %cst_149 = arith.constant 0.000000e+00 : f32
    %336 = vector.broadcast %cst_149 : f32 to vector<14x14x10xf32>
    %337 = arith.maximumf %335, %336 : vector<14x14x10xf32>
    %c0_150 = arith.constant 0 : index
    %c0_151 = arith.constant 0 : index
    %c0_152 = arith.constant 0 : index
    %c0_153 = arith.constant 0 : index
    %338 = vector.load %arg7[%c0_150, %c0_151, %c0_152, %c0_153] : memref<1x14x14x10xf32, #tpu.memory_space<vmem>>, vector<1x14x14x10xf32>
    %339 = vector.shape_cast %338 : vector<1x14x14x10xf32> to vector<14x14x10xf32>
    %340 = vector.shape_cast %337 : vector<14x14x10xf32> to vector<1x14x14x10xf32>
    tpu.vector_store %arg7[%c0_150, %c0_151, %c0_152, %c0_153], %340 {strides = array<i32>} : memref<1x14x14x10xf32, #tpu.memory_space<vmem>>, vector<1x14x14x10xf32>,
    return
  }
  func.func @transform_0(%arg0: i32) -> (i32, i32, i32, i32) {
    %c0_i32 = arith.constant 0 : i32
    %c0_i32_0 = arith.constant 0 : i32
    %c0_i32_1 = arith.constant 0 : i32
    %c0_i32_2 = arith.constant 0 : i32
    return %arg0, %c0_i32, %c0_i32_0, %c0_i32_1 : i32, i32, i32, i32
  }
  func.func @transform_1(%arg0: i32) -> (i32, i32, i32, i32) {
    %c0_i32 = arith.constant 0 : i32
    %c0_i32_0 = arith.constant 0 : i32
    %c0_i32_1 = arith.constant 0 : i32
    %c0_i32_2 = arith.constant 0 : i32
    return %arg0, %c0_i32, %c0_i32_0, %c0_i32_1 : i32, i32, i32, i32
  }
  func.func @transform_2(%arg0: i32) -> (i32, i32, i32, i32) {
    %c0_i32 = arith.constant 0 : i32
    %c0_i32_0 = arith.constant 0 : i32
    %c0_i32_1 = arith.constant 0 : i32
    %c0_i32_2 = arith.constant 0 : i32
    return %arg0, %c0_i32, %c0_i32_0, %c0_i32_1 : i32, i32, i32, i32
  }
  func.func @transform_3(%arg0: i32) -> (i32, i32, i32, i32) {
    %c0_i32 = arith.constant 0 : i32
    %c0_i32_0 = arith.constant 0 : i32
    %c0_i32_1 = arith.constant 0 : i32
    %c0_i32_2 = arith.constant 0 : i32
    return %arg0, %c0_i32, %c0_i32_0, %c0_i32_1 : i32, i32, i32, i32
  }
  func.func @transform_4(%arg0: i32) -> (i32, i32) {
    %c0_i32 = arith.constant 0 : i32
    %c0_i32_0 = arith.constant 0 : i32
    %c0_i32_1 = arith.constant 0 : i32
    return %c0_i32, %c0_i32_0 : i32, i32
  }
  func.func @transform_5(%arg0: i32) -> (i32, i32) {
    %c0_i32 = arith.constant 0 : i32
    %c0_i32_0 = arith.constant 0 : i32
    %c0_i32_1 = arith.constant 0 : i32
    return %c0_i32, %c0_i32_0 : i32, i32
  }
  func.func @transform_6(%arg0: i32) -> (i32, i32, i32, i32) {
    %c0_i32 = arith.constant 0 : i32
    %c0_i32_0 = arith.constant 0 : i32
    %c0_i32_1 = arith.constant 0 : i32
    %c0_i32_2 = arith.constant 0 : i32
    return %arg0, %c0_i32, %c0_i32_0, %c0_i32_1 : i32, i32, i32, i32
  }
}

module attributes {stable_mosaic.version = 11 : i64} {
  func.func @_fc_head_kernel(%arg0: i32, %arg1: memref<2x3200xf32, #tpu.memory_space<vmem>>, %arg2: memref<3200x20xf32, #tpu.memory_space<vmem>>, %arg3: memref<1x20xf32, #tpu.memory_space<vmem>>, %arg4: memref<20x10xf32, #tpu.memory_space<vmem>>, %arg5: memref<1x10xf32, #tpu.memory_space<vmem>>, %arg6: memref<2x10xf32, #tpu.memory_space<vmem>>) attributes {dimension_semantics = [#tpu.dimension_semantics<parallel>], iteration_bounds = array<i64: 1>, scalar_prefetch = 0 : i64, scratch_operands = 0 : i64, tpu.core_type = #tpu.core_type<tc>, window_params = [{transform_indices = @transform_0, window_bounds = array<i64: 2, 3200>}, {pipeline_mode = #tpu.pipeline_mode<synchronous>, transform_indices = @transform_1, window_bounds = array<i64: 3200, 20>}, {pipeline_mode = #tpu.pipeline_mode<synchronous>, transform_indices = @transform_2, window_bounds = array<i64: 1, 20>}, {pipeline_mode = #tpu.pipeline_mode<synchronous>, transform_indices = @transform_3, window_bounds = array<i64: 20, 10>}, {pipeline_mode = #tpu.pipeline_mode<synchronous>, transform_indices = @transform_4, window_bounds = array<i64: 1, 10>}, {transform_indices = @transform_5, window_bounds = array<i64: 2, 10>}]} {
    %c0 = arith.constant 0 : index
    %c0_0 = arith.constant 0 : index
    %0 = vector.load %arg1[%c0, %c0_0] : memref<2x3200xf32, #tpu.memory_space<vmem>>, vector<2x3200xf32>
    %c0_1 = arith.constant 0 : index
    %c0_2 = arith.constant 0 : index
    %1 = vector.load %arg2[%c0_1, %c0_2] : memref<3200x20xf32, #tpu.memory_space<vmem>>, vector<3200x20xf32>
    %cst = arith.constant dense<0.000000e+00> : vector<2x20xf32>
    %2 = tpu.matmul %0, %1, %cst {dimension_numbers = #tpu.dot_dimension_numbers<[1], [0], [0], [1], [0, 0, 1, 1], [], []>} : vector<2x3200xf32>, vector<3200x20xf32>, vector<2x20xf32> -> vector<2x20xf32>
    %c0_3 = arith.constant 0 : index
    %c0_4 = arith.constant 0 : index
    %3 = vector.load %arg3[%c0_3, %c0_4] : memref<1x20xf32, #tpu.memory_space<vmem>>, vector<1x20xf32>
    %4 = vector.broadcast %3 : vector<1x20xf32> to vector<2x20xf32>
    %5 = arith.addf %2, %4 : vector<2x20xf32>
    %cst_5 = arith.constant 0.000000e+00 : f32
    %6 = vector.broadcast %cst_5 : f32 to vector<2x20xf32>
    %7 = arith.maximumf %5, %6 : vector<2x20xf32>
    %c0_6 = arith.constant 0 : index
    %c0_7 = arith.constant 0 : index
    %8 = vector.load %arg4[%c0_6, %c0_7] : memref<20x10xf32, #tpu.memory_space<vmem>>, vector<20x10xf32>
    %cst_8 = arith.constant dense<0.000000e+00> : vector<2x10xf32>
    %9 = tpu.matmul %7, %8, %cst_8 {dimension_numbers = #tpu.dot_dimension_numbers<[1], [0], [0], [1], [0, 0, 1, 1], [], []>} : vector<2x20xf32>, vector<20x10xf32>, vector<2x10xf32> -> vector<2x10xf32>
    %c0_9 = arith.constant 0 : index
    %c0_10 = arith.constant 0 : index
    %10 = vector.load %arg5[%c0_9, %c0_10] : memref<1x10xf32, #tpu.memory_space<vmem>>, vector<1x10xf32>
    %11 = vector.broadcast %10 : vector<1x10xf32> to vector<2x10xf32>
    %12 = arith.addf %9, %11 : vector<2x10xf32>
    %cst_11 = arith.constant dense<0xFF800000> : vector<2xf32>
    %13 = vector.multi_reduction <maximumf>, %12, %cst_11 [1] : vector<2x10xf32> to vector<2xf32>
    %14 = vector.shape_cast %13 : vector<2xf32> to vector<2x1xf32>
    %15 = vector.broadcast %14 : vector<2x1xf32> to vector<2x10xf32>
    %16 = arith.subf %12, %15 : vector<2x10xf32>
    %17 = math.exp %16 : vector<2x10xf32>
    %cst_12 = arith.constant dense<0.000000e+00> : vector<2xf32>
    %18 = vector.multi_reduction <add>, %17, %cst_12 [1] : vector<2x10xf32> to vector<2xf32>
    %19 = vector.shape_cast %18 : vector<2xf32> to vector<2x1xf32>
    %20 = tpu.reciprocal %19 {approx = true} : vector<2x1xf32> -> vector<2x1xf32>
    %21 = vector.broadcast %20 : vector<2x1xf32> to vector<2x10xf32>
    %22 = arith.mulf %17, %21 : vector<2x10xf32>
    %c0_13 = arith.constant 0 : index
    %c0_14 = arith.constant 0 : index
    %23 = vector.load %arg6[%c0_13, %c0_14] : memref<2x10xf32, #tpu.memory_space<vmem>>, vector<2x10xf32>
    tpu.vector_store %arg6[%c0_13, %c0_14], %22 {strides = array<i32>} : memref<2x10xf32, #tpu.memory_space<vmem>>, vector<2x10xf32>,
    return
  }
  func.func @transform_0(%arg0: i32) -> (i32, i32) {
    %c0_i32 = arith.constant 0 : i32
    %c0_i32_0 = arith.constant 0 : i32
    return %arg0, %c0_i32 : i32, i32
  }
  func.func @transform_1(%arg0: i32) -> (i32, i32) {
    %c0_i32 = arith.constant 0 : i32
    %c0_i32_0 = arith.constant 0 : i32
    %c0_i32_1 = arith.constant 0 : i32
    return %c0_i32, %c0_i32_0 : i32, i32
  }
  func.func @transform_2(%arg0: i32) -> (i32, i32) {
    %c0_i32 = arith.constant 0 : i32
    %c0_i32_0 = arith.constant 0 : i32
    %c0_i32_1 = arith.constant 0 : i32
    return %c0_i32, %c0_i32_0 : i32, i32
  }
  func.func @transform_3(%arg0: i32) -> (i32, i32) {
    %c0_i32 = arith.constant 0 : i32
    %c0_i32_0 = arith.constant 0 : i32
    %c0_i32_1 = arith.constant 0 : i32
    return %c0_i32, %c0_i32_0 : i32, i32
  }
  func.func @transform_4(%arg0: i32) -> (i32, i32) {
    %c0_i32 = arith.constant 0 : i32
    %c0_i32_0 = arith.constant 0 : i32
    %c0_i32_1 = arith.constant 0 : i32
    return %c0_i32, %c0_i32_0 : i32, i32
  }
  func.func @transform_5(%arg0: i32) -> (i32, i32) {
    %c0_i32 = arith.constant 0 : i32
    %c0_i32_0 = arith.constant 0 : i32
    return %arg0, %c0_i32 : i32, i32
  }
}

</mosaic_0001>

<llo_original>
// kernel: convnet_forward.4
$region0: #{convnet_forward.4}
  #allocation0 [shape = 'u32[]', space=smem, size = 0x4, offset = 0x4, fixed_abs, tag = 'smem constant byte address 0x4 - core index']
  #allocation1 [shape = 'u32[144,128]{1,0:T(1,128)}', space=vmem, size = 0x12000, scoped, tag = 'internal scratch']
  %s0 = inlined_call_operand.vmem [shape: f32[2,14,14,10], index: 0, kind: input, shape index: {}]
  %s1 = inlined_call_operand.vmem [shape: f32[25,10,32], index: 1, kind: input, shape index: {}]
  %s2 = inlined_call_operand.vmem [shape: f32[1,32], index: 2, kind: input, shape index: {}]
  %s3 = inlined_call_operand.vmem [shape: f32[2,10,10,32], index: 3, kind: output, shape index: {}]
  %s4 = sld [smem:[#allocation0]]
  $region45: #{convnet_forward.4} parent=0
    _
  %s6 = ssub.s32 1, %s4
  %s7 = scalar_select 0, %s6, %s4
  loop: start=0, step=1, limit=22
  $region2: #{convnet_forward.4} parent=0 // loop_pre_header
    _
  $region3: #{convnet_forward.4} parent=0 // loop_header
    %s9 = sphi 0, %s13
    %p10 = scmp.ge.s32.totalorder %s9, 22
    %s16 = sphi 0, %s28
    %s17 = sphi 0, %s24
    %s18 = sphi 0, %s16
    %s19 = sphi 0, %s17
    %s20 = sphi 0, %s18
    %s21 = sphi 0, %s19
    %s31 = sphi 0, %s33
    %s34 = sphi 0, %s31
    %s35 = sphi 0, %s34
    %s51 = sphi 0, %s35
    %s55 = sphi 0, %s55
    %s57 = sphi 0, %s55
    %s58 = sphi 0, %s57
    %s72 = sphi 0, %s58
    %s76 = sphi 0, %s76
    %s78 = sphi 0, %s76
    %s79 = sphi 0, %s78
    %s93 = sphi 0, %s79
    %s101 = sphi 0, %s103
    %s104 = sphi 0, %s101
    %s105 = sphi 0, %s104
    %s121 = sphi 0, %s105
  $region4: #{convnet_forward.4} parent=0 // loop_header_branch
    %12 = sbr.rel (%p10) target = $region8
  $region5: #{convnet_forward.4} parent=0 // loop_body
    %s14 = ssub.s32 %s9, 1
    %s15 = ssub.s32 %s9, 2
    %s22 = sadd.s32 1, %s17
    %p23 = scmp.ge.s32.totalorder %s22, 10
    %s24 = scalar_select %p23, 0, %s22
    %s25 = sadd.s32 1, %s16
    %s26 = scalar_select %p23, %s25, %s16
    %p27 = scmp.ge.s32.totalorder %s26, 2
    %s28 = scalar_select %p27, 0, %s26
    %s29 = ssub.s32 %s16, %s28
    %p30 = scmp.eq.s32.totalorder %s29, 0
    %s32 = sadd.s32 %s31, 1
    %s33 = scalar_select %p30, %s31, %s32
    %p36 = pneg %p30
    %p37 = scmp.eq.s32.totalorder %s9, 19
    %p38 = por %p36, %p37
    %p39 = scmp.ne.s32.totalorder %s31, %s34
    %p40 = scmp.eq.s32.totalorder %s9, 0
    %p41 = por %p39, %p40
    %p42 = scmp.ne.s32.totalorder %s31, %s34
    %p43 = scmp.eq.s32.totalorder %s14, 19
    %p44 = por %p42, %p43
    %p45 = scmp.ne.s32.totalorder %s34, %s35
    %p46 = scmp.eq.s32.totalorder %s14, 0
    %p47 = por %p45, %p46
    %p48 = scmp.ne.s32.totalorder %s34, %s35
    %p49 = scmp.eq.s32.totalorder %s15, 19
    %p50 = por %p48, %p49
    %p52 = scmp.ne.s32.totalorder %s35, %s51
    %p53 = scmp.eq.s32.totalorder %s15, 0
    %p54 = por %p52, %p53
    %s56 = sadd.s32 %s55, 1
    %p59 = scmp.eq.s32.totalorder %s9, 19
    %p60 = scmp.ne.s32.totalorder %s55, %s57
    %p61 = scmp.eq.s32.totalorder %s9, 0
    %p62 = por %p60, %p61
    %p63 = scmp.ne.s32.totalorder %s55, %s57
    %p64 = scmp.eq.s32.totalorder %s14, 19
    %p65 = por %p63, %p64
    %p66 = scmp.ne.s32.totalorder %s57, %s58
    %p67 = scmp.eq.s32.totalorder %s14, 0
    %p68 = por %p66, %p67
    %p69 = scmp.ne.s32.totalorder %s57, %s58
    %p70 = scmp.eq.s32.totalorder %s15, 19
    %p71 = por %p69, %p70
    %p73 = scmp.ne.s32.totalorder %s58, %s72
    %p74 = scmp.eq.s32.totalorder %s15, 0
    %p75 = por %p73, %p74
    %s77 = sadd.s32 %s76, 1
    %p80 = scmp.eq.s32.totalorder %s9, 19
    %p81 = scmp.ne.s32.totalorder %s76, %s78
    %p82 = scmp.eq.s32.totalorder %s9, 0
    %p83 = por %p81, %p82
    %p84 = scmp.ne.s32.totalorder %s76, %s78
    %p85 = scmp.eq.s32.totalorder %s14, 19
    %p86 = por %p84, %p85
    %p87 = scmp.ne.s32.totalorder %s78, %s79
    %p88 = scmp.eq.s32.totalorder %s14, 0
    %p89 = por %p87, %p88
    %p90 = scmp.ne.s32.totalorder %s78, %s79
    %p91 = scmp.eq.s32.totalorder %s15, 19
    %p92 = por %p90, %p91
    %p94 = scmp.ne.s32.totalorder %s79, %s93
    %p95 = scmp.eq.s32.totalorder %s15, 0
    %p96 = por %p94, %p95
    %s97 = ssub.s32 %s16, %s28
    %s98 = ssub.s32 %s17, %s24
    %s99 = sor.u32 %s97, %s98
    %p100 = scmp.eq.s32.totalorder %s99, 0
    %s102 = sadd.s32 %s101, 1
    %s103 = scalar_select %p100, %s101, %s102
    %p106 = pneg %p100
    %p107 = scmp.eq.s32.totalorder %s9, 19
    %p108 = por %p106, %p107
    %p109 = scmp.ne.s32.totalorder %s101, %s104
    %p110 = scmp.eq.s32.totalorder %s9, 0
    %p111 = por %p109, %p110
    %p112 = scmp.ne.s32.totalorder %s101, %s104
    %p113 = scmp.eq.s32.totalorder %s14, 19
    %p114 = por %p112, %p113
    %p115 = scmp.ne.s32.totalorder %s104, %s105
    %p116 = scmp.eq.s32.totalorder %s14, 0
    %p117 = por %p115, %p116
    %p118 = scmp.ne.s32.totalorder %s104, %s105
    %p119 = scmp.eq.s32.totalorder %s15, 19
    %p120 = por %p118, %p119
    %p122 = scmp.ne.s32.totalorder %s105, %s121
    %p123 = scmp.eq.s32.totalorder %s15, 0
    %p124 = por %p122, %p123
    %p125 = scmp.le.s32.totalorder 1, %s9
    %p126 = scmp.lt.s32.totalorder %s9, 21
    %p127 = pnand %p125, %p126
    %p128 = pneg %p127
    // Predicated region
    $region9: #{convnet_forward.4} parent=5 // pred_check
      _
    $region10: #{convnet_forward.4} parent=5 // pred_check_branch
      %130 = sbr.rel (%p127) target = $region12
    $region11: #{convnet_forward.4} parent=5 // pred_region
      %s131 = ssub.s32 %s9, 1
      // Predicated region
      $region13: #{convnet_forward.4} parent=11 // pred_check
        %p132 = pneg %p68
      $region14: #{convnet_forward.4} parent=11 // pred_check_branch
        %134 = sbr.rel (%p132) target = $region16
      $region15: #{convnet_forward.4} parent=11 // pred_region
        _
      $region16: #{convnet_forward.4} parent=11 // pred_fallthru
        _
      // Predicated region
      $region17: #{convnet_forward.4} parent=11 // pred_check
        %p135 = pneg %p89
      $region18: #{convnet_forward.4} parent=11 // pred_check_branch
        %137 = sbr.rel (%p135) target = $region20
      $region19: #{convnet_forward.4} parent=11 // pred_region
        _
      $region20: #{convnet_forward.4} parent=11 // pred_fallthru
        _
    $region12: #{convnet_forward.4} parent=5 // pred_fallthru
      _
    %p138 = scmp.lt.s32.totalorder %s9, 20
    // Predicated region
    $region21: #{convnet_forward.4} parent=5 // pred_check
      %p139 = pneg %p138
    $region22: #{convnet_forward.4} parent=5 // pred_check_branch
      %141 = sbr.rel (%p139) target = $region24
    $region23: #{convnet_forward.4} parent=5 // pred_region
      // Predicated region
      $region25: #{convnet_forward.4} parent=23 // pred_check
        %p142 = pneg %p41
      $region26: #{convnet_forward.4} parent=23 // pred_check_branch
        %144 = sbr.rel (%p142) target = $region28
      $region27: #{convnet_forward.4} parent=23 // pred_region
        %p145 = scmp.lt.s32.totalorder %s16, 1
        %s146 = scalar_select %p145, %s16, 1
        %s147 = smul.addr %s146, 28
        %s148 = smul.addr %s147, 8
        %s149 = scalar_lea.vmem %s0, %s148
      $region28: #{convnet_forward.4} parent=23 // pred_fallthru
        _
    $region24: #{convnet_forward.4} parent=5 // pred_fallthru
      _
    %p150 = scmp.le.s32.totalorder 1, %s9
    %p151 = scmp.lt.s32.totalorder %s9, 21
    %p152 = pnand %p150, %p151
    %p153 = pneg %p152
    // Predicated region
    $region29: #{convnet_forward.4} parent=5 // pred_check
      _
    $region30: #{convnet_forward.4} parent=5 // pred_check_branch
      %155 = sbr.rel (%p152) target = $region32
    $region31: #{convnet_forward.4} parent=5 // pred_region
      %s156 = ssub.s32 %s9, 1
      %p157 = scmp.lt.s32.totalorder %s18, 1
      %s158 = scalar_select %p157, %s18, 1
      %s159 = smul.addr %s158, 28
      %s160 = smul.addr %s159, 8
      %s161 = scalar_lea.vmem %s0, %s160
      %p162 = pneg %p47
      %p163 = pneg %p44
      %p164 = pneg %p68
      %p165 = pneg %p65
      %p166 = pneg %p89
      %p167 = pneg %p86
      %p168 = pneg %p117
      %p169 = pneg %p114
      %p170 = scmp.lt.s32.totalorder %s18, 1
      %s171 = scalar_select %p170, %s18, 1
      %p172 = scmp.lt.s32.totalorder %s19, 9
      %s173 = scalar_select %p172, %s19, 9
      %s174 = smul.addr %s173, 2
      %s175 = smul.addr %s171, 20
      %s176 = sadd.s32 %s174, %s175
      %s177 = smul.addr %s176, 8
      %s178 = scalar_lea.vmem %s3, %s177
      %p179 = scmp.lt.s32.totalorder %s18, 1
      %s180 = scalar_select %p179, %s18, 1
      %s181 = smul.addr %s180, 28
      %s182 = smul.addr %s181, 8
      %s183 = scalar_lea.vmem %s0, %s182
      %p184 = scmp.lt.s32.totalorder %s18, 1
      %s185 = scalar_select %p184, %s18, 1
      %p186 = scmp.lt.s32.totalorder %s19, 9
      %s187 = scalar_select %p186, %s19, 9
      %s188 = smul.addr %s187, 2
      %s189 = smul.addr %s185, 20
      %s190 = sadd.s32 %s188, %s189
      %s191 = smul.addr %s190, 8
      %s192 = scalar_lea.vmem %s3, %s191
      %s193 = smul.u32 %s19, 16
      %s194 = scalar_lea.vmem %s183, %s193
      %v195 = vld [vmem:[%s194] sm:$0xff]
      %v196 = vld [vmem:[%s194 + $0x8] sm:$0x3]
      %v197 = vld [vmem:[%s1] sm:$0xff]
      %v198 = vld [vmem:[%s1 + $0x8] sm:$0x3]
      %v199 = vld [vmem:[%s194 + $0x1] sm:$0xff]
      %v200 = vld [vmem:[%s194 + $0x9] sm:$0x3]
      %s201 = scalar_lea.vmem %s1, 16
      %v202 = vld [vmem:[%s201] sm:$0xff]
      %v203 = vld [vmem:[%s201 + $0x8] sm:$0x3]
      %vm204 = vcmask 80896
      %v206 = vsel %vm204, %v199, 0
      %v209 = vsel %vm204, %v200, 0
      %vm211 = vcmask 1041408
      %v213 = vsel %vm211, %v203, 0
      %215 = vmatprep.subr.mxu0 0.0
      %216 = vmatpush1.msra.mxu0 %v202
      %217 = vmatprep.subr.mxu0 0.0
      %218 = vmatpush1.msra.mxu0 %v213
      %219 = vmatprep.subr.mxu0 0.0
      %220 = vmatpush1.msra.mxu0 0.0
      %221 = vmatprep.subr.mxu0 0.0
      %222 = vmatpush1.msra.mxu0 0.0
      %223 = vmatprep.subr.mxu0 0.0
      %224 = vmatpush1.msra.mxu0 0.0
      %225 = vmatprep.subr.mxu0 0.0
      %226 = vmatpush1.msra.mxu0 0.0
      %227 = vmatprep.subr.mxu0 0.0
      %228 = vmatpush1.msra.mxu0 0.0
      %229 = vmatprep.subr.mxu0 0.0
      %230 = vmatpush1.msra.mxu0 0.0
      %231 = vmatprep.subr.mxu0 0.0
      %232 = vmatpush1.msra.mxu0 0.0
      %233 = vmatprep.subr.mxu0 0.0
      %234 = vmatpush1.msra.mxu0 0.0
      %235 = vmatprep.subr.mxu0 0.0
      %236 = vmatpush1.msra.mxu0 0.0
      %237 = vmatprep.subr.mxu0 0.0
      %238 = vmatpush1.msra.mxu0 0.0
      %239 = vmatprep.subr.mxu0 0.0
      %240 = vmatpush1.msra.mxu0 0.0
      %241 = vmatprep.subr.mxu0 0.0
      %242 = vmatpush1.msra.mxu0 0.0
      %243 = vmatprep.subr.mxu0 0.0
      %244 = vmatpush1.msra.mxu0 0.0
      %245 = vmatprep.subr.mxu0 0.0
      %246 = vmatpush1.msra.mxu0 0.0
      %247 = vmatprep.subr.mxu0 0.0
      %248 = vmatpush1.msra.mxu0 0.0
      %249 = vmatprep.subr.mxu0 0.0
      %250 = vmatpush1.msra.mxu0 0.0
      %251 = vmatprep.subr.mxu0 0.0
      %252 = vmatpush1.msra.mxu0 0.0
      %253 = vmatprep.subr.mxu0 0.0
      %254 = vmatpush1.msra.mxu0 0.0
      %255 = vmatprep.subr.mxu0 0.0
      %256 = vmatpush1.msra.mxu0 0.0
      %257 = vmatprep.subr.mxu0 0.0
      %258 = vmatpush1.msra.mxu0 0.0
      %259 = vmatprep.subr.mxu0 0.0
      %260 = vmatpush1.msra.mxu0 0.0
      %261 = vmatprep.subr.mxu0 0.0
      %262 = vmatpush1.msra.mxu0 0.0
      %263 = vmatprep.subr.mxu0 0.0
      %264 = vmatpush1.msra.mxu0 0.0
      %265 = vmatprep.subr.mxu0 0.0
      %266 = vmatpush1.msra.mxu0 0.0
      %267 = vmatprep.subr.mxu0 0.0
      %268 = vmatpush1.msra.mxu0 0.0
      %269 = vmatprep.subr.mxu0 0.0
      %270 = vmatpush1.msra.mxu0 0.0
      %271 = vmatprep.subr.mxu0 0.0
      %272 = vmatpush1.msra.mxu0 0.0
      %273 = vmatprep.subr.mxu0 0.0
      %274 = vmatpush1.msra.mxu0 0.0
      %275 = vmatprep.subr.mxu0 0.0
      %276 = vmatpush1.msra.mxu0 0.0
      %277 = vmatprep.subr.mxu0 0.0
      %278 = vmatpush1.msra.mxu0 0.0
      %279 = vmatprep.mubr.f32.mxu0 0.0
      %280 = vmatmul.mubr.f32.gmra.mrb[0].mxu0 %v206
      %v281 = vpop.f32.mrb[0].mxu0
      %v282 = vadd.f32 0.0, %v281
      %v283 = vpop.f32.mrb[0].mxu0
      %284 = vmatprep.mubr.f32.mxu0 0.0
      %285 = vmatmul.mubr.f32.gmra.mrb[0].mxu0 %v209
      %v286 = vpop.f32.mrb[0].mxu0
      %v287 = vadd.f32 0.0, %v286
      %v288 = vpop.f32.mrb[0].mxu0
      %289 = vdwg.mxu0
      %v291 = vsel %vm204, %v195, 0
      %v294 = vsel %vm204, %v196, 0
      %v297 = vsel %vm211, %v198, 0
      %299 = vmatprep.subr.mxu0 0.0
      %300 = vmatpush1.msra.mxu0 %v197
      %301 = vmatprep.subr.mxu0 0.0
      %302 = vmatpush1.msra.mxu0 %v297
      %303 = vmatprep.subr.mxu0 0.0
      %304 = vmatpush1.msra.mxu0 0.0
      %305 = vmatprep.subr.mxu0 0.0
      %306 = vmatpush1.msra.mxu0 0.0
      %307 = vmatprep.subr.mxu0 0.0
      %308 = vmatpush1.msra.mxu0 0.0
      %309 = vmatprep.subr.mxu0 0.0
      %310 = vmatpush1.msra.mxu0 0.0
      %311 = vmatprep.subr.mxu0 0.0
      %312 = vmatpush1.msra.mxu0 0.0
      %313 = vmatprep.subr.mxu0 0.0
      %314 = vmatpush1.msra.mxu0 0.0
      %315 = vmatprep.subr.mxu0 0.0
      %316 = vmatpush1.msra.mxu0 0.0
      %317 = vmatprep.subr.mxu0 0.0
      %318 = vmatpush1.msra.mxu0 0.0
      %319 = vmatprep.subr.mxu0 0.0
      %320 = vmatpush1.msra.mxu0 0.0
      %321 = vmatprep.subr.mxu0 0.0
      %322 = vmatpush1.msra.mxu0 0.0
      %323 = vmatprep.subr.mxu0 0.0
      %324 = vmatpush1.msra.mxu0 0.0
      %325 = vmatprep.subr.mxu0 0.0
      %326 = vmatpush1.msra.mxu0 0.0
      %327 = vmatprep.subr.mxu0 0.0
      %328 = vmatpush1.msra.mxu0 0.0
      %329 = vmatprep.subr.mxu0 0.0
      %330 = vmatpush1.msra.mxu0 0.0
      %331 = vmatprep.subr.mxu0 0.0
      %332 = vmatpush1.msra.mxu0 0.0
      %333 = vmatprep.subr.mxu0 0.0
      %334 = vmatpush1.msra.mxu0 0.0
      %335 = vmatprep.subr.mxu0 0.0
      %336 = vmatpush1.msra.mxu0 0.0
      %337 = vmatprep.subr.mxu0 0.0
      %338 = vmatpush1.msra.mxu0 0.0
      %339 = vmatprep.subr.mxu0 0.0
      %340 = vmatpush1.msra.mxu0 0.0
      %341 = vmatprep.subr.mxu0 0.0
      %342 = vmatpush1.msra.mxu0 0.0
      %343 = vmatprep.subr.mxu0 0.0
      %344 = vmatpush1.msra.mxu0 0.0
      %345 = vmatprep.subr.mxu0 0.0
      %346 = vmatpush1.msra.mxu0 0.0
      %347 = vmatprep.subr.mxu0 0.0
      %348 = vmatpush1.msra.mxu0 0.0
      %349 = vmatprep.subr.mxu0 0.0
      %350 = vmatpush1.msra.mxu0 0.0
      %351 = vmatprep.subr.mxu0 0.0
      %352 = vmatpush1.msra.mxu0 0.0
      %353 = vmatprep.subr.mxu0 0.0
      %354 = vmatpush1.msra.mxu0 0.0
      %355 = vmatprep.subr.mxu0 0.0
      %356 = vmatpush1.msra.mxu0 0.0
      %357 = vmatprep.subr.mxu0 0.0
      %358 = vmatpush1.msra.mxu0 0.0
      %359 = vmatprep.subr.mxu0 0.0
      %360 = vmatpush1.msra.mxu0 0.0
      %361 = vmatprep.subr.mxu0 0.0
      %362 = vmatpush1.msra.mxu0 0.0
      %363 = vmatprep.mubr.f32.mxu0 0.0
      %364 = vmatmul.mubr.f32.gmra.mrb[0].mxu0 %v291
      %v365 = vpop.f32.mrb[0].mxu0
      %v366 = vadd.f32 %v282, %v365
      %v367 = vpop.f32.mrb[0].mxu0
      %368 = vmatprep.mubr.f32.mxu0 0.0
      %369 = vmatmul.mubr.f32.gmra.mrb[0].mxu0 %v294
      %v370 = vpop.f32.mrb[0].mxu0
      %v371 = vadd.f32 %v287, %v370
      %v372 = vpop.f32.mrb[0].mxu0
      %373 = vdwg.mxu0
      %v374 = vld [vmem:[%s194 + $0x2] sm:$0xff]
      %v375 = vld [vmem:[%s194 + $0xa] sm:$0x3]
      %s376 = scalar_lea.vmem %s1, 32
      %v377 = vld [vmem:[%s376] sm:$0xff]
      %v378 = vld [vmem:[%s376 + $0x8] sm:$0x3]
      %v380 = vsel %vm204, %v374, 0
      %v383 = vsel %vm204, %v375, 0
      %v386 = vsel %vm211, %v378, 0
      %388 = vmatprep.subr.mxu0 0.0
      %389 = vmatpush1.msra.mxu0 %v377
      %390 = vmatprep.subr.mxu0 0.0
      %391 = vmatpush1.msra.mxu0 %v386
      %392 = vmatprep.subr.mxu0 0.0
      %393 = vmatpush1.msra.mxu0 0.0
      %394 = vmatprep.subr.mxu0 0.0
      %395 = vmatpush1.msra.mxu0 0.0
      %396 = vmatprep.subr.mxu0 0.0
      %397 = vmatpush1.msra.mxu0 0.0
      %398 = vmatprep.subr.mxu0 0.0
      %399 = vmatpush1.msra.mxu0 0.0
      %400 = vmatprep.subr.mxu0 0.0
      %401 = vmatpush1.msra.mxu0 0.0
      %402 = vmatprep.subr.mxu0 0.0
      %403 = vmatpush1.msra.mxu0 0.0
      %404 = vmatprep.subr.mxu0 0.0
      %405 = vmatpush1.msra.mxu0 0.0
      %406 = vmatprep.subr.mxu0 0.0
      %407 = vmatpush1.msra.mxu0 0.0
      %408 = vmatprep.subr.mxu0 0.0
      %409 = vmatpush1.msra.mxu0 0.0
      %410 = vmatprep.subr.mxu0 0.0
      %411 = vmatpush1.msra.mxu0 0.0
      %412 = vmatprep.subr.mxu0 0.0
      %413 = vmatpush1.msra.mxu0 0.0
      %414 = vmatprep.subr.mxu0 0.0
      %415 = vmatpush1.msra.mxu0 0.0
      %416 = vmatprep.subr.mxu0 0.0
      %417 = vmatpush1.msra.mxu0 0.0
      %418 = vmatprep.subr.mxu0 0.0
      %419 = vmatpush1.msra.mxu0 0.0
      %420 = vmatprep.subr.mxu0 0.0
      %421 = vmatpush1.msra.mxu0 0.0
      %422 = vmatprep.subr.mxu0 0.0
      %423 = vmatpush1.msra.mxu0 0.0
      %424 = vmatprep.subr.mxu0 0.0
      %425 = vmatpush1.msra.mxu0 0.0
      %426 = vmatprep.subr.mxu0 0.0
      %427 = vmatpush1.msra.mxu0 0.0
      %428 = vmatprep.subr.mxu0 0.0
      %429 = vmatpush1.msra.mxu0 0.0
      %430 = vmatprep.subr.mxu0 0.0
      %431 = vmatpush1.msra.mxu0 0.0
      %432 = vmatprep.subr.mxu0 0.0
      %433 = vmatpush1.msra.mxu0 0.0
      %434 = vmatprep.subr.mxu0 0.0
      %435 = vmatpush1.msra.mxu0 0.0
      %436 = vmatprep.subr.mxu0 0.0
      %437 = vmatpush1.msra.mxu0 0.0
      %438 = vmatprep.subr.mxu0 0.0
      %439 = vmatpush1.msra.mxu0 0.0
      %440 = vmatprep.subr.mxu0 0.0
      %441 = vmatpush1.msra.mxu0 0.0
      %442 = vmatprep.subr.mxu0 0.0
      %443 = vmatpush1.msra.mxu0 0.0
      %444 = vmatprep.subr.mxu0 0.0
      %445 = vmatpush1.msra.mxu0 0.0
      %446 = vmatprep.subr.mxu0 0.0
      %447 = vmatpush1.msra.mxu0 0.0
      %448 = vmatprep.subr.mxu0 0.0
      %449 = vmatpush1.msra.mxu0 0.0
      %450 = vmatprep.subr.mxu0 0.0
      %451 = vmatpush1.msra.mxu0 0.0
      %452 = vmatprep.mubr.f32.mxu0 0.0
      %453 = vmatmul.mubr.f32.gmra.mrb[0].mxu0 %v380
      %v454 = vpop.f32.mrb[0].mxu0
      %v455 = vadd.f32 0.0, %v454
      %v456 = vpop.f32.mrb[0].mxu0
      %457 = vmatprep.mubr.f32.mxu0 0.0
      %458 = vmatmul.mubr.f32.gmra.mrb[0].mxu0 %v383
      %v459 = vpop.f32.mrb[0].mxu0
      %v460 = vadd.f32 0.0, %v459
      %v461 = vpop.f32.mrb[0].mxu0
      %462 = vdwg.mxu0
      %v463 = vadd.f32 %v366, %v455
      %v464 = vadd.f32 %v371, %v460
      %v465 = vld [vmem:[%s194 + $0x3] sm:$0xff]
      %v466 = vld [vmem:[%s194 + $0xb] sm:$0x3]
      %s467 = scalar_lea.vmem %s1, 48
      %v468 = vld [vmem:[%s467] sm:$0xff]
      %v469 = vld [vmem:[%s467 + $0x8] sm:$0x3]
      %v471 = vsel %vm204, %v465, 0
      %v474 = vsel %vm204, %v466, 0
      %v477 = vsel %vm211, %v469, 0
      %479 = vmatprep.subr.mxu0 0.0
      %480 = vmatpush1.msra.mxu0 %v468
      %481 = vmatprep.subr.mxu0 0.0
      %482 = vmatpush1.msra.mxu0 %v477
      %483 = vmatprep.subr.mxu0 0.0
      %484 = vmatpush1.msra.mxu0 0.0
      %485 = vmatprep.subr.mxu0 0.0
      %486 = vmatpush1.msra.mxu0 0.0
      %487 = vmatprep.subr.mxu0 0.0
      %488 = vmatpush1.msra.mxu0 0.0
      %489 = vmatprep.subr.mxu0 0.0
      %490 = vmatpush1.msra.mxu0 0.0
      %491 = vmatprep.subr.mxu0 0.0
      %492 = vmatpush1.msra.mxu0 0.0
      %493 = vmatprep.subr.mxu0 0.0
      %494 = vmatpush1.msra.mxu0 0.0
      %495 = vmatprep.subr.mxu0 0.0
      %496 = vmatpush1.msra.mxu0 0.0
      %497 = vmatprep.subr.mxu0 0.0
      %498 = vmatpush1.msra.mxu0 0.0
      %499 = vmatprep.subr.mxu0 0.0
      %500 = vmatpush1.msra.mxu0 0.0
      %501 = vmatprep.subr.mxu0 0.0
      %502 = vmatpush1.msra.mxu0 0.0
      %503 = vmatprep.subr.mxu0 0.0
      %504 = vmatpush1.msra.mxu0 0.0
      %505 = vmatprep.subr.mxu0 0.0
      %506 = vmatpush1.msra.mxu0 0.0
      %507 = vmatprep.subr.mxu0 0.0
      %508 = vmatpush1.msra.mxu0 0.0
      %509 = vmatprep.subr.mxu0 0.0
      %510 = vmatpush1.msra.mxu0 0.0
      %511 = vmatprep.subr.mxu0 0.0
      %512 = vmatpush1.msra.mxu0 0.0
      %513 = vmatprep.subr.mxu0 0.0
      %514 = vmatpush1.msra.mxu0 0.0
      %515 = vmatprep.subr.mxu0 0.0
      %516 = vmatpush1.msra.mxu0 0.0
      %517 = vmatprep.subr.mxu0 0.0
      %518 = vmatpush1.msra.mxu0 0.0
      %519 = vmatprep.subr.mxu0 0.0
      %520 = vmatpush1.msra.mxu0 0.0
      %521 = vmatprep.subr.mxu0 0.0
      %522 = vmatpush1.msra.mxu0 0.0
      %523 = vmatprep.subr.mxu0 0.0
      %524 = vmatpush1.msra.mxu0 0.0
      %525 = vmatprep.subr.mxu0 0.0
      %526 = vmatpush1.msra.mxu0 0.0
      %527 = vmatprep.subr.mxu0 0.0
      %528 = vmatpush1.msra.mxu0 0.0
      %529 = vmatprep.subr.mxu0 0.0
      %530 = vmatpush1.msra.mxu0 0.0
      %531 = vmatprep.subr.mxu0 0.0
      %532 = vmatpush1.msra.mxu0 0.0
      %533 = vmatprep.subr.mxu0 0.0
      %534 = vmatpush1.msra.mxu0 0.0
      %535 = vmatprep.subr.mxu0 0.0
      %536 = vmatpush1.msra.mxu0 0.0
      %537 = vmatprep.subr.mxu0 0.0
      %538 = vmatpush1.msra.mxu0 0.0
      %539 = vmatprep.subr.mxu0 0.0
      %540 = vmatpush1.msra.mxu0 0.0
      %541 = vmatprep.subr.mxu0 0.0
      %542 = vmatpush1.msra.mxu0 0.0
      %543 = vmatprep.mubr.f32.mxu0 0.0
      %544 = vmatmul.mubr.f32.gmra.mrb[0].mxu0 %v471
      %v545 = vpop.f32.mrb[0].mxu0
      %v546 = vadd.f32 0.0, %v545
      %v547 = vpop.f32.mrb[0].mxu0
      %548 = vmatprep.mubr.f32.mxu0 0.0
      %549 = vmatmul.mubr.f32.gmra.mrb[0].mxu0 %v474
      %v550 = vpop.f32.mrb[0].mxu0
      %v551 = vadd.f32 0.0, %v550
      %v552 = vpop.f32.mrb[0].mxu0
      %553 = vdwg.mxu0
      %v554 = vadd.f32 %v463, %v546
      %v555 = vadd.f32 %v464, %v551
      %v556 = vld [vmem:[%s194 + $0x4] sm:$0xff]
      %v557 = vld [vmem:[%s194 + $0xc] sm:$0x3]
      %s558 = scalar_lea.vmem %s1, 64
      %v559 = vld [vmem:[%s558] sm:$0xff]
      %v560 = vld [vmem:[%s558 + $0x8] sm:$0x3]
      %v562 = vsel %vm204, %v556, 0
      %v565 = vsel %vm204, %v557, 0
      %v568 = vsel %vm211, %v560, 0
      %570 = vmatprep.subr.mxu0 0.0
      %571 = vmatpush1.msra.mxu0 %v559
      %572 = vmatprep.subr.mxu0 0.0
      %573 = vmatpush1.msra.mxu0 %v568
      %574 = vmatprep.subr.mxu0 0.0
      %575 = vmatpush1.msra.mxu0 0.0
      %576 = vmatprep.subr.mxu0 0.0
      %577 = vmatpush1.msra.mxu0 0.0
      %578 = vmatprep.subr.mxu0 0.0
      %579 = vmatpush1.msra.mxu0 0.0
      %580 = vmatprep.subr.mxu0 0.0
      %581 = vmatpush1.msra.mxu0 0.0
      %582 = vmatprep.subr.mxu0 0.0
      %583 = vmatpush1.msra.mxu0 0.0
      %584 = vmatprep.subr.mxu0 0.0
      %585 = vmatpush1.msra.mxu0 0.0
      %586 = vmatprep.subr.mxu0 0.0
      %587 = vmatpush1.msra.mxu0 0.0
      %588 = vmatprep.subr.mxu0 0.0
      %589 = vmatpush1.msra.mxu0 0.0
      %590 = vmatprep.subr.mxu0 0.0
      %591 = vmatpush1.msra.mxu0 0.0
      %592 = vmatprep.subr.mxu0 0.0
      %593 = vmatpush1.msra.mxu0 0.0
      %594 = vmatprep.subr.mxu0 0.0
      %595 = vmatpush1.msra.mxu0 0.0
      %596 = vmatprep.subr.mxu0 0.0
      %597 = vmatpush1.msra.mxu0 0.0
      %598 = vmatprep.subr.mxu0 0.0
      %599 = vmatpush1.msra.mxu0 0.0
      %600 = vmatprep.subr.mxu0 0.0
      %601 = vmatpush1.msra.mxu0 0.0
      %602 = vmatprep.subr.mxu0 0.0
      %603 = vmatpush1.msra.mxu0 0.0
      %604 = vmatprep.subr.mxu0 0.0
      %605 = vmatpush1.msra.mxu0 0.0
      %606 = vmatprep.subr.mxu0 0.0
      %607 = vmatpush1.msra.mxu0 0.0
      %608 = vmatprep.subr.mxu0 0.0
      %609 = vmatpush1.msra.mxu0 0.0
      %610 = vmatprep.subr.mxu0 0.0
      %611 = vmatpush1.msra.mxu0 0.0
      %612 = vmatprep.subr.mxu0 0.0
      %613 = vmatpush1.msra.mxu0 0.0
      %614 = vmatprep.subr.mxu0 0.0
      %615 = vmatpush1.msra.mxu0 0.0
      %616 = vmatprep.subr.mxu0 0.0
      %617 = vmatpush1.msra.mxu0 0.0
      %618 = vmatprep.subr.mxu0 0.0
      %619 = vmatpush1.msra.mxu0 0.0
      %620 = vmatprep.subr.mxu0 0.0
      %621 = vmatpush1.msra.mxu0 0.0
      %622 = vmatprep.subr.mxu0 0.0
      %623 = vmatpush1.msra.mxu0 0.0
      %624 = vmatprep.subr.mxu0 0.0
      %625 = vmatpush1.msra.mxu0 0.0
      %626 = vmatprep.subr.mxu0 0.0
      %627 = vmatpush1.msra.mxu0 0.0
      %628 = vmatprep.subr.mxu0 0.0
      %629 = vmatpush1.msra.mxu0 0.0
      %630 = vmatprep.subr.mxu0 0.0
      %631 = vmatpush1.msra.mxu0 0.0
      %632 = vmatprep.subr.mxu0 0.0
      %633 = vmatpush1.msra.mxu0 0.0
      %634 = vmatprep.mubr.f32.mxu0 0.0
      %635 = vmatmul.mubr.f32.gmra.mrb[0].mxu0 %v562
      %v636 = vpop.f32.mrb[0].mxu0
      %v637 = vadd.f32 0.0, %v636
      %v638 = vpop.f32.mrb[0].mxu0
      %639 = vmatprep.mubr.f32.mxu0 0.0
      %640 = vmatmul.mubr.f32.gmra.mrb[0].mxu0 %v565
      %v641 = vpop.f32.mrb[0].mxu0
      %v642 = vadd.f32 0.0, %v641
      %v643 = vpop.f32.mrb[0].mxu0
      %644 = vdwg.mxu0
      %v645 = vadd.f32 %v554, %v637
      %v646 = vadd.f32 %v555, %v642
      %s647 = sadd.s32 %s19, 1
      %s648 = smul.u32 %s647, 16
      %s649 = scalar_lea.vmem %s183, %s648
      %v650 = vld [vmem:[%s649] sm:$0xff]
      %v651 = vld [vmem:[%s649 + $0x8] sm:$0x3]
      %s652 = scalar_lea.vmem %s1, 80
      %v653 = vld [vmem:[%s652] sm:$0xff]
      %v654 = vld [vmem:[%s652 + $0x8] sm:$0x3]
      %v656 = vsel %vm204, %v650, 0
      %v659 = vsel %vm204, %v651, 0
      %v662 = vsel %vm211, %v654, 0
      %664 = vmatprep.subr.mxu0 0.0
      %665 = vmatpush1.msra.mxu0 %v653
      %666 = vmatprep.subr.mxu0 0.0
      %667 = vmatpush1.msra.mxu0 %v662
      %668 = vmatprep.subr.mxu0 0.0
      %669 = vmatpush1.msra.mxu0 0.0
      %670 = vmatprep.subr.mxu0 0.0
      %671 = vmatpush1.msra.mxu0 0.0
      %672 = vmatprep.subr.mxu0 0.0
      %673 = vmatpush1.msra.mxu0 0.0
      %674 = vmatprep.subr.mxu0 0.0
      %675 = vmatpush1.msra.mxu0 0.0
      %676 = vmatprep.subr.mxu0 0.0
      %677 = vmatpush1.msra.mxu0 0.0
      %678 = vmatprep.subr.mxu0 0.0
      %679 = vmatpush1.msra.mxu0 0.0
      %680 = vmatprep.subr.mxu0 0.0
      %681 = vmatpush1.msra.mxu0 0.0
      %682 = vmatprep.subr.mxu0 0.0
      %683 = vmatpush1.msra.mxu0 0.0
      %684 = vmatprep.subr.mxu0 0.0
      %685 = vmatpush1.msra.mxu0 0.0
      %686 = vmatprep.subr.mxu0 0.0
      %687 = vmatpush1.msra.mxu0 0.0
      %688 = vmatprep.subr.mxu0 0.0
      %689 = vmatpush1.msra.mxu0 0.0
      %690 = vmatprep.subr.mxu0 0.0
      %691 = vmatpush1.msra.mxu0 0.0
      %692 = vmatprep.subr.mxu0 0.0
      %693 = vmatpush1.msra.mxu0 0.0
      %694 = vmatprep.subr.mxu0 0.0
      %695 = vmatpush1.msra.mxu0 0.0
      %696 = vmatprep.subr.mxu0 0.0
      %697 = vmatpush1.msra.mxu0 0.0
      %698 = vmatprep.subr.mxu0 0.0
      %699 = vmatpush1.msra.mxu0 0.0
      %700 = vmatprep.subr.mxu0 0.0
      %701 = vmatpush1.msra.mxu0 0.0
      %702 = vmatprep.subr.mxu0 0.0
      %703 = vmatpush1.msra.mxu0 0.0
      %704 = vmatprep.subr.mxu0 0.0
      %705 = vmatpush1.msra.mxu0 0.0
      %706 = vmatprep.subr.mxu0 0.0
      %707 = vmatpush1.msra.mxu0 0.0
      %708 = vmatprep.subr.mxu0 0.0
      %709 = vmatpush1.msra.mxu0 0.0
      %710 = vmatprep.subr.mxu0 0.0
      %711 = vmatpush1.msra.mxu0 0.0
      %712 = vmatprep.subr.mxu0 0.0
      %713 = vmatpush1.msra.mxu0 0.0
      %714 = vmatprep.subr.mxu0 0.0
      %715 = vmatpush1.msra.mxu0 0.0
      %716 = vmatprep.subr.mxu0 0.0
      %717 = vmatpush1.msra.mxu0 0.0
      %718 = vmatprep.subr.mxu0 0.0
      %719 = vmatpush1.msra.mxu0 0.0
      %720 = vmatprep.subr.mxu0 0.0
      %721 = vmatpush1.msra.mxu0 0.0
      %722 = vmatprep.subr.mxu0 0.0
      %723 = vmatpush1.msra.mxu0 0.0
      %724 = vmatprep.subr.mxu0 0.0
      %725 = vmatpush1.msra.mxu0 0.0
      %726 = vmatprep.subr.mxu0 0.0
      %727 = vmatpush1.msra.mxu0 0.0
      %728 = vmatprep.mubr.f32.mxu0 0.0
      %729 = vmatmul.mubr.f32.gmra.mrb[0].mxu0 %v656
      %v730 = vpop.f32.mrb[0].mxu0
      %v731 = vadd.f32 0.0, %v730
      %v732 = vpop.f32.mrb[0].mxu0
      %733 = vmatprep.mubr.f32.mxu0 0.0
      %734 = vmatmul.mubr.f32.gmra.mrb[0].mxu0 %v659
      %v735 = vpop.f32.mrb[0].mxu0
      %v736 = vadd.f32 0.0, %v735
      %v737 = vpop.f32.mrb[0].mxu0
      %738 = vdwg.mxu0
      %v739 = vadd.f32 %v645, %v731
      %v740 = vadd.f32 %v646, %v736
      %v741 = vld [vmem:[%s649 + $0x1] sm:$0xff]
      %v742 = vld [vmem:[%s649 + $0x9] sm:$0x3]
      %s743 = scalar_lea.vmem %s1, 96
      %v744 = vld [vmem:[%s743] sm:$0xff]
      %v745 = vld [vmem:[%s743 + $0x8] sm:$0x3]
      %v747 = vsel %vm204, %v741, 0
      %v750 = vsel %vm204, %v742, 0
      %v753 = vsel %vm211, %v745, 0
      %755 = vmatprep.subr.mxu0 0.0
      %756 = vmatpush1.msra.mxu0 %v744
      %757 = vmatprep.subr.mxu0 0.0
      %758 = vmatpush1.msra.mxu0 %v753
      %759 = vmatprep.subr.mxu0 0.0
      %760 = vmatpush1.msra.mxu0 0.0
      %761 = vmatprep.subr.mxu0 0.0
      %762 = vmatpush1.msra.mxu0 0.0
      %763 = vmatprep.subr.mxu0 0.0
      %764 = vmatpush1.msra.mxu0 0.0
      %765 = vmatprep.subr.mxu0 0.0
      %766 = vmatpush1.msra.mxu0 0.0
      %767 = vmatprep.subr.mxu0 0.0
      %768 = vmatpush1.msra.mxu0 0.0
      %769 = vmatprep.subr.mxu0 0.0
      %770 = vmatpush1.msra.mxu0 0.0
      %771 = vmatprep.subr.mxu0 0.0
      %772 = vmatpush1.msra.mxu0 0.0
      %773 = vmatprep.subr.mxu0 0.0
      %774 = vmatpush1.msra.mxu0 0.0
      %775 = vmatprep.subr.mxu0 0.0
      %776 = vmatpush1.msra.mxu0 0.0
      %777 = vmatprep.subr.mxu0 0.0
      %778 = vmatpush1.msra.mxu0 0.0
      %779 = vmatprep.subr.mxu0 0.0
      %780 = vmatpush1.msra.mxu0 0.0
      %781 = vmatprep.subr.mxu0 0.0
      %782 = vmatpush1.msra.mxu0 0.0
      %783 = vmatprep.subr.mxu0 0.0
      %784 = vmatpush1.msra.mxu0 0.0
      %785 = vmatprep.subr.mxu0 0.0
      %786 = vmatpush1.msra.mxu0 0.0
      %787 = vmatprep.subr.mxu0 0.0
      %788 = vmatpush1.msra.mxu0 0.0
      %789 = vmatprep.subr.mxu0 0.0
      %790 = vmatpush1.msra.mxu0 0.0
      %791 = vmatprep.subr.mxu0 0.0
      %792 = vmatpush1.msra.mxu0 0.0
      %793 = vmatprep.subr.mxu0 0.0
      %794 = vmatpush1.msra.mxu0 0.0
      %795 = vmatprep.subr.mxu0 0.0
      %796 = vmatpush1.msra.mxu0 0.0
      %797 = vmatprep.subr.mxu0 0.0
      %798 = vmatpush1.msra.mxu0 0.0
      %799 = vmatprep.subr.mxu0 0.0
      %800 = vmatpush1.msra.mxu0 0.0
      %801 = vmatprep.subr.mxu0 0.0
      %802 = vmatpush1.msra.mxu0 0.0
      %803 = vmatprep.subr.mxu0 0.0
      %804 = vmatpush1.msra.mxu0 0.0
      %805 = vmatprep.subr.mxu0 0.0
      %806 = vmatpush1.msra.mxu0 0.0
      %807 = vmatprep.subr.mxu0 0.0
      %808 = vmatpush1.msra.mxu0 0.0
      %809 = vmatprep.subr.mxu0 0.0
      %810 = vmatpush1.msra.mxu0 0.0
      %811 = vmatprep.subr.mxu0 0.0
      %812 = vmatpush1.msra.mxu0 0.0
      %813 = vmatprep.subr.mxu0 0.0
      %814 = vmatpush1.msra.mxu0 0.0
      %815 = vmatprep.subr.mxu0 0.0
      %816 = vmatpush1.msra.mxu0 0.0
      %817 = vmatprep.subr.mxu0 0.0
      %818 = vmatpush1.msra.mxu0 0.0
      %819 = vmatprep.mubr.f32.mxu0 0.0
      %820 = vmatmul.mubr.f32.gmra.mrb[0].mxu0 %v747
      %v821 = vpop.f32.mrb[0].mxu0
      %v822 = vadd.f32 0.0, %v821
      %v823 = vpop.f32.mrb[0].mxu0
      %824 = vmatprep.mubr.f32.mxu0 0.0
      %825 = vmatmul.mubr.f32.gmra.mrb[0].mxu0 %v750
      %v826 = vpop.f32.mrb[0].mxu0
      %v827 = vadd.f32 0.0, %v826
      %v828 = vpop.f32.mrb[0].mxu0
      %829 = vdwg.mxu0
      %v830 = vadd.f32 %v739, %v822
      %v831 = vadd.f32 %v740, %v827
      %v832 = vld [vmem:[%s649 + $0x2] sm:$0xff]
      %v833 = vld [vmem:[%s649 + $0xa] sm:$0x3]
      %s834 = scalar_lea.vmem %s1, 112
      %v835 = vld [vmem:[%s834] sm:$0xff]
      %v836 = vld [vmem:[%s834 + $0x8] sm:$0x3]
      %v838 = vsel %vm204, %v832, 0
      %v841 = vsel %vm204, %v833, 0
      %v844 = vsel %vm211, %v836, 0
      %846 = vmatprep.subr.mxu0 0.0
      %847 = vmatpush1.msra.mxu0 %v835
      %848 = vmatprep.subr.mxu0 0.0
      %849 = vmatpush1.msra.mxu0 %v844
      %850 = vmatprep.subr.mxu0 0.0
      %851 = vmatpush1.msra.mxu0 0.0
      %852 = vmatprep.subr.mxu0 0.0
      %853 = vmatpush1.msra.mxu0 0.0
      %854 = vmatprep.subr.mxu0 0.0
      %855 = vmatpush1.msra.mxu0 0.0
      %856 = vmatprep.subr.mxu0 0.0
      %857 = vmatpush1.msra.mxu0 0.0
      %858 = vmatprep.subr.mxu0 0.0
      %859 = vmatpush1.msra.mxu0 0.0
      %860 = vmatprep.subr.mxu0 0.0
      %861 = vmatpush1.msra.mxu0 0.0
      %862 = vmatprep.subr.mxu0 0.0
      %863 = vmatpush1.msra.mxu0 0.0
      %864 = vmatprep.subr.mxu0 0.0
      %865 = vmatpush1.msra.mxu0 0.0
      %866 = vmatprep.subr.mxu0 0.0
      %867 = vmatpush1.msra.mxu0 0.0
      %868 = vmatprep.subr.mxu0 0.0
      %869 = vmatpush1.msra.mxu0 0.0
      %870 = vmatprep.subr.mxu0 0.0
      %871 = vmatpush1.msra.mxu0 0.0
      %872 = vmatprep.subr.mxu0 0.0
      %873 = vmatpush1.msra.mxu0 0.0
      %874 = vmatprep.subr.mxu0 0.0
      %875 = vmatpush1.msra.mxu0 0.0
      %876 = vmatprep.subr.mxu0 0.0
      %877 = vmatpush1.msra.mxu0 0.0
      %878 = vmatprep.subr.mxu0 0.0
      %879 = vmatpush1.msra.mxu0 0.0
      %880 = vmatprep.subr.mxu0 0.0
      %881 = vmatpush1.msra.mxu0 0.0
      %882 = vmatprep.subr.mxu0 0.0
      %883 = vmatpush1.msra.mxu0 0.0
      %884 = vmatprep.subr.mxu0 0.0
      %885 = vmatpush1.msra.mxu0 0.0
      %886 = vmatprep.subr.mxu0 0.0
      %887 = vmatpush1.msra.mxu0 0.0
      %888 = vmatprep.subr.mxu0 0.0
      %889 = vmatpush1.msra.mxu0 0.0
      %890 = vmatprep.subr.mxu0 0.0
      %891 = vmatpush1.msra.mxu0 0.0
      %892 = vmatprep.subr.mxu0 0.0
      %893 = vmatpush1.msra.mxu0 0.0
      %894 = vmatprep.subr.mxu0 0.0
      %895 = vmatpush1.msra.mxu0 0.0
      %896 = vmatprep.subr.mxu0 0.0
      %897 = vmatpush1.msra.mxu0 0.0
      %898 = vmatprep.subr.mxu0 0.0
      %899 = vmatpush1.msra.mxu0 0.0
      %900 = vmatprep.subr.mxu0 0.0
      %901 = vmatpush1.msra.mxu0 0.0
      %902 = vmatprep.subr.mxu0 0.0
      %903 = vmatpush1.msra.mxu0 0.0
      %904 = vmatprep.subr.mxu0 0.0
      %905 = vmatpush1.msra.mxu0 0.0
      %906 = vmatprep.subr.mxu0 0.0
      %907 = vmatpush1.msra.mxu0 0.0
      %908 = vmatprep.subr.mxu0 0.0
      %909 = vmatpush1.msra.mxu0 0.0
      %910 = vmatprep.mubr.f32.mxu0 0.0
      %911 = vmatmul.mubr.f32.gmra.mrb[0].mxu0 %v838
      %v912 = vpop.f32.mrb[0].mxu0
      %v913 = vadd.f32 0.0, %v912
      %v914 = vpop.f32.mrb[0].mxu0
      %915 = vmatprep.mubr.f32.mxu0 0.0
      %916 = vmatmul.mubr.f32.gmra.mrb[0].mxu0 %v841
      %v917 = vpop.f32.mrb[0].mxu0
      %v918 = vadd.f32 0.0, %v917
      %v919 = vpop.f32.mrb[0].mxu0
      %920 = vdwg.mxu0
      %v921 = vadd.f32 %v830, %v913
      %v922 = vadd.f32 %v831, %v918
      %v923 = vld [vmem:[%s649 + $0x3] sm:$0xff]
      %v924 = vld [vmem:[%s649 + $0xb] sm:$0x3]
      %s925 = scalar_lea.vmem %s1, 128
      %v926 = vld [vmem:[%s925] sm:$0xff]
      %v927 = vld [vmem:[%s925 + $0x8] sm:$0x3]
      %v929 = vsel %vm204, %v923, 0
      %v932 = vsel %vm204, %v924, 0
      %v935 = vsel %vm211, %v927, 0
      %937 = vmatprep.subr.mxu0 0.0
      %938 = vmatpush1.msra.mxu0 %v926
      %939 = vmatprep.subr.mxu0 0.0
      %940 = vmatpush1.msra.mxu0 %v935
      %941 = vmatprep.subr.mxu0 0.0
      %942 = vmatpush1.msra.mxu0 0.0
      %943 = vmatprep.subr.mxu0 0.0
      %944 = vmatpush1.msra.mxu0 0.0
      %945 = vmatprep.subr.mxu0 0.0
      %946 = vmatpush1.msra.mxu0 0.0
      %947 = vmatprep.subr.mxu0 0.0
      %948 = vmatpush1.msra.mxu0 0.0
      %949 = vmatprep.subr.mxu0 0.0
      %950 = vmatpush1.msra.mxu0 0.0
      %951 = vmatprep.subr.mxu0 0.0
      %952 = vmatpush1.msra.mxu0 0.0
      %953 = vmatprep.subr.mxu0 0.0
      %954 = vmatpush1.msra.mxu0 0.0
      %955 = vmatprep.subr.mxu0 0.0
      %956 = vmatpush1.msra.mxu0 0.0
      %957 = vmatprep.subr.mxu0 0.0
      %958 = vmatpush1.msra.mxu0 0.0
      %959 = vmatprep.subr.mxu0 0.0
      %960 = vmatpush1.msra.mxu0 0.0
      %961 = vmatprep.subr.mxu0 0.0
      %962 = vmatpush1.msra.mxu0 0.0
      %963 = vmatprep.subr.mxu0 0.0
      %964 = vmatpush1.msra.mxu0 0.0
      %965 = vmatprep.subr.mxu0 0.0
      %966 = vmatpush1.msra.mxu0 0.0
      %967 = vmatprep.subr.mxu0 0.0
      %968 = vmatpush1.msra.mxu0 0.0
      %969 = vmatprep.subr.mxu0 0.0
      %970 = vmatpush1.msra.mxu0 0.0
      %971 = vmatprep.subr.mxu0 0.0
      %972 = vmatpush1.msra.mxu0 0.0
      %973 = vmatprep.subr.mxu0 0.0
      %974 = vmatpush1.msra.mxu0 0.0
      %975 = vmatprep.subr.mxu0 0.0
      %976 = vmatpush1.msra.mxu0 0.0
      %977 = vmatprep.subr.mxu0 0.0
      %978 = vmatpush1.msra.mxu0 0.0
      %979 = vmatprep.subr.mxu0 0.0
      %980 = vmatpush1.msra.mxu0 0.0
      %981 = vmatprep.subr.mxu0 0.0
      %982 = vmatpush1.msra.mxu0 0.0
      %983 = vmatprep.subr.mxu0 0.0
      %984 = vmatpush1.msra.mxu0 0.0
      %985 = vmatprep.subr.mxu0 0.0
      %986 = vmatpush1.msra.mxu0 0.0
      %987 = vmatprep.subr.mxu0 0.0
      %988 = vmatpush1.msra.mxu0 0.0
      %989 = vmatprep.subr.mxu0 0.0
      %990 = vmatpush1.msra.mxu0 0.0
      %991 = vmatprep.subr.mxu0 0.0
      %992 = vmatpush1.msra.mxu0 0.0
      %993 = vmatprep.subr.mxu0 0.0
      %994 = vmatpush1.msra.mxu0 0.0
      %995 = vmatprep.subr.mxu0 0.0
      %996 = vmatpush1.msra.mxu0 0.0
      %997 = vmatprep.subr.mxu0 0.0
      %998 = vmatpush1.msra.mxu0 0.0
      %999 = vmatprep.subr.mxu0 0.0
      %1000 = vmatpush1.msra.mxu0 0.0
      %1001 = vmatprep.mubr.f32.mxu0 0.0
      %1002 = vmatmul.mubr.f32.gmra.mrb[0].mxu0 %v929
      %v1003 = vpop.f32.mrb[0].mxu0
      %v1004 = vadd.f32 0.0, %v1003
      %v1005 = vpop.f32.mrb[0].mxu0
      %1006 = vmatprep.mubr.f32.mxu0 0.0
      %1007 = vmatmul.mubr.f32.gmra.mrb[0].mxu0 %v932
      %v1008 = vpop.f32.mrb[0].mxu0
      %v1009 = vadd.f32 0.0, %v1008
      %v1010 = vpop.f32.mrb[0].mxu0
      %1011 = vdwg.mxu0
      %v1012 = vadd.f32 %v921, %v1004
      %v1013 = vadd.f32 %v922, %v1009
      %v1014 = vld [vmem:[%s649 + $0x4] sm:$0xff]
      %v1015 = vld [vmem:[%s649 + $0xc] sm:$0x3]
      %s1016 = scalar_lea.vmem %s1, 144
      %v1017 = vld [vmem:[%s1016] sm:$0xff]
      %v1018 = vld [vmem:[%s1016 + $0x8] sm:$0x3]
      %v1020 = vsel %vm204, %v1014, 0
      %v1023 = vsel %vm204, %v1015, 0
      %v1026 = vsel %vm211, %v1018, 0
      %1028 = vmatprep.subr.mxu0 0.0
      %1029 = vmatpush1.msra.mxu0 %v1017
      %1030 = vmatprep.subr.mxu0 0.0
      %1031 = vmatpush1.msra.mxu0 %v1026
      %1032 = vmatprep.subr.mxu0 0.0
      %1033 = vmatpush1.msra.mxu0 0.0
      %1034 = vmatprep.subr.mxu0 0.0
      %1035 = vmatpush1.msra.mxu0 0.0
      %1036 = vmatprep.subr.mxu0 0.0
      %1037 = vmatpush1.msra.mxu0 0.0
      %1038 = vmatprep.subr.mxu0 0.0
      %1039 = vmatpush1.msra.mxu0 0.0
      %1040 = vmatprep.subr.mxu0 0.0
      %1041 = vmatpush1.msra.mxu0 0.0
      %1042 = vmatprep.subr.mxu0 0.0
      %1043 = vmatpush1.msra.mxu0 0.0
      %1044 = vmatprep.subr.mxu0 0.0
      %1045 = vmatpush1.msra.mxu0 0.0
      %1046 = vmatprep.subr.mxu0 0.0
      %1047 = vmatpush1.msra.mxu0 0.0
      %1048 = vmatprep.subr.mxu0 0.0
      %1049 = vmatpush1.msra.mxu0 0.0
      %1050 = vmatprep.subr.mxu0 0.0
      %1051 = vmatpush1.msra.mxu0 0.0
      %1052 = vmatprep.subr.mxu0 0.0
      %1053 = vmatpush1.msra.mxu0 0.0
      %1054 = vmatprep.subr.mxu0 0.0
      %1055 = vmatpush1.msra.mxu0 0.0
      %1056 = vmatprep.subr.mxu0 0.0
      %1057 = vmatpush1.msra.mxu0 0.0
      %1058 = vmatprep.subr.mxu0 0.0
      %1059 = vmatpush1.msra.mxu0 0.0
      %1060 = vmatprep.subr.mxu0 0.0
      %1061 = vmatpush1.msra.mxu0 0.0
      %1062 = vmatprep.subr.mxu0 0.0
      %1063 = vmatpush1.msra.mxu0 0.0
      %1064 = vmatprep.subr.mxu0 0.0
      %1065 = vmatpush1.msra.mxu0 0.0
      %1066 = vmatprep.subr.mxu0 0.0
      %1067 = vmatpush1.msra.mxu0 0.0
      %1068 = vmatprep.subr.mxu0 0.0
      %1069 = vmatpush1.msra.mxu0 0.0
      %1070 = vmatprep.subr.mxu0 0.0
      %1071 = vmatpush1.msra.mxu0 0.0
      %1072 = vmatprep.subr.mxu0 0.0
      %1073 = vmatpush1.msra.mxu0 0.0
      %1074 = vmatprep.subr.mxu0 0.0
      %1075 = vmatpush1.msra.mxu0 0.0
      %1076 = vmatprep.subr.mxu0 0.0
      %1077 = vmatpush1.msra.mxu0 0.0
      %1078 = vmatprep.subr.mxu0 0.0
      %1079 = vmatpush1.msra.mxu0 0.0
      %1080 = vmatprep.subr.mxu0 0.0
      %1081 = vmatpush1.msra.mxu0 0.0
      %1082 = vmatprep.subr.mxu0 0.0
      %1083 = vmatpush1.msra.mxu0 0.0
      %1084 = vmatprep.subr.mxu0 0.0
      %1085 = vmatpush1.msra.mxu0 0.0
      %1086 = vmatprep.subr.mxu0 0.0
      %1087 = vmatpush1.msra.mxu0 0.0
      %1088 = vmatprep.subr.mxu0 0.0
      %1089 = vmatpush1.msra.mxu0 0.0
      %1090 = vmatprep.subr.mxu0 0.0
      %1091 = vmatpush1.msra.mxu0 0.0
      %1092 = vmatprep.mubr.f32.mxu0 0.0
      %1093 = vmatmul.mubr.f32.gmra.mrb[0].mxu0 %v1020
      %v1094 = vpop.f32.mrb[0].mxu0
      %v1095 = vadd.f32 0.0, %v1094
      %v1096 = vpop.f32.mrb[0].mxu0
      %1097 = vmatprep.mubr.f32.mxu0 0.0
      %1098 = vmatmul.mubr.f32.gmra.mrb[0].mxu0 %v1023
      %v1099 = vpop.f32.mrb[0].mxu0
      %v1100 = vadd.f32 0.0, %v1099
      %v1101 = vpop.f32.mrb[0].mxu0
      %1102 = vdwg.mxu0
      %v1103 = vadd.f32 %v1012, %v1095
      %v1104 = vadd.f32 %v1013, %v1100
      %s1105 = sadd.s32 %s19, 2
      %s1106 = smul.u32 %s1105, 16
      %s1107 = scalar_lea.vmem %s183, %s1106
      %v1108 = vld [vmem:[%s1107] sm:$0xff]
      %v1109 = vld [vmem:[%s1107 + $0x8] sm:$0x3]
      %s1110 = scalar_lea.vmem %s1, 160
      %v1111 = vld [vmem:[%s1110] sm:$0xff]
      %v1112 = vld [vmem:[%s1110 + $0x8] sm:$0x3]
      %v1114 = vsel %vm204, %v1108, 0
      %v1117 = vsel %vm204, %v1109, 0
      %v1120 = vsel %vm211, %v1112, 0
      %1122 = vmatprep.subr.mxu0 0.0
      %1123 = vmatpush1.msra.mxu0 %v1111
      %1124 = vmatprep.subr.mxu0 0.0
      %1125 = vmatpush1.msra.mxu0 %v1120
      %1126 = vmatprep.subr.mxu0 0.0
      %1127 = vmatpush1.msra.mxu0 0.0
      %1128 = vmatprep.subr.mxu0 0.0
      %1129 = vmatpush1.msra.mxu0 0.0
      %1130 = vmatprep.subr.mxu0 0.0
      %1131 = vmatpush1.msra.mxu0 0.0
      %1132 = vmatprep.subr.mxu0 0.0
      %1133 = vmatpush1.msra.mxu0 0.0
      %1134 = vmatprep.subr.mxu0 0.0
      %1135 = vmatpush1.msra.mxu0 0.0
      %1136 = vmatprep.subr.mxu0 0.0
      %1137 = vmatpush1.msra.mxu0 0.0
      %1138 = vmatprep.subr.mxu0 0.0
      %1139 = vmatpush1.msra.mxu0 0.0
      %1140 = vmatprep.subr.mxu0 0.0
      %1141 = vmatpush1.msra.mxu0 0.0
      %1142 = vmatprep.subr.mxu0 0.0
      %1143 = vmatpush1.msra.mxu0 0.0
      %1144 = vmatprep.subr.mxu0 0.0
      %1145 = vmatpush1.msra.mxu0 0.0
      %1146 = vmatprep.subr.mxu0 0.0
      %1147 = vmatpush1.msra.mxu0 0.0
      %1148 = vmatprep.subr.mxu0 0.0
      %1149 = vmatpush1.msra.mxu0 0.0
      %1150 = vmatprep.subr.mxu0 0.0
      %1151 = vmatpush1.msra.mxu0 0.0
      %1152 = vmatprep.subr.mxu0 0.0
      %1153 = vmatpush1.msra.mxu0 0.0
      %1154 = vmatprep.subr.mxu0 0.0
      %1155 = vmatpush1.msra.mxu0 0.0
      %1156 = vmatprep.subr.mxu0 0.0
      %1157 = vmatpush1.msra.mxu0 0.0
      %1158 = vmatprep.subr.mxu0 0.0
      %1159 = vmatpush1.msra.mxu0 0.0
      %1160 = vmatprep.subr.mxu0 0.0
      %1161 = vmatpush1.msra.mxu0 0.0
      %1162 = vmatprep.subr.mxu0 0.0
      %1163 = vmatpush1.msra.mxu0 0.0
      %1164 = vmatprep.subr.mxu0 0.0
      %1165 = vmatpush1.msra.mxu0 0.0
      %1166 = vmatprep.subr.mxu0 0.0
      %1167 = vmatpush1.msra.mxu0 0.0
      %1168 = vmatprep.subr.mxu0 0.0
      %1169 = vmatpush1.msra.mxu0 0.0
      %1170 = vmatprep.subr.mxu0 0.0
      %1171 = vmatpush1.msra.mxu0 0.0
      %1172 = vmatprep.subr.mxu0 0.0
      %1173 = vmatpush1.msra.mxu0 0.0
      %1174 = vmatprep.subr.mxu0 0.0
      %1175 = vmatpush1.msra.mxu0 0.0
      %1176 = vmatprep.subr.mxu0 0.0
      %1177 = vmatpush1.msra.mxu0 0.0
      %1178 = vmatprep.subr.mxu0 0.0
      %1179 = vmatpush1.msra.mxu0 0.0
      %1180 = vmatprep.subr.mxu0 0.0
      %1181 = vmatpush1.msra.mxu0 0.0
      %1182 = vmatprep.subr.mxu0 0.0
      %1183 = vmatpush1.msra.mxu0 0.0
      %1184 = vmatprep.subr.mxu0 0.0
      %1185 = vmatpush1.msra.mxu0 0.0
      %1186 = vmatprep.mubr.f32.mxu0 0.0
      %1187 = vmatmul.mubr.f32.gmra.mrb[0].mxu0 %v1114
      %v1188 = vpop.f32.mrb[0].mxu0
      %v1189 = vadd.f32 0.0, %v1188
      %v1190 = vpop.f32.mrb[0].mxu0
      %1191 = vmatprep.mubr.f32.mxu0 0.0
      %1192 = vmatmul.mubr.f32.gmra.mrb[0].mxu0 %v1117
      %v1193 = vpop.f32.mrb[0].mxu0
      %v1194 = vadd.f32 0.0, %v1193
      %v1195 = vpop.f32.mrb[0].mxu0
      %1196 = vdwg.mxu0
      %v1197 = vadd.f32 %v1103, %v1189
      %v1198 = vadd.f32 %v1104, %v1194
      %v1199 = vld [vmem:[%s1107 + $0x1] sm:$0xff]
      %v1200 = vld [vmem:[%s1107 + $0x9] sm:$0x3]
      %s1201 = scalar_lea.vmem %s1, 176
      %v1202 = vld [vmem:[%s1201] sm:$0xff]
      %v1203 = vld [vmem:[%s1201 + $0x8] sm:$0x3]
      %v1205 = vsel %vm204, %v1199, 0
      %v1208 = vsel %vm204, %v1200, 0
      %v1211 = vsel %vm211, %v1203, 0
      %1213 = vmatprep.subr.mxu0 0.0
      %1214 = vmatpush1.msra.mxu0 %v1202
      %1215 = vmatprep.subr.mxu0 0.0
      %1216 = vmatpush1.msra.mxu0 %v1211
      %1217 = vmatprep.subr.mxu0 0.0
      %1218 = vmatpush1.msra.mxu0 0.0
      %1219 = vmatprep.subr.mxu0 0.0
      %1220 = vmatpush1.msra.mxu0 0.0
      %1221 = vmatprep.subr.mxu0 0.0
      %1222 = vmatpush1.msra.mxu0 0.0
      %1223 = vmatprep.subr.mxu0 0.0
      %1224 = vmatpush1.msra.mxu0 0.0
      %1225 = vmatprep.subr.mxu0 0.0
      %1226 = vmatpush1.msra.mxu0 0.0
      %1227 = vmatprep.subr.mxu0 0.0
      %1228 = vmatpush1.msra.mxu0 0.0
      %1229 = vmatprep.subr.mxu0 0.0
      %1230 = vmatpush1.msra.mxu0 0.0
      %1231 = vmatprep.subr.mxu0 0.0
      %1232 = vmatpush1.msra.mxu0 0.0
      %1233 = vmatprep.subr.mxu0 0.0
      %1234 = vmatpush1.msra.mxu0 0.0
      %1235 = vmatprep.subr.mxu0 0.0
      %1236 = vmatpush1.msra.mxu0 0.0
      %1237 = vmatprep.subr.mxu0 0.0
      %1238 = vmatpush1.msra.mxu0 0.0
      %1239 = vmatprep.subr.mxu0 0.0
      %1240 = vmatpush1.msra.mxu0 0.0
      %1241 = vmatprep.subr.mxu0 0.0
      %1242 = vmatpush1.msra.mxu0 0.0
      %1243 = vmatprep.subr.mxu0 0.0
      %1244 = vmatpush1.msra.mxu0 0.0
      %1245 = vmatprep.subr.mxu0 0.0
      %1246 = vmatpush1.msra.mxu0 0.0
      %1247 = vmatprep.subr.mxu0 0.0
      %1248 = vmatpush1.msra.mxu0 0.0
      %1249 = vmatprep.subr.mxu0 0.0
      %1250 = vmatpush1.msra.mxu0 0.0
      %1251 = vmatprep.subr.mxu0 0.0
      %1252 = vmatpush1.msra.mxu0 0.0
      %1253 = vmatprep.subr.mxu0 0.0
      %1254 = vmatpush1.msra.mxu0 0.0
      %1255 = vmatprep.subr.mxu0 0.0
      %1256 = vmatpush1.msra.mxu0 0.0
      %1257 = vmatprep.subr.mxu0 0.0
      %1258 = vmatpush1.msra.mxu0 0.0
      %1259 = vmatprep.subr.mxu0 0.0
      %1260 = vmatpush1.msra.mxu0 0.0
      %1261 = vmatprep.subr.mxu0 0.0
      %1262 = vmatpush1.msra.mxu0 0.0
      %1263 = vmatprep.subr.mxu0 0.0
      %1264 = vmatpush1.msra.mxu0 0.0
      %1265 = vmatprep.subr.mxu0 0.0
      %1266 = vmatpush1.msra.mxu0 0.0
      %1267 = vmatprep.subr.mxu0 0.0
      %1268 = vmatpush1.msra.mxu0 0.0
      %1269 = vmatprep.subr.mxu0 0.0
      %1270 = vmatpush1.msra.mxu0 0.0
      %1271 = vmatprep.subr.mxu0 0.0
      %1272 = vmatpush1.msra.mxu0 0.0
      %1273 = vmatprep.subr.mxu0 0.0
      %1274 = vmatpush1.msra.mxu0 0.0
      %1275 = vmatprep.subr.mxu0 0.0
      %1276 = vmatpush1.msra.mxu0 0.0
      %1277 = vmatprep.mubr.f32.mxu0 0.0
      %1278 = vmatmul.mubr.f32.gmra.mrb[0].mxu0 %v1205
      %v1279 = vpop.f32.mrb[0].mxu0
      %v1280 = vadd.f32 0.0, %v1279
      %v1281 = vpop.f32.mrb[0].mxu0
      %1282 = vmatprep.mubr.f32.mxu0 0.0
      %1283 = vmatmul.mubr.f32.gmra.mrb[0].mxu0 %v1208
      %v1284 = vpop.f32.mrb[0].mxu0
      %v1285 = vadd.f32 0.0, %v1284
      %v1286 = vpop.f32.mrb[0].mxu0
      %1287 = vdwg.mxu0
      %v1288 = vadd.f32 %v1197, %v1280
      %v1289 = vadd.f32 %v1198, %v1285
      %v1290 = vld [vmem:[%s1107 + $0x2] sm:$0xff]
      %v1291 = vld [vmem:[%s1107 + $0xa] sm:$0x3]
      %s1292 = scalar_lea.vmem %s1, 192
      %v1293 = vld [vmem:[%s1292] sm:$0xff]
      %v1294 = vld [vmem:[%s1292 + $0x8] sm:$0x3]
      %v1296 = vsel %vm204, %v1290, 0
      %v1299 = vsel %vm204, %v1291, 0
      %v1302 = vsel %vm211, %v1294, 0
      %1304 = vmatprep.subr.mxu0 0.0
      %1305 = vmatpush1.msra.mxu0 %v1293
      %1306 = vmatprep.subr.mxu0 0.0
      %1307 = vmatpush1.msra.mxu0 %v1302
      %1308 = vmatprep.subr.mxu0 0.0
      %1309 = vmatpush1.msra.mxu0 0.0
      %1310 = vmatprep.subr.mxu0 0.0
      %1311 = vmatpush1.msra.mxu0 0.0
      %1312 = vmatprep.subr.mxu0 0.0
      %1313 = vmatpush1.msra.mxu0 0.0
      %1314 = vmatprep.subr.mxu0 0.0
      %1315 = vmatpush1.msra.mxu0 0.0
      %1316 = vmatprep.subr.mxu0 0.0
      %1317 = vmatpush1.msra.mxu0 0.0
      %1318 = vmatprep.subr.mxu0 0.0
      %1319 = vmatpush1.msra.mxu0 0.0
      %1320 = vmatprep.subr.mxu0 0.0
      %1321 = vmatpush1.msra.mxu0 0.0
      %1322 = vmatprep.subr.mxu0 0.0
      %1323 = vmatpush1.msra.mxu0 0.0
      %1324 = vmatprep.subr.mxu0 0.0
      %1325 = vmatpush1.msra.mxu0 0.0
      %1326 = vmatprep.subr.mxu0 0.0
      %1327 = vmatpush1.msra.mxu0 0.0
      %1328 = vmatprep.subr.mxu0 0.0
      %1329 = vmatpush1.msra.mxu0 0.0
      %1330 = vmatprep.subr.mxu0 0.0
      %1331 = vmatpush1.msra.mxu0 0.0
      %1332 = vmatprep.subr.mxu0 0.0
      %1333 = vmatpush1.msra.mxu0 0.0
      %1334 = vmatprep.subr.mxu0 0.0
      %1335 = vmatpush1.msra.mxu0 0.0
      %1336 = vmatprep.subr.mxu0 0.0
      %1337 = vmatpush1.msra.mxu0 0.0
      %1338 = vmatprep.subr.mxu0 0.0
      %1339 = vmatpush1.msra.mxu0 0.0
      %1340 = vmatprep.subr.mxu0 0.0
      %1341 = vmatpush1.msra.mxu0 0.0
      %1342 = vmatprep.subr.mxu0 0.0
      %1343 = vmatpush1.msra.mxu0 0.0
      %1344 = vmatprep.subr.mxu0 0.0
      %1345 = vmatpush1.msra.mxu0 0.0
      %1346 = vmatprep.subr.mxu0 0.0
      %1347 = vmatpush1.msra.mxu0 0.0
      %1348 = vmatprep.subr.mxu0 0.0
      %1349 = vmatpush1.msra.mxu0 0.0
      %1350 = vmatprep.subr.mxu0 0.0
      %1351 = vmatpush1.msra.mxu0 0.0
      %1352 = vmatprep.subr.mxu0 0.0
      %1353 = vmatpush1.msra.mxu0 0.0
      %1354 = vmatprep.subr.mxu0 0.0
      %1355 = vmatpush1.msra.mxu0 0.0
      %1356 = vmatprep.subr.mxu0 0.0
      %1357 = vmatpush1.msra.mxu0 0.0
      %1358 = vmatprep.subr.mxu0 0.0
      %1359 = vmatpush1.msra.mxu0 0.0
      %1360 = vmatprep.subr.mxu0 0.0
      %1361 = vmatpush1.msra.mxu0 0.0
      %1362 = vmatprep.subr.mxu0 0.0
      %1363 = vmatpush1.msra.mxu0 0.0
      %1364 = vmatprep.subr.mxu0 0.0
      %1365 = vmatpush1.msra.mxu0 0.0
      %1366 = vmatprep.subr.mxu0 0.0
      %1367 = vmatpush1.msra.mxu0 0.0
      %1368 = vmatprep.mubr.f32.mxu0 0.0
      %1369 = vmatmul.mubr.f32.gmra.mrb[0].mxu0 %v1296
      %v1370 = vpop.f32.mrb[0].mxu0
      %v1371 = vadd.f32 0.0, %v1370
      %v1372 = vpop.f32.mrb[0].mxu0
      %1373 = vmatprep.mubr.f32.mxu0 0.0
      %1374 = vmatmul.mubr.f32.gmra.mrb[0].mxu0 %v1299
      %v1375 = vpop.f32.mrb[0].mxu0
      %v1376 = vadd.f32 0.0, %v1375
      %v1377 = vpop.f32.mrb[0].mxu0
      %1378 = vdwg.mxu0
      %v1379 = vadd.f32 %v1288, %v1371
      %v1380 = vadd.f32 %v1289, %v1376
      %v1381 = vld [vmem:[%s1107 + $0x3] sm:$0xff]
      %v1382 = vld [vmem:[%s1107 + $0xb] sm:$0x3]
      %s1383 = scalar_lea.vmem %s1, 208
      %v1384 = vld [vmem:[%s1383] sm:$0xff]
      %v1385 = vld [vmem:[%s1383 + $0x8] sm:$0x3]
      %v1387 = vsel %vm204, %v1381, 0
      %v1390 = vsel %vm204, %v1382, 0
      %v1393 = vsel %vm211, %v1385, 0
      %1395 = vmatprep.subr.mxu0 0.0
      %1396 = vmatpush1.msra.mxu0 %v1384
      %1397 = vmatprep.subr.mxu0 0.0
      %1398 = vmatpush1.msra.mxu0 %v1393
      %1399 = vmatprep.subr.mxu0 0.0
      %1400 = vmatpush1.msra.mxu0 0.0
      %1401 = vmatprep.subr.mxu0 0.0
      %1402 = vmatpush1.msra.mxu0 0.0
      %1403 = vmatprep.subr.mxu0 0.0
      %1404 = vmatpush1.msra.mxu0 0.0
      %1405 = vmatprep.subr.mxu0 0.0
      %1406 = vmatpush1.msra.mxu0 0.0
      %1407 = vmatprep.subr.mxu0 0.0
      %1408 = vmatpush1.msra.mxu0 0.0
      %1409 = vmatprep.subr.mxu0 0.0
      %1410 = vmatpush1.msra.mxu0 0.0
      %1411 = vmatprep.subr.mxu0 0.0
      %1412 = vmatpush1.msra.mxu0 0.0
      %1413 = vmatprep.subr.mxu0 0.0
      %1414 = vmatpush1.msra.mxu0 0.0
      %1415 = vmatprep.subr.mxu0 0.0
      %1416 = vmatpush1.msra.mxu0 0.0
      %1417 = vmatprep.subr.mxu0 0.0
      %1418 = vmatpush1.msra.mxu0 0.0
      %1419 = vmatprep.subr.mxu0 0.0
      %1420 = vmatpush1.msra.mxu0 0.0
      %1421 = vmatprep.subr.mxu0 0.0
      %1422 = vmatpush1.msra.mxu0 0.0
      %1423 = vmatprep.subr.mxu0 0.0
      %1424 = vmatpush1.msra.mxu0 0.0
      %1425 = vmatprep.subr.mxu0 0.0
      %1426 = vmatpush1.msra.mxu0 0.0
      %1427 = vmatprep.subr.mxu0 0.0
      %1428 = vmatpush1.msra.mxu0 0.0
      %1429 = vmatprep.subr.mxu0 0.0
      %1430 = vmatpush1.msra.mxu0 0.0
      %1431 = vmatprep.subr.mxu0 0.0
      %1432 = vmatpush1.msra.mxu0 0.0
      %1433 = vmatprep.subr.mxu0 0.0
      %1434 = vmatpush1.msra.mxu0 0.0
      %1435 = vmatprep.subr.mxu0 0.0
      %1436 = vmatpush1.msra.mxu0 0.0
      %1437 = vmatprep.subr.mxu0 0.0
      %1438 = vmatpush1.msra.mxu0 0.0
      %1439 = vmatprep.subr.mxu0 0.0
      %1440 = vmatpush1.msra.mxu0 0.0
      %1441 = vmatprep.subr.mxu0 0.0
      %1442 = vmatpush1.msra.mxu0 0.0
      %1443 = vmatprep.subr.mxu0 0.0
      %1444 = vmatpush1.msra.mxu0 0.0
      %1445 = vmatprep.subr.mxu0 0.0
      %1446 = vmatpush1.msra.mxu0 0.0
      %1447 = vmatprep.subr.mxu0 0.0
      %1448 = vmatpush1.msra.mxu0 0.0
      %1449 = vmatprep.subr.mxu0 0.0
      %1450 = vmatpush1.msra.mxu0 0.0
      %1451 = vmatprep.subr.mxu0 0.0
      %1452 = vmatpush1.msra.mxu0 0.0
      %1453 = vmatprep.subr.mxu0 0.0
      %1454 = vmatpush1.msra.mxu0 0.0
      %1455 = vmatprep.subr.mxu0 0.0
      %1456 = vmatpush1.msra.mxu0 0.0
      %1457 = vmatprep.subr.mxu0 0.0
      %1458 = vmatpush1.msra.mxu0 0.0
      %1459 = vmatprep.mubr.f32.mxu0 0.0
      %1460 = vmatmul.mubr.f32.gmra.mrb[0].mxu0 %v1387
      %v1461 = vpop.f32.mrb[0].mxu0
      %v1462 = vadd.f32 0.0, %v1461
      %v1463 = vpop.f32.mrb[0].mxu0
      %1464 = vmatprep.mubr.f32.mxu0 0.0
      %1465 = vmatmul.mubr.f32.gmra.mrb[0].mxu0 %v1390
      %v1466 = vpop.f32.mrb[0].mxu0
      %v1467 = vadd.f32 0.0, %v1466
      %v1468 = vpop.f32.mrb[0].mxu0
      %1469 = vdwg.mxu0
      %v1470 = vadd.f32 %v1379, %v1462
      %v1471 = vadd.f32 %v1380, %v1467
      %v1472 = vld [vmem:[%s1107 + $0x4] sm:$0xff]
      %v1473 = vld [vmem:[%s1107 + $0xc] sm:$0x3]
      %s1474 = scalar_lea.vmem %s1, 224
      %v1475 = vld [vmem:[%s1474] sm:$0xff]
      %v1476 = vld [vmem:[%s1474 + $0x8] sm:$0x3]
      %v1478 = vsel %vm204, %v1472, 0
      %v1481 = vsel %vm204, %v1473, 0
      %v1484 = vsel %vm211, %v1476, 0
      %1486 = vmatprep.subr.mxu0 0.0
      %1487 = vmatpush1.msra.mxu0 %v1475
      %1488 = vmatprep.subr.mxu0 0.0
      %1489 = vmatpush1.msra.mxu0 %v1484
      %1490 = vmatprep.subr.mxu0 0.0
      %1491 = vmatpush1.msra.mxu0 0.0
      %1492 = vmatprep.subr.mxu0 0.0
      %1493 = vmatpush1.msra.mxu0 0.0
      %1494 = vmatprep.subr.mxu0 0.0
      %1495 = vmatpush1.msra.mxu0 0.0
      %1496 = vmatprep.subr.mxu0 0.0
      %1497 = vmatpush1.msra.mxu0 0.0
      %1498 = vmatprep.subr.mxu0 0.0
      %1499 = vmatpush1.msra.mxu0 0.0
      %1500 = vmatprep.subr.mxu0 0.0
      %1501 = vmatpush1.msra.mxu0 0.0
      %1502 = vmatprep.subr.mxu0 0.0
      %1503 = vmatpush1.msra.mxu0 0.0
      %1504 = vmatprep.subr.mxu0 0.0
      %1505 = vmatpush1.msra.mxu0 0.0
      %1506 = vmatprep.subr.mxu0 0.0
      %1507 = vmatpush1.msra.mxu0 0.0
      %1508 = vmatprep.subr.mxu0 0.0
      %1509 = vmatpush1.msra.mxu0 0.0
      %1510 = vmatprep.subr.mxu0 0.0
      %1511 = vmatpush1.msra.mxu0 0.0
      %1512 = vmatprep.subr.mxu0 0.0
      %1513 = vmatpush1.msra.mxu0 0.0
      %1514 = vmatprep.subr.mxu0 0.0
      %1515 = vmatpush1.msra.mxu0 0.0
      %1516 = vmatprep.subr.mxu0 0.0
      %1517 = vmatpush1.msra.mxu0 0.0
      %1518 = vmatprep.subr.mxu0 0.0
      %1519 = vmatpush1.msra.mxu0 0.0
      %1520 = vmatprep.subr.mxu0 0.0
      %1521 = vmatpush1.msra.mxu0 0.0
      %1522 = vmatprep.subr.mxu0 0.0
      %1523 = vmatpush1.msra.mxu0 0.0
      %1524 = vmatprep.subr.mxu0 0.0
      %1525 = vmatpush1.msra.mxu0 0.0
      %1526 = vmatprep.subr.mxu0 0.0
      %1527 = vmatpush1.msra.mxu0 0.0
      %1528 = vmatprep.subr.mxu0 0.0
      %1529 = vmatpush1.msra.mxu0 0.0
      %1530 = vmatprep.subr.mxu0 0.0
      %1531 = vmatpush1.msra.mxu0 0.0
      %1532 = vmatprep.subr.mxu0 0.0
      %1533 = vmatpush1.msra.mxu0 0.0
      %1534 = vmatprep.subr.mxu0 0.0
      %1535 = vmatpush1.msra.mxu0 0.0
      %1536 = vmatprep.subr.mxu0 0.0
      %1537 = vmatpush1.msra.mxu0 0.0
      %1538 = vmatprep.subr.mxu0 0.0
      %1539 = vmatpush1.msra.mxu0 0.0
      %1540 = vmatprep.subr.mxu0 0.0
      %1541 = vmatpush1.msra.mxu0 0.0
      %1542 = vmatprep.subr.mxu0 0.0
      %1543 = vmatpush1.msra.mxu0 0.0
      %1544 = vmatprep.subr.mxu0 0.0
      %1545 = vmatpush1.msra.mxu0 0.0
      %1546 = vmatprep.subr.mxu0 0.0
      %1547 = vmatpush1.msra.mxu0 0.0
      %1548 = vmatprep.subr.mxu0 0.0
      %1549 = vmatpush1.msra.mxu0 0.0
      %1550 = vmatprep.mubr.f32.mxu0 0.0
      %1551 = vmatmul.mubr.f32.gmra.mrb[0].mxu0 %v1478
      %v1552 = vpop.f32.mrb[0].mxu0
      %v1553 = vadd.f32 0.0, %v1552
      %v1554 = vpop.f32.mrb[0].mxu0
      %1555 = vmatprep.mubr.f32.mxu0 0.0
      %1556 = vmatmul.mubr.f32.gmra.mrb[0].mxu0 %v1481
      %v1557 = vpop.f32.mrb[0].mxu0
      %v1558 = vadd.f32 0.0, %v1557
      %v1559 = vpop.f32.mrb[0].mxu0
      %1560 = vdwg.mxu0
      %v1561 = vadd.f32 %v1470, %v1553
      %v1562 = vadd.f32 %v1471, %v1558
      %s1563 = sadd.s32 %s19, 3
      %s1564 = smul.u32 %s1563, 16
      %s1565 = scalar_lea.vmem %s183, %s1564
      %v1566 = vld [vmem:[%s1565] sm:$0xff]
      %v1567 = vld [vmem:[%s1565 + $0x8] sm:$0x3]
      %s1568 = scalar_lea.vmem %s1, 240
      %v1569 = vld [vmem:[%s1568] sm:$0xff]
      %v1570 = vld [vmem:[%s1568 + $0x8] sm:$0x3]
      %v1572 = vsel %vm204, %v1566, 0
      %v1575 = vsel %vm204, %v1567, 0
      %v1578 = vsel %vm211, %v1570, 0
      %1580 = vmatprep.subr.mxu0 0.0
      %1581 = vmatpush1.msra.mxu0 %v1569
      %1582 = vmatprep.subr.mxu0 0.0
      %1583 = vmatpush1.msra.mxu0 %v1578
      %1584 = vmatprep.subr.mxu0 0.0
      %1585 = vmatpush1.msra.mxu0 0.0
      %1586 = vmatprep.subr.mxu0 0.0
      %1587 = vmatpush1.msra.mxu0 0.0
      %1588 = vmatprep.subr.mxu0 0.0
      %1589 = vmatpush1.msra.mxu0 0.0
      %1590 = vmatprep.subr.mxu0 0.0
      %1591 = vmatpush1.msra.mxu0 0.0
      %1592 = vmatprep.subr.mxu0 0.0
      %1593 = vmatpush1.msra.mxu0 0.0
      %1594 = vmatprep.subr.mxu0 0.0
      %1595 = vmatpush1.msra.mxu0 0.0
      %1596 = vmatprep.subr.mxu0 0.0
      %1597 = vmatpush1.msra.mxu0 0.0
      %1598 = vmatprep.subr.mxu0 0.0
      %1599 = vmatpush1.msra.mxu0 0.0
      %1600 = vmatprep.subr.mxu0 0.0
      %1601 = vmatpush1.msra.mxu0 0.0
      %1602 = vmatprep.subr.mxu0 0.0
      %1603 = vmatpush1.msra.mxu0 0.0
      %1604 = vmatprep.subr.mxu0 0.0
      %1605 = vmatpush1.msra.mxu0 0.0
      %1606 = vmatprep.subr.mxu0 0.0
      %1607 = vmatpush1.msra.mxu0 0.0
      %1608 = vmatprep.subr.mxu0 0.0
      %1609 = vmatpush1.msra.mxu0 0.0
      %1610 = vmatprep.subr.mxu0 0.0
      %1611 = vmatpush1.msra.mxu0 0.0
      %1612 = vmatprep.subr.mxu0 0.0
      %1613 = vmatpush1.msra.mxu0 0.0
      %1614 = vmatprep.subr.mxu0 0.0
      %1615 = vmatpush1.msra.mxu0 0.0
      %1616 = vmatprep.subr.mxu0 0.0
      %1617 = vmatpush1.msra.mxu0 0.0
      %1618 = vmatprep.subr.mxu0 0.0
      %1619 = vmatpush1.msra.mxu0 0.0
      %1620 = vmatprep.subr.mxu0 0.0
      %1621 = vmatpush1.msra.mxu0 0.0
      %1622 = vmatprep.subr.mxu0 0.0
      %1623 = vmatpush1.msra.mxu0 0.0
      %1624 = vmatprep.subr.mxu0 0.0
      %1625 = vmatpush1.msra.mxu0 0.0
      %1626 = vmatprep.subr.mxu0 0.0
      %1627 = vmatpush1.msra.mxu0 0.0
      %1628 = vmatprep.subr.mxu0 0.0
      %1629 = vmatpush1.msra.mxu0 0.0
      %1630 = vmatprep.subr.mxu0 0.0
      %1631 = vmatpush1.msra.mxu0 0.0
      %1632 = vmatprep.subr.mxu0 0.0
      %1633 = vmatpush1.msra.mxu0 0.0
      %1634 = vmatprep.subr.mxu0 0.0
      %1635 = vmatpush1.msra.mxu0 0.0
      %1636 = vmatprep.subr.mxu0 0.0
      %1637 = vmatpush1.msra.mxu0 0.0
      %1638 = vmatprep.subr.mxu0 0.0
      %1639 = vmatpush1.msra.mxu0 0.0
      %1640 = vmatprep.subr.mxu0 0.0
      %1641 = vmatpush1.msra.mxu0 0.0
      %1642 = vmatprep.subr.mxu0 0.0
      %1643 = vmatpush1.msra.mxu0 0.0
      %1644 = vmatprep.mubr.f32.mxu0 0.0
      %1645 = vmatmul.mubr.f32.gmra.mrb[0].mxu0 %v1572
      %v1646 = vpop.f32.mrb[0].mxu0
      %v1647 = vadd.f32 0.0, %v1646
      %v1648 = vpop.f32.mrb[0].mxu0
      %1649 = vmatprep.mubr.f32.mxu0 0.0
      %1650 = vmatmul.mubr.f32.gmra.mrb[0].mxu0 %v1575
      %v1651 = vpop.f32.mrb[0].mxu0
      %v1652 = vadd.f32 0.0, %v1651
      %v1653 = vpop.f32.mrb[0].mxu0
      %1654 = vdwg.mxu0
      %v1655 = vadd.f32 %v1561, %v1647
      %v1656 = vadd.f32 %v1562, %v1652
      %v1657 = vld [vmem:[%s1565 + $0x1] sm:$0xff]
      %v1658 = vld [vmem:[%s1565 + $0x9] sm:$0x3]
      %s1659 = scalar_lea.vmem %s1, 256
      %v1660 = vld [vmem:[%s1659] sm:$0xff]
      %v1661 = vld [vmem:[%s1659 + $0x8] sm:$0x3]
      %v1663 = vsel %vm204, %v1657, 0
      %v1666 = vsel %vm204, %v1658, 0
      %v1669 = vsel %vm211, %v1661, 0
      %1671 = vmatprep.subr.mxu0 0.0
      %1672 = vmatpush1.msra.mxu0 %v1660
      %1673 = vmatprep.subr.mxu0 0.0
      %1674 = vmatpush1.msra.mxu0 %v1669
      %1675 = vmatprep.subr.mxu0 0.0
      %1676 = vmatpush1.msra.mxu0 0.0
      %1677 = vmatprep.subr.mxu0 0.0
      %1678 = vmatpush1.msra.mxu0 0.0
      %1679 = vmatprep.subr.mxu0 0.0
      %1680 = vmatpush1.msra.mxu0 0.0
      %1681 = vmatprep.subr.mxu0 0.0
      %1682 = vmatpush1.msra.mxu0 0.0
      %1683 = vmatprep.subr.mxu0 0.0
      %1684 = vmatpush1.msra.mxu0 0.0
      %1685 = vmatprep.subr.mxu0 0.0
      %1686 = vmatpush1.msra.mxu0 0.0
      %1687 = vmatprep.subr.mxu0 0.0
      %1688 = vmatpush1.msra.mxu0 0.0
      %1689 = vmatprep.subr.mxu0 0.0
      %1690 = vmatpush1.msra.mxu0 0.0
      %1691 = vmatprep.subr.mxu0 0.0
      %1692 = vmatpush1.msra.mxu0 0.0
      %1693 = vmatprep.subr.mxu0 0.0
      %1694 = vmatpush1.msra.mxu0 0.0
      %1695 = vmatprep.subr.mxu0 0.0
      %1696 = vmatpush1.msra.mxu0 0.0
      %1697 = vmatprep.subr.mxu0 0.0
      %1698 = vmatpush1.msra.mxu0 0.0
      %1699 = vmatprep.subr.mxu0 0.0
      %1700 = vmatpush1.msra.mxu0 0.0
      %1701 = vmatprep.subr.mxu0 0.0
      %1702 = vmatpush1.msra.mxu0 0.0
      %1703 = vmatprep.subr.mxu0 0.0
      %1704 = vmatpush1.msra.mxu0 0.0
      %1705 = vmatprep.subr.mxu0 0.0
      %1706 = vmatpush1.msra.mxu0 0.0
      %1707 = vmatprep.subr.mxu0 0.0
      %1708 = vmatpush1.msra.mxu0 0.0
      %1709 = vmatprep.subr.mxu0 0.0
      %1710 = vmatpush1.msra.mxu0 0.0
      %1711 = vmatprep.subr.mxu0 0.0
      %1712 = vmatpush1.msra.mxu0 0.0
      %1713 = vmatprep.subr.mxu0 0.0
      %1714 = vmatpush1.msra.mxu0 0.0
      %1715 = vmatprep.subr.mxu0 0.0
      %1716 = vmatpush1.msra.mxu0 0.0
      %1717 = vmatprep.subr.mxu0 0.0
      %1718 = vmatpush1.msra.mxu0 0.0
      %1719 = vmatprep.subr.mxu0 0.0
      %1720 = vmatpush1.msra.mxu0 0.0
      %1721 = vmatprep.subr.mxu0 0.0
      %1722 = vmatpush1.msra.mxu0 0.0
      %1723 = vmatprep.subr.mxu0 0.0
      %1724 = vmatpush1.msra.mxu0 0.0
      %1725 = vmatprep.subr.mxu0 0.0
      %1726 = vmatpush1.msra.mxu0 0.0
      %1727 = vmatprep.subr.mxu0 0.0
      %1728 = vmatpush1.msra.mxu0 0.0
      %1729 = vmatprep.subr.mxu0 0.0
      %1730 = vmatpush1.msra.mxu0 0.0
      %1731 = vmatprep.subr.mxu0 0.0
      %1732 = vmatpush1.msra.mxu0 0.0
      %1733 = vmatprep.subr.mxu0 0.0
      %1734 = vmatpush1.msra.mxu0 0.0
      %1735 = vmatprep.mubr.f32.mxu0 0.0
      %1736 = vmatmul.mubr.f32.gmra.mrb[0].mxu0 %v1663
      %v1737 = vpop.f32.mrb[0].mxu0
      %v1738 = vadd.f32 0.0, %v1737
      %v1739 = vpop.f32.mrb[0].mxu0
      %1740 = vmatprep.mubr.f32.mxu0 0.0
      %1741 = vmatmul.mubr.f32.gmra.mrb[0].mxu0 %v1666
      %v1742 = vpop.f32.mrb[0].mxu0
      %v1743 = vadd.f32 0.0, %v1742
      %v1744 = vpop.f32.mrb[0].mxu0
      %1745 = vdwg.mxu0
      %v1746 = vadd.f32 %v1655, %v1738
      %v1747 = vadd.f32 %v1656, %v1743
      %v1748 = vld [vmem:[%s1565 + $0x2] sm:$0xff]
      %v1749 = vld [vmem:[%s1565 + $0xa] sm:$0x3]
      %s1750 = scalar_lea.vmem %s1, 272
      %v1751 = vld [vmem:[%s1750] sm:$0xff]
      %v1752 = vld [vmem:[%s1750 + $0x8] sm:$0x3]
      %v1754 = vsel %vm204, %v1748, 0
      %v1757 = vsel %vm204, %v1749, 0
      %v1760 = vsel %vm211, %v1752, 0
      %1762 = vmatprep.subr.mxu0 0.0
      %1763 = vmatpush1.msra.mxu0 %v1751
      %1764 = vmatprep.subr.mxu0 0.0
      %1765 = vmatpush1.msra.mxu0 %v1760
      %1766 = vmatprep.subr.mxu0 0.0
      %1767 = vmatpush1.msra.mxu0 0.0
      %1768 = vmatprep.subr.mxu0 0.0
      %1769 = vmatpush1.msra.mxu0 0.0
      %1770 = vmatprep.subr.mxu0 0.0
      %1771 = vmatpush1.msra.mxu0 0.0
      %1772 = vmatprep.subr.mxu0 0.0
      %1773 = vmatpush1.msra.mxu0 0.0
      %1774 = vmatprep.subr.mxu0 0.0
      %1775 = vmatpush1.msra.mxu0 0.0
      %1776 = vmatprep.subr.mxu0 0.0
      %1777 = vmatpush1.msra.mxu0 0.0
      %1778 = vmatprep.subr.mxu0 0.0
      %1779 = vmatpush1.msra.mxu0 0.0
      %1780 = vmatprep.subr.mxu0 0.0
      %1781 = vmatpush1.msra.mxu0 0.0
      %1782 = vmatprep.subr.mxu0 0.0
      %1783 = vmatpush1.msra.mxu0 0.0
      %1784 = vmatprep.subr.mxu0 0.0
      %1785 = vmatpush1.msra.mxu0 0.0
      %1786 = vmatprep.subr.mxu0 0.0
      %1787 = vmatpush1.msra.mxu0 0.0
      %1788 = vmatprep.subr.mxu0 0.0
      %1789 = vmatpush1.msra.mxu0 0.0
      %1790 = vmatprep.subr.mxu0 0.0
      %1791 = vmatpush1.msra.mxu0 0.0
      %1792 = vmatprep.subr.mxu0 0.0
      %1793 = vmatpush1.msra.mxu0 0.0
      %1794 = vmatprep.subr.mxu0 0.0
      %1795 = vmatpush1.msra.mxu0 0.0
      %1796 = vmatprep.subr.mxu0 0.0
      %1797 = vmatpush1.msra.mxu0 0.0
      %1798 = vmatprep.subr.mxu0 0.0
      %1799 = vmatpush1.msra.mxu0 0.0
      %1800 = vmatprep.subr.mxu0 0.0
      %1801 = vmatpush1.msra.mxu0 0.0
      %1802 = vmatprep.subr.mxu0 0.0
      %1803 = vmatpush1.msra.mxu0 0.0
      %1804 = vmatprep.subr.mxu0 0.0
      %1805 = vmatpush1.msra.mxu0 0.0
      %1806 = vmatprep.subr.mxu0 0.0
      %1807 = vmatpush1.msra.mxu0 0.0
      %1808 = vmatprep.subr.mxu0 0.0
      %1809 = vmatpush1.msra.mxu0 0.0
      %1810 = vmatprep.subr.mxu0 0.0
      %1811 = vmatpush1.msra.mxu0 0.0
      %1812 = vmatprep.subr.mxu0 0.0
      %1813 = vmatpush1.msra.mxu0 0.0
      %1814 = vmatprep.subr.mxu0 0.0
      %1815 = vmatpush1.msra.mxu0 0.0
      %1816 = vmatprep.subr.mxu0 0.0
      %1817 = vmatpush1.msra.mxu0 0.0
      %1818 = vmatprep.subr.mxu0 0.0
      %1819 = vmatpush1.msra.mxu0 0.0
      %1820 = vmatprep.subr.mxu0 0.0
      %1821 = vmatpush1.msra.mxu0 0.0
      %1822 = vmatprep.subr.mxu0 0.0
      %1823 = vmatpush1.msra.mxu0 0.0
      %1824 = vmatprep.subr.mxu0 0.0
      %1825 = vmatpush1.msra.mxu0 0.0
      %1826 = vmatprep.mubr.f32.mxu0 0.0
      %1827 = vmatmul.mubr.f32.gmra.mrb[0].mxu0 %v1754
      %v1828 = vpop.f32.mrb[0].mxu0
      %v1829 = vadd.f32 0.0, %v1828
      %v1830 = vpop.f32.mrb[0].mxu0
      %1831 = vmatprep.mubr.f32.mxu0 0.0
      %1832 = vmatmul.mubr.f32.gmra.mrb[0].mxu0 %v1757
      %v1833 = vpop.f32.mrb[0].mxu0
      %v1834 = vadd.f32 0.0, %v1833
      %v1835 = vpop.f32.mrb[0].mxu0
      %1836 = vdwg.mxu0
      %v1837 = vadd.f32 %v1746, %v1829
      %v1838 = vadd.f32 %v1747, %v1834
      %v1839 = vld [vmem:[%s1565 + $0x3] sm:$0xff]
      %v1840 = vld [vmem:[%s1565 + $0xb] sm:$0x3]
      %s1841 = scalar_lea.vmem %s1, 288
      %v1842 = vld [vmem:[%s1841] sm:$0xff]
      %v1843 = vld [vmem:[%s1841 + $0x8] sm:$0x3]
      %v1845 = vsel %vm204, %v1839, 0
      %v1848 = vsel %vm204, %v1840, 0
      %v1851 = vsel %vm211, %v1843, 0
      %1853 = vmatprep.subr.mxu0 0.0
      %1854 = vmatpush1.msra.mxu0 %v1842
      %1855 = vmatprep.subr.mxu0 0.0
      %1856 = vmatpush1.msra.mxu0 %v1851
      %1857 = vmatprep.subr.mxu0 0.0
      %1858 = vmatpush1.msra.mxu0 0.0
      %1859 = vmatprep.subr.mxu0 0.0
      %1860 = vmatpush1.msra.mxu0 0.0
      %1861 = vmatprep.subr.mxu0 0.0
      %1862 = vmatpush1.msra.mxu0 0.0
      %1863 = vmatprep.subr.mxu0 0.0
      %1864 = vmatpush1.msra.mxu0 0.0
      %1865 = vmatprep.subr.mxu0 0.0
      %1866 = vmatpush1.msra.mxu0 0.0
      %1867 = vmatprep.subr.mxu0 0.0
      %1868 = vmatpush1.msra.mxu0 0.0
      %1869 = vmatprep.subr.mxu0 0.0
      %1870 = vmatpush1.msra.mxu0 0.0
      %1871 = vmatprep.subr.mxu0 0.0
      %1872 = vmatpush1.msra.mxu0 0.0
      %1873 = vmatprep.subr.mxu0 0.0
      %1874 = vmatpush1.msra.mxu0 0.0
      %1875 = vmatprep.subr.mxu0 0.0
      %1876 = vmatpush1.msra.mxu0 0.0
      %1877 = vmatprep.subr.mxu0 0.0
      %1878 = vmatpush1.msra.mxu0 0.0
      %1879 = vmatprep.subr.mxu0 0.0
      %1880 = vmatpush1.msra.mxu0 0.0
      %1881 = vmatprep.subr.mxu0 0.0
      %1882 = vmatpush1.msra.mxu0 0.0
      %1883 = vmatprep.subr.mxu0 0.0
      %1884 = vmatpush1.msra.mxu0 0.0
      %1885 = vmatprep.subr.mxu0 0.0
      %1886 = vmatpush1.msra.mxu0 0.0
      %1887 = vmatprep.subr.mxu0 0.0
      %1888 = vmatpush1.msra.mxu0 0.0
      %1889 = vmatprep.subr.mxu0 0.0
      %1890 = vmatpush1.msra.mxu0 0.0
      %1891 = vmatprep.subr.mxu0 0.0
      %1892 = vmatpush1.msra.mxu0 0.0
      %1893 = vmatprep.subr.mxu0 0.0
      %1894 = vmatpush1.msra.mxu0 0.0
      %1895 = vmatprep.subr.mxu0 0.0
      %1896 = vmatpush1.msra.mxu0 0.0
      %1897 = vmatprep.subr.mxu0 0.0
      %1898 = vmatpush1.msra.mxu0 0.0
      %1899 = vmatprep.subr.mxu0 0.0
      %1900 = vmatpush1.msra.mxu0 0.0
      %1901 = vmatprep.subr.mxu0 0.0
      %1902 = vmatpush1.msra.mxu0 0.0
      %1903 = vmatprep.subr.mxu0 0.0
      %1904 = vmatpush1.msra.mxu0 0.0
      %1905 = vmatprep.subr.mxu0 0.0
      %1906 = vmatpush1.msra.mxu0 0.0
      %1907 = vmatprep.subr.mxu0 0.0
      %1908 = vmatpush1.msra.mxu0 0.0
      %1909 = vmatprep.subr.mxu0 0.0
      %1910 = vmatpush1.msra.mxu0 0.0
      %1911 = vmatprep.subr.mxu0 0.0
      %1912 = vmatpush1.msra.mxu0 0.0
      %1913 = vmatprep.subr.mxu0 0.0
      %1914 = vmatpush1.msra.mxu0 0.0
      %1915 = vmatprep.subr.mxu0 0.0
      %1916 = vmatpush1.msra.mxu0 0.0
      %1917 = vmatprep.mubr.f32.mxu0 0.0
      %1918 = vmatmul.mubr.f32.gmra.mrb[0].mxu0 %v1845
      %v1919 = vpop.f32.mrb[0].mxu0
      %v1920 = vadd.f32 0.0, %v1919
      %v1921 = vpop.f32.mrb[0].mxu0
      %1922 = vmatprep.mubr.f32.mxu0 0.0
      %1923 = vmatmul.mubr.f32.gmra.mrb[0].mxu0 %v1848
      %v1924 = vpop.f32.mrb[0].mxu0
      %v1925 = vadd.f32 0.0, %v1924
      %v1926 = vpop.f32.mrb[0].mxu0
      %1927 = vdwg.mxu0
      %v1928 = vadd.f32 %v1837, %v1920
      %v1929 = vadd.f32 %v1838, %v1925
      %v1930 = vld [vmem:[%s1565 + $0x4] sm:$0xff]
      %v1931 = vld [vmem:[%s1565 + $0xc] sm:$0x3]
      %s1932 = scalar_lea.vmem %s1, 304
      %v1933 = vld [vmem:[%s1932] sm:$0xff]
      %v1934 = vld [vmem:[%s1932 + $0x8] sm:$0x3]
      %v1936 = vsel %vm204, %v1930, 0
      %v1939 = vsel %vm204, %v1931, 0
      %v1942 = vsel %vm211, %v1934, 0
      %1944 = vmatprep.subr.mxu0 0.0
      %1945 = vmatpush1.msra.mxu0 %v1933
      %1946 = vmatprep.subr.mxu0 0.0
      %1947 = vmatpush1.msra.mxu0 %v1942
      %1948 = vmatprep.subr.mxu0 0.0
      %1949 = vmatpush1.msra.mxu0 0.0
      %1950 = vmatprep.subr.mxu0 0.0
      %1951 = vmatpush1.msra.mxu0 0.0
      %1952 = vmatprep.subr.mxu0 0.0
      %1953 = vmatpush1.msra.mxu0 0.0
      %1954 = vmatprep.subr.mxu0 0.0
      %1955 = vmatpush1.msra.mxu0 0.0
      %1956 = vmatprep.subr.mxu0 0.0
      %1957 = vmatpush1.msra.mxu0 0.0
      %1958 = vmatprep.subr.mxu0 0.0
      %1959 = vmatpush1.msra.mxu0 0.0
      %1960 = vmatprep.subr.mxu0 0.0
      %1961 = vmatpush1.msra.mxu0 0.0
      %1962 = vmatprep.subr.mxu0 0.0
      %1963 = vmatpush1.msra.mxu0 0.0
      %1964 = vmatprep.subr.mxu0 0.0
      %1965 = vmatpush1.msra.mxu0 0.0
      %1966 = vmatprep.subr.mxu0 0.0
      %1967 = vmatpush1.msra.mxu0 0.0
      %1968 = vmatprep.subr.mxu0 0.0
      %1969 = vmatpush1.msra.mxu0 0.0
      %1970 = vmatprep.subr.mxu0 0.0
      %1971 = vmatpush1.msra.mxu0 0.0
      %1972 = vmatprep.subr.mxu0 0.0
      %1973 = vmatpush1.msra.mxu0 0.0
      %1974 = vmatprep.subr.mxu0 0.0
      %1975 = vmatpush1.msra.mxu0 0.0
      %1976 = vmatprep.subr.mxu0 0.0
      %1977 = vmatpush1.msra.mxu0 0.0
      %1978 = vmatprep.subr.mxu0 0.0
      %1979 = vmatpush1.msra.mxu0 0.0
      %1980 = vmatprep.subr.mxu0 0.0
      %1981 = vmatpush1.msra.mxu0 0.0
      %1982 = vmatprep.subr.mxu0 0.0
      %1983 = vmatpush1.msra.mxu0 0.0
      %1984 = vmatprep.subr.mxu0 0.0
      %1985 = vmatpush1.msra.mxu0 0.0
      %1986 = vmatprep.subr.mxu0 0.0
      %1987 = vmatpush1.msra.mxu0 0.0
      %1988 = vmatprep.subr.mxu0 0.0
      %1989 = vmatpush1.msra.mxu0 0.0
      %1990 = vmatprep.subr.mxu0 0.0
      %1991 = vmatpush1.msra.mxu0 0.0
      %1992 = vmatprep.subr.mxu0 0.0
      %1993 = vmatpush1.msra.mxu0 0.0
      %1994 = vmatprep.subr.mxu0 0.0
      %1995 = vmatpush1.msra.mxu0 0.0
      %1996 = vmatprep.subr.mxu0 0.0
      %1997 = vmatpush1.msra.mxu0 0.0
      %1998 = vmatprep.subr.mxu0 0.0
      %1999 = vmatpush1.msra.mxu0 0.0
      %2000 = vmatprep.subr.mxu0 0.0
      %2001 = vmatpush1.msra.mxu0 0.0
      %2002 = vmatprep.subr.mxu0 0.0
      %2003 = vmatpush1.msra.mxu0 0.0
      %2004 = vmatprep.subr.mxu0 0.0
      %2005 = vmatpush1.msra.mxu0 0.0
      %2006 = vmatprep.subr.mxu0 0.0
      %2007 = vmatpush1.msra.mxu0 0.0
      %2008 = vmatprep.mubr.f32.mxu0 0.0
      %2009 = vmatmul.mubr.f32.gmra.mrb[0].mxu0 %v1936
      %v2010 = vpop.f32.mrb[0].mxu0
      %v2011 = vadd.f32 0.0, %v2010
      %v2012 = vpop.f32.mrb[0].mxu0
      %2013 = vmatprep.mubr.f32.mxu0 0.0
      %2014 = vmatmul.mubr.f32.gmra.mrb[0].mxu0 %v1939
      %v2015 = vpop.f32.mrb[0].mxu0
      %v2016 = vadd.f32 0.0, %v2015
      %v2017 = vpop.f32.mrb[0].mxu0
      %2018 = vdwg.mxu0
      %v2019 = vadd.f32 %v1928, %v2011
      %v2020 = vadd.f32 %v1929, %v2016
      %s2021 = sadd.s32 %s19, 4
      %s2022 = smul.u32 %s2021, 16
      %s2023 = scalar_lea.vmem %s183, %s2022
      %v2024 = vld [vmem:[%s2023] sm:$0xff]
      %v2025 = vld [vmem:[%s2023 + $0x8] sm:$0x3]
      %s2026 = scalar_lea.vmem %s1, 320
      %v2027 = vld [vmem:[%s2026] sm:$0xff]
      %v2028 = vld [vmem:[%s2026 + $0x8] sm:$0x3]
      %v2030 = vsel %vm204, %v2024, 0
      %v2033 = vsel %vm204, %v2025, 0
      %v2036 = vsel %vm211, %v2028, 0
      %2038 = vmatprep.subr.mxu0 0.0
      %2039 = vmatpush1.msra.mxu0 %v2027
      %2040 = vmatprep.subr.mxu0 0.0
      %2041 = vmatpush1.msra.mxu0 %v2036
      %2042 = vmatprep.subr.mxu0 0.0
      %2043 = vmatpush1.msra.mxu0 0.0
      %2044 = vmatprep.subr.mxu0 0.0
      %2045 = vmatpush1.msra.mxu0 0.0
      %2046 = vmatprep.subr.mxu0 0.0
      %2047 = vmatpush1.msra.mxu0 0.0
      %2048 = vmatprep.subr.mxu0 0.0
      %2049 = vmatpush1.msra.mxu0 0.0
      %2050 = vmatprep.subr.mxu0 0.0
      %2051 = vmatpush1.msra.mxu0 0.0
      %2052 = vmatprep.subr.mxu0 0.0
      %2053 = vmatpush1.msra.mxu0 0.0
      %2054 = vmatprep.subr.mxu0 0.0
      %2055 = vmatpush1.msra.mxu0 0.0
      %2056 = vmatprep.subr.mxu0 0.0
      %2057 = vmatpush1.msra.mxu0 0.0
      %2058 = vmatprep.subr.mxu0 0.0
      %2059 = vmatpush1.msra.mxu0 0.0
      %2060 = vmatprep.subr.mxu0 0.0
      %2061 = vmatpush1.msra.mxu0 0.0
      %2062 = vmatprep.subr.mxu0 0.0
      %2063 = vmatpush1.msra.mxu0 0.0
      %2064 = vmatprep.subr.mxu0 0.0
      %2065 = vmatpush1.msra.mxu0 0.0
      %2066 = vmatprep.subr.mxu0 0.0
      %2067 = vmatpush1.msra.mxu0 0.0
      %2068 = vmatprep.subr.mxu0 0.0
      %2069 = vmatpush1.msra.mxu0 0.0
      %2070 = vmatprep.subr.mxu0 0.0
      %2071 = vmatpush1.msra.mxu0 0.0
      %2072 = vmatprep.subr.mxu0 0.0
      %2073 = vmatpush1.msra.mxu0 0.0
      %2074 = vmatprep.subr.mxu0 0.0
      %2075 = vmatpush1.msra.mxu0 0.0
      %2076 = vmatprep.subr.mxu0 0.0
      %2077 = vmatpush1.msra.mxu0 0.0
      %2078 = vmatprep.subr.mxu0 0.0
      %2079 = vmatpush1.msra.mxu0 0.0
      %2080 = vmatprep.subr.mxu0 0.0
      %2081 = vmatpush1.msra.mxu0 0.0
      %2082 = vmatprep.subr.mxu0 0.0
      %2083 = vmatpush1.msra.mxu0 0.0
      %2084 = vmatprep.subr.mxu0 0.0
      %2085 = vmatpush1.msra.mxu0 0.0
      %2086 = vmatprep.subr.mxu0 0.0
      %2087 = vmatpush1.msra.mxu0 0.0
      %2088 = vmatprep.subr.mxu0 0.0
      %2089 = vmatpush1.msra.mxu0 0.0
      %2090 = vmatprep.subr.mxu0 0.0
      %2091 = vmatpush1.msra.mxu0 0.0
      %2092 = vmatprep.subr.mxu0 0.0
      %2093 = vmatpush1.msra.mxu0 0.0
      %2094 = vmatprep.subr.mxu0 0.0
      %2095 = vmatpush1.msra.mxu0 0.0
      %2096 = vmatprep.subr.mxu0 0.0
      %2097 = vmatpush1.msra.mxu0 0.0
      %2098 = vmatprep.subr.mxu0 0.0
      %2099 = vmatpush1.msra.mxu0 0.0
      %2100 = vmatprep.subr.mxu0 0.0
      %2101 = vmatpush1.msra.mxu0 0.0
      %2102 = vmatprep.mubr.f32.mxu0 0.0
      %2103 = vmatmul.mubr.f32.gmra.mrb[0].mxu0 %v2030
      %v2104 = vpop.f32.mrb[0].mxu0
      %v2105 = vadd.f32 0.0, %v2104
      %v2106 = vpop.f32.mrb[0].mxu0
      %2107 = vmatprep.mubr.f32.mxu0 0.0
      %2108 = vmatmul.mubr.f32.gmra.mrb[0].mxu0 %v2033
      %v2109 = vpop.f32.mrb[0].mxu0
      %v2110 = vadd.f32 0.0, %v2109
      %v2111 = vpop.f32.mrb[0].mxu0
      %2112 = vdwg.mxu0
      %v2113 = vadd.f32 %v2019, %v2105
      %v2114 = vadd.f32 %v2020, %v2110
      %v2115 = vld [vmem:[%s2023 + $0x1] sm:$0xff]
      %v2116 = vld [vmem:[%s2023 + $0x9] sm:$0x3]
      %s2117 = scalar_lea.vmem %s1, 336
      %v2118 = vld [vmem:[%s2117] sm:$0xff]
      %v2119 = vld [vmem:[%s2117 + $0x8] sm:$0x3]
      %v2121 = vsel %vm204, %v2115, 0
      %v2124 = vsel %vm204, %v2116, 0
      %v2127 = vsel %vm211, %v2119, 0
      %2129 = vmatprep.subr.mxu0 0.0
      %2130 = vmatpush1.msra.mxu0 %v2118
      %2131 = vmatprep.subr.mxu0 0.0
      %2132 = vmatpush1.msra.mxu0 %v2127
      %2133 = vmatprep.subr.mxu0 0.0
      %2134 = vmatpush1.msra.mxu0 0.0
      %2135 = vmatprep.subr.mxu0 0.0
      %2136 = vmatpush1.msra.mxu0 0.0
      %2137 = vmatprep.subr.mxu0 0.0
      %2138 = vmatpush1.msra.mxu0 0.0
      %2139 = vmatprep.subr.mxu0 0.0
      %2140 = vmatpush1.msra.mxu0 0.0
      %2141 = vmatprep.subr.mxu0 0.0
      %2142 = vmatpush1.msra.mxu0 0.0
      %2143 = vmatprep.subr.mxu0 0.0
      %2144 = vmatpush1.msra.mxu0 0.0
      %2145 = vmatprep.subr.mxu0 0.0
      %2146 = vmatpush1.msra.mxu0 0.0
      %2147 = vmatprep.subr.mxu0 0.0
      %2148 = vmatpush1.msra.mxu0 0.0
      %2149 = vmatprep.subr.mxu0 0.0
      %2150 = vmatpush1.msra.mxu0 0.0
      %2151 = vmatprep.subr.mxu0 0.0
      %2152 = vmatpush1.msra.mxu0 0.0
      %2153 = vmatprep.subr.mxu0 0.0
      %2154 = vmatpush1.msra.mxu0 0.0
      %2155 = vmatprep.subr.mxu0 0.0
      %2156 = vmatpush1.msra.mxu0 0.0
      %2157 = vmatprep.subr.mxu0 0.0
      %2158 = vmatpush1.msra.mxu0 0.0
      %2159 = vmatprep.subr.mxu0 0.0
      %2160 = vmatpush1.msra.mxu0 0.0
      %2161 = vmatprep.subr.mxu0 0.0
      %2162 = vmatpush1.msra.mxu0 0.0
      %2163 = vmatprep.subr.mxu0 0.0
      %2164 = vmatpush1.msra.mxu0 0.0
      %2165 = vmatprep.subr.mxu0 0.0
      %2166 = vmatpush1.msra.mxu0 0.0
      %2167 = vmatprep.subr.mxu0 0.0
      %2168 = vmatpush1.msra.mxu0 0.0
      %2169 = vmatprep.subr.mxu0 0.0
      %2170 = vmatpush1.msra.mxu0 0.0
      %2171 = vmatprep.subr.mxu0 0.0
      %2172 = vmatpush1.msra.mxu0 0.0
      %2173 = vmatprep.subr.mxu0 0.0
      %2174 = vmatpush1.msra.mxu0 0.0
      %2175 = vmatprep.subr.mxu0 0.0
      %2176 = vmatpush1.msra.mxu0 0.0
      %2177 = vmatprep.subr.mxu0 0.0
      %2178 = vmatpush1.msra.mxu0 0.0
      %2179 = vmatprep.subr.mxu0 0.0
      %2180 = vmatpush1.msra.mxu0 0.0
      %2181 = vmatprep.subr.mxu0 0.0
      %2182 = vmatpush1.msra.mxu0 0.0
      %2183 = vmatprep.subr.mxu0 0.0
      %2184 = vmatpush1.msra.mxu0 0.0
      %2185 = vmatprep.subr.mxu0 0.0
      %2186 = vmatpush1.msra.mxu0 0.0
      %2187 = vmatprep.subr.mxu0 0.0
      %2188 = vmatpush1.msra.mxu0 0.0
      %2189 = vmatprep.subr.mxu0 0.0
      %2190 = vmatpush1.msra.mxu0 0.0
      %2191 = vmatprep.subr.mxu0 0.0
      %2192 = vmatpush1.msra.mxu0 0.0
      %2193 = vmatprep.mubr.f32.mxu0 0.0
      %2194 = vmatmul.mubr.f32.gmra.mrb[0].mxu0 %v2121
      %v2195 = vpop.f32.mrb[0].mxu0
      %v2196 = vadd.f32 0.0, %v2195
      %v2197 = vpop.f32.mrb[0].mxu0
      %2198 = vmatprep.mubr.f32.mxu0 0.0
      %2199 = vmatmul.mubr.f32.gmra.mrb[0].mxu0 %v2124
      %v2200 = vpop.f32.mrb[0].mxu0
      %v2201 = vadd.f32 0.0, %v2200
      %v2202 = vpop.f32.mrb[0].mxu0
      %2203 = vdwg.mxu0
      %v2204 = vadd.f32 %v2113, %v2196
      %v2205 = vadd.f32 %v2114, %v2201
      %v2206 = vld [vmem:[%s2023 + $0x2] sm:$0xff]
      %v2207 = vld [vmem:[%s2023 + $0xa] sm:$0x3]
      %s2208 = scalar_lea.vmem %s1, 352
      %v2209 = vld [vmem:[%s2208] sm:$0xff]
      %v2210 = vld [vmem:[%s2208 + $0x8] sm:$0x3]
      %v2212 = vsel %vm204, %v2206, 0
      %v2215 = vsel %vm204, %v2207, 0
      %v2218 = vsel %vm211, %v2210, 0
      %2220 = vmatprep.subr.mxu0 0.0
      %2221 = vmatpush1.msra.mxu0 %v2209
      %2222 = vmatprep.subr.mxu0 0.0
      %2223 = vmatpush1.msra.mxu0 %v2218
      %2224 = vmatprep.subr.mxu0 0.0
      %2225 = vmatpush1.msra.mxu0 0.0
      %2226 = vmatprep.subr.mxu0 0.0
      %2227 = vmatpush1.msra.mxu0 0.0
      %2228 = vmatprep.subr.mxu0 0.0
      %2229 = vmatpush1.msra.mxu0 0.0
      %2230 = vmatprep.subr.mxu0 0.0
      %2231 = vmatpush1.msra.mxu0 0.0
      %2232 = vmatprep.subr.mxu0 0.0
      %2233 = vmatpush1.msra.mxu0 0.0
      %2234 = vmatprep.subr.mxu0 0.0
      %2235 = vmatpush1.msra.mxu0 0.0
      %2236 = vmatprep.subr.mxu0 0.0
      %2237 = vmatpush1.msra.mxu0 0.0
      %2238 = vmatprep.subr.mxu0 0.0
      %2239 = vmatpush1.msra.mxu0 0.0
      %2240 = vmatprep.subr.mxu0 0.0
      %2241 = vmatpush1.msra.mxu0 0.0
      %2242 = vmatprep.subr.mxu0 0.0
      %2243 = vmatpush1.msra.mxu0 0.0
      %2244 = vmatprep.subr.mxu0 0.0
      %2245 = vmatpush1.msra.mxu0 0.0
      %2246 = vmatprep.subr.mxu0 0.0
      %2247 = vmatpush1.msra.mxu0 0.0
      %2248 = vmatprep.subr.mxu0 0.0
      %2249 = vmatpush1.msra.mxu0 0.0
      %2250 = vmatprep.subr.mxu0 0.0
      %2251 = vmatpush1.msra.mxu0 0.0
      %2252 = vmatprep.subr.mxu0 0.0
      %2253 = vmatpush1.msra.mxu0 0.0
      %2254 = vmatprep.subr.mxu0 0.0
      %2255 = vmatpush1.msra.mxu0 0.0
      %2256 = vmatprep.subr.mxu0 0.0
      %2257 = vmatpush1.msra.mxu0 0.0
      %2258 = vmatprep.subr.mxu0 0.0
      %2259 = vmatpush1.msra.mxu0 0.0
      %2260 = vmatprep.subr.mxu0 0.0
      %2261 = vmatpush1.msra.mxu0 0.0
      %2262 = vmatprep.subr.mxu0 0.0
      %2263 = vmatpush1.msra.mxu0 0.0
      %2264 = vmatprep.subr.mxu0 0.0
      %2265 = vmatpush1.msra.mxu0 0.0
      %2266 = vmatprep.subr.mxu0 0.0
      %2267 = vmatpush1.msra.mxu0 0.0
      %2268 = vmatprep.subr.mxu0 0.0
      %2269 = vmatpush1.msra.mxu0 0.0
      %2270 = vmatprep.subr.mxu0 0.0
      %2271 = vmatpush1.msra.mxu0 0.0
      %2272 = vmatprep.subr.mxu0 0.0
      %2273 = vmatpush1.msra.mxu0 0.0
      %2274 = vmatprep.subr.mxu0 0.0
      %2275 = vmatpush1.msra.mxu0 0.0
      %2276 = vmatprep.subr.mxu0 0.0
      %2277 = vmatpush1.msra.mxu0 0.0
      %2278 = vmatprep.subr.mxu0 0.0
      %2279 = vmatpush1.msra.mxu0 0.0
      %2280 = vmatprep.subr.mxu0 0.0
      %2281 = vmatpush1.msra.mxu0 0.0
      %2282 = vmatprep.subr.mxu0 0.0
      %2283 = vmatpush1.msra.mxu0 0.0
      %2284 = vmatprep.mubr.f32.mxu0 0.0
      %2285 = vmatmul.mubr.f32.gmra.mrb[0].mxu0 %v2212
      %v2286 = vpop.f32.mrb[0].mxu0
      %v2287 = vadd.f32 0.0, %v2286
      %v2288 = vpop.f32.mrb[0].mxu0
      %2289 = vmatprep.mubr.f32.mxu0 0.0
      %2290 = vmatmul.mubr.f32.gmra.mrb[0].mxu0 %v2215
      %v2291 = vpop.f32.mrb[0].mxu0
      %v2292 = vadd.f32 0.0, %v2291
      %v2293 = vpop.f32.mrb[0].mxu0
      %2294 = vdwg.mxu0
      %v2295 = vadd.f32 %v2204, %v2287
      %v2296 = vadd.f32 %v2205, %v2292
      %v2297 = vld [vmem:[%s2023 + $0x3] sm:$0xff]
      %v2298 = vld [vmem:[%s2023 + $0xb] sm:$0x3]
      %s2299 = scalar_lea.vmem %s1, 368
      %v2300 = vld [vmem:[%s2299] sm:$0xff]
      %v2301 = vld [vmem:[%s2299 + $0x8] sm:$0x3]
      %v2303 = vsel %vm204, %v2297, 0
      %v2306 = vsel %vm204, %v2298, 0
      %v2309 = vsel %vm211, %v2301, 0
      %2311 = vmatprep.subr.mxu0 0.0
      %2312 = vmatpush1.msra.mxu0 %v2300
      %2313 = vmatprep.subr.mxu0 0.0
      %2314 = vmatpush1.msra.mxu0 %v2309
      %2315 = vmatprep.subr.mxu0 0.0
      %2316 = vmatpush1.msra.mxu0 0.0
      %2317 = vmatprep.subr.mxu0 0.0
      %2318 = vmatpush1.msra.mxu0 0.0
      %2319 = vmatprep.subr.mxu0 0.0
      %2320 = vmatpush1.msra.mxu0 0.0
      %2321 = vmatprep.subr.mxu0 0.0
      %2322 = vmatpush1.msra.mxu0 0.0
      %2323 = vmatprep.subr.mxu0 0.0
      %2324 = vmatpush1.msra.mxu0 0.0
      %2325 = vmatprep.subr.mxu0 0.0
      %2326 = vmatpush1.msra.mxu0 0.0
      %2327 = vmatprep.subr.mxu0 0.0
      %2328 = vmatpush1.msra.mxu0 0.0
      %2329 = vmatprep.subr.mxu0 0.0
      %2330 = vmatpush1.msra.mxu0 0.0
      %2331 = vmatprep.subr.mxu0 0.0
      %2332 = vmatpush1.msra.mxu0 0.0
      %2333 = vmatprep.subr.mxu0 0.0
      %2334 = vmatpush1.msra.mxu0 0.0
      %2335 = vmatprep.subr.mxu0 0.0
      %2336 = vmatpush1.msra.mxu0 0.0
      %2337 = vmatprep.subr.mxu0 0.0
      %2338 = vmatpush1.msra.mxu0 0.0
      %2339 = vmatprep.subr.mxu0 0.0
      %2340 = vmatpush1.msra.mxu0 0.0
      %2341 = vmatprep.subr.mxu0 0.0
      %2342 = vmatpush1.msra.mxu0 0.0
      %2343 = vmatprep.subr.mxu0 0.0
      %2344 = vmatpush1.msra.mxu0 0.0
      %2345 = vmatprep.subr.mxu0 0.0
      %2346 = vmatpush1.msra.mxu0 0.0
      %2347 = vmatprep.subr.mxu0 0.0
      %2348 = vmatpush1.msra.mxu0 0.0
      %2349 = vmatprep.subr.mxu0 0.0
      %2350 = vmatpush1.msra.mxu0 0.0
      %2351 = vmatprep.subr.mxu0 0.0
      %2352 = vmatpush1.msra.mxu0 0.0
      %2353 = vmatprep.subr.mxu0 0.0
      %2354 = vmatpush1.msra.mxu0 0.0
      %2355 = vmatprep.subr.mxu0 0.0
      %2356 = vmatpush1.msra.mxu0 0.0
      %2357 = vmatprep.subr.mxu0 0.0
      %2358 = vmatpush1.msra.mxu0 0.0
      %2359 = vmatprep.subr.mxu0 0.0
      %2360 = vmatpush1.msra.mxu0 0.0
      %2361 = vmatprep.subr.mxu0 0.0
      %2362 = vmatpush1.msra.mxu0 0.0
      %2363 = vmatprep.subr.mxu0 0.0
      %2364 = vmatpush1.msra.mxu0 0.0
      %2365 = vmatprep.subr.mxu0 0.0
      %2366 = vmatpush1.msra.mxu0 0.0
      %2367 = vmatprep.subr.mxu0 0.0
      %2368 = vmatpush1.msra.mxu0 0.0
      %2369 = vmatprep.subr.mxu0 0.0
      %2370 = vmatpush1.msra.mxu0 0.0
      %2371 = vmatprep.subr.mxu0 0.0
      %2372 = vmatpush1.msra.mxu0 0.0
      %2373 = vmatprep.subr.mxu0 0.0
      %2374 = vmatpush1.msra.mxu0 0.0
      %2375 = vmatprep.mubr.f32.mxu0 0.0
      %2376 = vmatmul.mubr.f32.gmra.mrb[0].mxu0 %v2303
      %v2377 = vpop.f32.mrb[0].mxu0
      %v2378 = vadd.f32 0.0, %v2377
      %v2379 = vpop.f32.mrb[0].mxu0
      %2380 = vmatprep.mubr.f32.mxu0 0.0
      %2381 = vmatmul.mubr.f32.gmra.mrb[0].mxu0 %v2306
      %v2382 = vpop.f32.mrb[0].mxu0
      %v2383 = vadd.f32 0.0, %v2382
      %v2384 = vpop.f32.mrb[0].mxu0
      %2385 = vdwg.mxu0
      %v2386 = vadd.f32 %v2295, %v2378
      %v2387 = vadd.f32 %v2296, %v2383
      %v2388 = vld [vmem:[%s2023 + $0x4] sm:$0xff]
      %v2389 = vld [vmem:[%s2023 + $0xc] sm:$0x3]
      %s2390 = scalar_lea.vmem %s1, 384
      %v2391 = vld [vmem:[%s2390] sm:$0xff]
      %v2392 = vld [vmem:[%s2390 + $0x8] sm:$0x3]
      %v2394 = vsel %vm204, %v2388, 0
      %v2397 = vsel %vm204, %v2389, 0
      %v2400 = vsel %vm211, %v2392, 0
      %2402 = vmatprep.subr.mxu0 0.0
      %2403 = vmatpush1.msra.mxu0 %v2391
      %2404 = vmatprep.subr.mxu0 0.0
      %2405 = vmatpush1.msra.mxu0 %v2400
      %2406 = vmatprep.subr.mxu0 0.0
      %2407 = vmatpush1.msra.mxu0 0.0
      %2408 = vmatprep.subr.mxu0 0.0
      %2409 = vmatpush1.msra.mxu0 0.0
      %2410 = vmatprep.subr.mxu0 0.0
      %2411 = vmatpush1.msra.mxu0 0.0
      %2412 = vmatprep.subr.mxu0 0.0
      %2413 = vmatpush1.msra.mxu0 0.0
      %2414 = vmatprep.subr.mxu0 0.0
      %2415 = vmatpush1.msra.mxu0 0.0
      %2416 = vmatprep.subr.mxu0 0.0
      %2417 = vmatpush1.msra.mxu0 0.0
      %2418 = vmatprep.subr.mxu0 0.0
      %2419 = vmatpush1.msra.mxu0 0.0
      %2420 = vmatprep.subr.mxu0 0.0
      %2421 = vmatpush1.msra.mxu0 0.0
      %2422 = vmatprep.subr.mxu0 0.0
      %2423 = vmatpush1.msra.mxu0 0.0
      %2424 = vmatprep.subr.mxu0 0.0
      %2425 = vmatpush1.msra.mxu0 0.0
      %2426 = vmatprep.subr.mxu0 0.0
      %2427 = vmatpush1.msra.mxu0 0.0
      %2428 = vmatprep.subr.mxu0 0.0
      %2429 = vmatpush1.msra.mxu0 0.0
      %2430 = vmatprep.subr.mxu0 0.0
      %2431 = vmatpush1.msra.mxu0 0.0
      %2432 = vmatprep.subr.mxu0 0.0
      %2433 = vmatpush1.msra.mxu0 0.0
      %2434 = vmatprep.subr.mxu0 0.0
      %2435 = vmatpush1.msra.mxu0 0.0
      %2436 = vmatprep.subr.mxu0 0.0
      %2437 = vmatpush1.msra.mxu0 0.0
      %2438 = vmatprep.subr.mxu0 0.0
      %2439 = vmatpush1.msra.mxu0 0.0
      %2440 = vmatprep.subr.mxu0 0.0
      %2441 = vmatpush1.msra.mxu0 0.0
      %2442 = vmatprep.subr.mxu0 0.0
      %2443 = vmatpush1.msra.mxu0 0.0
      %2444 = vmatprep.subr.mxu0 0.0
      %2445 = vmatpush1.msra.mxu0 0.0
      %2446 = vmatprep.subr.mxu0 0.0
      %2447 = vmatpush1.msra.mxu0 0.0
      %2448 = vmatprep.subr.mxu0 0.0
      %2449 = vmatpush1.msra.mxu0 0.0
      %2450 = vmatprep.subr.mxu0 0.0
      %2451 = vmatpush1.msra.mxu0 0.0
      %2452 = vmatprep.subr.mxu0 0.0
      %2453 = vmatpush1.msra.mxu0 0.0
      %2454 = vmatprep.subr.mxu0 0.0
      %2455 = vmatpush1.msra.mxu0 0.0
      %2456 = vmatprep.subr.mxu0 0.0
      %2457 = vmatpush1.msra.mxu0 0.0
      %2458 = vmatprep.subr.mxu0 0.0
      %2459 = vmatpush1.msra.mxu0 0.0
      %2460 = vmatprep.subr.mxu0 0.0
      %2461 = vmatpush1.msra.mxu0 0.0
      %2462 = vmatprep.subr.mxu0 0.0
      %2463 = vmatpush1.msra.mxu0 0.0
      %2464 = vmatprep.subr.mxu0 0.0
      %2465 = vmatpush1.msra.mxu0 0.0
      %2466 = vmatprep.mubr.f32.mxu0 0.0
      %2467 = vmatmul.mubr.f32.gmra.mrb[0].mxu0 %v2394
      %v2468 = vpop.f32.mrb[0].mxu0
      %v2469 = vadd.f32 0.0, %v2468
      %v2470 = vpop.f32.mrb[0].mxu0
      %2471 = vmatprep.mubr.f32.mxu0 0.0
      %2472 = vmatmul.mubr.f32.gmra.mrb[0].mxu0 %v2397
      %v2473 = vpop.f32.mrb[0].mxu0
      %v2474 = vadd.f32 0.0, %v2473
      %v2475 = vpop.f32.mrb[0].mxu0
      %2476 = vdwg.mxu0
      %v2477 = vadd.f32 %v2386, %v2469
      %v2478 = vadd.f32 %v2387, %v2474
      %v2479 = vld [vmem:[%s2] sm:$0x1]
      %v2481 = vlaneseq
      %v2482 = vshrl.u32 %v2481, 7
      %v2483 = vsub.s32 0, %v2482
      %v2484 = vrot.slane %v2479, %v2483
      %v2486 = vadd.f32 %v2477, %v2484
      %v2487 = vadd.f32 %v2478, %v2484
      %v2488 = vmax.f32 %v2486, 0.0
      %v2489 = vmax.f32 %v2487, 0.0
      %vm2490 = vcmask 261120
      %2491 = vst.msk [vmem:[%s192] sm:$0xff] %vm2490, %v2488
      %vm2492 = vcmask 254976
      %2493 = vst.msk [vmem:[%s192 + $0x8] sm:$0x3] %vm2492, %v2489
      %p2494 = scmp.lt.s32.totalorder %s18, 1
      %s2495 = scalar_select %p2494, %s18, 1
      %p2496 = scmp.lt.s32.totalorder %s19, 9
      %s2497 = scalar_select %p2496, %s19, 9
      %s2498 = smul.addr %s2497, 2
      %s2499 = smul.addr %s2495, 20
      %s2500 = sadd.s32 %s2498, %s2499
      %s2501 = smul.addr %s2500, 8
      %s2502 = scalar_lea.vmem %s3, %s2501
      // Predicated region
      $region33: #{convnet_forward.4} parent=31 // pred_check
        %p2503 = pneg %p114
      $region34: #{convnet_forward.4} parent=31 // pred_check_branch
        %2505 = sbr.rel (%p2503) target = $region36
      $region35: #{convnet_forward.4} parent=31 // pred_region
        _
      $region36: #{convnet_forward.4} parent=31 // pred_fallthru
        _
    $region32: #{convnet_forward.4} parent=5 // pred_fallthru
      _
    %p2506 = scmp.le.s32.totalorder 2, %s9
    // Predicated region
    $region37: #{convnet_forward.4} parent=5 // pred_check
      %p2507 = pneg %p2506
    $region38: #{convnet_forward.4} parent=5 // pred_check_branch
      %2509 = sbr.rel (%p2507) target = $region40
    $region39: #{convnet_forward.4} parent=5 // pred_region
      %s2510 = ssub.s32 %s9, 2
      // Predicated region
      $region41: #{convnet_forward.4} parent=39 // pred_check
        %p2511 = pneg %p120
      $region42: #{convnet_forward.4} parent=39 // pred_check_branch
        %2513 = sbr.rel (%p2511) target = $region44
      $region43: #{convnet_forward.4} parent=39 // pred_region
        %p2514 = scmp.lt.s32.totalorder %s20, 1
        %s2515 = scalar_select %p2514, %s20, 1
        %p2516 = scmp.lt.s32.totalorder %s21, 9
        %s2517 = scalar_select %p2516, %s21, 9
        %s2518 = smul.addr %s2517, 2
        %s2519 = smul.addr %s2515, 20
        %s2520 = sadd.s32 %s2518, %s2519
        %s2521 = smul.addr %s2520, 8
        %s2522 = scalar_lea.vmem %s3, %s2521
      $region44: #{convnet_forward.4} parent=39 // pred_fallthru
        _
    $region40: #{convnet_forward.4} parent=5 // pred_fallthru
      _
  $region6: #{convnet_forward.4} parent=0 // loop_footer
    %s13 = sadd.s32 1, %s9
  $region7: #{convnet_forward.4} parent=0 // loop_footer_branch
    %8 = sbr.rel target = $region3
  $region8: #{convnet_forward.4} parent=0 // loop_exit
    _

// kernel: convnet_forward.5
$region0: #{convnet_forward.5}
  #allocation0 [shape = 'u32[]', space=smem, size = 0x4, offset = 0x4, fixed_abs, tag = 'smem constant byte address 0x4 - core index']
  #allocation1 [shape = 'u32[144,128]{1,0:T(1,128)}', space=vmem, size = 0x12000, scoped, tag = 'internal scratch']
  %s0 = inlined_call_operand.vmem [shape: f32[2,3200], index: 0, kind: input, shape index: {}]
  %s1 = inlined_call_operand.vmem [shape: f32[3200,20], index: 1, kind: input, shape index: {}]
  %s2 = inlined_call_operand.vmem [shape: f32[1,20], index: 2, kind: input, shape index: {}]
  %s3 = inlined_call_operand.vmem [shape: f32[20,10], index: 3, kind: input, shape index: {}]
  %s4 = inlined_call_operand.vmem [shape: f32[1,10], index: 4, kind: input, shape index: {}]
  %s5 = inlined_call_operand.hbm [shape: f32[2,10], index: 5, kind: output, shape index: {}]
  %s6 = sld [smem:[#allocation0]]
  $region30: #{convnet_forward.5} parent=0
    _
  %s8 = ssub.s32 1, %s6
  %s9 = scalar_select 0, %s8, %s6
  $region1: #{convnet_forward.5} parent=0
    #allocation2 [shape = 'u8[1024]{0}', space=vmem, size = 0x400, scoped, tag = 'output window, operand 0, single buffered']
    #allocation3 [shape = 's32[1]{0}', space=sflag, size = 0x4, scoped, tag = 'scoped memory for convnet_forward.5']
    %10 = vsyncpa [#allocation3], 0
    // Predicated region
    $region2: #{convnet_forward.5} parent=1 // pred_check
      _
    $region3: #{convnet_forward.5} parent=1 // pred_check_branch
      %12 = sbr.rel (0) target = $region5
    $region4: #{convnet_forward.5} parent=1 // pred_region
      _
    $region5: #{convnet_forward.5} parent=1 // pred_fallthru
      _
    // Predicated region
    $region6: #{convnet_forward.5} parent=1 // pred_check
      _
    $region7: #{convnet_forward.5} parent=1 // pred_check_branch
      %14 = sbr.rel (0) target = $region9
    $region8: #{convnet_forward.5} parent=1 // pred_region
      _
    $region9: #{convnet_forward.5} parent=1 // pred_fallthru
      _
    // Predicated region
    $region10: #{convnet_forward.5} parent=1 // pred_check
      _
    $region11: #{convnet_forward.5} parent=1 // pred_check_branch
      %16 = sbr.rel (0) target = $region13
    $region12: #{convnet_forward.5} parent=1 // pred_region
      _
    $region13: #{convnet_forward.5} parent=1 // pred_fallthru
      _
    // Predicated region
    $region14: #{convnet_forward.5} parent=1 // pred_check
      _
    $region15: #{convnet_forward.5} parent=1 // pred_check_branch
      %18 = sbr.rel (0) target = $region17
    $region16: #{convnet_forward.5} parent=1 // pred_region
      _
    $region17: #{convnet_forward.5} parent=1 // pred_fallthru
      _
    // Predicated region
    $region18: #{convnet_forward.5} parent=1 // pred_check
      _
    $region19: #{convnet_forward.5} parent=1 // pred_check_branch
      %20 = sbr.rel (0) target = $region21
    $region20: #{convnet_forward.5} parent=1 // pred_region
      _
    $region21: #{convnet_forward.5} parent=1 // pred_fallthru
      _
    %v21 = vld [vmem:[%s0] sm:$0xff]
    %v22 = vld [vmem:[%s0 + $0x8] sm:$0xff]
    %v23 = vld [vmem:[%s0 + $0x10] sm:$0xff]
    %v24 = vld [vmem:[%s0 + $0x18] sm:$0xff]
    %v25 = vld [vmem:[%s0 + $0x20] sm:$0xff]
    %v26 = vld [vmem:[%s0 + $0x28] sm:$0xff]
    %v27 = vld [vmem:[%s0 + $0x30] sm:$0x3]
    %v28 = vld [vmem:[%s1] sm:$0xff]
    %v29 = vld [vmem:[%s1 + $0x8] sm:$0xff]
    %v30 = vld [vmem:[%s1 + $0x10] sm:$0xff]
    %v31 = vld [vmem:[%s1 + $0x18] sm:$0xff]
    %v32 = vld [vmem:[%s1 + $0x20] sm:$0xff]
    %v33 = vld [vmem:[%s1 + $0x28] sm:$0xff]
    %v34 = vld [vmem:[%s1 + $0x30] sm:$0xff]
    %v35 = vld [vmem:[%s1 + $0x38] sm:$0xff]
    %v36 = vld [vmem:[%s1 + $0x40] sm:$0xff]
    %v37 = vld [vmem:[%s1 + $0x48] sm:$0xff]
    %v38 = vld [vmem:[%s1 + $0x50] sm:$0xff]
    %v39 = vld [vmem:[%s1 + $0x58] sm:$0xff]
    %v40 = vld [vmem:[%s1 + $0x60] sm:$0xff]
    %v41 = vld [vmem:[%s1 + $0x68] sm:$0xff]
    %v42 = vld [vmem:[%s1 + $0x70] sm:$0xff]
    %v43 = vld [vmem:[%s1 + $0x78] sm:$0xff]
    %v44 = vld [vmem:[%s1 + $0x80] sm:$0xff]
    %v45 = vld [vmem:[%s1 + $0x88] sm:$0xff]
    %v46 = vld [vmem:[%s1 + $0x90] sm:$0xff]
    %v47 = vld [vmem:[%s1 + $0x98] sm:$0xff]
    %v48 = vld [vmem:[%s1 + $0xa0] sm:$0xff]
    %v49 = vld [vmem:[%s1 + $0xa8] sm:$0xff]
    %v50 = vld [vmem:[%s1 + $0xb0] sm:$0xff]
    %v51 = vld [vmem:[%s1 + $0xb8] sm:$0xff]
    %v52 = vld [vmem:[%s1 + $0xc0] sm:$0xff]
    %v53 = vld [vmem:[%s1 + $0xc8] sm:$0xff]
    %v54 = vld [vmem:[%s1 + $0xd0] sm:$0xff]
    %v55 = vld [vmem:[%s1 + $0xd8] sm:$0xff]
    %v56 = vld [vmem:[%s1 + $0xe0] sm:$0xff]
    %v57 = vld [vmem:[%s1 + $0xe8] sm:$0xff]
    %v58 = vld [vmem:[%s1 + $0xf0] sm:$0xff]
    %v59 = vld [vmem:[%s1 + $0xf8] sm:$0xff]
    %v60 = vld [vmem:[%s1 + $0x100] sm:$0xff]
    %v61 = vld [vmem:[%s1 + $0x108] sm:$0xff]
    %v62 = vld [vmem:[%s1 + $0x110] sm:$0xff]
    %v63 = vld [vmem:[%s1 + $0x118] sm:$0xff]
    %v64 = vld [vmem:[%s1 + $0x120] sm:$0xff]
    %v65 = vld [vmem:[%s1 + $0x128] sm:$0xff]
    %v66 = vld [vmem:[%s1 + $0x130] sm:$0xff]
    %v67 = vld [vmem:[%s1 + $0x138] sm:$0xff]
    %v68 = vld [vmem:[%s1 + $0x140] sm:$0xff]
    %v69 = vld [vmem:[%s1 + $0x148] sm:$0xff]
    %v70 = vld [vmem:[%s1 + $0x150] sm:$0xff]
    %v71 = vld [vmem:[%s1 + $0x158] sm:$0xff]
    %v72 = vld [vmem:[%s1 + $0x160] sm:$0xff]
    %v73 = vld [vmem:[%s1 + $0x168] sm:$0xff]
    %v74 = vld [vmem:[%s1 + $0x170] sm:$0xff]
    %v75 = vld [vmem:[%s1 + $0x178] sm:$0xff]
    %v76 = vld [vmem:[%s1 + $0x180] sm:$0xff]
    %v77 = vld [vmem:[%s1 + $0x188] sm:$0xff]
    %v78 = vld [vmem:[%s1 + $0x190] sm:$0xff]
    %v79 = vld [vmem:[%s1 + $0x198] sm:$0xff]
    %v80 = vld [vmem:[%s1 + $0x1a0] sm:$0xff]
    %v81 = vld [vmem:[%s1 + $0x1a8] sm:$0xff]
    %v82 = vld [vmem:[%s1 + $0x1b0] sm:$0xff]
    %v83 = vld [vmem:[%s1 + $0x1b8] sm:$0xff]
    %v84 = vld [vmem:[%s1 + $0x1c0] sm:$0xff]
    %v85 = vld [vmem:[%s1 + $0x1c8] sm:$0xff]
    %v86 = vld [vmem:[%s1 + $0x1d0] sm:$0xff]
    %v87 = vld [vmem:[%s1 + $0x1d8] sm:$0xff]
    %v88 = vld [vmem:[%s1 + $0x1e0] sm:$0xff]
    %v89 = vld [vmem:[%s1 + $0x1e8] sm:$0xff]
    %v90 = vld [vmem:[%s1 + $0x1f0] sm:$0xff]
    %v91 = vld [vmem:[%s1 + $0x1f8] sm:$0xff]
    %v92 = vld [vmem:[%s1 + $0x200] sm:$0xff]
    %v93 = vld [vmem:[%s1 + $0x208] sm:$0xff]
    %v94 = vld [vmem:[%s1 + $0x210] sm:$0xff]
    %v95 = vld [vmem:[%s1 + $0x218] sm:$0xff]
    %v96 = vld [vmem:[%s1 + $0x220] sm:$0xff]
    %v97 = vld [vmem:[%s1 + $0x228] sm:$0xff]
    %v98 = vld [vmem:[%s1 + $0x230] sm:$0xff]
    %v99 = vld [vmem:[%s1 + $0x238] sm:$0xff]
    %v100 = vld [vmem:[%s1 + $0x240] sm:$0xff]
    %v101 = vld [vmem:[%s1 + $0x248] sm:$0xff]
    %v102 = vld [vmem:[%s1 + $0x250] sm:$0xff]
    %v103 = vld [vmem:[%s1 + $0x258] sm:$0xff]
    %v104 = vld [vmem:[%s1 + $0x260] sm:$0xff]
    %v105 = vld [vmem:[%s1 + $0x268] sm:$0xff]
    %v106 = vld [vmem:[%s1 + $0x270] sm:$0xff]
    %v107 = vld [vmem:[%s1 + $0x278] sm:$0xff]
    %v108 = vld [vmem:[%s1 + $0x280] sm:$0xff]
    %v109 = vld [vmem:[%s1 + $0x288] sm:$0xff]
    %v110 = vld [vmem:[%s1 + $0x290] sm:$0xff]
    %v111 = vld [vmem:[%s1 + $0x298] sm:$0xff]
    %v112 = vld [vmem:[%s1 + $0x2a0] sm:$0xff]
    %v113 = vld [vmem:[%s1 + $0x2a8] sm:$0xff]
    %v114 = vld [vmem:[%s1 + $0x2b0] sm:$0xff]
    %v115 = vld [vmem:[%s1 + $0x2b8] sm:$0xff]
    %v116 = vld [vmem:[%s1 + $0x2c0] sm:$0xff]
    %v117 = vld [vmem:[%s1 + $0x2c8] sm:$0xff]
    %v118 = vld [vmem:[%s1 + $0x2d0] sm:$0xff]
    %v119 = vld [vmem:[%s1 + $0x2d8] sm:$0xff]
    %v120 = vld [vmem:[%s1 + $0x2e0] sm:$0xff]
    %v121 = vld [vmem:[%s1 + $0x2e8] sm:$0xff]
    %v122 = vld [vmem:[%s1 + $0x2f0] sm:$0xff]
    %v123 = vld [vmem:[%s1 + $0x2f8] sm:$0xff]
    %v124 = vld [vmem:[%s1 + $0x300] sm:$0xff]
    %v125 = vld [vmem:[%s1 + $0x308] sm:$0xff]
    %v126 = vld [vmem:[%s1 + $0x310] sm:$0xff]
    %v127 = vld [vmem:[%s1 + $0x318] sm:$0xff]
    %v128 = vld [vmem:[%s1 + $0x320] sm:$0xff]
    %v129 = vld [vmem:[%s1 + $0x328] sm:$0xff]
    %v130 = vld [vmem:[%s1 + $0x330] sm:$0xff]
    %v131 = vld [vmem:[%s1 + $0x338] sm:$0xff]
    %v132 = vld [vmem:[%s1 + $0x340] sm:$0xff]
    %v133 = vld [vmem:[%s1 + $0x348] sm:$0xff]
    %v134 = vld [vmem:[%s1 + $0x350] sm:$0xff]
    %v135 = vld [vmem:[%s1 + $0x358] sm:$0xff]
    %v136 = vld [vmem:[%s1 + $0x360] sm:$0xff]
    %v137 = vld [vmem:[%s1 + $0x368] sm:$0xff]
    %v138 = vld [vmem:[%s1 + $0x370] sm:$0xff]
    %v139 = vld [vmem:[%s1 + $0x378] sm:$0xff]
    %v140 = vld [vmem:[%s1 + $0x380] sm:$0xff]
    %v141 = vld [vmem:[%s1 + $0x388] sm:$0xff]
    %v142 = vld [vmem:[%s1 + $0x390] sm:$0xff]
    %v143 = vld [vmem:[%s1 + $0x398] sm:$0xff]
    %v144 = vld [vmem:[%s1 + $0x3a0] sm:$0xff]
    %v145 = vld [vmem:[%s1 + $0x3a8] sm:$0xff]
    %v146 = vld [vmem:[%s1 + $0x3b0] sm:$0xff]
    %v147 = vld [vmem:[%s1 + $0x3b8] sm:$0xff]
    %v148 = vld [vmem:[%s1 + $0x3c0] sm:$0xff]
    %v149 = vld [vmem:[%s1 + $0x3c8] sm:$0xff]
    %v150 = vld [vmem:[%s1 + $0x3d0] sm:$0xff]
    %v151 = vld [vmem:[%s1 + $0x3d8] sm:$0xff]
    %v152 = vld [vmem:[%s1 + $0x3e0] sm:$0xff]
    %v153 = vld [vmem:[%s1 + $0x3e8] sm:$0xff]
    %v154 = vld [vmem:[%s1 + $0x3f0] sm:$0xff]
    %v155 = vld [vmem:[%s1 + $0x3f8] sm:$0xff]
    %v156 = vld [vmem:[%s1 + $0x400] sm:$0xff]
    %v157 = vld [vmem:[%s1 + $0x408] sm:$0xff]
    %v158 = vld [vmem:[%s1 + $0x410] sm:$0xff]
    %v159 = vld [vmem:[%s1 + $0x418] sm:$0xff]
    %v160 = vld [vmem:[%s1 + $0x420] sm:$0xff]
    %v161 = vld [vmem:[%s1 + $0x428] sm:$0xff]
    %v162 = vld [vmem:[%s1 + $0x430] sm:$0xff]
    %v163 = vld [vmem:[%s1 + $0x438] sm:$0xff]
    %v164 = vld [vmem:[%s1 + $0x440] sm:$0xff]
    %v165 = vld [vmem:[%s1 + $0x448] sm:$0xff]
    %v166 = vld [vmem:[%s1 + $0x450] sm:$0xff]
    %v167 = vld [vmem:[%s1 + $0x458] sm:$0xff]
    %v168 = vld [vmem:[%s1 + $0x460] sm:$0xff]
    %v169 = vld [vmem:[%s1 + $0x468] sm:$0xff]
    %v170 = vld [vmem:[%s1 + $0x470] sm:$0xff]
    %v171 = vld [vmem:[%s1 + $0x478] sm:$0xff]
    %v172 = vld [vmem:[%s1 + $0x480] sm:$0xff]
    %v173 = vld [vmem:[%s1 + $0x488] sm:$0xff]
    %v174 = vld [vmem:[%s1 + $0x490] sm:$0xff]
    %v175 = vld [vmem:[%s1 + $0x498] sm:$0xff]
    %v176 = vld [vmem:[%s1 + $0x4a0] sm:$0xff]
    %v177 = vld [vmem:[%s1 + $0x4a8] sm:$0xff]
    %v178 = vld [vmem:[%s1 + $0x4b0] sm:$0xff]
    %v179 = vld [vmem:[%s1 + $0x4b8] sm:$0xff]
    %v180 = vld [vmem:[%s1 + $0x4c0] sm:$0xff]
    %v181 = vld [vmem:[%s1 + $0x4c8] sm:$0xff]
    %v182 = vld [vmem:[%s1 + $0x4d0] sm:$0xff]
    %v183 = vld [vmem:[%s1 + $0x4d8] sm:$0xff]
    %v184 = vld [vmem:[%s1 + $0x4e0] sm:$0xff]
    %v185 = vld [vmem:[%s1 + $0x4e8] sm:$0xff]
    %v186 = vld [vmem:[%s1 + $0x4f0] sm:$0xff]
    %v187 = vld [vmem:[%s1 + $0x4f8] sm:$0xff]
    %v188 = vld [vmem:[%s1 + $0x500] sm:$0xff]
    %v189 = vld [vmem:[%s1 + $0x508] sm:$0xff]
    %v190 = vld [vmem:[%s1 + $0x510] sm:$0xff]
    %v191 = vld [vmem:[%s1 + $0x518] sm:$0xff]
    %v192 = vld [vmem:[%s1 + $0x520] sm:$0xff]
    %v193 = vld [vmem:[%s1 + $0x528] sm:$0xff]
    %v194 = vld [vmem:[%s1 + $0x530] sm:$0xff]
    %v195 = vld [vmem:[%s1 + $0x538] sm:$0xff]
    %v196 = vld [vmem:[%s1 + $0x540] sm:$0xff]
    %v197 = vld [vmem:[%s1 + $0x548] sm:$0xff]
    %v198 = vld [vmem:[%s1 + $0x550] sm:$0xff]
    %v199 = vld [vmem:[%s1 + $0x558] sm:$0xff]
    %v200 = vld [vmem:[%s1 + $0x560] sm:$0xff]
    %v201 = vld [vmem:[%s1 + $0x568] sm:$0xff]
    %v202 = vld [vmem:[%s1 + $0x570] sm:$0xff]
    %v203 = vld [vmem:[%s1 + $0x578] sm:$0xff]
    %v204 = vld [vmem:[%s1 + $0x580] sm:$0xff]
    %v205 = vld [vmem:[%s1 + $0x588] sm:$0xff]
    %v206 = vld [vmem:[%s1 + $0x590] sm:$0xff]
    %v207 = vld [vmem:[%s1 + $0x598] sm:$0xff]
    %v208 = vld [vmem:[%s1 + $0x5a0] sm:$0xff]
    %v209 = vld [vmem:[%s1 + $0x5a8] sm:$0xff]
    %v210 = vld [vmem:[%s1 + $0x5b0] sm:$0xff]
    %v211 = vld [vmem:[%s1 + $0x5b8] sm:$0xff]
    %v212 = vld [vmem:[%s1 + $0x5c0] sm:$0xff]
    %v213 = vld [vmem:[%s1 + $0x5c8] sm:$0xff]
    %v214 = vld [vmem:[%s1 + $0x5d0] sm:$0xff]
    %v215 = vld [vmem:[%s1 + $0x5d8] sm:$0xff]
    %v216 = vld [vmem:[%s1 + $0x5e0] sm:$0xff]
    %v217 = vld [vmem:[%s1 + $0x5e8] sm:$0xff]
    %v218 = vld [vmem:[%s1 + $0x5f0] sm:$0xff]
    %v219 = vld [vmem:[%s1 + $0x5f8] sm:$0xff]
    %v220 = vld [vmem:[%s1 + $0x600] sm:$0xff]
    %v221 = vld [vmem:[%s1 + $0x608] sm:$0xff]
    %v222 = vld [vmem:[%s1 + $0x610] sm:$0xff]
    %v223 = vld [vmem:[%s1 + $0x618] sm:$0xff]
    %v224 = vld [vmem:[%s1 + $0x620] sm:$0xff]
    %v225 = vld [vmem:[%s1 + $0x628] sm:$0xff]
    %v226 = vld [vmem:[%s1 + $0x630] sm:$0xff]
    %v227 = vld [vmem:[%s1 + $0x638] sm:$0xff]
    %v228 = vld [vmem:[%s1 + $0x640] sm:$0xff]
    %v229 = vld [vmem:[%s1 + $0x648] sm:$0xff]
    %v230 = vld [vmem:[%s1 + $0x650] sm:$0xff]
    %v231 = vld [vmem:[%s1 + $0x658] sm:$0xff]
    %v232 = vld [vmem:[%s1 + $0x660] sm:$0xff]
    %v233 = vld [vmem:[%s1 + $0x668] sm:$0xff]
    %v234 = vld [vmem:[%s1 + $0x670] sm:$0xff]
    %v235 = vld [vmem:[%s1 + $0x678] sm:$0xff]
    %v236 = vld [vmem:[%s1 + $0x680] sm:$0xff]
    %v237 = vld [vmem:[%s1 + $0x688] sm:$0xff]
    %v238 = vld [vmem:[%s1 + $0x690] sm:$0xff]
    %v239 = vld [vmem:[%s1 + $0x698] sm:$0xff]
    %v240 = vld [vmem:[%s1 + $0x6a0] sm:$0xff]
    %v241 = vld [vmem:[%s1 + $0x6a8] sm:$0xff]
    %v242 = vld [vmem:[%s1 + $0x6b0] sm:$0xff]
    %v243 = vld [vmem:[%s1 + $0x6b8] sm:$0xff]
    %v244 = vld [vmem:[%s1 + $0x6c0] sm:$0xff]
    %v245 = vld [vmem:[%s1 + $0x6c8] sm:$0xff]
    %v246 = vld [vmem:[%s1 + $0x6d0] sm:$0xff]
    %v247 = vld [vmem:[%s1 + $0x6d8] sm:$0xff]
    %v248 = vld [vmem:[%s1 + $0x6e0] sm:$0xff]
    %v249 = vld [vmem:[%s1 + $0x6e8] sm:$0xff]
    %v250 = vld [vmem:[%s1 + $0x6f0] sm:$0xff]
    %v251 = vld [vmem:[%s1 + $0x6f8] sm:$0xff]
    %v252 = vld [vmem:[%s1 + $0x700] sm:$0xff]
    %v253 = vld [vmem:[%s1 + $0x708] sm:$0xff]
    %v254 = vld [vmem:[%s1 + $0x710] sm:$0xff]
    %v255 = vld [vmem:[%s1 + $0x718] sm:$0xff]
    %v256 = vld [vmem:[%s1 + $0x720] sm:$0xff]
    %v257 = vld [vmem:[%s1 + $0x728] sm:$0xff]
    %v258 = vld [vmem:[%s1 + $0x730] sm:$0xff]
    %v259 = vld [vmem:[%s1 + $0x738] sm:$0xff]
    %v260 = vld [vmem:[%s1 + $0x740] sm:$0xff]
    %v261 = vld [vmem:[%s1 + $0x748] sm:$0xff]
    %v262 = vld [vmem:[%s1 + $0x750] sm:$0xff]
    %v263 = vld [vmem:[%s1 + $0x758] sm:$0xff]
    %v264 = vld [vmem:[%s1 + $0x760] sm:$0xff]
    %v265 = vld [vmem:[%s1 + $0x768] sm:$0xff]
    %v266 = vld [vmem:[%s1 + $0x770] sm:$0xff]
    %v267 = vld [vmem:[%s1 + $0x778] sm:$0xff]
    %v268 = vld [vmem:[%s1 + $0x780] sm:$0xff]
    %v269 = vld [vmem:[%s1 + $0x788] sm:$0xff]
    %v270 = vld [vmem:[%s1 + $0x790] sm:$0xff]
    %v271 = vld [vmem:[%s1 + $0x798] sm:$0xff]
    %v272 = vld [vmem:[%s1 + $0x7a0] sm:$0xff]
    %v273 = vld [vmem:[%s1 + $0x7a8] sm:$0xff]
    %v274 = vld [vmem:[%s1 + $0x7b0] sm:$0xff]
    %v275 = vld [vmem:[%s1 + $0x7b8] sm:$0xff]
    %v276 = vld [vmem:[%s1 + $0x7c0] sm:$0xff]
    %v277 = vld [vmem:[%s1 + $0x7c8] sm:$0xff]
    %v278 = vld [vmem:[%s1 + $0x7d0] sm:$0xff]
    %v279 = vld [vmem:[%s1 + $0x7d8] sm:$0xff]
    %v280 = vld [vmem:[%s1 + $0x7e0] sm:$0xff]
    %v281 = vld [vmem:[%s1 + $0x7e8] sm:$0xff]
    %v282 = vld [vmem:[%s1 + $0x7f0] sm:$0xff]
    %v283 = vld [vmem:[%s1 + $0x7f8] sm:$0xff]
    %v284 = vld [vmem:[%s1 + $0x800] sm:$0xff]
    %v285 = vld [vmem:[%s1 + $0x808] sm:$0xff]
    %v286 = vld [vmem:[%s1 + $0x810] sm:$0xff]
    %v287 = vld [vmem:[%s1 + $0x818] sm:$0xff]
    %v288 = vld [vmem:[%s1 + $0x820] sm:$0xff]
    %v289 = vld [vmem:[%s1 + $0x828] sm:$0xff]
    %v290 = vld [vmem:[%s1 + $0x830] sm:$0xff]
    %v291 = vld [vmem:[%s1 + $0x838] sm:$0xff]
    %v292 = vld [vmem:[%s1 + $0x840] sm:$0xff]
    %v293 = vld [vmem:[%s1 + $0x848] sm:$0xff]
    %v294 = vld [vmem:[%s1 + $0x850] sm:$0xff]
    %v295 = vld [vmem:[%s1 + $0x858] sm:$0xff]
    %v296 = vld [vmem:[%s1 + $0x860] sm:$0xff]
    %v297 = vld [vmem:[%s1 + $0x868] sm:$0xff]
    %v298 = vld [vmem:[%s1 + $0x870] sm:$0xff]
    %v299 = vld [vmem:[%s1 + $0x878] sm:$0xff]
    %v300 = vld [vmem:[%s1 + $0x880] sm:$0xff]
    %v301 = vld [vmem:[%s1 + $0x888] sm:$0xff]
    %v302 = vld [vmem:[%s1 + $0x890] sm:$0xff]
    %v303 = vld [vmem:[%s1 + $0x898] sm:$0xff]
    %v304 = vld [vmem:[%s1 + $0x8a0] sm:$0xff]
    %v305 = vld [vmem:[%s1 + $0x8a8] sm:$0xff]
    %v306 = vld [vmem:[%s1 + $0x8b0] sm:$0xff]
    %v307 = vld [vmem:[%s1 + $0x8b8] sm:$0xff]
    %v308 = vld [vmem:[%s1 + $0x8c0] sm:$0xff]
    %v309 = vld [vmem:[%s1 + $0x8c8] sm:$0xff]
    %v310 = vld [vmem:[%s1 + $0x8d0] sm:$0xff]
    %v311 = vld [vmem:[%s1 + $0x8d8] sm:$0xff]
    %v312 = vld [vmem:[%s1 + $0x8e0] sm:$0xff]
    %v313 = vld [vmem:[%s1 + $0x8e8] sm:$0xff]
    %v314 = vld [vmem:[%s1 + $0x8f0] sm:$0xff]
    %v315 = vld [vmem:[%s1 + $0x8f8] sm:$0xff]
    %v316 = vld [vmem:[%s1 + $0x900] sm:$0xff]
    %v317 = vld [vmem:[%s1 + $0x908] sm:$0xff]
    %v318 = vld [vmem:[%s1 + $0x910] sm:$0xff]
    %v319 = vld [vmem:[%s1 + $0x918] sm:$0xff]
    %v320 = vld [vmem:[%s1 + $0x920] sm:$0xff]
    %v321 = vld [vmem:[%s1 + $0x928] sm:$0xff]
    %v322 = vld [vmem:[%s1 + $0x930] sm:$0xff]
    %v323 = vld [vmem:[%s1 + $0x938] sm:$0xff]
    %v324 = vld [vmem:[%s1 + $0x940] sm:$0xff]
    %v325 = vld [vmem:[%s1 + $0x948] sm:$0xff]
    %v326 = vld [vmem:[%s1 + $0x950] sm:$0xff]
    %v327 = vld [vmem:[%s1 + $0x958] sm:$0xff]
    %v328 = vld [vmem:[%s1 + $0x960] sm:$0xff]
    %v329 = vld [vmem:[%s1 + $0x968] sm:$0xff]
    %v330 = vld [vmem:[%s1 + $0x970] sm:$0xff]
    %v331 = vld [vmem:[%s1 + $0x978] sm:$0xff]
    %v332 = vld [vmem:[%s1 + $0x980] sm:$0xff]
    %v333 = vld [vmem:[%s1 + $0x988] sm:$0xff]
    %v334 = vld [vmem:[%s1 + $0x990] sm:$0xff]
    %v335 = vld [vmem:[%s1 + $0x998] sm:$0xff]
    %v336 = vld [vmem:[%s1 + $0x9a0] sm:$0xff]
    %v337 = vld [vmem:[%s1 + $0x9a8] sm:$0xff]
    %v338 = vld [vmem:[%s1 + $0x9b0] sm:$0xff]
    %v339 = vld [vmem:[%s1 + $0x9b8] sm:$0xff]
    %v340 = vld [vmem:[%s1 + $0x9c0] sm:$0xff]
    %v341 = vld [vmem:[%s1 + $0x9c8] sm:$0xff]
    %v342 = vld [vmem:[%s1 + $0x9d0] sm:$0xff]
    %v343 = vld [vmem:[%s1 + $0x9d8] sm:$0xff]
    %v344 = vld [vmem:[%s1 + $0x9e0] sm:$0xff]
    %v345 = vld [vmem:[%s1 + $0x9e8] sm:$0xff]
    %v346 = vld [vmem:[%s1 + $0x9f0] sm:$0xff]
    %v347 = vld [vmem:[%s1 + $0x9f8] sm:$0xff]
    %v348 = vld [vmem:[%s1 + $0xa00] sm:$0xff]
    %v349 = vld [vmem:[%s1 + $0xa08] sm:$0xff]
    %v350 = vld [vmem:[%s1 + $0xa10] sm:$0xff]
    %v351 = vld [vmem:[%s1 + $0xa18] sm:$0xff]
    %v352 = vld [vmem:[%s1 + $0xa20] sm:$0xff]
    %v353 = vld [vmem:[%s1 + $0xa28] sm:$0xff]
    %v354 = vld [vmem:[%s1 + $0xa30] sm:$0xff]
    %v355 = vld [vmem:[%s1 + $0xa38] sm:$0xff]
    %v356 = vld [vmem:[%s1 + $0xa40] sm:$0xff]
    %v357 = vld [vmem:[%s1 + $0xa48] sm:$0xff]
    %v358 = vld [vmem:[%s1 + $0xa50] sm:$0xff]
    %v359 = vld [vmem:[%s1 + $0xa58] sm:$0xff]
    %v360 = vld [vmem:[%s1 + $0xa60] sm:$0xff]
    %v361 = vld [vmem:[%s1 + $0xa68] sm:$0xff]
    %v362 = vld [vmem:[%s1 + $0xa70] sm:$0xff]
    %v363 = vld [vmem:[%s1 + $0xa78] sm:$0xff]
    %v364 = vld [vmem:[%s1 + $0xa80] sm:$0xff]
    %v365 = vld [vmem:[%s1 + $0xa88] sm:$0xff]
    %v366 = vld [vmem:[%s1 + $0xa90] sm:$0xff]
    %v367 = vld [vmem:[%s1 + $0xa98] sm:$0xff]
    %v368 = vld [vmem:[%s1 + $0xaa0] sm:$0xff]
    %v369 = vld [vmem:[%s1 + $0xaa8] sm:$0xff]
    %v370 = vld [vmem:[%s1 + $0xab0] sm:$0xff]
    %v371 = vld [vmem:[%s1 + $0xab8] sm:$0xff]
    %v372 = vld [vmem:[%s1 + $0xac0] sm:$0xff]
    %v373 = vld [vmem:[%s1 + $0xac8] sm:$0xff]
    %v374 = vld [vmem:[%s1 + $0xad0] sm:$0xff]
    %v375 = vld [vmem:[%s1 + $0xad8] sm:$0xff]
    %v376 = vld [vmem:[%s1 + $0xae0] sm:$0xff]
    %v377 = vld [vmem:[%s1 + $0xae8] sm:$0xff]
    %v378 = vld [vmem:[%s1 + $0xaf0] sm:$0xff]
    %v379 = vld [vmem:[%s1 + $0xaf8] sm:$0xff]
    %v380 = vld [vmem:[%s1 + $0xb00] sm:$0xff]
    %v381 = vld [vmem:[%s1 + $0xb08] sm:$0xff]
    %v382 = vld [vmem:[%s1 + $0xb10] sm:$0xff]
    %v383 = vld [vmem:[%s1 + $0xb18] sm:$0xff]
    %v384 = vld [vmem:[%s1 + $0xb20] sm:$0xff]
    %v385 = vld [vmem:[%s1 + $0xb28] sm:$0xff]
    %v386 = vld [vmem:[%s1 + $0xb30] sm:$0xff]
    %v387 = vld [vmem:[%s1 + $0xb38] sm:$0xff]
    %v388 = vld [vmem:[%s1 + $0xb40] sm:$0xff]
    %v389 = vld [vmem:[%s1 + $0xb48] sm:$0xff]
    %v390 = vld [vmem:[%s1 + $0xb50] sm:$0xff]
    %v391 = vld [vmem:[%s1 + $0xb58] sm:$0xff]
    %v392 = vld [vmem:[%s1 + $0xb60] sm:$0xff]
    %v393 = vld [vmem:[%s1 + $0xb68] sm:$0xff]
    %v394 = vld [vmem:[%s1 + $0xb70] sm:$0xff]
    %v395 = vld [vmem:[%s1 + $0xb78] sm:$0xff]
    %v396 = vld [vmem:[%s1 + $0xb80] sm:$0xff]
    %v397 = vld [vmem:[%s1 + $0xb88] sm:$0xff]
    %v398 = vld [vmem:[%s1 + $0xb90] sm:$0xff]
    %v399 = vld [vmem:[%s1 + $0xb98] sm:$0xff]
    %v400 = vld [vmem:[%s1 + $0xba0] sm:$0xff]
    %v401 = vld [vmem:[%s1 + $0xba8] sm:$0xff]
    %v402 = vld [vmem:[%s1 + $0xbb0] sm:$0xff]
    %v403 = vld [vmem:[%s1 + $0xbb8] sm:$0xff]
    %v404 = vld [vmem:[%s1 + $0xbc0] sm:$0xff]
    %v405 = vld [vmem:[%s1 + $0xbc8] sm:$0xff]
    %v406 = vld [vmem:[%s1 + $0xbd0] sm:$0xff]
    %v407 = vld [vmem:[%s1 + $0xbd8] sm:$0xff]
    %v408 = vld [vmem:[%s1 + $0xbe0] sm:$0xff]
    %v409 = vld [vmem:[%s1 + $0xbe8] sm:$0xff]
    %v410 = vld [vmem:[%s1 + $0xbf0] sm:$0xff]
    %v411 = vld [vmem:[%s1 + $0xbf8] sm:$0xff]
    %v412 = vld [vmem:[%s1 + $0xc00] sm:$0xff]
    %v413 = vld [vmem:[%s1 + $0xc08] sm:$0xff]
    %v414 = vld [vmem:[%s1 + $0xc10] sm:$0xff]
    %v415 = vld [vmem:[%s1 + $0xc18] sm:$0xff]
    %v416 = vld [vmem:[%s1 + $0xc20] sm:$0xff]
    %v417 = vld [vmem:[%s1 + $0xc28] sm:$0xff]
    %v418 = vld [vmem:[%s1 + $0xc30] sm:$0xff]
    %v419 = vld [vmem:[%s1 + $0xc38] sm:$0xff]
    %v420 = vld [vmem:[%s1 + $0xc40] sm:$0xff]
    %v421 = vld [vmem:[%s1 + $0xc48] sm:$0xff]
    %v422 = vld [vmem:[%s1 + $0xc50] sm:$0xff]
    %v423 = vld [vmem:[%s1 + $0xc58] sm:$0xff]
    %v424 = vld [vmem:[%s1 + $0xc60] sm:$0xff]
    %v425 = vld [vmem:[%s1 + $0xc68] sm:$0xff]
    %v426 = vld [vmem:[%s1 + $0xc70] sm:$0xff]
    %v427 = vld [vmem:[%s1 + $0xc78] sm:$0xff]
    %v428 = vld [vmem:[%s2] sm:$0x1]
    %v430 = vlaneseq
    %v431 = vshrl.u32 %v430, 7
    %v432 = vsub.s32 0, %v431
    %v433 = vrot.slane %v428, %v432
    %v442 = vcombine.high %v21, %v21
    %v444 = vunpack.c.l.s4 1983009808
    %v445 = vunpack.c.0.s8 %v444
    %v446 = vlaneseq
    %v447 = vshrl.u32 %v446, 7
    %v448 = vsub.s32 %v445, %v447
    %v449 = vrot.slane %v21, %v448
    %v451 = vunpack.c.l.s4 1983009808
    %v452 = vunpack.c.0.s8 %v451
    %v453 = vlaneseq
    %v454 = vshrl.u32 %v453, 7
    %v455 = vsub.s32 %v452, %v454
    %v456 = vrot.slane %v442, %v455
    %v457 = vcombine.high %v449, %v449
    %v458 = vcombine.high %v456, %v456
    %v459 = vcombine.high %v22, %v22
    %v461 = vunpack.c.l.s4 1983009808
    %v462 = vunpack.c.0.s8 %v461
    %v463 = vlaneseq
    %v464 = vshrl.u32 %v463, 7
    %v465 = vsub.s32 %v462, %v464
    %v466 = vrot.slane %v22, %v465
    %v468 = vunpack.c.l.s4 1983009808
    %v469 = vunpack.c.0.s8 %v468
    %v470 = vlaneseq
    %v471 = vshrl.u32 %v470, 7
    %v472 = vsub.s32 %v469, %v471
    %v473 = vrot.slane %v459, %v472
    %v474 = vcombine.high %v466, %v466
    %v475 = vcombine.high %v473, %v473
    %v476 = vcombine.high %v23, %v23
    %v478 = vunpack.c.l.s4 1983009808
    %v479 = vunpack.c.0.s8 %v478
    %v480 = vlaneseq
    %v481 = vshrl.u32 %v480, 7
    %v482 = vsub.s32 %v479, %v481
    %v483 = vrot.slane %v23, %v482
    %v485 = vunpack.c.l.s4 1983009808
    %v486 = vunpack.c.0.s8 %v485
    %v487 = vlaneseq
    %v488 = vshrl.u32 %v487, 7
    %v489 = vsub.s32 %v486, %v488
    %v490 = vrot.slane %v476, %v489
    %v491 = vcombine.high %v483, %v483
    %v492 = vcombine.high %v490, %v490
    %v493 = vcombine.high %v24, %v24
    %v495 = vunpack.c.l.s4 1983009808
    %v496 = vunpack.c.0.s8 %v495
    %v497 = vlaneseq
    %v498 = vshrl.u32 %v497, 7
    %v499 = vsub.s32 %v496, %v498
    %v500 = vrot.slane %v24, %v499
    %v502 = vunpack.c.l.s4 1983009808
    %v503 = vunpack.c.0.s8 %v502
    %v504 = vlaneseq
    %v505 = vshrl.u32 %v504, 7
    %v506 = vsub.s32 %v503, %v505
    %v507 = vrot.slane %v493, %v506
    %v508 = vcombine.high %v500, %v500
    %v509 = vcombine.high %v507, %v507
    %v510 = vcombine.high %v25, %v25
    %v512 = vunpack.c.l.s4 1983009808
    %v513 = vunpack.c.0.s8 %v512
    %v514 = vlaneseq
    %v515 = vshrl.u32 %v514, 7
    %v516 = vsub.s32 %v513, %v515
    %v517 = vrot.slane %v25, %v516
    %v519 = vunpack.c.l.s4 1983009808
    %v520 = vunpack.c.0.s8 %v519
    %v521 = vlaneseq
    %v522 = vshrl.u32 %v521, 7
    %v523 = vsub.s32 %v520, %v522
    %v524 = vrot.slane %v510, %v523
    %v525 = vcombine.high %v517, %v517
    %v526 = vcombine.high %v524, %v524
    %v527 = vcombine.high %v26, %v26
    %v529 = vunpack.c.l.s4 1983009808
    %v530 = vunpack.c.0.s8 %v529
    %v531 = vlaneseq
    %v532 = vshrl.u32 %v531, 7
    %v533 = vsub.s32 %v530, %v532
    %v534 = vrot.slane %v26, %v533
    %v536 = vunpack.c.l.s4 1983009808
    %v537 = vunpack.c.0.s8 %v536
    %v538 = vlaneseq
    %v539 = vshrl.u32 %v538, 7
    %v540 = vsub.s32 %v537, %v539
    %v541 = vrot.slane %v527, %v540
    %v542 = vcombine.high %v534, %v534
    %v543 = vcombine.high %v541, %v541
    %v545 = vunpack.c.l.s4 1983009808
    %v546 = vunpack.c.0.s8 %v545
    %v547 = vlaneseq
    %v548 = vshrl.u32 %v547, 7
    %v549 = vsub.s32 %v546, %v548
    %v550 = vrot.slane %v27, %v549
    %576 = vmatprep.subr.mxu0 0.0
    %577 = vmatpush1.msra.mxu0 %v28
    %578 = vmatprep.subr.mxu0 0.0
    %579 = vmatpush1.msra.mxu0 %v29
    %580 = vmatprep.subr.mxu0 0.0
    %581 = vmatpush1.msra.mxu0 %v30
    %582 = vmatprep.subr.mxu0 0.0
    %583 = vmatpush1.msra.mxu0 %v31
    %584 = vmatprep.subr.mxu0 0.0
    %585 = vmatpush1.msra.mxu0 %v32
    %586 = vmatprep.subr.mxu0 0.0
    %587 = vmatpush1.msra.mxu0 %v33
    %588 = vmatprep.subr.mxu0 0.0
    %589 = vmatpush1.msra.mxu0 %v34
    %590 = vmatprep.subr.mxu0 0.0
    %591 = vmatpush1.msra.mxu0 %v35
    %592 = vmatprep.subr.mxu0 0.0
    %593 = vmatpush1.msra.mxu0 %v36
    %594 = vmatprep.subr.mxu0 0.0
    %595 = vmatpush1.msra.mxu0 %v37
    %596 = vmatprep.subr.mxu0 0.0
    %597 = vmatpush1.msra.mxu0 %v38
    %598 = vmatprep.subr.mxu0 0.0
    %599 = vmatpush1.msra.mxu0 %v39
    %600 = vmatprep.subr.mxu0 0.0
    %601 = vmatpush1.msra.mxu0 %v40
    %602 = vmatprep.subr.mxu0 0.0
    %603 = vmatpush1.msra.mxu0 %v41
    %604 = vmatprep.subr.mxu0 0.0
    %605 = vmatpush1.msra.mxu0 %v42
    %606 = vmatprep.subr.mxu0 0.0
    %607 = vmatpush1.msra.mxu0 %v43
    %608 = vmatprep.subr.mxu0 0.0
    %609 = vmatpush1.msra.mxu0 %v44
    %610 = vmatprep.subr.mxu0 0.0
    %611 = vmatpush1.msra.mxu0 %v45
    %612 = vmatprep.subr.mxu0 0.0
    %613 = vmatpush1.msra.mxu0 %v46
    %614 = vmatprep.subr.mxu0 0.0
    %615 = vmatpush1.msra.mxu0 %v47
    %616 = vmatprep.subr.mxu0 0.0
    %617 = vmatpush1.msra.mxu0 %v48
    %618 = vmatprep.subr.mxu0 0.0
    %619 = vmatpush1.msra.mxu0 %v49
    %620 = vmatprep.subr.mxu0 0.0
    %621 = vmatpush1.msra.mxu0 %v50
    %622 = vmatprep.subr.mxu0 0.0
    %623 = vmatpush1.msra.mxu0 %v51
    %624 = vmatprep.subr.mxu0 0.0
    %625 = vmatpush1.msra.mxu0 %v52
    %626 = vmatprep.subr.mxu0 0.0
    %627 = vmatpush1.msra.mxu0 %v53
    %628 = vmatprep.subr.mxu0 0.0
    %629 = vmatpush1.msra.mxu0 %v54
    %630 = vmatprep.subr.mxu0 0.0
    %631 = vmatpush1.msra.mxu0 %v55
    %632 = vmatprep.subr.mxu0 0.0
    %633 = vmatpush1.msra.mxu0 %v56
    %634 = vmatprep.subr.mxu0 0.0
    %635 = vmatpush1.msra.mxu0 %v57
    %636 = vmatprep.subr.mxu0 0.0
    %637 = vmatpush1.msra.mxu0 %v58
    %638 = vmatprep.subr.mxu0 0.0
    %639 = vmatpush1.msra.mxu0 %v59
    %640 = vmatprep.mubr.f32.mxu0 %v457
    %641 = vmatmul.mubr.f32.gmra.mrb[0].mxu0 %v449
    %v642 = vpop.f32.mrb[0].mxu0
    %v643 = vadd.f32 %v433, %v642
    %v644 = vpop.f32.mrb[0].mxu0
    %645 = vdwg.mxu0
    %646 = vmatprep.subr.mxu0 0.0
    %647 = vmatpush1.msra.mxu0 %v60
    %648 = vmatprep.subr.mxu0 0.0
    %649 = vmatpush1.msra.mxu0 %v61
    %650 = vmatprep.subr.mxu0 0.0
    %651 = vmatpush1.msra.mxu0 %v62
    %652 = vmatprep.subr.mxu0 0.0
    %653 = vmatpush1.msra.mxu0 %v63
    %654 = vmatprep.subr.mxu0 0.0
    %655 = vmatpush1.msra.mxu0 %v64
    %656 = vmatprep.subr.mxu0 0.0
    %657 = vmatpush1.msra.mxu0 %v65
    %658 = vmatprep.subr.mxu0 0.0
    %659 = vmatpush1.msra.mxu0 %v66
    %660 = vmatprep.subr.mxu0 0.0
    %661 = vmatpush1.msra.mxu0 %v67
    %662 = vmatprep.subr.mxu0 0.0
    %663 = vmatpush1.msra.mxu0 %v68
    %664 = vmatprep.subr.mxu0 0.0
    %665 = vmatpush1.msra.mxu0 %v69
    %666 = vmatprep.subr.mxu0 0.0
    %667 = vmatpush1.msra.mxu0 %v70
    %668 = vmatprep.subr.mxu0 0.0
    %669 = vmatpush1.msra.mxu0 %v71
    %670 = vmatprep.subr.mxu0 0.0
    %671 = vmatpush1.msra.mxu0 %v72
    %672 = vmatprep.subr.mxu0 0.0
    %673 = vmatpush1.msra.mxu0 %v73
    %674 = vmatprep.subr.mxu0 0.0
    %675 = vmatpush1.msra.mxu0 %v74
    %676 = vmatprep.subr.mxu0 0.0
    %677 = vmatpush1.msra.mxu0 %v75
    %678 = vmatprep.subr.mxu0 0.0
    %679 = vmatpush1.msra.mxu0 %v76
    %680 = vmatprep.subr.mxu0 0.0
    %681 = vmatpush1.msra.mxu0 %v77
    %682 = vmatprep.subr.mxu0 0.0
    %683 = vmatpush1.msra.mxu0 %v78
    %684 = vmatprep.subr.mxu0 0.0
    %685 = vmatpush1.msra.mxu0 %v79
    %686 = vmatprep.subr.mxu0 0.0
    %687 = vmatpush1.msra.mxu0 %v80
    %688 = vmatprep.subr.mxu0 0.0
    %689 = vmatpush1.msra.mxu0 %v81
    %690 = vmatprep.subr.mxu0 0.0
    %691 = vmatpush1.msra.mxu0 %v82
    %692 = vmatprep.subr.mxu0 0.0
    %693 = vmatpush1.msra.mxu0 %v83
    %694 = vmatprep.subr.mxu0 0.0
    %695 = vmatpush1.msra.mxu0 %v84
    %696 = vmatprep.subr.mxu0 0.0
    %697 = vmatpush1.msra.mxu0 %v85
    %698 = vmatprep.subr.mxu0 0.0
    %699 = vmatpush1.msra.mxu0 %v86
    %700 = vmatprep.subr.mxu0 0.0
    %701 = vmatpush1.msra.mxu0 %v87
    %702 = vmatprep.subr.mxu0 0.0
    %703 = vmatpush1.msra.mxu0 %v88
    %704 = vmatprep.subr.mxu0 0.0
    %705 = vmatpush1.msra.mxu0 %v89
    %706 = vmatprep.subr.mxu0 0.0
    %707 = vmatpush1.msra.mxu0 %v90
    %708 = vmatprep.subr.mxu0 0.0
    %709 = vmatpush1.msra.mxu0 %v91
    %710 = vmatprep.mubr.f32.mxu0 %v458
    %711 = vmatmul.mubr.f32.gmra.mrb[0].mxu0 %v456
    %v712 = vpop.f32.mrb[0].mxu0
    %v713 = vadd.f32 %v643, %v712
    %v714 = vpop.f32.mrb[0].mxu0
    %715 = vdwg.mxu0
    %716 = vmatprep.subr.mxu0 0.0
    %717 = vmatpush1.msra.mxu0 %v92
    %718 = vmatprep.subr.mxu0 0.0
    %719 = vmatpush1.msra.mxu0 %v93
    %720 = vmatprep.subr.mxu0 0.0
    %721 = vmatpush1.msra.mxu0 %v94
    %722 = vmatprep.subr.mxu0 0.0
    %723 = vmatpush1.msra.mxu0 %v95
    %724 = vmatprep.subr.mxu0 0.0
    %725 = vmatpush1.msra.mxu0 %v96
    %726 = vmatprep.subr.mxu0 0.0
    %727 = vmatpush1.msra.mxu0 %v97
    %728 = vmatprep.subr.mxu0 0.0
    %729 = vmatpush1.msra.mxu0 %v98
    %730 = vmatprep.subr.mxu0 0.0
    %731 = vmatpush1.msra.mxu0 %v99
    %732 = vmatprep.subr.mxu0 0.0
    %733 = vmatpush1.msra.mxu0 %v100
    %734 = vmatprep.subr.mxu0 0.0
    %735 = vmatpush1.msra.mxu0 %v101
    %736 = vmatprep.subr.mxu0 0.0
    %737 = vmatpush1.msra.mxu0 %v102
    %738 = vmatprep.subr.mxu0 0.0
    %739 = vmatpush1.msra.mxu0 %v103
    %740 = vmatprep.subr.mxu0 0.0
    %741 = vmatpush1.msra.mxu0 %v104
    %742 = vmatprep.subr.mxu0 0.0
    %743 = vmatpush1.msra.mxu0 %v105
    %744 = vmatprep.subr.mxu0 0.0
    %745 = vmatpush1.msra.mxu0 %v106
    %746 = vmatprep.subr.mxu0 0.0
    %747 = vmatpush1.msra.mxu0 %v107
    %748 = vmatprep.subr.mxu0 0.0
    %749 = vmatpush1.msra.mxu0 %v108
    %750 = vmatprep.subr.mxu0 0.0
    %751 = vmatpush1.msra.mxu0 %v109
    %752 = vmatprep.subr.mxu0 0.0
    %753 = vmatpush1.msra.mxu0 %v110
    %754 = vmatprep.subr.mxu0 0.0
    %755 = vmatpush1.msra.mxu0 %v111
    %756 = vmatprep.subr.mxu0 0.0
    %757 = vmatpush1.msra.mxu0 %v112
    %758 = vmatprep.subr.mxu0 0.0
    %759 = vmatpush1.msra.mxu0 %v113
    %760 = vmatprep.subr.mxu0 0.0
    %761 = vmatpush1.msra.mxu0 %v114
    %762 = vmatprep.subr.mxu0 0.0
    %763 = vmatpush1.msra.mxu0 %v115
    %764 = vmatprep.subr.mxu0 0.0
    %765 = vmatpush1.msra.mxu0 %v116
    %766 = vmatprep.subr.mxu0 0.0
    %767 = vmatpush1.msra.mxu0 %v117
    %768 = vmatprep.subr.mxu0 0.0
    %769 = vmatpush1.msra.mxu0 %v118
    %770 = vmatprep.subr.mxu0 0.0
    %771 = vmatpush1.msra.mxu0 %v119
    %772 = vmatprep.subr.mxu0 0.0
    %773 = vmatpush1.msra.mxu0 %v120
    %774 = vmatprep.subr.mxu0 0.0
    %775 = vmatpush1.msra.mxu0 %v121
    %776 = vmatprep.subr.mxu0 0.0
    %777 = vmatpush1.msra.mxu0 %v122
    %778 = vmatprep.subr.mxu0 0.0
    %779 = vmatpush1.msra.mxu0 %v123
    %780 = vmatprep.mubr.f32.mxu0 %v474
    %781 = vmatmul.mubr.f32.gmra.mrb[0].mxu0 %v466
    %v782 = vpop.f32.mrb[0].mxu0
    %v783 = vadd.f32 %v713, %v782
    %v784 = vpop.f32.mrb[0].mxu0
    %785 = vdwg.mxu0
    %786 = vmatprep.subr.mxu0 0.0
    %787 = vmatpush1.msra.mxu0 %v124
    %788 = vmatprep.subr.mxu0 0.0
    %789 = vmatpush1.msra.mxu0 %v125
    %790 = vmatprep.subr.mxu0 0.0
    %791 = vmatpush1.msra.mxu0 %v126
    %792 = vmatprep.subr.mxu0 0.0
    %793 = vmatpush1.msra.mxu0 %v127
    %794 = vmatprep.subr.mxu0 0.0
    %795 = vmatpush1.msra.mxu0 %v128
    %796 = vmatprep.subr.mxu0 0.0
    %797 = vmatpush1.msra.mxu0 %v129
    %798 = vmatprep.subr.mxu0 0.0
    %799 = vmatpush1.msra.mxu0 %v130
    %800 = vmatprep.subr.mxu0 0.0
    %801 = vmatpush1.msra.mxu0 %v131
    %802 = vmatprep.subr.mxu0 0.0
    %803 = vmatpush1.msra.mxu0 %v132
    %804 = vmatprep.subr.mxu0 0.0
    %805 = vmatpush1.msra.mxu0 %v133
    %806 = vmatprep.subr.mxu0 0.0
    %807 = vmatpush1.msra.mxu0 %v134
    %808 = vmatprep.subr.mxu0 0.0
    %809 = vmatpush1.msra.mxu0 %v135
    %810 = vmatprep.subr.mxu0 0.0
    %811 = vmatpush1.msra.mxu0 %v136
    %812 = vmatprep.subr.mxu0 0.0
    %813 = vmatpush1.msra.mxu0 %v137
    %814 = vmatprep.subr.mxu0 0.0
    %815 = vmatpush1.msra.mxu0 %v138
    %816 = vmatprep.subr.mxu0 0.0
    %817 = vmatpush1.msra.mxu0 %v139
    %818 = vmatprep.subr.mxu0 0.0
    %819 = vmatpush1.msra.mxu0 %v140
    %820 = vmatprep.subr.mxu0 0.0
    %821 = vmatpush1.msra.mxu0 %v141
    %822 = vmatprep.subr.mxu0 0.0
    %823 = vmatpush1.msra.mxu0 %v142
    %824 = vmatprep.subr.mxu0 0.0
    %825 = vmatpush1.msra.mxu0 %v143
    %826 = vmatprep.subr.mxu0 0.0
    %827 = vmatpush1.msra.mxu0 %v144
    %828 = vmatprep.subr.mxu0 0.0
    %829 = vmatpush1.msra.mxu0 %v145
    %830 = vmatprep.subr.mxu0 0.0
    %831 = vmatpush1.msra.mxu0 %v146
    %832 = vmatprep.subr.mxu0 0.0
    %833 = vmatpush1.msra.mxu0 %v147
    %834 = vmatprep.subr.mxu0 0.0
    %835 = vmatpush1.msra.mxu0 %v148
    %836 = vmatprep.subr.mxu0 0.0
    %837 = vmatpush1.msra.mxu0 %v149
    %838 = vmatprep.subr.mxu0 0.0
    %839 = vmatpush1.msra.mxu0 %v150
    %840 = vmatprep.subr.mxu0 0.0
    %841 = vmatpush1.msra.mxu0 %v151
    %842 = vmatprep.subr.mxu0 0.0
    %843 = vmatpush1.msra.mxu0 %v152
    %844 = vmatprep.subr.mxu0 0.0
    %845 = vmatpush1.msra.mxu0 %v153
    %846 = vmatprep.subr.mxu0 0.0
    %847 = vmatpush1.msra.mxu0 %v154
    %848 = vmatprep.subr.mxu0 0.0
    %849 = vmatpush1.msra.mxu0 %v155
    %850 = vmatprep.mubr.f32.mxu0 %v475
    %851 = vmatmul.mubr.f32.gmra.mrb[0].mxu0 %v473
    %v852 = vpop.f32.mrb[0].mxu0
    %v853 = vadd.f32 %v783, %v852
    %v854 = vpop.f32.mrb[0].mxu0
    %855 = vdwg.mxu0
    %856 = vmatprep.subr.mxu0 0.0
    %857 = vmatpush1.msra.mxu0 %v156
    %858 = vmatprep.subr.mxu0 0.0
    %859 = vmatpush1.msra.mxu0 %v157
    %860 = vmatprep.subr.mxu0 0.0
    %861 = vmatpush1.msra.mxu0 %v158
    %862 = vmatprep.subr.mxu0 0.0
    %863 = vmatpush1.msra.mxu0 %v159
    %864 = vmatprep.subr.mxu0 0.0
    %865 = vmatpush1.msra.mxu0 %v160
    %866 = vmatprep.subr.mxu0 0.0
    %867 = vmatpush1.msra.mxu0 %v161
    %868 = vmatprep.subr.mxu0 0.0
    %869 = vmatpush1.msra.mxu0 %v162
    %870 = vmatprep.subr.mxu0 0.0
    %871 = vmatpush1.msra.mxu0 %v163
    %872 = vmatprep.subr.mxu0 0.0
    %873 = vmatpush1.msra.mxu0 %v164
    %874 = vmatprep.subr.mxu0 0.0
    %875 = vmatpush1.msra.mxu0 %v165
    %876 = vmatprep.subr.mxu0 0.0
    %877 = vmatpush1.msra.mxu0 %v166
    %878 = vmatprep.subr.mxu0 0.0
    %879 = vmatpush1.msra.mxu0 %v167
    %880 = vmatprep.subr.mxu0 0.0
    %881 = vmatpush1.msra.mxu0 %v168
    %882 = vmatprep.subr.mxu0 0.0
    %883 = vmatpush1.msra.mxu0 %v169
    %884 = vmatprep.subr.mxu0 0.0
    %885 = vmatpush1.msra.mxu0 %v170
    %886 = vmatprep.subr.mxu0 0.0
    %887 = vmatpush1.msra.mxu0 %v171
    %888 = vmatprep.subr.mxu0 0.0
    %889 = vmatpush1.msra.mxu0 %v172
    %890 = vmatprep.subr.mxu0 0.0
    %891 = vmatpush1.msra.mxu0 %v173
    %892 = vmatprep.subr.mxu0 0.0
    %893 = vmatpush1.msra.mxu0 %v174
    %894 = vmatprep.subr.mxu0 0.0
    %895 = vmatpush1.msra.mxu0 %v175
    %896 = vmatprep.subr.mxu0 0.0
    %897 = vmatpush1.msra.mxu0 %v176
    %898 = vmatprep.subr.mxu0 0.0
    %899 = vmatpush1.msra.mxu0 %v177
    %900 = vmatprep.subr.mxu0 0.0
    %901 = vmatpush1.msra.mxu0 %v178
    %902 = vmatprep.subr.mxu0 0.0
    %903 = vmatpush1.msra.mxu0 %v179
    %904 = vmatprep.subr.mxu0 0.0
    %905 = vmatpush1.msra.mxu0 %v180
    %906 = vmatprep.subr.mxu0 0.0
    %907 = vmatpush1.msra.mxu0 %v181
    %908 = vmatprep.subr.mxu0 0.0
    %909 = vmatpush1.msra.mxu0 %v182
    %910 = vmatprep.subr.mxu0 0.0
    %911 = vmatpush1.msra.mxu0 %v183
    %912 = vmatprep.subr.mxu0 0.0
    %913 = vmatpush1.msra.mxu0 %v184
    %914 = vmatprep.subr.mxu0 0.0
    %915 = vmatpush1.msra.mxu0 %v185
    %916 = vmatprep.subr.mxu0 0.0
    %917 = vmatpush1.msra.mxu0 %v186
    %918 = vmatprep.subr.mxu0 0.0
    %919 = vmatpush1.msra.mxu0 %v187
    %920 = vmatprep.mubr.f32.mxu0 %v491
    %921 = vmatmul.mubr.f32.gmra.mrb[0].mxu0 %v483
    %v922 = vpop.f32.mrb[0].mxu0
    %v923 = vadd.f32 %v853, %v922
    %v924 = vpop.f32.mrb[0].mxu0
    %925 = vdwg.mxu0
    %926 = vmatprep.subr.mxu0 0.0
    %927 = vmatpush1.msra.mxu0 %v188
    %928 = vmatprep.subr.mxu0 0.0
    %929 = vmatpush1.msra.mxu0 %v189
    %930 = vmatprep.subr.mxu0 0.0
    %931 = vmatpush1.msra.mxu0 %v190
    %932 = vmatprep.subr.mxu0 0.0
    %933 = vmatpush1.msra.mxu0 %v191
    %934 = vmatprep.subr.mxu0 0.0
    %935 = vmatpush1.msra.mxu0 %v192
    %936 = vmatprep.subr.mxu0 0.0
    %937 = vmatpush1.msra.mxu0 %v193
    %938 = vmatprep.subr.mxu0 0.0
    %939 = vmatpush1.msra.mxu0 %v194
    %940 = vmatprep.subr.mxu0 0.0
    %941 = vmatpush1.msra.mxu0 %v195
    %942 = vmatprep.subr.mxu0 0.0
    %943 = vmatpush1.msra.mxu0 %v196
    %944 = vmatprep.subr.mxu0 0.0
    %945 = vmatpush1.msra.mxu0 %v197
    %946 = vmatprep.subr.mxu0 0.0
    %947 = vmatpush1.msra.mxu0 %v198
    %948 = vmatprep.subr.mxu0 0.0
    %949 = vmatpush1.msra.mxu0 %v199
    %950 = vmatprep.subr.mxu0 0.0
    %951 = vmatpush1.msra.mxu0 %v200
    %952 = vmatprep.subr.mxu0 0.0
    %953 = vmatpush1.msra.mxu0 %v201
    %954 = vmatprep.subr.mxu0 0.0
    %955 = vmatpush1.msra.mxu0 %v202
    %956 = vmatprep.subr.mxu0 0.0
    %957 = vmatpush1.msra.mxu0 %v203
    %958 = vmatprep.subr.mxu0 0.0
    %959 = vmatpush1.msra.mxu0 %v204
    %960 = vmatprep.subr.mxu0 0.0
    %961 = vmatpush1.msra.mxu0 %v205
    %962 = vmatprep.subr.mxu0 0.0
    %963 = vmatpush1.msra.mxu0 %v206
    %964 = vmatprep.subr.mxu0 0.0
    %965 = vmatpush1.msra.mxu0 %v207
    %966 = vmatprep.subr.mxu0 0.0
    %967 = vmatpush1.msra.mxu0 %v208
    %968 = vmatprep.subr.mxu0 0.0
    %969 = vmatpush1.msra.mxu0 %v209
    %970 = vmatprep.subr.mxu0 0.0
    %971 = vmatpush1.msra.mxu0 %v210
    %972 = vmatprep.subr.mxu0 0.0
    %973 = vmatpush1.msra.mxu0 %v211
    %974 = vmatprep.subr.mxu0 0.0
    %975 = vmatpush1.msra.mxu0 %v212
    %976 = vmatprep.subr.mxu0 0.0
    %977 = vmatpush1.msra.mxu0 %v213
    %978 = vmatprep.subr.mxu0 0.0
    %979 = vmatpush1.msra.mxu0 %v214
    %980 = vmatprep.subr.mxu0 0.0
    %981 = vmatpush1.msra.mxu0 %v215
    %982 = vmatprep.subr.mxu0 0.0
    %983 = vmatpush1.msra.mxu0 %v216
    %984 = vmatprep.subr.mxu0 0.0
    %985 = vmatpush1.msra.mxu0 %v217
    %986 = vmatprep.subr.mxu0 0.0
    %987 = vmatpush1.msra.mxu0 %v218
    %988 = vmatprep.subr.mxu0 0.0
    %989 = vmatpush1.msra.mxu0 %v219
    %990 = vmatprep.mubr.f32.mxu0 %v492
    %991 = vmatmul.mubr.f32.gmra.mrb[0].mxu0 %v490
    %v992 = vpop.f32.mrb[0].mxu0
    %v993 = vadd.f32 %v923, %v992
    %v994 = vpop.f32.mrb[0].mxu0
    %995 = vdwg.mxu0
    %996 = vmatprep.subr.mxu0 0.0
    %997 = vmatpush1.msra.mxu0 %v220
    %998 = vmatprep.subr.mxu0 0.0
    %999 = vmatpush1.msra.mxu0 %v221
    %1000 = vmatprep.subr.mxu0 0.0
    %1001 = vmatpush1.msra.mxu0 %v222
    %1002 = vmatprep.subr.mxu0 0.0
    %1003 = vmatpush1.msra.mxu0 %v223
    %1004 = vmatprep.subr.mxu0 0.0
    %1005 = vmatpush1.msra.mxu0 %v224
    %1006 = vmatprep.subr.mxu0 0.0
    %1007 = vmatpush1.msra.mxu0 %v225
    %1008 = vmatprep.subr.mxu0 0.0
    %1009 = vmatpush1.msra.mxu0 %v226
    %1010 = vmatprep.subr.mxu0 0.0
    %1011 = vmatpush1.msra.mxu0 %v227
    %1012 = vmatprep.subr.mxu0 0.0
    %1013 = vmatpush1.msra.mxu0 %v228
    %1014 = vmatprep.subr.mxu0 0.0
    %1015 = vmatpush1.msra.mxu0 %v229
    %1016 = vmatprep.subr.mxu0 0.0
    %1017 = vmatpush1.msra.mxu0 %v230
    %1018 = vmatprep.subr.mxu0 0.0
    %1019 = vmatpush1.msra.mxu0 %v231
    %1020 = vmatprep.subr.mxu0 0.0
    %1021 = vmatpush1.msra.mxu0 %v232
    %1022 = vmatprep.subr.mxu0 0.0
    %1023 = vmatpush1.msra.mxu0 %v233
    %1024 = vmatprep.subr.mxu0 0.0
    %1025 = vmatpush1.msra.mxu0 %v234
    %1026 = vmatprep.subr.mxu0 0.0
    %1027 = vmatpush1.msra.mxu0 %v235
    %1028 = vmatprep.subr.mxu0 0.0
    %1029 = vmatpush1.msra.mxu0 %v236
    %1030 = vmatprep.subr.mxu0 0.0
    %1031 = vmatpush1.msra.mxu0 %v237
    %1032 = vmatprep.subr.mxu0 0.0
    %1033 = vmatpush1.msra.mxu0 %v238
    %1034 = vmatprep.subr.mxu0 0.0
    %1035 = vmatpush1.msra.mxu0 %v239
    %1036 = vmatprep.subr.mxu0 0.0
    %1037 = vmatpush1.msra.mxu0 %v240
    %1038 = vmatprep.subr.mxu0 0.0
    %1039 = vmatpush1.msra.mxu0 %v241
    %1040 = vmatprep.subr.mxu0 0.0
    %1041 = vmatpush1.msra.mxu0 %v242
    %1042 = vmatprep.subr.mxu0 0.0
    %1043 = vmatpush1.msra.mxu0 %v243
    %1044 = vmatprep.subr.mxu0 0.0
    %1045 = vmatpush1.msra.mxu0 %v244
    %1046 = vmatprep.subr.mxu0 0.0
    %1047 = vmatpush1.msra.mxu0 %v245
    %1048 = vmatprep.subr.mxu0 0.0
    %1049 = vmatpush1.msra.mxu0 %v246
    %1050 = vmatprep.subr.mxu0 0.0
    %1051 = vmatpush1.msra.mxu0 %v247
    %1052 = vmatprep.subr.mxu0 0.0
    %1053 = vmatpush1.msra.mxu0 %v248
    %1054 = vmatprep.subr.mxu0 0.0
    %1055 = vmatpush1.msra.mxu0 %v249
    %1056 = vmatprep.subr.mxu0 0.0
    %1057 = vmatpush1.msra.mxu0 %v250
    %1058 = vmatprep.subr.mxu0 0.0
    %1059 = vmatpush1.msra.mxu0 %v251
    %1060 = vmatprep.mubr.f32.mxu0 %v508
    %1061 = vmatmul.mubr.f32.gmra.mrb[0].mxu0 %v500
    %v1062 = vpop.f32.mrb[0].mxu0
    %v1063 = vadd.f32 %v993, %v1062
    %v1064 = vpop.f32.mrb[0].mxu0
    %1065 = vdwg.mxu0
    %1066 = vmatprep.subr.mxu0 0.0
    %1067 = vmatpush1.msra.mxu0 %v252
    %1068 = vmatprep.subr.mxu0 0.0
    %1069 = vmatpush1.msra.mxu0 %v253
    %1070 = vmatprep.subr.mxu0 0.0
    %1071 = vmatpush1.msra.mxu0 %v254
    %1072 = vmatprep.subr.mxu0 0.0
    %1073 = vmatpush1.msra.mxu0 %v255
    %1074 = vmatprep.subr.mxu0 0.0
    %1075 = vmatpush1.msra.mxu0 %v256
    %1076 = vmatprep.subr.mxu0 0.0
    %1077 = vmatpush1.msra.mxu0 %v257
    %1078 = vmatprep.subr.mxu0 0.0
    %1079 = vmatpush1.msra.mxu0 %v258
    %1080 = vmatprep.subr.mxu0 0.0
    %1081 = vmatpush1.msra.mxu0 %v259
    %1082 = vmatprep.subr.mxu0 0.0
    %1083 = vmatpush1.msra.mxu0 %v260
    %1084 = vmatprep.subr.mxu0 0.0
    %1085 = vmatpush1.msra.mxu0 %v261
    %1086 = vmatprep.subr.mxu0 0.0
    %1087 = vmatpush1.msra.mxu0 %v262
    %1088 = vmatprep.subr.mxu0 0.0
    %1089 = vmatpush1.msra.mxu0 %v263
    %1090 = vmatprep.subr.mxu0 0.0
    %1091 = vmatpush1.msra.mxu0 %v264
    %1092 = vmatprep.subr.mxu0 0.0
    %1093 = vmatpush1.msra.mxu0 %v265
    %1094 = vmatprep.subr.mxu0 0.0
    %1095 = vmatpush1.msra.mxu0 %v266
    %1096 = vmatprep.subr.mxu0 0.0
    %1097 = vmatpush1.msra.mxu0 %v267
    %1098 = vmatprep.subr.mxu0 0.0
    %1099 = vmatpush1.msra.mxu0 %v268
    %1100 = vmatprep.subr.mxu0 0.0
    %1101 = vmatpush1.msra.mxu0 %v269
    %1102 = vmatprep.subr.mxu0 0.0
    %1103 = vmatpush1.msra.mxu0 %v270
    %1104 = vmatprep.subr.mxu0 0.0
    %1105 = vmatpush1.msra.mxu0 %v271
    %1106 = vmatprep.subr.mxu0 0.0
    %1107 = vmatpush1.msra.mxu0 %v272
    %1108 = vmatprep.subr.mxu0 0.0
    %1109 = vmatpush1.msra.mxu0 %v273
    %1110 = vmatprep.subr.mxu0 0.0
    %1111 = vmatpush1.msra.mxu0 %v274
    %1112 = vmatprep.subr.mxu0 0.0
    %1113 = vmatpush1.msra.mxu0 %v275
    %1114 = vmatprep.subr.mxu0 0.0
    %1115 = vmatpush1.msra.mxu0 %v276
    %1116 = vmatprep.subr.mxu0 0.0
    %1117 = vmatpush1.msra.mxu0 %v277
    %1118 = vmatprep.subr.mxu0 0.0
    %1119 = vmatpush1.msra.mxu0 %v278
    %1120 = vmatprep.subr.mxu0 0.0
    %1121 = vmatpush1.msra.mxu0 %v279
    %1122 = vmatprep.subr.mxu0 0.0
    %1123 = vmatpush1.msra.mxu0 %v280
    %1124 = vmatprep.subr.mxu0 0.0
    %1125 = vmatpush1.msra.mxu0 %v281
    %1126 = vmatprep.subr.mxu0 0.0
    %1127 = vmatpush1.msra.mxu0 %v282
    %1128 = vmatprep.subr.mxu0 0.0
    %1129 = vmatpush1.msra.mxu0 %v283
    %1130 = vmatprep.mubr.f32.mxu0 %v509
    %1131 = vmatmul.mubr.f32.gmra.mrb[0].mxu0 %v507
    %v1132 = vpop.f32.mrb[0].mxu0
    %v1133 = vadd.f32 %v1063, %v1132
    %v1134 = vpop.f32.mrb[0].mxu0
    %1135 = vdwg.mxu0
    %1136 = vmatprep.subr.mxu0 0.0
    %1137 = vmatpush1.msra.mxu0 %v284
    %1138 = vmatprep.subr.mxu0 0.0
    %1139 = vmatpush1.msra.mxu0 %v285
    %1140 = vmatprep.subr.mxu0 0.0
    %1141 = vmatpush1.msra.mxu0 %v286
    %1142 = vmatprep.subr.mxu0 0.0
    %1143 = vmatpush1.msra.mxu0 %v287
    %1144 = vmatprep.subr.mxu0 0.0
    %1145 = vmatpush1.msra.mxu0 %v288
    %1146 = vmatprep.subr.mxu0 0.0
    %1147 = vmatpush1.msra.mxu0 %v289
    %1148 = vmatprep.subr.mxu0 0.0
    %1149 = vmatpush1.msra.mxu0 %v290
    %1150 = vmatprep.subr.mxu0 0.0
    %1151 = vmatpush1.msra.mxu0 %v291
    %1152 = vmatprep.subr.mxu0 0.0
    %1153 = vmatpush1.msra.mxu0 %v292
    %1154 = vmatprep.subr.mxu0 0.0
    %1155 = vmatpush1.msra.mxu0 %v293
    %1156 = vmatprep.subr.mxu0 0.0
    %1157 = vmatpush1.msra.mxu0 %v294
    %1158 = vmatprep.subr.mxu0 0.0
    %1159 = vmatpush1.msra.mxu0 %v295
    %1160 = vmatprep.subr.mxu0 0.0
    %1161 = vmatpush1.msra.mxu0 %v296
    %1162 = vmatprep.subr.mxu0 0.0
    %1163 = vmatpush1.msra.mxu0 %v297
    %1164 = vmatprep.subr.mxu0 0.0
    %1165 = vmatpush1.msra.mxu0 %v298
    %1166 = vmatprep.subr.mxu0 0.0
    %1167 = vmatpush1.msra.mxu0 %v299
    %1168 = vmatprep.subr.mxu0 0.0
    %1169 = vmatpush1.msra.mxu0 %v300
    %1170 = vmatprep.subr.mxu0 0.0
    %1171 = vmatpush1.msra.mxu0 %v301
    %1172 = vmatprep.subr.mxu0 0.0
    %1173 = vmatpush1.msra.mxu0 %v302
    %1174 = vmatprep.subr.mxu0 0.0
    %1175 = vmatpush1.msra.mxu0 %v303
    %1176 = vmatprep.subr.mxu0 0.0
    %1177 = vmatpush1.msra.mxu0 %v304
    %1178 = vmatprep.subr.mxu0 0.0
    %1179 = vmatpush1.msra.mxu0 %v305
    %1180 = vmatprep.subr.mxu0 0.0
    %1181 = vmatpush1.msra.mxu0 %v306
    %1182 = vmatprep.subr.mxu0 0.0
    %1183 = vmatpush1.msra.mxu0 %v307
    %1184 = vmatprep.subr.mxu0 0.0
    %1185 = vmatpush1.msra.mxu0 %v308
    %1186 = vmatprep.subr.mxu0 0.0
    %1187 = vmatpush1.msra.mxu0 %v309
    %1188 = vmatprep.subr.mxu0 0.0
    %1189 = vmatpush1.msra.mxu0 %v310
    %1190 = vmatprep.subr.mxu0 0.0
    %1191 = vmatpush1.msra.mxu0 %v311
    %1192 = vmatprep.subr.mxu0 0.0
    %1193 = vmatpush1.msra.mxu0 %v312
    %1194 = vmatprep.subr.mxu0 0.0
    %1195 = vmatpush1.msra.mxu0 %v313
    %1196 = vmatprep.subr.mxu0 0.0
    %1197 = vmatpush1.msra.mxu0 %v314
    %1198 = vmatprep.subr.mxu0 0.0
    %1199 = vmatpush1.msra.mxu0 %v315
    %1200 = vmatprep.mubr.f32.mxu0 %v525
    %1201 = vmatmul.mubr.f32.gmra.mrb[0].mxu0 %v517
    %v1202 = vpop.f32.mrb[0].mxu0
    %v1203 = vadd.f32 %v1133, %v1202
    %v1204 = vpop.f32.mrb[0].mxu0
    %1205 = vdwg.mxu0
    %1206 = vmatprep.subr.mxu0 0.0
    %1207 = vmatpush1.msra.mxu0 %v316
    %1208 = vmatprep.subr.mxu0 0.0
    %1209 = vmatpush1.msra.mxu0 %v317
    %1210 = vmatprep.subr.mxu0 0.0
    %1211 = vmatpush1.msra.mxu0 %v318
    %1212 = vmatprep.subr.mxu0 0.0
    %1213 = vmatpush1.msra.mxu0 %v319
    %1214 = vmatprep.subr.mxu0 0.0
    %1215 = vmatpush1.msra.mxu0 %v320
    %1216 = vmatprep.subr.mxu0 0.0
    %1217 = vmatpush1.msra.mxu0 %v321
    %1218 = vmatprep.subr.mxu0 0.0
    %1219 = vmatpush1.msra.mxu0 %v322
    %1220 = vmatprep.subr.mxu0 0.0
    %1221 = vmatpush1.msra.mxu0 %v323
    %1222 = vmatprep.subr.mxu0 0.0
    %1223 = vmatpush1.msra.mxu0 %v324
    %1224 = vmatprep.subr.mxu0 0.0
    %1225 = vmatpush1.msra.mxu0 %v325
    %1226 = vmatprep.subr.mxu0 0.0
    %1227 = vmatpush1.msra.mxu0 %v326
    %1228 = vmatprep.subr.mxu0 0.0
    %1229 = vmatpush1.msra.mxu0 %v327
    %1230 = vmatprep.subr.mxu0 0.0
    %1231 = vmatpush1.msra.mxu0 %v328
    %1232 = vmatprep.subr.mxu0 0.0
    %1233 = vmatpush1.msra.mxu0 %v329
    %1234 = vmatprep.subr.mxu0 0.0
    %1235 = vmatpush1.msra.mxu0 %v330
    %1236 = vmatprep.subr.mxu0 0.0
    %1237 = vmatpush1.msra.mxu0 %v331
    %1238 = vmatprep.subr.mxu0 0.0
    %1239 = vmatpush1.msra.mxu0 %v332
    %1240 = vmatprep.subr.mxu0 0.0
    %1241 = vmatpush1.msra.mxu0 %v333
    %1242 = vmatprep.subr.mxu0 0.0
    %1243 = vmatpush1.msra.mxu0 %v334
    %1244 = vmatprep.subr.mxu0 0.0
    %1245 = vmatpush1.msra.mxu0 %v335
    %1246 = vmatprep.subr.mxu0 0.0
    %1247 = vmatpush1.msra.mxu0 %v336
    %1248 = vmatprep.subr.mxu0 0.0
    %1249 = vmatpush1.msra.mxu0 %v337
    %1250 = vmatprep.subr.mxu0 0.0
    %1251 = vmatpush1.msra.mxu0 %v338
    %1252 = vmatprep.subr.mxu0 0.0
    %1253 = vmatpush1.msra.mxu0 %v339
    %1254 = vmatprep.subr.mxu0 0.0
    %1255 = vmatpush1.msra.mxu0 %v340
    %1256 = vmatprep.subr.mxu0 0.0
    %1257 = vmatpush1.msra.mxu0 %v341
    %1258 = vmatprep.subr.mxu0 0.0
    %1259 = vmatpush1.msra.mxu0 %v342
    %1260 = vmatprep.subr.mxu0 0.0
    %1261 = vmatpush1.msra.mxu0 %v343
    %1262 = vmatprep.subr.mxu0 0.0
    %1263 = vmatpush1.msra.mxu0 %v344
    %1264 = vmatprep.subr.mxu0 0.0
    %1265 = vmatpush1.msra.mxu0 %v345
    %1266 = vmatprep.subr.mxu0 0.0
    %1267 = vmatpush1.msra.mxu0 %v346
    %1268 = vmatprep.subr.mxu0 0.0
    %1269 = vmatpush1.msra.mxu0 %v347
    %1270 = vmatprep.mubr.f32.mxu0 %v526
    %1271 = vmatmul.mubr.f32.gmra.mrb[0].mxu0 %v524
    %v1272 = vpop.f32.mrb[0].mxu0
    %v1273 = vadd.f32 %v1203, %v1272
    %v1274 = vpop.f32.mrb[0].mxu0
    %1275 = vdwg.mxu0
    %1276 = vmatprep.subr.mxu0 0.0
    %1277 = vmatpush1.msra.mxu0 %v348
    %1278 = vmatprep.subr.mxu0 0.0
    %1279 = vmatpush1.msra.mxu0 %v349
    %1280 = vmatprep.subr.mxu0 0.0
    %1281 = vmatpush1.msra.mxu0 %v350
    %1282 = vmatprep.subr.mxu0 0.0
    %1283 = vmatpush1.msra.mxu0 %v351
    %1284 = vmatprep.subr.mxu0 0.0
    %1285 = vmatpush1.msra.mxu0 %v352
    %1286 = vmatprep.subr.mxu0 0.0
    %1287 = vmatpush1.msra.mxu0 %v353
    %1288 = vmatprep.subr.mxu0 0.0
    %1289 = vmatpush1.msra.mxu0 %v354
    %1290 = vmatprep.subr.mxu0 0.0
    %1291 = vmatpush1.msra.mxu0 %v355
    %1292 = vmatprep.subr.mxu0 0.0
    %1293 = vmatpush1.msra.mxu0 %v356
    %1294 = vmatprep.subr.mxu0 0.0
    %1295 = vmatpush1.msra.mxu0 %v357
    %1296 = vmatprep.subr.mxu0 0.0
    %1297 = vmatpush1.msra.mxu0 %v358
    %1298 = vmatprep.subr.mxu0 0.0
    %1299 = vmatpush1.msra.mxu0 %v359
    %1300 = vmatprep.subr.mxu0 0.0
    %1301 = vmatpush1.msra.mxu0 %v360
    %1302 = vmatprep.subr.mxu0 0.0
    %1303 = vmatpush1.msra.mxu0 %v361
    %1304 = vmatprep.subr.mxu0 0.0
    %1305 = vmatpush1.msra.mxu0 %v362
    %1306 = vmatprep.subr.mxu0 0.0
    %1307 = vmatpush1.msra.mxu0 %v363
    %1308 = vmatprep.subr.mxu0 0.0
    %1309 = vmatpush1.msra.mxu0 %v364
    %1310 = vmatprep.subr.mxu0 0.0
    %1311 = vmatpush1.msra.mxu0 %v365
    %1312 = vmatprep.subr.mxu0 0.0
    %1313 = vmatpush1.msra.mxu0 %v366
    %1314 = vmatprep.subr.mxu0 0.0
    %1315 = vmatpush1.msra.mxu0 %v367
    %1316 = vmatprep.subr.mxu0 0.0
    %1317 = vmatpush1.msra.mxu0 %v368
    %1318 = vmatprep.subr.mxu0 0.0
    %1319 = vmatpush1.msra.mxu0 %v369
    %1320 = vmatprep.subr.mxu0 0.0
    %1321 = vmatpush1.msra.mxu0 %v370
    %1322 = vmatprep.subr.mxu0 0.0
    %1323 = vmatpush1.msra.mxu0 %v371
    %1324 = vmatprep.subr.mxu0 0.0
    %1325 = vmatpush1.msra.mxu0 %v372
    %1326 = vmatprep.subr.mxu0 0.0
    %1327 = vmatpush1.msra.mxu0 %v373
    %1328 = vmatprep.subr.mxu0 0.0
    %1329 = vmatpush1.msra.mxu0 %v374
    %1330 = vmatprep.subr.mxu0 0.0
    %1331 = vmatpush1.msra.mxu0 %v375
    %1332 = vmatprep.subr.mxu0 0.0
    %1333 = vmatpush1.msra.mxu0 %v376
    %1334 = vmatprep.subr.mxu0 0.0
    %1335 = vmatpush1.msra.mxu0 %v377
    %1336 = vmatprep.subr.mxu0 0.0
    %1337 = vmatpush1.msra.mxu0 %v378
    %1338 = vmatprep.subr.mxu0 0.0
    %1339 = vmatpush1.msra.mxu0 %v379
    %1340 = vmatprep.mubr.f32.mxu0 %v542
    %1341 = vmatmul.mubr.f32.gmra.mrb[0].mxu0 %v534
    %v1342 = vpop.f32.mrb[0].mxu0
    %v1343 = vadd.f32 %v1273, %v1342
    %v1344 = vpop.f32.mrb[0].mxu0
    %1345 = vdwg.mxu0
    %1346 = vmatprep.subr.mxu0 0.0
    %1347 = vmatpush1.msra.mxu0 %v380
    %1348 = vmatprep.subr.mxu0 0.0
    %1349 = vmatpush1.msra.mxu0 %v381
    %1350 = vmatprep.subr.mxu0 0.0
    %1351 = vmatpush1.msra.mxu0 %v382
    %1352 = vmatprep.subr.mxu0 0.0
    %1353 = vmatpush1.msra.mxu0 %v383
    %1354 = vmatprep.subr.mxu0 0.0
    %1355 = vmatpush1.msra.mxu0 %v384
    %1356 = vmatprep.subr.mxu0 0.0
    %1357 = vmatpush1.msra.mxu0 %v385
    %1358 = vmatprep.subr.mxu0 0.0
    %1359 = vmatpush1.msra.mxu0 %v386
    %1360 = vmatprep.subr.mxu0 0.0
    %1361 = vmatpush1.msra.mxu0 %v387
    %1362 = vmatprep.subr.mxu0 0.0
    %1363 = vmatpush1.msra.mxu0 %v388
    %1364 = vmatprep.subr.mxu0 0.0
    %1365 = vmatpush1.msra.mxu0 %v389
    %1366 = vmatprep.subr.mxu0 0.0
    %1367 = vmatpush1.msra.mxu0 %v390
    %1368 = vmatprep.subr.mxu0 0.0
    %1369 = vmatpush1.msra.mxu0 %v391
    %1370 = vmatprep.subr.mxu0 0.0
    %1371 = vmatpush1.msra.mxu0 %v392
    %1372 = vmatprep.subr.mxu0 0.0
    %1373 = vmatpush1.msra.mxu0 %v393
    %1374 = vmatprep.subr.mxu0 0.0
    %1375 = vmatpush1.msra.mxu0 %v394
    %1376 = vmatprep.subr.mxu0 0.0
    %1377 = vmatpush1.msra.mxu0 %v395
    %1378 = vmatprep.subr.mxu0 0.0
    %1379 = vmatpush1.msra.mxu0 %v396
    %1380 = vmatprep.subr.mxu0 0.0
    %1381 = vmatpush1.msra.mxu0 %v397
    %1382 = vmatprep.subr.mxu0 0.0
    %1383 = vmatpush1.msra.mxu0 %v398
    %1384 = vmatprep.subr.mxu0 0.0
    %1385 = vmatpush1.msra.mxu0 %v399
    %1386 = vmatprep.subr.mxu0 0.0
    %1387 = vmatpush1.msra.mxu0 %v400
    %1388 = vmatprep.subr.mxu0 0.0
    %1389 = vmatpush1.msra.mxu0 %v401
    %1390 = vmatprep.subr.mxu0 0.0
    %1391 = vmatpush1.msra.mxu0 %v402
    %1392 = vmatprep.subr.mxu0 0.0
    %1393 = vmatpush1.msra.mxu0 %v403
    %1394 = vmatprep.subr.mxu0 0.0
    %1395 = vmatpush1.msra.mxu0 %v404
    %1396 = vmatprep.subr.mxu0 0.0
    %1397 = vmatpush1.msra.mxu0 %v405
    %1398 = vmatprep.subr.mxu0 0.0
    %1399 = vmatpush1.msra.mxu0 %v406
    %1400 = vmatprep.subr.mxu0 0.0
    %1401 = vmatpush1.msra.mxu0 %v407
    %1402 = vmatprep.subr.mxu0 0.0
    %1403 = vmatpush1.msra.mxu0 %v408
    %1404 = vmatprep.subr.mxu0 0.0
    %1405 = vmatpush1.msra.mxu0 %v409
    %1406 = vmatprep.subr.mxu0 0.0
    %1407 = vmatpush1.msra.mxu0 %v410
    %1408 = vmatprep.subr.mxu0 0.0
    %1409 = vmatpush1.msra.mxu0 %v411
    %1410 = vmatprep.mubr.f32.mxu0 %v543
    %1411 = vmatmul.mubr.f32.gmra.mrb[0].mxu0 %v541
    %v1412 = vpop.f32.mrb[0].mxu0
    %v1413 = vadd.f32 %v1343, %v1412
    %v1414 = vpop.f32.mrb[0].mxu0
    %1415 = vdwg.mxu0
    %1416 = vmatprep.subr.mxu0 0.0
    %1417 = vmatpush1.msra.mxu0 %v412
    %1418 = vmatprep.subr.mxu0 0.0
    %1419 = vmatpush1.msra.mxu0 %v413
    %1420 = vmatprep.subr.mxu0 0.0
    %1421 = vmatpush1.msra.mxu0 %v414
    %1422 = vmatprep.subr.mxu0 0.0
    %1423 = vmatpush1.msra.mxu0 %v415
    %1424 = vmatprep.subr.mxu0 0.0
    %1425 = vmatpush1.msra.mxu0 %v416
    %1426 = vmatprep.subr.mxu0 0.0
    %1427 = vmatpush1.msra.mxu0 %v417
    %1428 = vmatprep.subr.mxu0 0.0
    %1429 = vmatpush1.msra.mxu0 %v418
    %1430 = vmatprep.subr.mxu0 0.0
    %1431 = vmatpush1.msra.mxu0 %v419
    %1432 = vmatprep.subr.mxu0 0.0
    %1433 = vmatpush1.msra.mxu0 %v420
    %1434 = vmatprep.subr.mxu0 0.0
    %1435 = vmatpush1.msra.mxu0 %v421
    %1436 = vmatprep.subr.mxu0 0.0
    %1437 = vmatpush1.msra.mxu0 %v422
    %1438 = vmatprep.subr.mxu0 0.0
    %1439 = vmatpush1.msra.mxu0 %v423
    %1440 = vmatprep.subr.mxu0 0.0
    %1441 = vmatpush1.msra.mxu0 %v424
    %1442 = vmatprep.subr.mxu0 0.0
    %1443 = vmatpush1.msra.mxu0 %v425
    %1444 = vmatprep.subr.mxu0 0.0
    %1445 = vmatpush1.msra.mxu0 %v426
    %1446 = vmatprep.subr.mxu0 0.0
    %1447 = vmatpush1.msra.mxu0 %v427
    %1448 = vmatprep.subr.mxu0 0.0
    %1449 = vmatpush1.msra.mxu0 0.0
    %1450 = vmatprep.subr.mxu0 0.0
    %1451 = vmatpush1.msra.mxu0 0.0
    %1452 = vmatprep.subr.mxu0 0.0
    %1453 = vmatpush1.msra.mxu0 0.0
    %1454 = vmatprep.subr.mxu0 0.0
    %1455 = vmatpush1.msra.mxu0 0.0
    %1456 = vmatprep.subr.mxu0 0.0
    %1457 = vmatpush1.msra.mxu0 0.0
    %1458 = vmatprep.subr.mxu0 0.0
    %1459 = vmatpush1.msra.mxu0 0.0
    %1460 = vmatprep.subr.mxu0 0.0
    %1461 = vmatpush1.msra.mxu0 0.0
    %1462 = vmatprep.subr.mxu0 0.0
    %1463 = vmatpush1.msra.mxu0 0.0
    %1464 = vmatprep.subr.mxu0 0.0
    %1465 = vmatpush1.msra.mxu0 0.0
    %1466 = vmatprep.subr.mxu0 0.0
    %1467 = vmatpush1.msra.mxu0 0.0
    %1468 = vmatprep.subr.mxu0 0.0
    %1469 = vmatpush1.msra.mxu0 0.0
    %1470 = vmatprep.subr.mxu0 0.0
    %1471 = vmatpush1.msra.mxu0 0.0
    %1472 = vmatprep.subr.mxu0 0.0
    %1473 = vmatpush1.msra.mxu0 0.0
    %1474 = vmatprep.subr.mxu0 0.0
    %1475 = vmatpush1.msra.mxu0 0.0
    %1476 = vmatprep.subr.mxu0 0.0
    %1477 = vmatpush1.msra.mxu0 0.0
    %1478 = vmatprep.subr.mxu0 0.0
    %1479 = vmatpush1.msra.mxu0 0.0
    %1480 = vmatprep.mubr.f32.mxu0 0.0
    %1481 = vmatmul.mubr.f32.gmra.mrb[0].mxu0 %v550
    %v1482 = vpop.f32.mrb[0].mxu0
    %v1483 = vadd.f32 %v1413, %v1482
    %v1484 = vpop.f32.mrb[0].mxu0
    %1485 = vdwg.mxu0
    %v1486 = vmax.f32 %v1483, 0.0
    %v1487 = vld [vmem:[%s3] sm:$0xff]
    %v1488 = vld [vmem:[%s3 + $0x8] sm:$0xff]
    %v1489 = vld [vmem:[%s3 + $0x10] sm:$0xf]
    %v1490 = vld [vmem:[%s4] sm:$0x1]
    %v1492 = vlaneseq
    %v1493 = vshrl.u32 %v1492, 7
    %v1494 = vsub.s32 0, %v1493
    %v1495 = vrot.slane %v1490, %v1494
    %vm1497 = vcmask 162816
    %v1499 = vsel %vm1497, %v1486, 0
    %vm1501 = vcmask 1043456
    %v1503 = vsel %vm1501, %v1489, 0
    %1505 = vmatprep.subr.mxu0 0.0
    %1506 = vmatpush1.msra.mxu0 %v1487
    %1507 = vmatprep.subr.mxu0 0.0
    %1508 = vmatpush1.msra.mxu0 %v1488
    %1509 = vmatprep.subr.mxu0 0.0
    %1510 = vmatpush1.msra.mxu0 %v1503
    %1511 = vmatprep.subr.mxu0 0.0
    %1512 = vmatpush1.msra.mxu0 0.0
    %1513 = vmatprep.subr.mxu0 0.0
    %1514 = vmatpush1.msra.mxu0 0.0
    %1515 = vmatprep.subr.mxu0 0.0
    %1516 = vmatpush1.msra.mxu0 0.0
    %1517 = vmatprep.subr.mxu0 0.0
    %1518 = vmatpush1.msra.mxu0 0.0
    %1519 = vmatprep.subr.mxu0 0.0
    %1520 = vmatpush1.msra.mxu0 0.0
    %1521 = vmatprep.subr.mxu0 0.0
    %1522 = vmatpush1.msra.mxu0 0.0
    %1523 = vmatprep.subr.mxu0 0.0
    %1524 = vmatpush1.msra.mxu0 0.0
    %1525 = vmatprep.subr.mxu0 0.0
    %1526 = vmatpush1.msra.mxu0 0.0
    %1527 = vmatprep.subr.mxu0 0.0
    %1528 = vmatpush1.msra.mxu0 0.0
    %1529 = vmatprep.subr.mxu0 0.0
    %1530 = vmatpush1.msra.mxu0 0.0
    %1531 = vmatprep.subr.mxu0 0.0
    %1532 = vmatpush1.msra.mxu0 0.0
    %1533 = vmatprep.subr.mxu0 0.0
    %1534 = vmatpush1.msra.mxu0 0.0
    %1535 = vmatprep.subr.mxu0 0.0
    %1536 = vmatpush1.msra.mxu0 0.0
    %1537 = vmatprep.subr.mxu0 0.0
    %1538 = vmatpush1.msra.mxu0 0.0
    %1539 = vmatprep.subr.mxu0 0.0
    %1540 = vmatpush1.msra.mxu0 0.0
    %1541 = vmatprep.subr.mxu0 0.0
    %1542 = vmatpush1.msra.mxu0 0.0
    %1543 = vmatprep.subr.mxu0 0.0
    %1544 = vmatpush1.msra.mxu0 0.0
    %1545 = vmatprep.subr.mxu0 0.0
    %1546 = vmatpush1.msra.mxu0 0.0
    %1547 = vmatprep.subr.mxu0 0.0
    %1548 = vmatpush1.msra.mxu0 0.0
    %1549 = vmatprep.subr.mxu0 0.0
    %1550 = vmatpush1.msra.mxu0 0.0
    %1551 = vmatprep.subr.mxu0 0.0
    %1552 = vmatpush1.msra.mxu0 0.0
    %1553 = vmatprep.subr.mxu0 0.0
    %1554 = vmatpush1.msra.mxu0 0.0
    %1555 = vmatprep.subr.mxu0 0.0
    %1556 = vmatpush1.msra.mxu0 0.0
    %1557 = vmatprep.subr.mxu0 0.0
    %1558 = vmatpush1.msra.mxu0 0.0
    %1559 = vmatprep.subr.mxu0 0.0
    %1560 = vmatpush1.msra.mxu0 0.0
    %1561 = vmatprep.subr.mxu0 0.0
    %1562 = vmatpush1.msra.mxu0 0.0
    %1563 = vmatprep.subr.mxu0 0.0
    %1564 = vmatpush1.msra.mxu0 0.0
    %1565 = vmatprep.subr.mxu0 0.0
    %1566 = vmatpush1.msra.mxu0 0.0
    %1567 = vmatprep.subr.mxu0 0.0
    %1568 = vmatpush1.msra.mxu0 0.0
    %1569 = vmatprep.mubr.f32.mxu0 0.0
    %1570 = vmatmul.mubr.f32.gmra.mrb[0].mxu0 %v1499
    %v1571 = vpop.f32.mrb[0].mxu0
    %v1572 = vadd.f32 %v1495, %v1571
    %v1573 = vpop.f32.mrb[0].mxu0
    %1574 = vdwg.mxu0
    %vm1575 = vcmask 74752
    %v1576 = vsel %vm1575, %v1572, -inf
    %1577 = vmax.xlane.f32.xlu0 %v1576
    %v1578 = vpop.xlane.xlu0 %1577
    %v1579 = vsub.f32 %v1572, %v1578
    %v1580 = vmul.f32 %v1579, 1.442695
    %v1581 = vpow.pop %v1580
    %v1582 = vsel %vm1575, %v1581, 0.0
    %1583 = vadd.xlane.f32.xlu0 %v1582
    %v1584 = vpop.xlane.xlu0 %1583
    %v1585 = vrcp.pop %v1584
    %v1586 = vmul.f32 %v1581, %v1585
    %1587 = vst.msk [vmem:[#allocation2] sm:$0x3] %vm1575, %v1586
    // Predicated region
    $region22: #{convnet_forward.5} parent=1 // pred_check
      _
    $region23: #{convnet_forward.5} parent=1 // pred_check_branch
      %1589 = sbr.rel (0) target = $region25
    $region24: #{convnet_forward.5} parent=1 // pred_region
      %s1591 = ssub.s32 32, 32
      %1592 = vsyncadd [#allocation3], %s1591
      %s1594 = sshll.u32 [#allocation2], 4
      %s1595 = int_to_ptr.vmem [resolvable:$true] %s1594
      %1597 = dma.vmem_to_hbm [thread:$0]  %s1595, 32, %s5, [#allocation3]
    $region25: #{convnet_forward.5} parent=1 // pred_fallthru
      _
    // Predicated region
    $region26: #{convnet_forward.5} parent=1 // pred_check
      _
    $region27: #{convnet_forward.5} parent=1 // pred_check_branch
      %1599 = sbr.rel (0) target = $region29
    $region28: #{convnet_forward.5} parent=1 // pred_region
      %1600 = dma.done [#allocation3], 32
    $region29: #{convnet_forward.5} parent=1 // pred_fallthru
      _
    %1601 = vsyncpa [#allocation3], 1

// kernel: convnet_forward.3
$region0: #{convnet_forward.3}
  #allocation0 [shape = 'u32[]', space=smem, size = 0x4, offset = 0x4, fixed_abs, tag = 'smem constant byte address 0x4 - core index']
  #allocation1 [shape = 'u32[144,128]{1,0:T(1,128)}', space=vmem, size = 0x12000, scoped, tag = 'internal scratch']
  %s0 = inlined_call_operand.vmem [shape: f32[2,15,15,1], index: 0, kind: input, shape index: {}]
  %s1 = inlined_call_operand.vmem [shape: f32[2,15,15,1], index: 1, kind: input, shape index: {}]
  %s2 = inlined_call_operand.vmem [shape: f32[2,15,15,1], index: 2, kind: input, shape index: {}]
  %s3 = inlined_call_operand.vmem [shape: f32[2,15,15,1], index: 3, kind: input, shape index: {}]
  %s4 = inlined_call_operand.vmem [shape: f32[9,10], index: 4, kind: input, shape index: {}]
  %s5 = inlined_call_operand.vmem [shape: f32[1,10], index: 5, kind: input, shape index: {}]
  %s6 = inlined_call_operand.vmem [shape: f32[2,14,14,10], index: 6, kind: output, shape index: {}]
  %s7 = sld [smem:[#allocation0]]
  $region57: #{convnet_forward.3} parent=0
    _
  %s9 = ssub.s32 1, %s7
  %s10 = scalar_select 0, %s9, %s7
  loop: start=0, step=1, limit=4
  $region2: #{convnet_forward.3} parent=0 // loop_pre_header
    _
  $region3: #{convnet_forward.3} parent=0 // loop_header
    %s12 = sphi 0, %s16
    %p13 = scmp.ge.s32.totalorder %s12, 4
    %s22 = sphi 0, %s24
    %s25 = sphi 0, %s22
    %s26 = sphi 0, %s25
    %s42 = sphi 0, %s26
    %s48 = sphi 0, %s50
    %s51 = sphi 0, %s48
    %s52 = sphi 0, %s51
    %s68 = sphi 0, %s52
    %s74 = sphi 0, %s76
    %s77 = sphi 0, %s74
    %s78 = sphi 0, %s77
    %s94 = sphi 0, %s78
    %s100 = sphi 0, %s102
    %s103 = sphi 0, %s100
    %s104 = sphi 0, %s103
    %s120 = sphi 0, %s104
    %s124 = sphi 0, %s124
    %s126 = sphi 0, %s124
    %s127 = sphi 0, %s126
    %s141 = sphi 0, %s127
    %s145 = sphi 0, %s145
    %s147 = sphi 0, %s145
    %s148 = sphi 0, %s147
    %s162 = sphi 0, %s148
    %s168 = sphi 0, %s170
    %s171 = sphi 0, %s168
    %s172 = sphi 0, %s171
    %s188 = sphi 0, %s172
  $region4: #{convnet_forward.3} parent=0 // loop_header_branch
    %15 = sbr.rel (%p13) target = $region8
  $region5: #{convnet_forward.3} parent=0 // loop_body
    %s17 = ssub.s32 %s12, 1
    %s18 = ssub.s32 %s12, 2
    %s19 = sadd.s32 %s12, 1
    %s20 = ssub.s32 %s12, %s19
    %p21 = scmp.eq.s32.totalorder %s20, 0
    %s23 = sadd.s32 %s22, 1
    %s24 = scalar_select %p21, %s22, %s23
    %p27 = pneg %p21
    %p28 = scmp.eq.s32.totalorder %s12, 1
    %p29 = por %p27, %p28
    %p30 = scmp.ne.s32.totalorder %s22, %s25
    %p31 = scmp.eq.s32.totalorder %s12, 0
    %p32 = por %p30, %p31
    %p33 = scmp.ne.s32.totalorder %s22, %s25
    %p34 = scmp.eq.s32.totalorder %s17, 1
    %p35 = por %p33, %p34
    %p36 = scmp.ne.s32.totalorder %s25, %s26
    %p37 = scmp.eq.s32.totalorder %s17, 0
    %p38 = por %p36, %p37
    %p39 = scmp.ne.s32.totalorder %s25, %s26
    %p40 = scmp.eq.s32.totalorder %s18, 1
    %p41 = por %p39, %p40
    %p43 = scmp.ne.s32.totalorder %s26, %s42
    %p44 = scmp.eq.s32.totalorder %s18, 0
    %p45 = por %p43, %p44
    %s46 = ssub.s32 %s12, %s19
    %p47 = scmp.eq.s32.totalorder %s46, 0
    %s49 = sadd.s32 %s48, 1
    %s50 = scalar_select %p47, %s48, %s49
    %p53 = pneg %p47
    %p54 = scmp.eq.s32.totalorder %s12, 1
    %p55 = por %p53, %p54
    %p56 = scmp.ne.s32.totalorder %s48, %s51
    %p57 = scmp.eq.s32.totalorder %s12, 0
    %p58 = por %p56, %p57
    %p59 = scmp.ne.s32.totalorder %s48, %s51
    %p60 = scmp.eq.s32.totalorder %s17, 1
    %p61 = por %p59, %p60
    %p62 = scmp.ne.s32.totalorder %s51, %s52
    %p63 = scmp.eq.s32.totalorder %s17, 0
    %p64 = por %p62, %p63
    %p65 = scmp.ne.s32.totalorder %s51, %s52
    %p66 = scmp.eq.s32.totalorder %s18, 1
    %p67 = por %p65, %p66
    %p69 = scmp.ne.s32.totalorder %s52, %s68
    %p70 = scmp.eq.s32.totalorder %s18, 0
    %p71 = por %p69, %p70
    %s72 = ssub.s32 %s12, %s19
    %p73 = scmp.eq.s32.totalorder %s72, 0
    %s75 = sadd.s32 %s74, 1
    %s76 = scalar_select %p73, %s74, %s75
    %p79 = pneg %p73
    %p80 = scmp.eq.s32.totalorder %s12, 1
    %p81 = por %p79, %p80
    %p82 = scmp.ne.s32.totalorder %s74, %s77
    %p83 = scmp.eq.s32.totalorder %s12, 0
    %p84 = por %p82, %p83
    %p85 = scmp.ne.s32.totalorder %s74, %s77
    %p86 = scmp.eq.s32.totalorder %s17, 1
    %p87 = por %p85, %p86
    %p88 = scmp.ne.s32.totalorder %s77, %s78
    %p89 = scmp.eq.s32.totalorder %s17, 0
    %p90 = por %p88, %p89
    %p91 = scmp.ne.s32.totalorder %s77, %s78
    %p92 = scmp.eq.s32.totalorder %s18, 1
    %p93 = por %p91, %p92
    %p95 = scmp.ne.s32.totalorder %s78, %s94
    %p96 = scmp.eq.s32.totalorder %s18, 0
    %p97 = por %p95, %p96
    %s98 = ssub.s32 %s12, %s19
    %p99 = scmp.eq.s32.totalorder %s98, 0
    %s101 = sadd.s32 %s100, 1
    %s102 = scalar_select %p99, %s100, %s101
    %p105 = pneg %p99
    %p106 = scmp.eq.s32.totalorder %s12, 1
    %p107 = por %p105, %p106
    %p108 = scmp.ne.s32.totalorder %s100, %s103
    %p109 = scmp.eq.s32.totalorder %s12, 0
    %p110 = por %p108, %p109
    %p111 = scmp.ne.s32.totalorder %s100, %s103
    %p112 = scmp.eq.s32.totalorder %s17, 1
    %p113 = por %p111, %p112
    %p114 = scmp.ne.s32.totalorder %s103, %s104
    %p115 = scmp.eq.s32.totalorder %s17, 0
    %p116 = por %p114, %p115
    %p117 = scmp.ne.s32.totalorder %s103, %s104
    %p118 = scmp.eq.s32.totalorder %s18, 1
    %p119 = por %p117, %p118
    %p121 = scmp.ne.s32.totalorder %s104, %s120
    %p122 = scmp.eq.s32.totalorder %s18, 0
    %p123 = por %p121, %p122
    %s125 = sadd.s32 %s124, 1
    %p128 = scmp.eq.s32.totalorder %s12, 1
    %p129 = scmp.ne.s32.totalorder %s124, %s126
    %p130 = scmp.eq.s32.totalorder %s12, 0
    %p131 = por %p129, %p130
    %p132 = scmp.ne.s32.totalorder %s124, %s126
    %p133 = scmp.eq.s32.totalorder %s17, 1
    %p134 = por %p132, %p133
    %p135 = scmp.ne.s32.totalorder %s126, %s127
    %p136 = scmp.eq.s32.totalorder %s17, 0
    %p137 = por %p135, %p136
    %p138 = scmp.ne.s32.totalorder %s126, %s127
    %p139 = scmp.eq.s32.totalorder %s18, 1
    %p140 = por %p138, %p139
    %p142 = scmp.ne.s32.totalorder %s127, %s141
    %p143 = scmp.eq.s32.totalorder %s18, 0
    %p144 = por %p142, %p143
    %s146 = sadd.s32 %s145, 1
    %p149 = scmp.eq.s32.totalorder %s12, 1
    %p150 = scmp.ne.s32.totalorder %s145, %s147
    %p151 = scmp.eq.s32.totalorder %s12, 0
    %p152 = por %p150, %p151
    %p153 = scmp.ne.s32.totalorder %s145, %s147
    %p154 = scmp.eq.s32.totalorder %s17, 1
    %p155 = por %p153, %p154
    %p156 = scmp.ne.s32.totalorder %s147, %s148
    %p157 = scmp.eq.s32.totalorder %s17, 0
    %p158 = por %p156, %p157
    %p159 = scmp.ne.s32.totalorder %s147, %s148
    %p160 = scmp.eq.s32.totalorder %s18, 1
    %p161 = por %p159, %p160
    %p163 = scmp.ne.s32.totalorder %s148, %s162
    %p164 = scmp.eq.s32.totalorder %s18, 0
    %p165 = por %p163, %p164
    %s166 = ssub.s32 %s12, %s19
    %p167 = scmp.eq.s32.totalorder %s166, 0
    %s169 = sadd.s32 %s168, 1
    %s170 = scalar_select %p167, %s168, %s169
    %p173 = pneg %p167
    %p174 = scmp.eq.s32.totalorder %s12, 1
    %p175 = por %p173, %p174
    %p176 = scmp.ne.s32.totalorder %s168, %s171
    %p177 = scmp.eq.s32.totalorder %s12, 0
    %p178 = por %p176, %p177
    %p179 = scmp.ne.s32.totalorder %s168, %s171
    %p180 = scmp.eq.s32.totalorder %s17, 1
    %p181 = por %p179, %p180
    %p182 = scmp.ne.s32.totalorder %s171, %s172
    %p183 = scmp.eq.s32.totalorder %s17, 0
    %p184 = por %p182, %p183
    %p185 = scmp.ne.s32.totalorder %s171, %s172
    %p186 = scmp.eq.s32.totalorder %s18, 1
    %p187 = por %p185, %p186
    %p189 = scmp.ne.s32.totalorder %s172, %s188
    %p190 = scmp.eq.s32.totalorder %s18, 0
    %p191 = por %p189, %p190
    %p192 = scmp.le.s32.totalorder 1, %s12
    %p193 = scmp.lt.s32.totalorder %s12, 3
    %p194 = pnand %p192, %p193
    %p195 = pneg %p194
    // Predicated region
    $region9: #{convnet_forward.3} parent=5 // pred_check
      _
    $region10: #{convnet_forward.3} parent=5 // pred_check_branch
      %197 = sbr.rel (%p194) target = $region12
    $region11: #{convnet_forward.3} parent=5 // pred_region
      %s198 = ssub.s32 %s12, 1
      // Predicated region
      $region13: #{convnet_forward.3} parent=11 // pred_check
        %p199 = pneg %p137
      $region14: #{convnet_forward.3} parent=11 // pred_check_branch
        %201 = sbr.rel (%p199) target = $region16
      $region15: #{convnet_forward.3} parent=11 // pred_region
        _
      $region16: #{convnet_forward.3} parent=11 // pred_fallthru
        _
      // Predicated region
      $region17: #{convnet_forward.3} parent=11 // pred_check
        %p202 = pneg %p158
      $region18: #{convnet_forward.3} parent=11 // pred_check_branch
        %204 = sbr.rel (%p202) target = $region20
      $region19: #{convnet_forward.3} parent=11 // pred_region
        _
      $region20: #{convnet_forward.3} parent=11 // pred_fallthru
        _
    $region12: #{convnet_forward.3} parent=5 // pred_fallthru
      _
    %p205 = scmp.lt.s32.totalorder %s12, 2
    // Predicated region
    $region21: #{convnet_forward.3} parent=5 // pred_check
      %p206 = pneg %p205
    $region22: #{convnet_forward.3} parent=5 // pred_check_branch
      %208 = sbr.rel (%p206) target = $region24
    $region23: #{convnet_forward.3} parent=5 // pred_region
      // Predicated region
      $region25: #{convnet_forward.3} parent=23 // pred_check
        %p209 = pneg %p32
      $region26: #{convnet_forward.3} parent=23 // pred_check_branch
        %211 = sbr.rel (%p209) target = $region28
      $region27: #{convnet_forward.3} parent=23 // pred_region
        %p212 = scmp.lt.s32.totalorder %s12, 1
        %s213 = scalar_select %p212, %s12, 1
        %s214 = smul.addr %s213, 30
        %s215 = smul.addr %s214, 8
        %s216 = scalar_lea.vmem %s0, %s215
      $region28: #{convnet_forward.3} parent=23 // pred_fallthru
        _
      // Predicated region
      $region29: #{convnet_forward.3} parent=23 // pred_check
        %p217 = pneg %p58
      $region30: #{convnet_forward.3} parent=23 // pred_check_branch
        %219 = sbr.rel (%p217) target = $region32
      $region31: #{convnet_forward.3} parent=23 // pred_region
        %p220 = scmp.lt.s32.totalorder %s12, 1
        %s221 = scalar_select %p220, %s12, 1
        %s222 = smul.addr %s221, 30
        %s223 = smul.addr %s222, 8
        %s224 = scalar_lea.vmem %s1, %s223
      $region32: #{convnet_forward.3} parent=23 // pred_fallthru
        _
      // Predicated region
      $region33: #{convnet_forward.3} parent=23 // pred_check
        %p225 = pneg %p84
      $region34: #{convnet_forward.3} parent=23 // pred_check_branch
        %227 = sbr.rel (%p225) target = $region36
      $region35: #{convnet_forward.3} parent=23 // pred_region
        %p228 = scmp.lt.s32.totalorder %s12, 1
        %s229 = scalar_select %p228, %s12, 1
        %s230 = smul.addr %s229, 30
        %s231 = smul.addr %s230, 8
        %s232 = scalar_lea.vmem %s2, %s231
      $region36: #{convnet_forward.3} parent=23 // pred_fallthru
        _
      // Predicated region
      $region37: #{convnet_forward.3} parent=23 // pred_check
        %p233 = pneg %p110
      $region38: #{convnet_forward.3} parent=23 // pred_check_branch
        %235 = sbr.rel (%p233) target = $region40
      $region39: #{convnet_forward.3} parent=23 // pred_region
        %p236 = scmp.lt.s32.totalorder %s12, 1
        %s237 = scalar_select %p236, %s12, 1
        %s238 = smul.addr %s237, 30
        %s239 = smul.addr %s238, 8
        %s240 = scalar_lea.vmem %s3, %s239
      $region40: #{convnet_forward.3} parent=23 // pred_fallthru
        _
    $region24: #{convnet_forward.3} parent=5 // pred_fallthru
      _
    %p241 = scmp.le.s32.totalorder 1, %s12
    %p242 = scmp.lt.s32.totalorder %s12, 3
    %p243 = pnand %p241, %p242
    %p244 = pneg %p243
    // Predicated region
    $region41: #{convnet_forward.3} parent=5 // pred_check
      _
    $region42: #{convnet_forward.3} parent=5 // pred_check_branch
      %246 = sbr.rel (%p243) target = $region44
    $region43: #{convnet_forward.3} parent=5 // pred_region
      %s247 = ssub.s32 %s12, 1
      %p248 = scmp.lt.s32.totalorder %s17, 1
      %s249 = scalar_select %p248, %s17, 1
      %s250 = smul.addr %s249, 30
      %s251 = smul.addr %s250, 8
      %s252 = scalar_lea.vmem %s0, %s251
      %p253 = pneg %p38
      %p254 = pneg %p35
      %p255 = scmp.lt.s32.totalorder %s17, 1
      %s256 = scalar_select %p255, %s17, 1
      %s257 = smul.addr %s256, 30
      %s258 = smul.addr %s257, 8
      %s259 = scalar_lea.vmem %s1, %s258
      %p260 = pneg %p64
      %p261 = pneg %p61
      %p262 = scmp.lt.s32.totalorder %s17, 1
      %s263 = scalar_select %p262, %s17, 1
      %s264 = smul.addr %s263, 30
      %s265 = smul.addr %s264, 8
      %s266 = scalar_lea.vmem %s2, %s265
      %p267 = pneg %p90
      %p268 = pneg %p87
      %p269 = scmp.lt.s32.totalorder %s17, 1
      %s270 = scalar_select %p269, %s17, 1
      %s271 = smul.addr %s270, 30
      %s272 = smul.addr %s271, 8
      %s273 = scalar_lea.vmem %s3, %s272
      %p274 = pneg %p116
      %p275 = pneg %p113
      %p276 = pneg %p137
      %p277 = pneg %p134
      %p278 = pneg %p158
      %p279 = pneg %p155
      %p280 = pneg %p184
      %p281 = pneg %p181
      %p282 = scmp.lt.s32.totalorder %s17, 1
      %s283 = scalar_select %p282, %s17, 1
      %s284 = smul.addr %s283, 28
      %s285 = smul.addr %s284, 8
      %s286 = scalar_lea.vmem %s6, %s285
      %p287 = scmp.lt.s32.totalorder %s17, 1
      %s288 = scalar_select %p287, %s17, 1
      %s289 = smul.addr %s288, 30
      %s290 = smul.addr %s289, 8
      %s291 = scalar_lea.vmem %s0, %s290
      %p292 = scmp.lt.s32.totalorder %s17, 1
      %s293 = scalar_select %p292, %s17, 1
      %s294 = smul.addr %s293, 30
      %s295 = smul.addr %s294, 8
      %s296 = scalar_lea.vmem %s1, %s295
      %p297 = scmp.lt.s32.totalorder %s17, 1
      %s298 = scalar_select %p297, %s17, 1
      %s299 = smul.addr %s298, 30
      %s300 = smul.addr %s299, 8
      %s301 = scalar_lea.vmem %s2, %s300
      %p302 = scmp.lt.s32.totalorder %s17, 1
      %s303 = scalar_select %p302, %s17, 1
      %s304 = smul.addr %s303, 30
      %s305 = smul.addr %s304, 8
      %s306 = scalar_lea.vmem %s3, %s305
      %p307 = scmp.lt.s32.totalorder %s17, 1
      %s308 = scalar_select %p307, %s17, 1
      %s309 = smul.addr %s308, 28
      %s310 = smul.addr %s309, 8
      %s311 = scalar_lea.vmem %s6, %s310
      %v312 = vld [vmem:[%s4] sm:$0xff]
      %v313 = vld [vmem:[%s4 + $0x8] sm:$0x1]
      %v314 = vld [vmem:[%s291] sm:$0xff]
      %v315 = vld [vmem:[%s291 + $0x8] sm:$0x3f]
      %v316 = vld [vmem:[%s291 + $0x10] sm:$0xff]
      %v317 = vld [vmem:[%s291 + $0x18] sm:$0x3f]
      %v318 = vld [vmem:[%s291 + $0x20] sm:$0xff]
      %v319 = vld [vmem:[%s291 + $0x28] sm:$0x3f]
      %v320 = vld [vmem:[%s291 + $0x30] sm:$0xff]
      %v321 = vld [vmem:[%s291 + $0x38] sm:$0x3f]
      %v322 = vld [vmem:[%s291 + $0x40] sm:$0xff]
      %v323 = vld [vmem:[%s291 + $0x48] sm:$0x3f]
      %v324 = vld [vmem:[%s291 + $0x50] sm:$0xff]
      %v325 = vld [vmem:[%s291 + $0x58] sm:$0x3f]
      %v326 = vld [vmem:[%s291 + $0x60] sm:$0xff]
      %v327 = vld [vmem:[%s291 + $0x68] sm:$0x3f]
      %v328 = vld [vmem:[%s291 + $0x70] sm:$0xff]
      %v329 = vld [vmem:[%s291 + $0x78] sm:$0x3f]
      %v330 = vld [vmem:[%s291 + $0x80] sm:$0xff]
      %v331 = vld [vmem:[%s291 + $0x88] sm:$0x3f]
      %v332 = vld [vmem:[%s291 + $0x90] sm:$0xff]
      %v333 = vld [vmem:[%s291 + $0x98] sm:$0x3f]
      %v334 = vld [vmem:[%s291 + $0xa0] sm:$0xff]
      %v335 = vld [vmem:[%s291 + $0xa8] sm:$0x3f]
      %v336 = vld [vmem:[%s291 + $0xb0] sm:$0xff]
      %v337 = vld [vmem:[%s291 + $0xb8] sm:$0x3f]
      %v338 = vld [vmem:[%s291 + $0xc0] sm:$0xff]
      %v339 = vld [vmem:[%s291 + $0xc8] sm:$0x3f]
      %v340 = vld [vmem:[%s291 + $0xd0] sm:$0xff]
      %v341 = vld [vmem:[%s291 + $0xd8] sm:$0x3f]
      %343 = vset.pattern.permute.xlu0 0
      %344 = vperm.xlu0 %343, %v314
      %v345 = vpop.permute.xlu0 %344
      %348 = vset.pattern.permute.xlu0 0
      %349 = vperm.xlu0 %348, %v315
      %v350 = vpop.permute.xlu0 %349
      %353 = vset.pattern.permute.xlu0 0
      %354 = vperm.xlu0 %353, %v316
      %v355 = vpop.permute.xlu0 %354
      %358 = vset.pattern.permute.xlu0 0
      %359 = vperm.xlu0 %358, %v317
      %v360 = vpop.permute.xlu0 %359
      %363 = vset.pattern.permute.xlu0 0
      %364 = vperm.xlu0 %363, %v318
      %v365 = vpop.permute.xlu0 %364
      %368 = vset.pattern.permute.xlu0 0
      %369 = vperm.xlu0 %368, %v319
      %v370 = vpop.permute.xlu0 %369
      %373 = vset.pattern.permute.xlu0 0
      %374 = vperm.xlu0 %373, %v320
      %v375 = vpop.permute.xlu0 %374
      %378 = vset.pattern.permute.xlu0 0
      %379 = vperm.xlu0 %378, %v321
      %v380 = vpop.permute.xlu0 %379
      %383 = vset.pattern.permute.xlu0 0
      %384 = vperm.xlu0 %383, %v322
      %v385 = vpop.permute.xlu0 %384
      %388 = vset.pattern.permute.xlu0 0
      %389 = vperm.xlu0 %388, %v323
      %v390 = vpop.permute.xlu0 %389
      %393 = vset.pattern.permute.xlu0 0
      %394 = vperm.xlu0 %393, %v324
      %v395 = vpop.permute.xlu0 %394
      %398 = vset.pattern.permute.xlu0 0
      %399 = vperm.xlu0 %398, %v325
      %v400 = vpop.permute.xlu0 %399
      %403 = vset.pattern.permute.xlu0 0
      %404 = vperm.xlu0 %403, %v326
      %v405 = vpop.permute.xlu0 %404
      %408 = vset.pattern.permute.xlu0 0
      %409 = vperm.xlu0 %408, %v327
      %v410 = vpop.permute.xlu0 %409
      %413 = vset.pattern.permute.xlu0 0
      %414 = vperm.xlu0 %413, %v328
      %v415 = vpop.permute.xlu0 %414
      %418 = vset.pattern.permute.xlu0 0
      %419 = vperm.xlu0 %418, %v329
      %v420 = vpop.permute.xlu0 %419
      %423 = vset.pattern.permute.xlu0 0
      %424 = vperm.xlu0 %423, %v330
      %v425 = vpop.permute.xlu0 %424
      %428 = vset.pattern.permute.xlu0 0
      %429 = vperm.xlu0 %428, %v331
      %v430 = vpop.permute.xlu0 %429
      %433 = vset.pattern.permute.xlu0 0
      %434 = vperm.xlu0 %433, %v332
      %v435 = vpop.permute.xlu0 %434
      %438 = vset.pattern.permute.xlu0 0
      %439 = vperm.xlu0 %438, %v333
      %v440 = vpop.permute.xlu0 %439
      %443 = vset.pattern.permute.xlu0 0
      %444 = vperm.xlu0 %443, %v334
      %v445 = vpop.permute.xlu0 %444
      %448 = vset.pattern.permute.xlu0 0
      %449 = vperm.xlu0 %448, %v335
      %v450 = vpop.permute.xlu0 %449
      %453 = vset.pattern.permute.xlu0 0
      %454 = vperm.xlu0 %453, %v336
      %v455 = vpop.permute.xlu0 %454
      %458 = vset.pattern.permute.xlu0 0
      %459 = vperm.xlu0 %458, %v337
      %v460 = vpop.permute.xlu0 %459
      %463 = vset.pattern.permute.xlu0 0
      %464 = vperm.xlu0 %463, %v338
      %v465 = vpop.permute.xlu0 %464
      %468 = vset.pattern.permute.xlu0 0
      %469 = vperm.xlu0 %468, %v339
      %v470 = vpop.permute.xlu0 %469
      %473 = vset.pattern.permute.xlu0 0
      %474 = vperm.xlu0 %473, %v340
      %v475 = vpop.permute.xlu0 %474
      %478 = vset.pattern.permute.xlu0 0
      %479 = vperm.xlu0 %478, %v341
      %v480 = vpop.permute.xlu0 %479
      %v482 = vlaneseq
      %v483 = vshrl.u32 %v482, 7
      %v484 = vsub.s32 0, %v483
      %v485 = vrot.slane %v312, %v484
      %v486 = vmul.f32 %v345, %v485
      %v487 = vmul.f32 %v350, %v485
      %v488 = vmul.f32 %v355, %v485
      %v489 = vmul.f32 %v360, %v485
      %v490 = vmul.f32 %v365, %v485
      %v491 = vmul.f32 %v370, %v485
      %v492 = vmul.f32 %v375, %v485
      %v493 = vmul.f32 %v380, %v485
      %v494 = vmul.f32 %v385, %v485
      %v495 = vmul.f32 %v390, %v485
      %v496 = vmul.f32 %v395, %v485
      %v497 = vmul.f32 %v400, %v485
      %v498 = vmul.f32 %v405, %v485
      %v499 = vmul.f32 %v410, %v485
      %v500 = vmul.f32 %v415, %v485
      %v501 = vmul.f32 %v420, %v485
      %v502 = vmul.f32 %v425, %v485
      %v503 = vmul.f32 %v430, %v485
      %v504 = vmul.f32 %v435, %v485
      %v505 = vmul.f32 %v440, %v485
      %v506 = vmul.f32 %v445, %v485
      %v507 = vmul.f32 %v450, %v485
      %v508 = vmul.f32 %v455, %v485
      %v509 = vmul.f32 %v460, %v485
      %v510 = vmul.f32 %v465, %v485
      %v511 = vmul.f32 %v470, %v485
      %v512 = vmul.f32 %v475, %v485
      %v513 = vmul.f32 %v480, %v485
      %v514 = vadd.f32 %v486, 0.0
      %v515 = vadd.f32 %v487, 0.0
      %v516 = vadd.f32 %v488, 0.0
      %v517 = vadd.f32 %v489, 0.0
      %v518 = vadd.f32 %v490, 0.0
      %v519 = vadd.f32 %v491, 0.0
      %v520 = vadd.f32 %v492, 0.0
      %v521 = vadd.f32 %v493, 0.0
      %v522 = vadd.f32 %v494, 0.0
      %v523 = vadd.f32 %v495, 0.0
      %v524 = vadd.f32 %v496, 0.0
      %v525 = vadd.f32 %v497, 0.0
      %v526 = vadd.f32 %v498, 0.0
      %v527 = vadd.f32 %v499, 0.0
      %v528 = vadd.f32 %v500, 0.0
      %v529 = vadd.f32 %v501, 0.0
      %v530 = vadd.f32 %v502, 0.0
      %v531 = vadd.f32 %v503, 0.0
      %v532 = vadd.f32 %v504, 0.0
      %v533 = vadd.f32 %v505, 0.0
      %v534 = vadd.f32 %v506, 0.0
      %v535 = vadd.f32 %v507, 0.0
      %v536 = vadd.f32 %v508, 0.0
      %v537 = vadd.f32 %v509, 0.0
      %v538 = vadd.f32 %v510, 0.0
      %v539 = vadd.f32 %v511, 0.0
      %v540 = vadd.f32 %v512, 0.0
      %v541 = vadd.f32 %v513, 0.0
      %v542 = vld [vmem:[%s296] sm:$0xff]
      %v543 = vld [vmem:[%s296 + $0x8] sm:$0x3f]
      %v544 = vld [vmem:[%s296 + $0x10] sm:$0xff]
      %v545 = vld [vmem:[%s296 + $0x18] sm:$0x3f]
      %v546 = vld [vmem:[%s296 + $0x20] sm:$0xff]
      %v547 = vld [vmem:[%s296 + $0x28] sm:$0x3f]
      %v548 = vld [vmem:[%s296 + $0x30] sm:$0xff]
      %v549 = vld [vmem:[%s296 + $0x38] sm:$0x3f]
      %v550 = vld [vmem:[%s296 + $0x40] sm:$0xff]
      %v551 = vld [vmem:[%s296 + $0x48] sm:$0x3f]
      %v552 = vld [vmem:[%s296 + $0x50] sm:$0xff]
      %v553 = vld [vmem:[%s296 + $0x58] sm:$0x3f]
      %v554 = vld [vmem:[%s296 + $0x60] sm:$0xff]
      %v555 = vld [vmem:[%s296 + $0x68] sm:$0x3f]
      %v556 = vld [vmem:[%s296 + $0x70] sm:$0xff]
      %v557 = vld [vmem:[%s296 + $0x78] sm:$0x3f]
      %v558 = vld [vmem:[%s296 + $0x80] sm:$0xff]
      %v559 = vld [vmem:[%s296 + $0x88] sm:$0x3f]
      %v560 = vld [vmem:[%s296 + $0x90] sm:$0xff]
      %v561 = vld [vmem:[%s296 + $0x98] sm:$0x3f]
      %v562 = vld [vmem:[%s296 + $0xa0] sm:$0xff]
      %v563 = vld [vmem:[%s296 + $0xa8] sm:$0x3f]
      %v564 = vld [vmem:[%s296 + $0xb0] sm:$0xff]
      %v565 = vld [vmem:[%s296 + $0xb8] sm:$0x3f]
      %v566 = vld [vmem:[%s296 + $0xc0] sm:$0xff]
      %v567 = vld [vmem:[%s296 + $0xc8] sm:$0x3f]
      %v568 = vld [vmem:[%s296 + $0xd0] sm:$0xff]
      %v569 = vld [vmem:[%s296 + $0xd8] sm:$0x3f]
      %571 = vset.pattern.permute.xlu0 0
      %572 = vperm.xlu0 %571, %v542
      %v573 = vpop.permute.xlu0 %572
      %576 = vset.pattern.permute.xlu0 0
      %577 = vperm.xlu0 %576, %v543
      %v578 = vpop.permute.xlu0 %577
      %581 = vset.pattern.permute.xlu0 0
      %582 = vperm.xlu0 %581, %v544
      %v583 = vpop.permute.xlu0 %582
      %586 = vset.pattern.permute.xlu0 0
      %587 = vperm.xlu0 %586, %v545
      %v588 = vpop.permute.xlu0 %587
      %591 = vset.pattern.permute.xlu0 0
      %592 = vperm.xlu0 %591, %v546
      %v593 = vpop.permute.xlu0 %592
      %596 = vset.pattern.permute.xlu0 0
      %597 = vperm.xlu0 %596, %v547
      %v598 = vpop.permute.xlu0 %597
      %601 = vset.pattern.permute.xlu0 0
      %602 = vperm.xlu0 %601, %v548
      %v603 = vpop.permute.xlu0 %602
      %606 = vset.pattern.permute.xlu0 0
      %607 = vperm.xlu0 %606, %v549
      %v608 = vpop.permute.xlu0 %607
      %611 = vset.pattern.permute.xlu0 0
      %612 = vperm.xlu0 %611, %v550
      %v613 = vpop.permute.xlu0 %612
      %616 = vset.pattern.permute.xlu0 0
      %617 = vperm.xlu0 %616, %v551
      %v618 = vpop.permute.xlu0 %617
      %621 = vset.pattern.permute.xlu0 0
      %622 = vperm.xlu0 %621, %v552
      %v623 = vpop.permute.xlu0 %622
      %626 = vset.pattern.permute.xlu0 0
      %627 = vperm.xlu0 %626, %v553
      %v628 = vpop.permute.xlu0 %627
      %631 = vset.pattern.permute.xlu0 0
      %632 = vperm.xlu0 %631, %v554
      %v633 = vpop.permute.xlu0 %632
      %636 = vset.pattern.permute.xlu0 0
      %637 = vperm.xlu0 %636, %v555
      %v638 = vpop.permute.xlu0 %637
      %641 = vset.pattern.permute.xlu0 0
      %642 = vperm.xlu0 %641, %v556
      %v643 = vpop.permute.xlu0 %642
      %646 = vset.pattern.permute.xlu0 0
      %647 = vperm.xlu0 %646, %v557
      %v648 = vpop.permute.xlu0 %647
      %651 = vset.pattern.permute.xlu0 0
      %652 = vperm.xlu0 %651, %v558
      %v653 = vpop.permute.xlu0 %652
      %656 = vset.pattern.permute.xlu0 0
      %657 = vperm.xlu0 %656, %v559
      %v658 = vpop.permute.xlu0 %657
      %661 = vset.pattern.permute.xlu0 0
      %662 = vperm.xlu0 %661, %v560
      %v663 = vpop.permute.xlu0 %662
      %666 = vset.pattern.permute.xlu0 0
      %667 = vperm.xlu0 %666, %v561
      %v668 = vpop.permute.xlu0 %667
      %671 = vset.pattern.permute.xlu0 0
      %672 = vperm.xlu0 %671, %v562
      %v673 = vpop.permute.xlu0 %672
      %676 = vset.pattern.permute.xlu0 0
      %677 = vperm.xlu0 %676, %v563
      %v678 = vpop.permute.xlu0 %677
      %681 = vset.pattern.permute.xlu0 0
      %682 = vperm.xlu0 %681, %v564
      %v683 = vpop.permute.xlu0 %682
      %686 = vset.pattern.permute.xlu0 0
      %687 = vperm.xlu0 %686, %v565
      %v688 = vpop.permute.xlu0 %687
      %691 = vset.pattern.permute.xlu0 0
      %692 = vperm.xlu0 %691, %v566
      %v693 = vpop.permute.xlu0 %692
      %696 = vset.pattern.permute.xlu0 0
      %697 = vperm.xlu0 %696, %v567
      %v698 = vpop.permute.xlu0 %697
      %701 = vset.pattern.permute.xlu0 0
      %702 = vperm.xlu0 %701, %v568
      %v703 = vpop.permute.xlu0 %702
      %706 = vset.pattern.permute.xlu0 0
      %707 = vperm.xlu0 %706, %v569
      %v708 = vpop.permute.xlu0 %707
      %v710 = vlaneseq
      %v711 = vshrl.u32 %v710, 7
      %v712 = vsub.s32 1, %v711
      %v713 = vrot.slane %v312, %v712
      %v714 = vmul.f32 %v573, %v713
      %v715 = vmul.f32 %v578, %v713
      %v716 = vmul.f32 %v583, %v713
      %v717 = vmul.f32 %v588, %v713
      %v718 = vmul.f32 %v593, %v713
      %v719 = vmul.f32 %v598, %v713
      %v720 = vmul.f32 %v603, %v713
      %v721 = vmul.f32 %v608, %v713
      %v722 = vmul.f32 %v613, %v713
      %v723 = vmul.f32 %v618, %v713
      %v724 = vmul.f32 %v623, %v713
      %v725 = vmul.f32 %v628, %v713
      %v726 = vmul.f32 %v633, %v713
      %v727 = vmul.f32 %v638, %v713
      %v728 = vmul.f32 %v643, %v713
      %v729 = vmul.f32 %v648, %v713
      %v730 = vmul.f32 %v653, %v713
      %v731 = vmul.f32 %v658, %v713
      %v732 = vmul.f32 %v663, %v713
      %v733 = vmul.f32 %v668, %v713
      %v734 = vmul.f32 %v673, %v713
      %v735 = vmul.f32 %v678, %v713
      %v736 = vmul.f32 %v683, %v713
      %v737 = vmul.f32 %v688, %v713
      %v738 = vmul.f32 %v693, %v713
      %v739 = vmul.f32 %v698, %v713
      %v740 = vmul.f32 %v703, %v713
      %v741 = vmul.f32 %v708, %v713
      %v742 = vadd.f32 %v514, %v714
      %v743 = vadd.f32 %v515, %v715
      %v744 = vadd.f32 %v516, %v716
      %v745 = vadd.f32 %v517, %v717
      %v746 = vadd.f32 %v518, %v718
      %v747 = vadd.f32 %v519, %v719
      %v748 = vadd.f32 %v520, %v720
      %v749 = vadd.f32 %v521, %v721
      %v750 = vadd.f32 %v522, %v722
      %v751 = vadd.f32 %v523, %v723
      %v752 = vadd.f32 %v524, %v724
      %v753 = vadd.f32 %v525, %v725
      %v754 = vadd.f32 %v526, %v726
      %v755 = vadd.f32 %v527, %v727
      %v756 = vadd.f32 %v528, %v728
      %v757 = vadd.f32 %v529, %v729
      %v758 = vadd.f32 %v530, %v730
      %v759 = vadd.f32 %v531, %v731
      %v760 = vadd.f32 %v532, %v732
      %v761 = vadd.f32 %v533, %v733
      %v762 = vadd.f32 %v534, %v734
      %v763 = vadd.f32 %v535, %v735
      %v764 = vadd.f32 %v536, %v736
      %v765 = vadd.f32 %v537, %v737
      %v766 = vadd.f32 %v538, %v738
      %v767 = vadd.f32 %v539, %v739
      %v768 = vadd.f32 %v540, %v740
      %v769 = vadd.f32 %v541, %v741
      %v770 = vld [vmem:[%s291 + $0x1] sm:$0xff]
      %v771 = vld [vmem:[%s291 + $0x9] sm:$0x3f]
      %v772 = vld [vmem:[%s291 + $0x11] sm:$0xff]
      %v773 = vld [vmem:[%s291 + $0x19] sm:$0x3f]
      %v774 = vld [vmem:[%s291 + $0x21] sm:$0xff]
      %v775 = vld [vmem:[%s291 + $0x29] sm:$0x3f]
      %v776 = vld [vmem:[%s291 + $0x31] sm:$0xff]
      %v777 = vld [vmem:[%s291 + $0x39] sm:$0x3f]
      %v778 = vld [vmem:[%s291 + $0x41] sm:$0xff]
      %v779 = vld [vmem:[%s291 + $0x49] sm:$0x3f]
      %v780 = vld [vmem:[%s291 + $0x51] sm:$0xff]
      %v781 = vld [vmem:[%s291 + $0x59] sm:$0x3f]
      %v782 = vld [vmem:[%s291 + $0x61] sm:$0xff]
      %v783 = vld [vmem:[%s291 + $0x69] sm:$0x3f]
      %v784 = vld [vmem:[%s291 + $0x71] sm:$0xff]
      %v785 = vld [vmem:[%s291 + $0x79] sm:$0x3f]
      %v786 = vld [vmem:[%s291 + $0x81] sm:$0xff]
      %v787 = vld [vmem:[%s291 + $0x89] sm:$0x3f]
      %v788 = vld [vmem:[%s291 + $0x91] sm:$0xff]
      %v789 = vld [vmem:[%s291 + $0x99] sm:$0x3f]
      %v790 = vld [vmem:[%s291 + $0xa1] sm:$0xff]
      %v791 = vld [vmem:[%s291 + $0xa9] sm:$0x3f]
      %v792 = vld [vmem:[%s291 + $0xb1] sm:$0xff]
      %v793 = vld [vmem:[%s291 + $0xb9] sm:$0x3f]
      %v794 = vld [vmem:[%s291 + $0xc1] sm:$0xff]
      %v795 = vld [vmem:[%s291 + $0xc9] sm:$0x3f]
      %v796 = vld [vmem:[%s291 + $0xd1] sm:$0xff]
      %v797 = vld [vmem:[%s291 + $0xd9] sm:$0x3f]
      %799 = vset.pattern.permute.xlu0 0
      %800 = vperm.xlu0 %799, %v770
      %v801 = vpop.permute.xlu0 %800
      %804 = vset.pattern.permute.xlu0 0
      %805 = vperm.xlu0 %804, %v771
      %v806 = vpop.permute.xlu0 %805
      %809 = vset.pattern.permute.xlu0 0
      %810 = vperm.xlu0 %809, %v772
      %v811 = vpop.permute.xlu0 %810
      %814 = vset.pattern.permute.xlu0 0
      %815 = vperm.xlu0 %814, %v773
      %v816 = vpop.permute.xlu0 %815
      %819 = vset.pattern.permute.xlu0 0
      %820 = vperm.xlu0 %819, %v774
      %v821 = vpop.permute.xlu0 %820
      %824 = vset.pattern.permute.xlu0 0
      %825 = vperm.xlu0 %824, %v775
      %v826 = vpop.permute.xlu0 %825
      %829 = vset.pattern.permute.xlu0 0
      %830 = vperm.xlu0 %829, %v776
      %v831 = vpop.permute.xlu0 %830
      %834 = vset.pattern.permute.xlu0 0
      %835 = vperm.xlu0 %834, %v777
      %v836 = vpop.permute.xlu0 %835
      %839 = vset.pattern.permute.xlu0 0
      %840 = vperm.xlu0 %839, %v778
      %v841 = vpop.permute.xlu0 %840
      %844 = vset.pattern.permute.xlu0 0
      %845 = vperm.xlu0 %844, %v779
      %v846 = vpop.permute.xlu0 %845
      %849 = vset.pattern.permute.xlu0 0
      %850 = vperm.xlu0 %849, %v780
      %v851 = vpop.permute.xlu0 %850
      %854 = vset.pattern.permute.xlu0 0
      %855 = vperm.xlu0 %854, %v781
      %v856 = vpop.permute.xlu0 %855
      %859 = vset.pattern.permute.xlu0 0
      %860 = vperm.xlu0 %859, %v782
      %v861 = vpop.permute.xlu0 %860
      %864 = vset.pattern.permute.xlu0 0
      %865 = vperm.xlu0 %864, %v783
      %v866 = vpop.permute.xlu0 %865
      %869 = vset.pattern.permute.xlu0 0
      %870 = vperm.xlu0 %869, %v784
      %v871 = vpop.permute.xlu0 %870
      %874 = vset.pattern.permute.xlu0 0
      %875 = vperm.xlu0 %874, %v785
      %v876 = vpop.permute.xlu0 %875
      %879 = vset.pattern.permute.xlu0 0
      %880 = vperm.xlu0 %879, %v786
      %v881 = vpop.permute.xlu0 %880
      %884 = vset.pattern.permute.xlu0 0
      %885 = vperm.xlu0 %884, %v787
      %v886 = vpop.permute.xlu0 %885
      %889 = vset.pattern.permute.xlu0 0
      %890 = vperm.xlu0 %889, %v788
      %v891 = vpop.permute.xlu0 %890
      %894 = vset.pattern.permute.xlu0 0
      %895 = vperm.xlu0 %894, %v789
      %v896 = vpop.permute.xlu0 %895
      %899 = vset.pattern.permute.xlu0 0
      %900 = vperm.xlu0 %899, %v790
      %v901 = vpop.permute.xlu0 %900
      %904 = vset.pattern.permute.xlu0 0
      %905 = vperm.xlu0 %904, %v791
      %v906 = vpop.permute.xlu0 %905
      %909 = vset.pattern.permute.xlu0 0
      %910 = vperm.xlu0 %909, %v792
      %v911 = vpop.permute.xlu0 %910
      %914 = vset.pattern.permute.xlu0 0
      %915 = vperm.xlu0 %914, %v793
      %v916 = vpop.permute.xlu0 %915
      %919 = vset.pattern.permute.xlu0 0
      %920 = vperm.xlu0 %919, %v794
      %v921 = vpop.permute.xlu0 %920
      %924 = vset.pattern.permute.xlu0 0
      %925 = vperm.xlu0 %924, %v795
      %v926 = vpop.permute.xlu0 %925
      %929 = vset.pattern.permute.xlu0 0
      %930 = vperm.xlu0 %929, %v796
      %v931 = vpop.permute.xlu0 %930
      %934 = vset.pattern.permute.xlu0 0
      %935 = vperm.xlu0 %934, %v797
      %v936 = vpop.permute.xlu0 %935
      %v938 = vlaneseq
      %v939 = vshrl.u32 %v938, 7
      %v940 = vsub.s32 2, %v939
      %v941 = vrot.slane %v312, %v940
      %v942 = vmul.f32 %v801, %v941
      %v943 = vmul.f32 %v806, %v941
      %v944 = vmul.f32 %v811, %v941
      %v945 = vmul.f32 %v816, %v941
      %v946 = vmul.f32 %v821, %v941
      %v947 = vmul.f32 %v826, %v941
      %v948 = vmul.f32 %v831, %v941
      %v949 = vmul.f32 %v836, %v941
      %v950 = vmul.f32 %v841, %v941
      %v951 = vmul.f32 %v846, %v941
      %v952 = vmul.f32 %v851, %v941
      %v953 = vmul.f32 %v856, %v941
      %v954 = vmul.f32 %v861, %v941
      %v955 = vmul.f32 %v866, %v941
      %v956 = vmul.f32 %v871, %v941
      %v957 = vmul.f32 %v876, %v941
      %v958 = vmul.f32 %v881, %v941
      %v959 = vmul.f32 %v886, %v941
      %v960 = vmul.f32 %v891, %v941
      %v961 = vmul.f32 %v896, %v941
      %v962 = vmul.f32 %v901, %v941
      %v963 = vmul.f32 %v906, %v941
      %v964 = vmul.f32 %v911, %v941
      %v965 = vmul.f32 %v916, %v941
      %v966 = vmul.f32 %v921, %v941
      %v967 = vmul.f32 %v926, %v941
      %v968 = vmul.f32 %v931, %v941
      %v969 = vmul.f32 %v936, %v941
      %v970 = vadd.f32 %v742, %v942
      %v971 = vadd.f32 %v743, %v943
      %v972 = vadd.f32 %v744, %v944
      %v973 = vadd.f32 %v745, %v945
      %v974 = vadd.f32 %v746, %v946
      %v975 = vadd.f32 %v747, %v947
      %v976 = vadd.f32 %v748, %v948
      %v977 = vadd.f32 %v749, %v949
      %v978 = vadd.f32 %v750, %v950
      %v979 = vadd.f32 %v751, %v951
      %v980 = vadd.f32 %v752, %v952
      %v981 = vadd.f32 %v753, %v953
      %v982 = vadd.f32 %v754, %v954
      %v983 = vadd.f32 %v755, %v955
      %v984 = vadd.f32 %v756, %v956
      %v985 = vadd.f32 %v757, %v957
      %v986 = vadd.f32 %v758, %v958
      %v987 = vadd.f32 %v759, %v959
      %v988 = vadd.f32 %v760, %v960
      %v989 = vadd.f32 %v761, %v961
      %v990 = vadd.f32 %v762, %v962
      %v991 = vadd.f32 %v763, %v963
      %v992 = vadd.f32 %v764, %v964
      %v993 = vadd.f32 %v765, %v965
      %v994 = vadd.f32 %v766, %v966
      %v995 = vadd.f32 %v767, %v967
      %v996 = vadd.f32 %v768, %v968
      %v997 = vadd.f32 %v769, %v969
      %v998 = vld [vmem:[%s301] sm:$0xff]
      %v999 = vld [vmem:[%s301 + $0x8] sm:$0x3f]
      %v1000 = vld [vmem:[%s301 + $0x10] sm:$0xff]
      %v1001 = vld [vmem:[%s301 + $0x18] sm:$0x3f]
      %v1002 = vld [vmem:[%s301 + $0x20] sm:$0xff]
      %v1003 = vld [vmem:[%s301 + $0x28] sm:$0x3f]
      %v1004 = vld [vmem:[%s301 + $0x30] sm:$0xff]
      %v1005 = vld [vmem:[%s301 + $0x38] sm:$0x3f]
      %v1006 = vld [vmem:[%s301 + $0x40] sm:$0xff]
      %v1007 = vld [vmem:[%s301 + $0x48] sm:$0x3f]
      %v1008 = vld [vmem:[%s301 + $0x50] sm:$0xff]
      %v1009 = vld [vmem:[%s301 + $0x58] sm:$0x3f]
      %v1010 = vld [vmem:[%s301 + $0x60] sm:$0xff]
      %v1011 = vld [vmem:[%s301 + $0x68] sm:$0x3f]
      %v1012 = vld [vmem:[%s301 + $0x70] sm:$0xff]
      %v1013 = vld [vmem:[%s301 + $0x78] sm:$0x3f]
      %v1014 = vld [vmem:[%s301 + $0x80] sm:$0xff]
      %v1015 = vld [vmem:[%s301 + $0x88] sm:$0x3f]
      %v1016 = vld [vmem:[%s301 + $0x90] sm:$0xff]
      %v1017 = vld [vmem:[%s301 + $0x98] sm:$0x3f]
      %v1018 = vld [vmem:[%s301 + $0xa0] sm:$0xff]
      %v1019 = vld [vmem:[%s301 + $0xa8] sm:$0x3f]
      %v1020 = vld [vmem:[%s301 + $0xb0] sm:$0xff]
      %v1021 = vld [vmem:[%s301 + $0xb8] sm:$0x3f]
      %v1022 = vld [vmem:[%s301 + $0xc0] sm:$0xff]
      %v1023 = vld [vmem:[%s301 + $0xc8] sm:$0x3f]
      %v1024 = vld [vmem:[%s301 + $0xd0] sm:$0xff]
      %v1025 = vld [vmem:[%s301 + $0xd8] sm:$0x3f]
      %1027 = vset.pattern.permute.xlu0 0
      %1028 = vperm.xlu0 %1027, %v998
      %v1029 = vpop.permute.xlu0 %1028
      %1032 = vset.pattern.permute.xlu0 0
      %1033 = vperm.xlu0 %1032, %v999
      %v1034 = vpop.permute.xlu0 %1033
      %1037 = vset.pattern.permute.xlu0 0
      %1038 = vperm.xlu0 %1037, %v1000
      %v1039 = vpop.permute.xlu0 %1038
      %1042 = vset.pattern.permute.xlu0 0
      %1043 = vperm.xlu0 %1042, %v1001
      %v1044 = vpop.permute.xlu0 %1043
      %1047 = vset.pattern.permute.xlu0 0
      %1048 = vperm.xlu0 %1047, %v1002
      %v1049 = vpop.permute.xlu0 %1048
      %1052 = vset.pattern.permute.xlu0 0
      %1053 = vperm.xlu0 %1052, %v1003
      %v1054 = vpop.permute.xlu0 %1053
      %1057 = vset.pattern.permute.xlu0 0
      %1058 = vperm.xlu0 %1057, %v1004
      %v1059 = vpop.permute.xlu0 %1058
      %1062 = vset.pattern.permute.xlu0 0
      %1063 = vperm.xlu0 %1062, %v1005
      %v1064 = vpop.permute.xlu0 %1063
      %1067 = vset.pattern.permute.xlu0 0
      %1068 = vperm.xlu0 %1067, %v1006
      %v1069 = vpop.permute.xlu0 %1068
      %1072 = vset.pattern.permute.xlu0 0
      %1073 = vperm.xlu0 %1072, %v1007
      %v1074 = vpop.permute.xlu0 %1073
      %1077 = vset.pattern.permute.xlu0 0
      %1078 = vperm.xlu0 %1077, %v1008
      %v1079 = vpop.permute.xlu0 %1078
      %1082 = vset.pattern.permute.xlu0 0
      %1083 = vperm.xlu0 %1082, %v1009
      %v1084 = vpop.permute.xlu0 %1083
      %1087 = vset.pattern.permute.xlu0 0
      %1088 = vperm.xlu0 %1087, %v1010
      %v1089 = vpop.permute.xlu0 %1088
      %1092 = vset.pattern.permute.xlu0 0
      %1093 = vperm.xlu0 %1092, %v1011
      %v1094 = vpop.permute.xlu0 %1093
      %1097 = vset.pattern.permute.xlu0 0
      %1098 = vperm.xlu0 %1097, %v1012
      %v1099 = vpop.permute.xlu0 %1098
      %1102 = vset.pattern.permute.xlu0 0
      %1103 = vperm.xlu0 %1102, %v1013
      %v1104 = vpop.permute.xlu0 %1103
      %1107 = vset.pattern.permute.xlu0 0
      %1108 = vperm.xlu0 %1107, %v1014
      %v1109 = vpop.permute.xlu0 %1108
      %1112 = vset.pattern.permute.xlu0 0
      %1113 = vperm.xlu0 %1112, %v1015
      %v1114 = vpop.permute.xlu0 %1113
      %1117 = vset.pattern.permute.xlu0 0
      %1118 = vperm.xlu0 %1117, %v1016
      %v1119 = vpop.permute.xlu0 %1118
      %1122 = vset.pattern.permute.xlu0 0
      %1123 = vperm.xlu0 %1122, %v1017
      %v1124 = vpop.permute.xlu0 %1123
      %1127 = vset.pattern.permute.xlu0 0
      %1128 = vperm.xlu0 %1127, %v1018
      %v1129 = vpop.permute.xlu0 %1128
      %1132 = vset.pattern.permute.xlu0 0
      %1133 = vperm.xlu0 %1132, %v1019
      %v1134 = vpop.permute.xlu0 %1133
      %1137 = vset.pattern.permute.xlu0 0
      %1138 = vperm.xlu0 %1137, %v1020
      %v1139 = vpop.permute.xlu0 %1138
      %1142 = vset.pattern.permute.xlu0 0
      %1143 = vperm.xlu0 %1142, %v1021
      %v1144 = vpop.permute.xlu0 %1143
      %1147 = vset.pattern.permute.xlu0 0
      %1148 = vperm.xlu0 %1147, %v1022
      %v1149 = vpop.permute.xlu0 %1148
      %1152 = vset.pattern.permute.xlu0 0
      %1153 = vperm.xlu0 %1152, %v1023
      %v1154 = vpop.permute.xlu0 %1153
      %1157 = vset.pattern.permute.xlu0 0
      %1158 = vperm.xlu0 %1157, %v1024
      %v1159 = vpop.permute.xlu0 %1158
      %1162 = vset.pattern.permute.xlu0 0
      %1163 = vperm.xlu0 %1162, %v1025
      %v1164 = vpop.permute.xlu0 %1163
      %v1166 = vlaneseq
      %v1167 = vshrl.u32 %v1166, 7
      %v1168 = vsub.s32 3, %v1167
      %v1169 = vrot.slane %v312, %v1168
      %v1170 = vmul.f32 %v1029, %v1169
      %v1171 = vmul.f32 %v1034, %v1169
      %v1172 = vmul.f32 %v1039, %v1169
      %v1173 = vmul.f32 %v1044, %v1169
      %v1174 = vmul.f32 %v1049, %v1169
      %v1175 = vmul.f32 %v1054, %v1169
      %v1176 = vmul.f32 %v1059, %v1169
      %v1177 = vmul.f32 %v1064, %v1169
      %v1178 = vmul.f32 %v1069, %v1169
      %v1179 = vmul.f32 %v1074, %v1169
      %v1180 = vmul.f32 %v1079, %v1169
      %v1181 = vmul.f32 %v1084, %v1169
      %v1182 = vmul.f32 %v1089, %v1169
      %v1183 = vmul.f32 %v1094, %v1169
      %v1184 = vmul.f32 %v1099, %v1169
      %v1185 = vmul.f32 %v1104, %v1169
      %v1186 = vmul.f32 %v1109, %v1169
      %v1187 = vmul.f32 %v1114, %v1169
      %v1188 = vmul.f32 %v1119, %v1169
      %v1189 = vmul.f32 %v1124, %v1169
      %v1190 = vmul.f32 %v1129, %v1169
      %v1191 = vmul.f32 %v1134, %v1169
      %v1192 = vmul.f32 %v1139, %v1169
      %v1193 = vmul.f32 %v1144, %v1169
      %v1194 = vmul.f32 %v1149, %v1169
      %v1195 = vmul.f32 %v1154, %v1169
      %v1196 = vmul.f32 %v1159, %v1169
      %v1197 = vmul.f32 %v1164, %v1169
      %v1198 = vadd.f32 %v970, %v1170
      %v1199 = vadd.f32 %v971, %v1171
      %v1200 = vadd.f32 %v972, %v1172
      %v1201 = vadd.f32 %v973, %v1173
      %v1202 = vadd.f32 %v974, %v1174
      %v1203 = vadd.f32 %v975, %v1175
      %v1204 = vadd.f32 %v976, %v1176
      %v1205 = vadd.f32 %v977, %v1177
      %v1206 = vadd.f32 %v978, %v1178
      %v1207 = vadd.f32 %v979, %v1179
      %v1208 = vadd.f32 %v980, %v1180
      %v1209 = vadd.f32 %v981, %v1181
      %v1210 = vadd.f32 %v982, %v1182
      %v1211 = vadd.f32 %v983, %v1183
      %v1212 = vadd.f32 %v984, %v1184
      %v1213 = vadd.f32 %v985, %v1185
      %v1214 = vadd.f32 %v986, %v1186
      %v1215 = vadd.f32 %v987, %v1187
      %v1216 = vadd.f32 %v988, %v1188
      %v1217 = vadd.f32 %v989, %v1189
      %v1218 = vadd.f32 %v990, %v1190
      %v1219 = vadd.f32 %v991, %v1191
      %v1220 = vadd.f32 %v992, %v1192
      %v1221 = vadd.f32 %v993, %v1193
      %v1222 = vadd.f32 %v994, %v1194
      %v1223 = vadd.f32 %v995, %v1195
      %v1224 = vadd.f32 %v996, %v1196
      %v1225 = vadd.f32 %v997, %v1197
      %v1226 = vld [vmem:[%s306] sm:$0xff]
      %v1227 = vld [vmem:[%s306 + $0x8] sm:$0x3f]
      %v1228 = vld [vmem:[%s306 + $0x10] sm:$0xff]
      %v1229 = vld [vmem:[%s306 + $0x18] sm:$0x3f]
      %v1230 = vld [vmem:[%s306 + $0x20] sm:$0xff]
      %v1231 = vld [vmem:[%s306 + $0x28] sm:$0x3f]
      %v1232 = vld [vmem:[%s306 + $0x30] sm:$0xff]
      %v1233 = vld [vmem:[%s306 + $0x38] sm:$0x3f]
      %v1234 = vld [vmem:[%s306 + $0x40] sm:$0xff]
      %v1235 = vld [vmem:[%s306 + $0x48] sm:$0x3f]
      %v1236 = vld [vmem:[%s306 + $0x50] sm:$0xff]
      %v1237 = vld [vmem:[%s306 + $0x58] sm:$0x3f]
      %v1238 = vld [vmem:[%s306 + $0x60] sm:$0xff]
      %v1239 = vld [vmem:[%s306 + $0x68] sm:$0x3f]
      %v1240 = vld [vmem:[%s306 + $0x70] sm:$0xff]
      %v1241 = vld [vmem:[%s306 + $0x78] sm:$0x3f]
      %v1242 = vld [vmem:[%s306 + $0x80] sm:$0xff]
      %v1243 = vld [vmem:[%s306 + $0x88] sm:$0x3f]
      %v1244 = vld [vmem:[%s306 + $0x90] sm:$0xff]
      %v1245 = vld [vmem:[%s306 + $0x98] sm:$0x3f]
      %v1246 = vld [vmem:[%s306 + $0xa0] sm:$0xff]
      %v1247 = vld [vmem:[%s306 + $0xa8] sm:$0x3f]
      %v1248 = vld [vmem:[%s306 + $0xb0] sm:$0xff]
      %v1249 = vld [vmem:[%s306 + $0xb8] sm:$0x3f]
      %v1250 = vld [vmem:[%s306 + $0xc0] sm:$0xff]
      %v1251 = vld [vmem:[%s306 + $0xc8] sm:$0x3f]
      %v1252 = vld [vmem:[%s306 + $0xd0] sm:$0xff]
      %v1253 = vld [vmem:[%s306 + $0xd8] sm:$0x3f]
      %1255 = vset.pattern.permute.xlu0 0
      %1256 = vperm.xlu0 %1255, %v1226
      %v1257 = vpop.permute.xlu0 %1256
      %1260 = vset.pattern.permute.xlu0 0
      %1261 = vperm.xlu0 %1260, %v1227
      %v1262 = vpop.permute.xlu0 %1261
      %1265 = vset.pattern.permute.xlu0 0
      %1266 = vperm.xlu0 %1265, %v1228
      %v1267 = vpop.permute.xlu0 %1266
      %1270 = vset.pattern.permute.xlu0 0
      %1271 = vperm.xlu0 %1270, %v1229
      %v1272 = vpop.permute.xlu0 %1271
      %1275 = vset.pattern.permute.xlu0 0
      %1276 = vperm.xlu0 %1275, %v1230
      %v1277 = vpop.permute.xlu0 %1276
      %1280 = vset.pattern.permute.xlu0 0
      %1281 = vperm.xlu0 %1280, %v1231
      %v1282 = vpop.permute.xlu0 %1281
      %1285 = vset.pattern.permute.xlu0 0
      %1286 = vperm.xlu0 %1285, %v1232
      %v1287 = vpop.permute.xlu0 %1286
      %1290 = vset.pattern.permute.xlu0 0
      %1291 = vperm.xlu0 %1290, %v1233
      %v1292 = vpop.permute.xlu0 %1291
      %1295 = vset.pattern.permute.xlu0 0
      %1296 = vperm.xlu0 %1295, %v1234
      %v1297 = vpop.permute.xlu0 %1296
      %1300 = vset.pattern.permute.xlu0 0
      %1301 = vperm.xlu0 %1300, %v1235
      %v1302 = vpop.permute.xlu0 %1301
      %1305 = vset.pattern.permute.xlu0 0
      %1306 = vperm.xlu0 %1305, %v1236
      %v1307 = vpop.permute.xlu0 %1306
      %1310 = vset.pattern.permute.xlu0 0
      %1311 = vperm.xlu0 %1310, %v1237
      %v1312 = vpop.permute.xlu0 %1311
      %1315 = vset.pattern.permute.xlu0 0
      %1316 = vperm.xlu0 %1315, %v1238
      %v1317 = vpop.permute.xlu0 %1316
      %1320 = vset.pattern.permute.xlu0 0
      %1321 = vperm.xlu0 %1320, %v1239
      %v1322 = vpop.permute.xlu0 %1321
      %1325 = vset.pattern.permute.xlu0 0
      %1326 = vperm.xlu0 %1325, %v1240
      %v1327 = vpop.permute.xlu0 %1326
      %1330 = vset.pattern.permute.xlu0 0
      %1331 = vperm.xlu0 %1330, %v1241
      %v1332 = vpop.permute.xlu0 %1331
      %1335 = vset.pattern.permute.xlu0 0
      %1336 = vperm.xlu0 %1335, %v1242
      %v1337 = vpop.permute.xlu0 %1336
      %1340 = vset.pattern.permute.xlu0 0
      %1341 = vperm.xlu0 %1340, %v1243
      %v1342 = vpop.permute.xlu0 %1341
      %1345 = vset.pattern.permute.xlu0 0
      %1346 = vperm.xlu0 %1345, %v1244
      %v1347 = vpop.permute.xlu0 %1346
      %1350 = vset.pattern.permute.xlu0 0
      %1351 = vperm.xlu0 %1350, %v1245
      %v1352 = vpop.permute.xlu0 %1351
      %1355 = vset.pattern.permute.xlu0 0
      %1356 = vperm.xlu0 %1355, %v1246
      %v1357 = vpop.permute.xlu0 %1356
      %1360 = vset.pattern.permute.xlu0 0
      %1361 = vperm.xlu0 %1360, %v1247
      %v1362 = vpop.permute.xlu0 %1361
      %1365 = vset.pattern.permute.xlu0 0
      %1366 = vperm.xlu0 %1365, %v1248
      %v1367 = vpop.permute.xlu0 %1366
      %1370 = vset.pattern.permute.xlu0 0
      %1371 = vperm.xlu0 %1370, %v1249
      %v1372 = vpop.permute.xlu0 %1371
      %1375 = vset.pattern.permute.xlu0 0
      %1376 = vperm.xlu0 %1375, %v1250
      %v1377 = vpop.permute.xlu0 %1376
      %1380 = vset.pattern.permute.xlu0 0
      %1381 = vperm.xlu0 %1380, %v1251
      %v1382 = vpop.permute.xlu0 %1381
      %1385 = vset.pattern.permute.xlu0 0
      %1386 = vperm.xlu0 %1385, %v1252
      %v1387 = vpop.permute.xlu0 %1386
      %1390 = vset.pattern.permute.xlu0 0
      %1391 = vperm.xlu0 %1390, %v1253
      %v1392 = vpop.permute.xlu0 %1391
      %v1394 = vlaneseq
      %v1395 = vshrl.u32 %v1394, 7
      %v1396 = vsub.s32 4, %v1395
      %v1397 = vrot.slane %v312, %v1396
      %v1398 = vmul.f32 %v1257, %v1397
      %v1399 = vmul.f32 %v1262, %v1397
      %v1400 = vmul.f32 %v1267, %v1397
      %v1401 = vmul.f32 %v1272, %v1397
      %v1402 = vmul.f32 %v1277, %v1397
      %v1403 = vmul.f32 %v1282, %v1397
      %v1404 = vmul.f32 %v1287, %v1397
      %v1405 = vmul.f32 %v1292, %v1397
      %v1406 = vmul.f32 %v1297, %v1397
      %v1407 = vmul.f32 %v1302, %v1397
      %v1408 = vmul.f32 %v1307, %v1397
      %v1409 = vmul.f32 %v1312, %v1397
      %v1410 = vmul.f32 %v1317, %v1397
      %v1411 = vmul.f32 %v1322, %v1397
      %v1412 = vmul.f32 %v1327, %v1397
      %v1413 = vmul.f32 %v1332, %v1397
      %v1414 = vmul.f32 %v1337, %v1397
      %v1415 = vmul.f32 %v1342, %v1397
      %v1416 = vmul.f32 %v1347, %v1397
      %v1417 = vmul.f32 %v1352, %v1397
      %v1418 = vmul.f32 %v1357, %v1397
      %v1419 = vmul.f32 %v1362, %v1397
      %v1420 = vmul.f32 %v1367, %v1397
      %v1421 = vmul.f32 %v1372, %v1397
      %v1422 = vmul.f32 %v1377, %v1397
      %v1423 = vmul.f32 %v1382, %v1397
      %v1424 = vmul.f32 %v1387, %v1397
      %v1425 = vmul.f32 %v1392, %v1397
      %v1426 = vadd.f32 %v1198, %v1398
      %v1427 = vadd.f32 %v1199, %v1399
      %v1428 = vadd.f32 %v1200, %v1400
      %v1429 = vadd.f32 %v1201, %v1401
      %v1430 = vadd.f32 %v1202, %v1402
      %v1431 = vadd.f32 %v1203, %v1403
      %v1432 = vadd.f32 %v1204, %v1404
      %v1433 = vadd.f32 %v1205, %v1405
      %v1434 = vadd.f32 %v1206, %v1406
      %v1435 = vadd.f32 %v1207, %v1407
      %v1436 = vadd.f32 %v1208, %v1408
      %v1437 = vadd.f32 %v1209, %v1409
      %v1438 = vadd.f32 %v1210, %v1410
      %v1439 = vadd.f32 %v1211, %v1411
      %v1440 = vadd.f32 %v1212, %v1412
      %v1441 = vadd.f32 %v1213, %v1413
      %v1442 = vadd.f32 %v1214, %v1414
      %v1443 = vadd.f32 %v1215, %v1415
      %v1444 = vadd.f32 %v1216, %v1416
      %v1445 = vadd.f32 %v1217, %v1417
      %v1446 = vadd.f32 %v1218, %v1418
      %v1447 = vadd.f32 %v1219, %v1419
      %v1448 = vadd.f32 %v1220, %v1420
      %v1449 = vadd.f32 %v1221, %v1421
      %v1450 = vadd.f32 %v1222, %v1422
      %v1451 = vadd.f32 %v1223, %v1423
      %v1452 = vadd.f32 %v1224, %v1424
      %v1453 = vadd.f32 %v1225, %v1425
      %v1454 = vld [vmem:[%s301 + $0x1] sm:$0xff]
      %v1455 = vld [vmem:[%s301 + $0x9] sm:$0x3f]
      %v1456 = vld [vmem:[%s301 + $0x11] sm:$0xff]
      %v1457 = vld [vmem:[%s301 + $0x19] sm:$0x3f]
      %v1458 = vld [vmem:[%s301 + $0x21] sm:$0xff]
      %v1459 = vld [vmem:[%s301 + $0x29] sm:$0x3f]
      %v1460 = vld [vmem:[%s301 + $0x31] sm:$0xff]
      %v1461 = vld [vmem:[%s301 + $0x39] sm:$0x3f]
      %v1462 = vld [vmem:[%s301 + $0x41] sm:$0xff]
      %v1463 = vld [vmem:[%s301 + $0x49] sm:$0x3f]
      %v1464 = vld [vmem:[%s301 + $0x51] sm:$0xff]
      %v1465 = vld [vmem:[%s301 + $0x59] sm:$0x3f]
      %v1466 = vld [vmem:[%s301 + $0x61] sm:$0xff]
      %v1467 = vld [vmem:[%s301 + $0x69] sm:$0x3f]
      %v1468 = vld [vmem:[%s301 + $0x71] sm:$0xff]
      %v1469 = vld [vmem:[%s301 + $0x79] sm:$0x3f]
      %v1470 = vld [vmem:[%s301 + $0x81] sm:$0xff]
      %v1471 = vld [vmem:[%s301 + $0x89] sm:$0x3f]
      %v1472 = vld [vmem:[%s301 + $0x91] sm:$0xff]
      %v1473 = vld [vmem:[%s301 + $0x99] sm:$0x3f]
      %v1474 = vld [vmem:[%s301 + $0xa1] sm:$0xff]
      %v1475 = vld [vmem:[%s301 + $0xa9] sm:$0x3f]
      %v1476 = vld [vmem:[%s301 + $0xb1] sm:$0xff]
      %v1477 = vld [vmem:[%s301 + $0xb9] sm:$0x3f]
      %v1478 = vld [vmem:[%s301 + $0xc1] sm:$0xff]
      %v1479 = vld [vmem:[%s301 + $0xc9] sm:$0x3f]
      %v1480 = vld [vmem:[%s301 + $0xd1] sm:$0xff]
      %v1481 = vld [vmem:[%s301 + $0xd9] sm:$0x3f]
      %1483 = vset.pattern.permute.xlu0 0
      %1484 = vperm.xlu0 %1483, %v1454
      %v1485 = vpop.permute.xlu0 %1484
      %1488 = vset.pattern.permute.xlu0 0
      %1489 = vperm.xlu0 %1488, %v1455
      %v1490 = vpop.permute.xlu0 %1489
      %1493 = vset.pattern.permute.xlu0 0
      %1494 = vperm.xlu0 %1493, %v1456
      %v1495 = vpop.permute.xlu0 %1494
      %1498 = vset.pattern.permute.xlu0 0
      %1499 = vperm.xlu0 %1498, %v1457
      %v1500 = vpop.permute.xlu0 %1499
      %1503 = vset.pattern.permute.xlu0 0
      %1504 = vperm.xlu0 %1503, %v1458
      %v1505 = vpop.permute.xlu0 %1504
      %1508 = vset.pattern.permute.xlu0 0
      %1509 = vperm.xlu0 %1508, %v1459
      %v1510 = vpop.permute.xlu0 %1509
      %1513 = vset.pattern.permute.xlu0 0
      %1514 = vperm.xlu0 %1513, %v1460
      %v1515 = vpop.permute.xlu0 %1514
      %1518 = vset.pattern.permute.xlu0 0
      %1519 = vperm.xlu0 %1518, %v1461
      %v1520 = vpop.permute.xlu0 %1519
      %1523 = vset.pattern.permute.xlu0 0
      %1524 = vperm.xlu0 %1523, %v1462
      %v1525 = vpop.permute.xlu0 %1524
      %1528 = vset.pattern.permute.xlu0 0
      %1529 = vperm.xlu0 %1528, %v1463
      %v1530 = vpop.permute.xlu0 %1529
      %1533 = vset.pattern.permute.xlu0 0
      %1534 = vperm.xlu0 %1533, %v1464
      %v1535 = vpop.permute.xlu0 %1534
      %1538 = vset.pattern.permute.xlu0 0
      %1539 = vperm.xlu0 %1538, %v1465
      %v1540 = vpop.permute.xlu0 %1539
      %1543 = vset.pattern.permute.xlu0 0
      %1544 = vperm.xlu0 %1543, %v1466
      %v1545 = vpop.permute.xlu0 %1544
      %1548 = vset.pattern.permute.xlu0 0
      %1549 = vperm.xlu0 %1548, %v1467
      %v1550 = vpop.permute.xlu0 %1549
      %1553 = vset.pattern.permute.xlu0 0
      %1554 = vperm.xlu0 %1553, %v1468
      %v1555 = vpop.permute.xlu0 %1554
      %1558 = vset.pattern.permute.xlu0 0
      %1559 = vperm.xlu0 %1558, %v1469
      %v1560 = vpop.permute.xlu0 %1559
      %1563 = vset.pattern.permute.xlu0 0
      %1564 = vperm.xlu0 %1563, %v1470
      %v1565 = vpop.permute.xlu0 %1564
      %1568 = vset.pattern.permute.xlu0 0
      %1569 = vperm.xlu0 %1568, %v1471
      %v1570 = vpop.permute.xlu0 %1569
      %1573 = vset.pattern.permute.xlu0 0
      %1574 = vperm.xlu0 %1573, %v1472
      %v1575 = vpop.permute.xlu0 %1574
      %1578 = vset.pattern.permute.xlu0 0
      %1579 = vperm.xlu0 %1578, %v1473
      %v1580 = vpop.permute.xlu0 %1579
      %1583 = vset.pattern.permute.xlu0 0
      %1584 = vperm.xlu0 %1583, %v1474
      %v1585 = vpop.permute.xlu0 %1584
      %1588 = vset.pattern.permute.xlu0 0
      %1589 = vperm.xlu0 %1588, %v1475
      %v1590 = vpop.permute.xlu0 %1589
      %1593 = vset.pattern.permute.xlu0 0
      %1594 = vperm.xlu0 %1593, %v1476
      %v1595 = vpop.permute.xlu0 %1594
      %1598 = vset.pattern.permute.xlu0 0
      %1599 = vperm.xlu0 %1598, %v1477
      %v1600 = vpop.permute.xlu0 %1599
      %1603 = vset.pattern.permute.xlu0 0
      %1604 = vperm.xlu0 %1603, %v1478
      %v1605 = vpop.permute.xlu0 %1604
      %1608 = vset.pattern.permute.xlu0 0
      %1609 = vperm.xlu0 %1608, %v1479
      %v1610 = vpop.permute.xlu0 %1609
      %1613 = vset.pattern.permute.xlu0 0
      %1614 = vperm.xlu0 %1613, %v1480
      %v1615 = vpop.permute.xlu0 %1614
      %1618 = vset.pattern.permute.xlu0 0
      %1619 = vperm.xlu0 %1618, %v1481
      %v1620 = vpop.permute.xlu0 %1619
      %v1622 = vlaneseq
      %v1623 = vshrl.u32 %v1622, 7
      %v1624 = vsub.s32 5, %v1623
      %v1625 = vrot.slane %v312, %v1624
      %v1626 = vmul.f32 %v1485, %v1625
      %v1627 = vmul.f32 %v1490, %v1625
      %v1628 = vmul.f32 %v1495, %v1625
      %v1629 = vmul.f32 %v1500, %v1625
      %v1630 = vmul.f32 %v1505, %v1625
      %v1631 = vmul.f32 %v1510, %v1625
      %v1632 = vmul.f32 %v1515, %v1625
      %v1633 = vmul.f32 %v1520, %v1625
      %v1634 = vmul.f32 %v1525, %v1625
      %v1635 = vmul.f32 %v1530, %v1625
      %v1636 = vmul.f32 %v1535, %v1625
      %v1637 = vmul.f32 %v1540, %v1625
      %v1638 = vmul.f32 %v1545, %v1625
      %v1639 = vmul.f32 %v1550, %v1625
      %v1640 = vmul.f32 %v1555, %v1625
      %v1641 = vmul.f32 %v1560, %v1625
      %v1642 = vmul.f32 %v1565, %v1625
      %v1643 = vmul.f32 %v1570, %v1625
      %v1644 = vmul.f32 %v1575, %v1625
      %v1645 = vmul.f32 %v1580, %v1625
      %v1646 = vmul.f32 %v1585, %v1625
      %v1647 = vmul.f32 %v1590, %v1625
      %v1648 = vmul.f32 %v1595, %v1625
      %v1649 = vmul.f32 %v1600, %v1625
      %v1650 = vmul.f32 %v1605, %v1625
      %v1651 = vmul.f32 %v1610, %v1625
      %v1652 = vmul.f32 %v1615, %v1625
      %v1653 = vmul.f32 %v1620, %v1625
      %v1654 = vadd.f32 %v1426, %v1626
      %v1655 = vadd.f32 %v1427, %v1627
      %v1656 = vadd.f32 %v1428, %v1628
      %v1657 = vadd.f32 %v1429, %v1629
      %v1658 = vadd.f32 %v1430, %v1630
      %v1659 = vadd.f32 %v1431, %v1631
      %v1660 = vadd.f32 %v1432, %v1632
      %v1661 = vadd.f32 %v1433, %v1633
      %v1662 = vadd.f32 %v1434, %v1634
      %v1663 = vadd.f32 %v1435, %v1635
      %v1664 = vadd.f32 %v1436, %v1636
      %v1665 = vadd.f32 %v1437, %v1637
      %v1666 = vadd.f32 %v1438, %v1638
      %v1667 = vadd.f32 %v1439, %v1639
      %v1668 = vadd.f32 %v1440, %v1640
      %v1669 = vadd.f32 %v1441, %v1641
      %v1670 = vadd.f32 %v1442, %v1642
      %v1671 = vadd.f32 %v1443, %v1643
      %v1672 = vadd.f32 %v1444, %v1644
      %v1673 = vadd.f32 %v1445, %v1645
      %v1674 = vadd.f32 %v1446, %v1646
      %v1675 = vadd.f32 %v1447, %v1647
      %v1676 = vadd.f32 %v1448, %v1648
      %v1677 = vadd.f32 %v1449, %v1649
      %v1678 = vadd.f32 %v1450, %v1650
      %v1679 = vadd.f32 %v1451, %v1651
      %v1680 = vadd.f32 %v1452, %v1652
      %v1681 = vadd.f32 %v1453, %v1653
      %s1682 = scalar_lea.vmem %s291, 16
      %v1683 = vld [vmem:[%s1682] sm:$0xff]
      %v1684 = vld [vmem:[%s1682 + $0x8] sm:$0x3f]
      %v1685 = vld [vmem:[%s1682 + $0x10] sm:$0xff]
      %v1686 = vld [vmem:[%s1682 + $0x18] sm:$0x3f]
      %v1687 = vld [vmem:[%s1682 + $0x20] sm:$0xff]
      %v1688 = vld [vmem:[%s1682 + $0x28] sm:$0x3f]
      %v1689 = vld [vmem:[%s1682 + $0x30] sm:$0xff]
      %v1690 = vld [vmem:[%s1682 + $0x38] sm:$0x3f]
      %v1691 = vld [vmem:[%s1682 + $0x40] sm:$0xff]
      %v1692 = vld [vmem:[%s1682 + $0x48] sm:$0x3f]
      %v1693 = vld [vmem:[%s1682 + $0x50] sm:$0xff]
      %v1694 = vld [vmem:[%s1682 + $0x58] sm:$0x3f]
      %v1695 = vld [vmem:[%s1682 + $0x60] sm:$0xff]
      %v1696 = vld [vmem:[%s1682 + $0x68] sm:$0x3f]
      %v1697 = vld [vmem:[%s1682 + $0x70] sm:$0xff]
      %v1698 = vld [vmem:[%s1682 + $0x78] sm:$0x3f]
      %v1699 = vld [vmem:[%s1682 + $0x80] sm:$0xff]
      %v1700 = vld [vmem:[%s1682 + $0x88] sm:$0x3f]
      %v1701 = vld [vmem:[%s1682 + $0x90] sm:$0xff]
      %v1702 = vld [vmem:[%s1682 + $0x98] sm:$0x3f]
      %v1703 = vld [vmem:[%s1682 + $0xa0] sm:$0xff]
      %v1704 = vld [vmem:[%s1682 + $0xa8] sm:$0x3f]
      %v1705 = vld [vmem:[%s1682 + $0xb0] sm:$0xff]
      %v1706 = vld [vmem:[%s1682 + $0xb8] sm:$0x3f]
      %v1707 = vld [vmem:[%s1682 + $0xc0] sm:$0xff]
      %v1708 = vld [vmem:[%s1682 + $0xc8] sm:$0x3f]
      %v1709 = vld [vmem:[%s1682 + $0xd0] sm:$0xff]
      %v1710 = vld [vmem:[%s1682 + $0xd8] sm:$0x3f]
      %1712 = vset.pattern.permute.xlu0 0
      %1713 = vperm.xlu0 %1712, %v1683
      %v1714 = vpop.permute.xlu0 %1713
      %1717 = vset.pattern.permute.xlu0 0
      %1718 = vperm.xlu0 %1717, %v1684
      %v1719 = vpop.permute.xlu0 %1718
      %1722 = vset.pattern.permute.xlu0 0
      %1723 = vperm.xlu0 %1722, %v1685
      %v1724 = vpop.permute.xlu0 %1723
      %1727 = vset.pattern.permute.xlu0 0
      %1728 = vperm.xlu0 %1727, %v1686
      %v1729 = vpop.permute.xlu0 %1728
      %1732 = vset.pattern.permute.xlu0 0
      %1733 = vperm.xlu0 %1732, %v1687
      %v1734 = vpop.permute.xlu0 %1733
      %1737 = vset.pattern.permute.xlu0 0
      %1738 = vperm.xlu0 %1737, %v1688
      %v1739 = vpop.permute.xlu0 %1738
      %1742 = vset.pattern.permute.xlu0 0
      %1743 = vperm.xlu0 %1742, %v1689
      %v1744 = vpop.permute.xlu0 %1743
      %1747 = vset.pattern.permute.xlu0 0
      %1748 = vperm.xlu0 %1747, %v1690
      %v1749 = vpop.permute.xlu0 %1748
      %1752 = vset.pattern.permute.xlu0 0
      %1753 = vperm.xlu0 %1752, %v1691
      %v1754 = vpop.permute.xlu0 %1753
      %1757 = vset.pattern.permute.xlu0 0
      %1758 = vperm.xlu0 %1757, %v1692
      %v1759 = vpop.permute.xlu0 %1758
      %1762 = vset.pattern.permute.xlu0 0
      %1763 = vperm.xlu0 %1762, %v1693
      %v1764 = vpop.permute.xlu0 %1763
      %1767 = vset.pattern.permute.xlu0 0
      %1768 = vperm.xlu0 %1767, %v1694
      %v1769 = vpop.permute.xlu0 %1768
      %1772 = vset.pattern.permute.xlu0 0
      %1773 = vperm.xlu0 %1772, %v1695
      %v1774 = vpop.permute.xlu0 %1773
      %1777 = vset.pattern.permute.xlu0 0
      %1778 = vperm.xlu0 %1777, %v1696
      %v1779 = vpop.permute.xlu0 %1778
      %1782 = vset.pattern.permute.xlu0 0
      %1783 = vperm.xlu0 %1782, %v1697
      %v1784 = vpop.permute.xlu0 %1783
      %1787 = vset.pattern.permute.xlu0 0
      %1788 = vperm.xlu0 %1787, %v1698
      %v1789 = vpop.permute.xlu0 %1788
      %1792 = vset.pattern.permute.xlu0 0
      %1793 = vperm.xlu0 %1792, %v1699
      %v1794 = vpop.permute.xlu0 %1793
      %1797 = vset.pattern.permute.xlu0 0
      %1798 = vperm.xlu0 %1797, %v1700
      %v1799 = vpop.permute.xlu0 %1798
      %1802 = vset.pattern.permute.xlu0 0
      %1803 = vperm.xlu0 %1802, %v1701
      %v1804 = vpop.permute.xlu0 %1803
      %1807 = vset.pattern.permute.xlu0 0
      %1808 = vperm.xlu0 %1807, %v1702
      %v1809 = vpop.permute.xlu0 %1808
      %1812 = vset.pattern.permute.xlu0 0
      %1813 = vperm.xlu0 %1812, %v1703
      %v1814 = vpop.permute.xlu0 %1813
      %1817 = vset.pattern.permute.xlu0 0
      %1818 = vperm.xlu0 %1817, %v1704
      %v1819 = vpop.permute.xlu0 %1818
      %1822 = vset.pattern.permute.xlu0 0
      %1823 = vperm.xlu0 %1822, %v1705
      %v1824 = vpop.permute.xlu0 %1823
      %1827 = vset.pattern.permute.xlu0 0
      %1828 = vperm.xlu0 %1827, %v1706
      %v1829 = vpop.permute.xlu0 %1828
      %1832 = vset.pattern.permute.xlu0 0
      %1833 = vperm.xlu0 %1832, %v1707
      %v1834 = vpop.permute.xlu0 %1833
      %1837 = vset.pattern.permute.xlu0 0
      %1838 = vperm.xlu0 %1837, %v1708
      %v1839 = vpop.permute.xlu0 %1838
      %1842 = vset.pattern.permute.xlu0 0
      %1843 = vperm.xlu0 %1842, %v1709
      %v1844 = vpop.permute.xlu0 %1843
      %1847 = vset.pattern.permute.xlu0 0
      %1848 = vperm.xlu0 %1847, %v1710
      %v1849 = vpop.permute.xlu0 %1848
      %v1851 = vlaneseq
      %v1852 = vshrl.u32 %v1851, 7
      %v1853 = vsub.s32 6, %v1852
      %v1854 = vrot.slane %v312, %v1853
      %v1855 = vmul.f32 %v1714, %v1854
      %v1856 = vmul.f32 %v1719, %v1854
      %v1857 = vmul.f32 %v1724, %v1854
      %v1858 = vmul.f32 %v1729, %v1854
      %v1859 = vmul.f32 %v1734, %v1854
      %v1860 = vmul.f32 %v1739, %v1854
      %v1861 = vmul.f32 %v1744, %v1854
      %v1862 = vmul.f32 %v1749, %v1854
      %v1863 = vmul.f32 %v1754, %v1854
      %v1864 = vmul.f32 %v1759, %v1854
      %v1865 = vmul.f32 %v1764, %v1854
      %v1866 = vmul.f32 %v1769, %v1854
      %v1867 = vmul.f32 %v1774, %v1854
      %v1868 = vmul.f32 %v1779, %v1854
      %v1869 = vmul.f32 %v1784, %v1854
      %v1870 = vmul.f32 %v1789, %v1854
      %v1871 = vmul.f32 %v1794, %v1854
      %v1872 = vmul.f32 %v1799, %v1854
      %v1873 = vmul.f32 %v1804, %v1854
      %v1874 = vmul.f32 %v1809, %v1854
      %v1875 = vmul.f32 %v1814, %v1854
      %v1876 = vmul.f32 %v1819, %v1854
      %v1877 = vmul.f32 %v1824, %v1854
      %v1878 = vmul.f32 %v1829, %v1854
      %v1879 = vmul.f32 %v1834, %v1854
      %v1880 = vmul.f32 %v1839, %v1854
      %v1881 = vmul.f32 %v1844, %v1854
      %v1882 = vmul.f32 %v1849, %v1854
      %v1883 = vadd.f32 %v1654, %v1855
      %v1884 = vadd.f32 %v1655, %v1856
      %v1885 = vadd.f32 %v1656, %v1857
      %v1886 = vadd.f32 %v1657, %v1858
      %v1887 = vadd.f32 %v1658, %v1859
      %v1888 = vadd.f32 %v1659, %v1860
      %v1889 = vadd.f32 %v1660, %v1861
      %v1890 = vadd.f32 %v1661, %v1862
      %v1891 = vadd.f32 %v1662, %v1863
      %v1892 = vadd.f32 %v1663, %v1864
      %v1893 = vadd.f32 %v1664, %v1865
      %v1894 = vadd.f32 %v1665, %v1866
      %v1895 = vadd.f32 %v1666, %v1867
      %v1896 = vadd.f32 %v1667, %v1868
      %v1897 = vadd.f32 %v1668, %v1869
      %v1898 = vadd.f32 %v1669, %v1870
      %v1899 = vadd.f32 %v1670, %v1871
      %v1900 = vadd.f32 %v1671, %v1872
      %v1901 = vadd.f32 %v1672, %v1873
      %v1902 = vadd.f32 %v1673, %v1874
      %v1903 = vadd.f32 %v1674, %v1875
      %v1904 = vadd.f32 %v1675, %v1876
      %v1905 = vadd.f32 %v1676, %v1877
      %v1906 = vadd.f32 %v1677, %v1878
      %v1907 = vadd.f32 %v1678, %v1879
      %v1908 = vadd.f32 %v1679, %v1880
      %v1909 = vadd.f32 %v1680, %v1881
      %v1910 = vadd.f32 %v1681, %v1882
      %s1911 = scalar_lea.vmem %s296, 16
      %v1912 = vld [vmem:[%s1911] sm:$0xff]
      %v1913 = vld [vmem:[%s1911 + $0x8] sm:$0x3f]
      %v1914 = vld [vmem:[%s1911 + $0x10] sm:$0xff]
      %v1915 = vld [vmem:[%s1911 + $0x18] sm:$0x3f]
      %v1916 = vld [vmem:[%s1911 + $0x20] sm:$0xff]
      %v1917 = vld [vmem:[%s1911 + $0x28] sm:$0x3f]
      %v1918 = vld [vmem:[%s1911 + $0x30] sm:$0xff]
      %v1919 = vld [vmem:[%s1911 + $0x38] sm:$0x3f]
      %v1920 = vld [vmem:[%s1911 + $0x40] sm:$0xff]
      %v1921 = vld [vmem:[%s1911 + $0x48] sm:$0x3f]
      %v1922 = vld [vmem:[%s1911 + $0x50] sm:$0xff]
      %v1923 = vld [vmem:[%s1911 + $0x58] sm:$0x3f]
      %v1924 = vld [vmem:[%s1911 + $0x60] sm:$0xff]
      %v1925 = vld [vmem:[%s1911 + $0x68] sm:$0x3f]
      %v1926 = vld [vmem:[%s1911 + $0x70] sm:$0xff]
      %v1927 = vld [vmem:[%s1911 + $0x78] sm:$0x3f]
      %v1928 = vld [vmem:[%s1911 + $0x80] sm:$0xff]
      %v1929 = vld [vmem:[%s1911 + $0x88] sm:$0x3f]
      %v1930 = vld [vmem:[%s1911 + $0x90] sm:$0xff]
      %v1931 = vld [vmem:[%s1911 + $0x98] sm:$0x3f]
      %v1932 = vld [vmem:[%s1911 + $0xa0] sm:$0xff]
      %v1933 = vld [vmem:[%s1911 + $0xa8] sm:$0x3f]
      %v1934 = vld [vmem:[%s1911 + $0xb0] sm:$0xff]
      %v1935 = vld [vmem:[%s1911 + $0xb8] sm:$0x3f]
      %v1936 = vld [vmem:[%s1911 + $0xc0] sm:$0xff]
      %v1937 = vld [vmem:[%s1911 + $0xc8] sm:$0x3f]
      %v1938 = vld [vmem:[%s1911 + $0xd0] sm:$0xff]
      %v1939 = vld [vmem:[%s1911 + $0xd8] sm:$0x3f]
      %1941 = vset.pattern.permute.xlu0 0
      %1942 = vperm.xlu0 %1941, %v1912
      %v1943 = vpop.permute.xlu0 %1942
      %1946 = vset.pattern.permute.xlu0 0
      %1947 = vperm.xlu0 %1946, %v1913
      %v1948 = vpop.permute.xlu0 %1947
      %1951 = vset.pattern.permute.xlu0 0
      %1952 = vperm.xlu0 %1951, %v1914
      %v1953 = vpop.permute.xlu0 %1952
      %1956 = vset.pattern.permute.xlu0 0
      %1957 = vperm.xlu0 %1956, %v1915
      %v1958 = vpop.permute.xlu0 %1957
      %1961 = vset.pattern.permute.xlu0 0
      %1962 = vperm.xlu0 %1961, %v1916
      %v1963 = vpop.permute.xlu0 %1962
      %1966 = vset.pattern.permute.xlu0 0
      %1967 = vperm.xlu0 %1966, %v1917
      %v1968 = vpop.permute.xlu0 %1967
      %1971 = vset.pattern.permute.xlu0 0
      %1972 = vperm.xlu0 %1971, %v1918
      %v1973 = vpop.permute.xlu0 %1972
      %1976 = vset.pattern.permute.xlu0 0
      %1977 = vperm.xlu0 %1976, %v1919
      %v1978 = vpop.permute.xlu0 %1977
      %1981 = vset.pattern.permute.xlu0 0
      %1982 = vperm.xlu0 %1981, %v1920
      %v1983 = vpop.permute.xlu0 %1982
      %1986 = vset.pattern.permute.xlu0 0
      %1987 = vperm.xlu0 %1986, %v1921
      %v1988 = vpop.permute.xlu0 %1987
      %1991 = vset.pattern.permute.xlu0 0
      %1992 = vperm.xlu0 %1991, %v1922
      %v1993 = vpop.permute.xlu0 %1992
      %1996 = vset.pattern.permute.xlu0 0
      %1997 = vperm.xlu0 %1996, %v1923
      %v1998 = vpop.permute.xlu0 %1997
      %2001 = vset.pattern.permute.xlu0 0
      %2002 = vperm.xlu0 %2001, %v1924
      %v2003 = vpop.permute.xlu0 %2002
      %2006 = vset.pattern.permute.xlu0 0
      %2007 = vperm.xlu0 %2006, %v1925
      %v2008 = vpop.permute.xlu0 %2007
      %2011 = vset.pattern.permute.xlu0 0
      %2012 = vperm.xlu0 %2011, %v1926
      %v2013 = vpop.permute.xlu0 %2012
      %2016 = vset.pattern.permute.xlu0 0
      %2017 = vperm.xlu0 %2016, %v1927
      %v2018 = vpop.permute.xlu0 %2017
      %2021 = vset.pattern.permute.xlu0 0
      %2022 = vperm.xlu0 %2021, %v1928
      %v2023 = vpop.permute.xlu0 %2022
      %2026 = vset.pattern.permute.xlu0 0
      %2027 = vperm.xlu0 %2026, %v1929
      %v2028 = vpop.permute.xlu0 %2027
      %2031 = vset.pattern.permute.xlu0 0
      %2032 = vperm.xlu0 %2031, %v1930
      %v2033 = vpop.permute.xlu0 %2032
      %2036 = vset.pattern.permute.xlu0 0
      %2037 = vperm.xlu0 %2036, %v1931
      %v2038 = vpop.permute.xlu0 %2037
      %2041 = vset.pattern.permute.xlu0 0
      %2042 = vperm.xlu0 %2041, %v1932
      %v2043 = vpop.permute.xlu0 %2042
      %2046 = vset.pattern.permute.xlu0 0
      %2047 = vperm.xlu0 %2046, %v1933
      %v2048 = vpop.permute.xlu0 %2047
      %2051 = vset.pattern.permute.xlu0 0
      %2052 = vperm.xlu0 %2051, %v1934
      %v2053 = vpop.permute.xlu0 %2052
      %2056 = vset.pattern.permute.xlu0 0
      %2057 = vperm.xlu0 %2056, %v1935
      %v2058 = vpop.permute.xlu0 %2057
      %2061 = vset.pattern.permute.xlu0 0
      %2062 = vperm.xlu0 %2061, %v1936
      %v2063 = vpop.permute.xlu0 %2062
      %2066 = vset.pattern.permute.xlu0 0
      %2067 = vperm.xlu0 %2066, %v1937
      %v2068 = vpop.permute.xlu0 %2067
      %2071 = vset.pattern.permute.xlu0 0
      %2072 = vperm.xlu0 %2071, %v1938
      %v2073 = vpop.permute.xlu0 %2072
      %2076 = vset.pattern.permute.xlu0 0
      %2077 = vperm.xlu0 %2076, %v1939
      %v2078 = vpop.permute.xlu0 %2077
      %v2080 = vlaneseq
      %v2081 = vshrl.u32 %v2080, 7
      %v2082 = vsub.s32 7, %v2081
      %v2083 = vrot.slane %v312, %v2082
      %v2084 = vmul.f32 %v1943, %v2083
      %v2085 = vmul.f32 %v1948, %v2083
      %v2086 = vmul.f32 %v1953, %v2083
      %v2087 = vmul.f32 %v1958, %v2083
      %v2088 = vmul.f32 %v1963, %v2083
      %v2089 = vmul.f32 %v1968, %v2083
      %v2090 = vmul.f32 %v1973, %v2083
      %v2091 = vmul.f32 %v1978, %v2083
      %v2092 = vmul.f32 %v1983, %v2083
      %v2093 = vmul.f32 %v1988, %v2083
      %v2094 = vmul.f32 %v1993, %v2083
      %v2095 = vmul.f32 %v1998, %v2083
      %v2096 = vmul.f32 %v2003, %v2083
      %v2097 = vmul.f32 %v2008, %v2083
      %v2098 = vmul.f32 %v2013, %v2083
      %v2099 = vmul.f32 %v2018, %v2083
      %v2100 = vmul.f32 %v2023, %v2083
      %v2101 = vmul.f32 %v2028, %v2083
      %v2102 = vmul.f32 %v2033, %v2083
      %v2103 = vmul.f32 %v2038, %v2083
      %v2104 = vmul.f32 %v2043, %v2083
      %v2105 = vmul.f32 %v2048, %v2083
      %v2106 = vmul.f32 %v2053, %v2083
      %v2107 = vmul.f32 %v2058, %v2083
      %v2108 = vmul.f32 %v2063, %v2083
      %v2109 = vmul.f32 %v2068, %v2083
      %v2110 = vmul.f32 %v2073, %v2083
      %v2111 = vmul.f32 %v2078, %v2083
      %v2112 = vadd.f32 %v1883, %v2084
      %v2113 = vadd.f32 %v1884, %v2085
      %v2114 = vadd.f32 %v1885, %v2086
      %v2115 = vadd.f32 %v1886, %v2087
      %v2116 = vadd.f32 %v1887, %v2088
      %v2117 = vadd.f32 %v1888, %v2089
      %v2118 = vadd.f32 %v1889, %v2090
      %v2119 = vadd.f32 %v1890, %v2091
      %v2120 = vadd.f32 %v1891, %v2092
      %v2121 = vadd.f32 %v1892, %v2093
      %v2122 = vadd.f32 %v1893, %v2094
      %v2123 = vadd.f32 %v1894, %v2095
      %v2124 = vadd.f32 %v1895, %v2096
      %v2125 = vadd.f32 %v1896, %v2097
      %v2126 = vadd.f32 %v1897, %v2098
      %v2127 = vadd.f32 %v1898, %v2099
      %v2128 = vadd.f32 %v1899, %v2100
      %v2129 = vadd.f32 %v1900, %v2101
      %v2130 = vadd.f32 %v1901, %v2102
      %v2131 = vadd.f32 %v1902, %v2103
      %v2132 = vadd.f32 %v1903, %v2104
      %v2133 = vadd.f32 %v1904, %v2105
      %v2134 = vadd.f32 %v1905, %v2106
      %v2135 = vadd.f32 %v1906, %v2107
      %v2136 = vadd.f32 %v1907, %v2108
      %v2137 = vadd.f32 %v1908, %v2109
      %v2138 = vadd.f32 %v1909, %v2110
      %v2139 = vadd.f32 %v1910, %v2111
      %v2140 = vld [vmem:[%s1682 + $0x1] sm:$0xff]
      %v2141 = vld [vmem:[%s1682 + $0x9] sm:$0x3f]
      %v2142 = vld [vmem:[%s1682 + $0x11] sm:$0xff]
      %v2143 = vld [vmem:[%s1682 + $0x19] sm:$0x3f]
      %v2144 = vld [vmem:[%s1682 + $0x21] sm:$0xff]
      %v2145 = vld [vmem:[%s1682 + $0x29] sm:$0x3f]
      %v2146 = vld [vmem:[%s1682 + $0x31] sm:$0xff]
      %v2147 = vld [vmem:[%s1682 + $0x39] sm:$0x3f]
      %v2148 = vld [vmem:[%s1682 + $0x41] sm:$0xff]
      %v2149 = vld [vmem:[%s1682 + $0x49] sm:$0x3f]
      %v2150 = vld [vmem:[%s1682 + $0x51] sm:$0xff]
      %v2151 = vld [vmem:[%s1682 + $0x59] sm:$0x3f]
      %v2152 = vld [vmem:[%s1682 + $0x61] sm:$0xff]
      %v2153 = vld [vmem:[%s1682 + $0x69] sm:$0x3f]
      %v2154 = vld [vmem:[%s1682 + $0x71] sm:$0xff]
      %v2155 = vld [vmem:[%s1682 + $0x79] sm:$0x3f]
      %v2156 = vld [vmem:[%s1682 + $0x81] sm:$0xff]
      %v2157 = vld [vmem:[%s1682 + $0x89] sm:$0x3f]
      %v2158 = vld [vmem:[%s1682 + $0x91] sm:$0xff]
      %v2159 = vld [vmem:[%s1682 + $0x99] sm:$0x3f]
      %v2160 = vld [vmem:[%s1682 + $0xa1] sm:$0xff]
      %v2161 = vld [vmem:[%s1682 + $0xa9] sm:$0x3f]
      %v2162 = vld [vmem:[%s1682 + $0xb1] sm:$0xff]
      %v2163 = vld [vmem:[%s1682 + $0xb9] sm:$0x3f]
      %v2164 = vld [vmem:[%s1682 + $0xc1] sm:$0xff]
      %v2165 = vld [vmem:[%s1682 + $0xc9] sm:$0x3f]
      %v2166 = vld [vmem:[%s1682 + $0xd1] sm:$0xff]
      %v2167 = vld [vmem:[%s1682 + $0xd9] sm:$0x3f]
      %2169 = vset.pattern.permute.xlu0 0
      %2170 = vperm.xlu0 %2169, %v2140
      %v2171 = vpop.permute.xlu0 %2170
      %2174 = vset.pattern.permute.xlu0 0
      %2175 = vperm.xlu0 %2174, %v2141
      %v2176 = vpop.permute.xlu0 %2175
      %2179 = vset.pattern.permute.xlu0 0
      %2180 = vperm.xlu0 %2179, %v2142
      %v2181 = vpop.permute.xlu0 %2180
      %2184 = vset.pattern.permute.xlu0 0
      %2185 = vperm.xlu0 %2184, %v2143
      %v2186 = vpop.permute.xlu0 %2185
      %2189 = vset.pattern.permute.xlu0 0
      %2190 = vperm.xlu0 %2189, %v2144
      %v2191 = vpop.permute.xlu0 %2190
      %2194 = vset.pattern.permute.xlu0 0
      %2195 = vperm.xlu0 %2194, %v2145
      %v2196 = vpop.permute.xlu0 %2195
      %2199 = vset.pattern.permute.xlu0 0
      %2200 = vperm.xlu0 %2199, %v2146
      %v2201 = vpop.permute.xlu0 %2200
      %2204 = vset.pattern.permute.xlu0 0
      %2205 = vperm.xlu0 %2204, %v2147
      %v2206 = vpop.permute.xlu0 %2205
      %2209 = vset.pattern.permute.xlu0 0
      %2210 = vperm.xlu0 %2209, %v2148
      %v2211 = vpop.permute.xlu0 %2210
      %2214 = vset.pattern.permute.xlu0 0
      %2215 = vperm.xlu0 %2214, %v2149
      %v2216 = vpop.permute.xlu0 %2215
      %2219 = vset.pattern.permute.xlu0 0
      %2220 = vperm.xlu0 %2219, %v2150
      %v2221 = vpop.permute.xlu0 %2220
      %2224 = vset.pattern.permute.xlu0 0
      %2225 = vperm.xlu0 %2224, %v2151
      %v2226 = vpop.permute.xlu0 %2225
      %2229 = vset.pattern.permute.xlu0 0
      %2230 = vperm.xlu0 %2229, %v2152
      %v2231 = vpop.permute.xlu0 %2230
      %2234 = vset.pattern.permute.xlu0 0
      %2235 = vperm.xlu0 %2234, %v2153
      %v2236 = vpop.permute.xlu0 %2235
      %2239 = vset.pattern.permute.xlu0 0
      %2240 = vperm.xlu0 %2239, %v2154
      %v2241 = vpop.permute.xlu0 %2240
      %2244 = vset.pattern.permute.xlu0 0
      %2245 = vperm.xlu0 %2244, %v2155
      %v2246 = vpop.permute.xlu0 %2245
      %2249 = vset.pattern.permute.xlu0 0
      %2250 = vperm.xlu0 %2249, %v2156
      %v2251 = vpop.permute.xlu0 %2250
      %2254 = vset.pattern.permute.xlu0 0
      %2255 = vperm.xlu0 %2254, %v2157
      %v2256 = vpop.permute.xlu0 %2255
      %2259 = vset.pattern.permute.xlu0 0
      %2260 = vperm.xlu0 %2259, %v2158
      %v2261 = vpop.permute.xlu0 %2260
      %2264 = vset.pattern.permute.xlu0 0
      %2265 = vperm.xlu0 %2264, %v2159
      %v2266 = vpop.permute.xlu0 %2265
      %2269 = vset.pattern.permute.xlu0 0
      %2270 = vperm.xlu0 %2269, %v2160
      %v2271 = vpop.permute.xlu0 %2270
      %2274 = vset.pattern.permute.xlu0 0
      %2275 = vperm.xlu0 %2274, %v2161
      %v2276 = vpop.permute.xlu0 %2275
      %2279 = vset.pattern.permute.xlu0 0
      %2280 = vperm.xlu0 %2279, %v2162
      %v2281 = vpop.permute.xlu0 %2280
      %2284 = vset.pattern.permute.xlu0 0
      %2285 = vperm.xlu0 %2284, %v2163
      %v2286 = vpop.permute.xlu0 %2285
      %2289 = vset.pattern.permute.xlu0 0
      %2290 = vperm.xlu0 %2289, %v2164
      %v2291 = vpop.permute.xlu0 %2290
      %2294 = vset.pattern.permute.xlu0 0
      %2295 = vperm.xlu0 %2294, %v2165
      %v2296 = vpop.permute.xlu0 %2295
      %2299 = vset.pattern.permute.xlu0 0
      %2300 = vperm.xlu0 %2299, %v2166
      %v2301 = vpop.permute.xlu0 %2300
      %2304 = vset.pattern.permute.xlu0 0
      %2305 = vperm.xlu0 %2304, %v2167
      %v2306 = vpop.permute.xlu0 %2305
      %v2308 = vlaneseq
      %v2309 = vshrl.u32 %v2308, 7
      %v2310 = vsub.s32 0, %v2309
      %v2311 = vrot.slane %v313, %v2310
      %v2312 = vmul.f32 %v2171, %v2311
      %v2313 = vmul.f32 %v2176, %v2311
      %v2314 = vmul.f32 %v2181, %v2311
      %v2315 = vmul.f32 %v2186, %v2311
      %v2316 = vmul.f32 %v2191, %v2311
      %v2317 = vmul.f32 %v2196, %v2311
      %v2318 = vmul.f32 %v2201, %v2311
      %v2319 = vmul.f32 %v2206, %v2311
      %v2320 = vmul.f32 %v2211, %v2311
      %v2321 = vmul.f32 %v2216, %v2311
      %v2322 = vmul.f32 %v2221, %v2311
      %v2323 = vmul.f32 %v2226, %v2311
      %v2324 = vmul.f32 %v2231, %v2311
      %v2325 = vmul.f32 %v2236, %v2311
      %v2326 = vmul.f32 %v2241, %v2311
      %v2327 = vmul.f32 %v2246, %v2311
      %v2328 = vmul.f32 %v2251, %v2311
      %v2329 = vmul.f32 %v2256, %v2311
      %v2330 = vmul.f32 %v2261, %v2311
      %v2331 = vmul.f32 %v2266, %v2311
      %v2332 = vmul.f32 %v2271, %v2311
      %v2333 = vmul.f32 %v2276, %v2311
      %v2334 = vmul.f32 %v2281, %v2311
      %v2335 = vmul.f32 %v2286, %v2311
      %v2336 = vmul.f32 %v2291, %v2311
      %v2337 = vmul.f32 %v2296, %v2311
      %v2338 = vmul.f32 %v2301, %v2311
      %v2339 = vmul.f32 %v2306, %v2311
      %v2340 = vadd.f32 %v2112, %v2312
      %v2341 = vadd.f32 %v2113, %v2313
      %v2342 = vadd.f32 %v2114, %v2314
      %v2343 = vadd.f32 %v2115, %v2315
      %v2344 = vadd.f32 %v2116, %v2316
      %v2345 = vadd.f32 %v2117, %v2317
      %v2346 = vadd.f32 %v2118, %v2318
      %v2347 = vadd.f32 %v2119, %v2319
      %v2348 = vadd.f32 %v2120, %v2320
      %v2349 = vadd.f32 %v2121, %v2321
      %v2350 = vadd.f32 %v2122, %v2322
      %v2351 = vadd.f32 %v2123, %v2323
      %v2352 = vadd.f32 %v2124, %v2324
      %v2353 = vadd.f32 %v2125, %v2325
      %v2354 = vadd.f32 %v2126, %v2326
      %v2355 = vadd.f32 %v2127, %v2327
      %v2356 = vadd.f32 %v2128, %v2328
      %v2357 = vadd.f32 %v2129, %v2329
      %v2358 = vadd.f32 %v2130, %v2330
      %v2359 = vadd.f32 %v2131, %v2331
      %v2360 = vadd.f32 %v2132, %v2332
      %v2361 = vadd.f32 %v2133, %v2333
      %v2362 = vadd.f32 %v2134, %v2334
      %v2363 = vadd.f32 %v2135, %v2335
      %v2364 = vadd.f32 %v2136, %v2336
      %v2365 = vadd.f32 %v2137, %v2337
      %v2366 = vadd.f32 %v2138, %v2338
      %v2367 = vadd.f32 %v2139, %v2339
      %v2368 = vmul.f32 %v573, %v485
      %v2369 = vmul.f32 %v578, %v485
      %v2370 = vmul.f32 %v583, %v485
      %v2371 = vmul.f32 %v588, %v485
      %v2372 = vmul.f32 %v593, %v485
      %v2373 = vmul.f32 %v598, %v485
      %v2374 = vmul.f32 %v603, %v485
      %v2375 = vmul.f32 %v608, %v485
      %v2376 = vmul.f32 %v613, %v485
      %v2377 = vmul.f32 %v618, %v485
      %v2378 = vmul.f32 %v623, %v485
      %v2379 = vmul.f32 %v628, %v485
      %v2380 = vmul.f32 %v633, %v485
      %v2381 = vmul.f32 %v638, %v485
      %v2382 = vmul.f32 %v643, %v485
      %v2383 = vmul.f32 %v648, %v485
      %v2384 = vmul.f32 %v653, %v485
      %v2385 = vmul.f32 %v658, %v485
      %v2386 = vmul.f32 %v663, %v485
      %v2387 = vmul.f32 %v668, %v485
      %v2388 = vmul.f32 %v673, %v485
      %v2389 = vmul.f32 %v678, %v485
      %v2390 = vmul.f32 %v683, %v485
      %v2391 = vmul.f32 %v688, %v485
      %v2392 = vmul.f32 %v693, %v485
      %v2393 = vmul.f32 %v698, %v485
      %v2394 = vmul.f32 %v703, %v485
      %v2395 = vmul.f32 %v708, %v485
      %v2396 = vadd.f32 %v2368, 0.0
      %v2397 = vadd.f32 %v2369, 0.0
      %v2398 = vadd.f32 %v2370, 0.0
      %v2399 = vadd.f32 %v2371, 0.0
      %v2400 = vadd.f32 %v2372, 0.0
      %v2401 = vadd.f32 %v2373, 0.0
      %v2402 = vadd.f32 %v2374, 0.0
      %v2403 = vadd.f32 %v2375, 0.0
      %v2404 = vadd.f32 %v2376, 0.0
      %v2405 = vadd.f32 %v2377, 0.0
      %v2406 = vadd.f32 %v2378, 0.0
      %v2407 = vadd.f32 %v2379, 0.0
      %v2408 = vadd.f32 %v2380, 0.0
      %v2409 = vadd.f32 %v2381, 0.0
      %v2410 = vadd.f32 %v2382, 0.0
      %v2411 = vadd.f32 %v2383, 0.0
      %v2412 = vadd.f32 %v2384, 0.0
      %v2413 = vadd.f32 %v2385, 0.0
      %v2414 = vadd.f32 %v2386, 0.0
      %v2415 = vadd.f32 %v2387, 0.0
      %v2416 = vadd.f32 %v2388, 0.0
      %v2417 = vadd.f32 %v2389, 0.0
      %v2418 = vadd.f32 %v2390, 0.0
      %v2419 = vadd.f32 %v2391, 0.0
      %v2420 = vadd.f32 %v2392, 0.0
      %v2421 = vadd.f32 %v2393, 0.0
      %v2422 = vadd.f32 %v2394, 0.0
      %v2423 = vadd.f32 %v2395, 0.0
      %v2424 = vmul.f32 %v801, %v713
      %v2425 = vmul.f32 %v806, %v713
      %v2426 = vmul.f32 %v811, %v713
      %v2427 = vmul.f32 %v816, %v713
      %v2428 = vmul.f32 %v821, %v713
      %v2429 = vmul.f32 %v826, %v713
      %v2430 = vmul.f32 %v831, %v713
      %v2431 = vmul.f32 %v836, %v713
      %v2432 = vmul.f32 %v841, %v713
      %v2433 = vmul.f32 %v846, %v713
      %v2434 = vmul.f32 %v851, %v713
      %v2435 = vmul.f32 %v856, %v713
      %v2436 = vmul.f32 %v861, %v713
      %v2437 = vmul.f32 %v866, %v713
      %v2438 = vmul.f32 %v871, %v713
      %v2439 = vmul.f32 %v876, %v713
      %v2440 = vmul.f32 %v881, %v713
      %v2441 = vmul.f32 %v886, %v713
      %v2442 = vmul.f32 %v891, %v713
      %v2443 = vmul.f32 %v896, %v713
      %v2444 = vmul.f32 %v901, %v713
      %v2445 = vmul.f32 %v906, %v713
      %v2446 = vmul.f32 %v911, %v713
      %v2447 = vmul.f32 %v916, %v713
      %v2448 = vmul.f32 %v921, %v713
      %v2449 = vmul.f32 %v926, %v713
      %v2450 = vmul.f32 %v931, %v713
      %v2451 = vmul.f32 %v936, %v713
      %v2452 = vadd.f32 %v2396, %v2424
      %v2453 = vadd.f32 %v2397, %v2425
      %v2454 = vadd.f32 %v2398, %v2426
      %v2455 = vadd.f32 %v2399, %v2427
      %v2456 = vadd.f32 %v2400, %v2428
      %v2457 = vadd.f32 %v2401, %v2429
      %v2458 = vadd.f32 %v2402, %v2430
      %v2459 = vadd.f32 %v2403, %v2431
      %v2460 = vadd.f32 %v2404, %v2432
      %v2461 = vadd.f32 %v2405, %v2433
      %v2462 = vadd.f32 %v2406, %v2434
      %v2463 = vadd.f32 %v2407, %v2435
      %v2464 = vadd.f32 %v2408, %v2436
      %v2465 = vadd.f32 %v2409, %v2437
      %v2466 = vadd.f32 %v2410, %v2438
      %v2467 = vadd.f32 %v2411, %v2439
      %v2468 = vadd.f32 %v2412, %v2440
      %v2469 = vadd.f32 %v2413, %v2441
      %v2470 = vadd.f32 %v2414, %v2442
      %v2471 = vadd.f32 %v2415, %v2443
      %v2472 = vadd.f32 %v2416, %v2444
      %v2473 = vadd.f32 %v2417, %v2445
      %v2474 = vadd.f32 %v2418, %v2446
      %v2475 = vadd.f32 %v2419, %v2447
      %v2476 = vadd.f32 %v2420, %v2448
      %v2477 = vadd.f32 %v2421, %v2449
      %v2478 = vadd.f32 %v2422, %v2450
      %v2479 = vadd.f32 %v2423, %v2451
      %v2480 = vld [vmem:[%s296 + $0x1] sm:$0xff]
      %v2481 = vld [vmem:[%s296 + $0x9] sm:$0x3f]
      %v2482 = vld [vmem:[%s296 + $0x11] sm:$0xff]
      %v2483 = vld [vmem:[%s296 + $0x19] sm:$0x3f]
      %v2484 = vld [vmem:[%s296 + $0x21] sm:$0xff]
      %v2485 = vld [vmem:[%s296 + $0x29] sm:$0x3f]
      %v2486 = vld [vmem:[%s296 + $0x31] sm:$0xff]
      %v2487 = vld [vmem:[%s296 + $0x39] sm:$0x3f]
      %v2488 = vld [vmem:[%s296 + $0x41] sm:$0xff]
      %v2489 = vld [vmem:[%s296 + $0x49] sm:$0x3f]
      %v2490 = vld [vmem:[%s296 + $0x51] sm:$0xff]
      %v2491 = vld [vmem:[%s296 + $0x59] sm:$0x3f]
      %v2492 = vld [vmem:[%s296 + $0x61] sm:$0xff]
      %v2493 = vld [vmem:[%s296 + $0x69] sm:$0x3f]
      %v2494 = vld [vmem:[%s296 + $0x71] sm:$0xff]
      %v2495 = vld [vmem:[%s296 + $0x79] sm:$0x3f]
      %v2496 = vld [vmem:[%s296 + $0x81] sm:$0xff]
      %v2497 = vld [vmem:[%s296 + $0x89] sm:$0x3f]
      %v2498 = vld [vmem:[%s296 + $0x91] sm:$0xff]
      %v2499 = vld [vmem:[%s296 + $0x99] sm:$0x3f]
      %v2500 = vld [vmem:[%s296 + $0xa1] sm:$0xff]
      %v2501 = vld [vmem:[%s296 + $0xa9] sm:$0x3f]
      %v2502 = vld [vmem:[%s296 + $0xb1] sm:$0xff]
      %v2503 = vld [vmem:[%s296 + $0xb9] sm:$0x3f]
      %v2504 = vld [vmem:[%s296 + $0xc1] sm:$0xff]
      %v2505 = vld [vmem:[%s296 + $0xc9] sm:$0x3f]
      %v2506 = vld [vmem:[%s296 + $0xd1] sm:$0xff]
      %v2507 = vld [vmem:[%s296 + $0xd9] sm:$0x3f]
      %2509 = vset.pattern.permute.xlu0 0
      %2510 = vperm.xlu0 %2509, %v2480
      %v2511 = vpop.permute.xlu0 %2510
      %2514 = vset.pattern.permute.xlu0 0
      %2515 = vperm.xlu0 %2514, %v2481
      %v2516 = vpop.permute.xlu0 %2515
      %2519 = vset.pattern.permute.xlu0 0
      %2520 = vperm.xlu0 %2519, %v2482
      %v2521 = vpop.permute.xlu0 %2520
      %2524 = vset.pattern.permute.xlu0 0
      %2525 = vperm.xlu0 %2524, %v2483
      %v2526 = vpop.permute.xlu0 %2525
      %2529 = vset.pattern.permute.xlu0 0
      %2530 = vperm.xlu0 %2529, %v2484
      %v2531 = vpop.permute.xlu0 %2530
      %2534 = vset.pattern.permute.xlu0 0
      %2535 = vperm.xlu0 %2534, %v2485
      %v2536 = vpop.permute.xlu0 %2535
      %2539 = vset.pattern.permute.xlu0 0
      %2540 = vperm.xlu0 %2539, %v2486
      %v2541 = vpop.permute.xlu0 %2540
      %2544 = vset.pattern.permute.xlu0 0
      %2545 = vperm.xlu0 %2544, %v2487
      %v2546 = vpop.permute.xlu0 %2545
      %2549 = vset.pattern.permute.xlu0 0
      %2550 = vperm.xlu0 %2549, %v2488
      %v2551 = vpop.permute.xlu0 %2550
      %2554 = vset.pattern.permute.xlu0 0
      %2555 = vperm.xlu0 %2554, %v2489
      %v2556 = vpop.permute.xlu0 %2555
      %2559 = vset.pattern.permute.xlu0 0
      %2560 = vperm.xlu0 %2559, %v2490
      %v2561 = vpop.permute.xlu0 %2560
      %2564 = vset.pattern.permute.xlu0 0
      %2565 = vperm.xlu0 %2564, %v2491
      %v2566 = vpop.permute.xlu0 %2565
      %2569 = vset.pattern.permute.xlu0 0
      %2570 = vperm.xlu0 %2569, %v2492
      %v2571 = vpop.permute.xlu0 %2570
      %2574 = vset.pattern.permute.xlu0 0
      %2575 = vperm.xlu0 %2574, %v2493
      %v2576 = vpop.permute.xlu0 %2575
      %2579 = vset.pattern.permute.xlu0 0
      %2580 = vperm.xlu0 %2579, %v2494
      %v2581 = vpop.permute.xlu0 %2580
      %2584 = vset.pattern.permute.xlu0 0
      %2585 = vperm.xlu0 %2584, %v2495
      %v2586 = vpop.permute.xlu0 %2585
      %2589 = vset.pattern.permute.xlu0 0
      %2590 = vperm.xlu0 %2589, %v2496
      %v2591 = vpop.permute.xlu0 %2590
      %2594 = vset.pattern.permute.xlu0 0
      %2595 = vperm.xlu0 %2594, %v2497
      %v2596 = vpop.permute.xlu0 %2595
      %2599 = vset.pattern.permute.xlu0 0
      %2600 = vperm.xlu0 %2599, %v2498
      %v2601 = vpop.permute.xlu0 %2600
      %2604 = vset.pattern.permute.xlu0 0
      %2605 = vperm.xlu0 %2604, %v2499
      %v2606 = vpop.permute.xlu0 %2605
      %2609 = vset.pattern.permute.xlu0 0
      %2610 = vperm.xlu0 %2609, %v2500
      %v2611 = vpop.permute.xlu0 %2610
      %2614 = vset.pattern.permute.xlu0 0
      %2615 = vperm.xlu0 %2614, %v2501
      %v2616 = vpop.permute.xlu0 %2615
      %2619 = vset.pattern.permute.xlu0 0
      %2620 = vperm.xlu0 %2619, %v2502
      %v2621 = vpop.permute.xlu0 %2620
      %2624 = vset.pattern.permute.xlu0 0
      %2625 = vperm.xlu0 %2624, %v2503
      %v2626 = vpop.permute.xlu0 %2625
      %2629 = vset.pattern.permute.xlu0 0
      %2630 = vperm.xlu0 %2629, %v2504
      %v2631 = vpop.permute.xlu0 %2630
      %2634 = vset.pattern.permute.xlu0 0
      %2635 = vperm.xlu0 %2634, %v2505
      %v2636 = vpop.permute.xlu0 %2635
      %2639 = vset.pattern.permute.xlu0 0
      %2640 = vperm.xlu0 %2639, %v2506
      %v2641 = vpop.permute.xlu0 %2640
      %2644 = vset.pattern.permute.xlu0 0
      %2645 = vperm.xlu0 %2644, %v2507
      %v2646 = vpop.permute.xlu0 %2645
      %v2648 = vmul.f32 %v2511, %v941
      %v2649 = vmul.f32 %v2516, %v941
      %v2650 = vmul.f32 %v2521, %v941
      %v2651 = vmul.f32 %v2526, %v941
      %v2652 = vmul.f32 %v2531, %v941
      %v2653 = vmul.f32 %v2536, %v941
      %v2654 = vmul.f32 %v2541, %v941
      %v2655 = vmul.f32 %v2546, %v941
      %v2656 = vmul.f32 %v2551, %v941
      %v2657 = vmul.f32 %v2556, %v941
      %v2658 = vmul.f32 %v2561, %v941
      %v2659 = vmul.f32 %v2566, %v941
      %v2660 = vmul.f32 %v2571, %v941
      %v2661 = vmul.f32 %v2576, %v941
      %v2662 = vmul.f32 %v2581, %v941
      %v2663 = vmul.f32 %v2586, %v941
      %v2664 = vmul.f32 %v2591, %v941
      %v2665 = vmul.f32 %v2596, %v941
      %v2666 = vmul.f32 %v2601, %v941
      %v2667 = vmul.f32 %v2606, %v941
      %v2668 = vmul.f32 %v2611, %v941
      %v2669 = vmul.f32 %v2616, %v941
      %v2670 = vmul.f32 %v2621, %v941
      %v2671 = vmul.f32 %v2626, %v941
      %v2672 = vmul.f32 %v2631, %v941
      %v2673 = vmul.f32 %v2636, %v941
      %v2674 = vmul.f32 %v2641, %v941
      %v2675 = vmul.f32 %v2646, %v941
      %v2676 = vadd.f32 %v2452, %v2648
      %v2677 = vadd.f32 %v2453, %v2649
      %v2678 = vadd.f32 %v2454, %v2650
      %v2679 = vadd.f32 %v2455, %v2651
      %v2680 = vadd.f32 %v2456, %v2652
      %v2681 = vadd.f32 %v2457, %v2653
      %v2682 = vadd.f32 %v2458, %v2654
      %v2683 = vadd.f32 %v2459, %v2655
      %v2684 = vadd.f32 %v2460, %v2656
      %v2685 = vadd.f32 %v2461, %v2657
      %v2686 = vadd.f32 %v2462, %v2658
      %v2687 = vadd.f32 %v2463, %v2659
      %v2688 = vadd.f32 %v2464, %v2660
      %v2689 = vadd.f32 %v2465, %v2661
      %v2690 = vadd.f32 %v2466, %v2662
      %v2691 = vadd.f32 %v2467, %v2663
      %v2692 = vadd.f32 %v2468, %v2664
      %v2693 = vadd.f32 %v2469, %v2665
      %v2694 = vadd.f32 %v2470, %v2666
      %v2695 = vadd.f32 %v2471, %v2667
      %v2696 = vadd.f32 %v2472, %v2668
      %v2697 = vadd.f32 %v2473, %v2669
      %v2698 = vadd.f32 %v2474, %v2670
      %v2699 = vadd.f32 %v2475, %v2671
      %v2700 = vadd.f32 %v2476, %v2672
      %v2701 = vadd.f32 %v2477, %v2673
      %v2702 = vadd.f32 %v2478, %v2674
      %v2703 = vadd.f32 %v2479, %v2675
      %v2704 = vmul.f32 %v1257, %v1169
      %v2705 = vmul.f32 %v1262, %v1169
      %v2706 = vmul.f32 %v1267, %v1169
      %v2707 = vmul.f32 %v1272, %v1169
      %v2708 = vmul.f32 %v1277, %v1169
      %v2709 = vmul.f32 %v1282, %v1169
      %v2710 = vmul.f32 %v1287, %v1169
      %v2711 = vmul.f32 %v1292, %v1169
      %v2712 = vmul.f32 %v1297, %v1169
      %v2713 = vmul.f32 %v1302, %v1169
      %v2714 = vmul.f32 %v1307, %v1169
      %v2715 = vmul.f32 %v1312, %v1169
      %v2716 = vmul.f32 %v1317, %v1169
      %v2717 = vmul.f32 %v1322, %v1169
      %v2718 = vmul.f32 %v1327, %v1169
      %v2719 = vmul.f32 %v1332, %v1169
      %v2720 = vmul.f32 %v1337, %v1169
      %v2721 = vmul.f32 %v1342, %v1169
      %v2722 = vmul.f32 %v1347, %v1169
      %v2723 = vmul.f32 %v1352, %v1169
      %v2724 = vmul.f32 %v1357, %v1169
      %v2725 = vmul.f32 %v1362, %v1169
      %v2726 = vmul.f32 %v1367, %v1169
      %v2727 = vmul.f32 %v1372, %v1169
      %v2728 = vmul.f32 %v1377, %v1169
      %v2729 = vmul.f32 %v1382, %v1169
      %v2730 = vmul.f32 %v1387, %v1169
      %v2731 = vmul.f32 %v1392, %v1169
      %v2732 = vadd.f32 %v2676, %v2704
      %v2733 = vadd.f32 %v2677, %v2705
      %v2734 = vadd.f32 %v2678, %v2706
      %v2735 = vadd.f32 %v2679, %v2707
      %v2736 = vadd.f32 %v2680, %v2708
      %v2737 = vadd.f32 %v2681, %v2709
      %v2738 = vadd.f32 %v2682, %v2710
      %v2739 = vadd.f32 %v2683, %v2711
      %v2740 = vadd.f32 %v2684, %v2712
      %v2741 = vadd.f32 %v2685, %v2713
      %v2742 = vadd.f32 %v2686, %v2714
      %v2743 = vadd.f32 %v2687, %v2715
      %v2744 = vadd.f32 %v2688, %v2716
      %v2745 = vadd.f32 %v2689, %v2717
      %v2746 = vadd.f32 %v2690, %v2718
      %v2747 = vadd.f32 %v2691, %v2719
      %v2748 = vadd.f32 %v2692, %v2720
      %v2749 = vadd.f32 %v2693, %v2721
      %v2750 = vadd.f32 %v2694, %v2722
      %v2751 = vadd.f32 %v2695, %v2723
      %v2752 = vadd.f32 %v2696, %v2724
      %v2753 = vadd.f32 %v2697, %v2725
      %v2754 = vadd.f32 %v2698, %v2726
      %v2755 = vadd.f32 %v2699, %v2727
      %v2756 = vadd.f32 %v2700, %v2728
      %v2757 = vadd.f32 %v2701, %v2729
      %v2758 = vadd.f32 %v2702, %v2730
      %v2759 = vadd.f32 %v2703, %v2731
      %v2760 = vmul.f32 %v1485, %v1397
      %v2761 = vmul.f32 %v1490, %v1397
      %v2762 = vmul.f32 %v1495, %v1397
      %v2763 = vmul.f32 %v1500, %v1397
      %v2764 = vmul.f32 %v1505, %v1397
      %v2765 = vmul.f32 %v1510, %v1397
      %v2766 = vmul.f32 %v1515, %v1397
      %v2767 = vmul.f32 %v1520, %v1397
      %v2768 = vmul.f32 %v1525, %v1397
      %v2769 = vmul.f32 %v1530, %v1397
      %v2770 = vmul.f32 %v1535, %v1397
      %v2771 = vmul.f32 %v1540, %v1397
      %v2772 = vmul.f32 %v1545, %v1397
      %v2773 = vmul.f32 %v1550, %v1397
      %v2774 = vmul.f32 %v1555, %v1397
      %v2775 = vmul.f32 %v1560, %v1397
      %v2776 = vmul.f32 %v1565, %v1397
      %v2777 = vmul.f32 %v1570, %v1397
      %v2778 = vmul.f32 %v1575, %v1397
      %v2779 = vmul.f32 %v1580, %v1397
      %v2780 = vmul.f32 %v1585, %v1397
      %v2781 = vmul.f32 %v1590, %v1397
      %v2782 = vmul.f32 %v1595, %v1397
      %v2783 = vmul.f32 %v1600, %v1397
      %v2784 = vmul.f32 %v1605, %v1397
      %v2785 = vmul.f32 %v1610, %v1397
      %v2786 = vmul.f32 %v1615, %v1397
      %v2787 = vmul.f32 %v1620, %v1397
      %v2788 = vadd.f32 %v2732, %v2760
      %v2789 = vadd.f32 %v2733, %v2761
      %v2790 = vadd.f32 %v2734, %v2762
      %v2791 = vadd.f32 %v2735, %v2763
      %v2792 = vadd.f32 %v2736, %v2764
      %v2793 = vadd.f32 %v2737, %v2765
      %v2794 = vadd.f32 %v2738, %v2766
      %v2795 = vadd.f32 %v2739, %v2767
      %v2796 = vadd.f32 %v2740, %v2768
      %v2797 = vadd.f32 %v2741, %v2769
      %v2798 = vadd.f32 %v2742, %v2770
      %v2799 = vadd.f32 %v2743, %v2771
      %v2800 = vadd.f32 %v2744, %v2772
      %v2801 = vadd.f32 %v2745, %v2773
      %v2802 = vadd.f32 %v2746, %v2774
      %v2803 = vadd.f32 %v2747, %v2775
      %v2804 = vadd.f32 %v2748, %v2776
      %v2805 = vadd.f32 %v2749, %v2777
      %v2806 = vadd.f32 %v2750, %v2778
      %v2807 = vadd.f32 %v2751, %v2779
      %v2808 = vadd.f32 %v2752, %v2780
      %v2809 = vadd.f32 %v2753, %v2781
      %v2810 = vadd.f32 %v2754, %v2782
      %v2811 = vadd.f32 %v2755, %v2783
      %v2812 = vadd.f32 %v2756, %v2784
      %v2813 = vadd.f32 %v2757, %v2785
      %v2814 = vadd.f32 %v2758, %v2786
      %v2815 = vadd.f32 %v2759, %v2787
      %v2816 = vld [vmem:[%s306 + $0x1] sm:$0xff]
      %v2817 = vld [vmem:[%s306 + $0x9] sm:$0x3f]
      %v2818 = vld [vmem:[%s306 + $0x11] sm:$0xff]
      %v2819 = vld [vmem:[%s306 + $0x19] sm:$0x3f]
      %v2820 = vld [vmem:[%s306 + $0x21] sm:$0xff]
      %v2821 = vld [vmem:[%s306 + $0x29] sm:$0x3f]
      %v2822 = vld [vmem:[%s306 + $0x31] sm:$0xff]
      %v2823 = vld [vmem:[%s306 + $0x39] sm:$0x3f]
      %v2824 = vld [vmem:[%s306 + $0x41] sm:$0xff]
      %v2825 = vld [vmem:[%s306 + $0x49] sm:$0x3f]
      %v2826 = vld [vmem:[%s306 + $0x51] sm:$0xff]
      %v2827 = vld [vmem:[%s306 + $0x59] sm:$0x3f]
      %v2828 = vld [vmem:[%s306 + $0x61] sm:$0xff]
      %v2829 = vld [vmem:[%s306 + $0x69] sm:$0x3f]
      %v2830 = vld [vmem:[%s306 + $0x71] sm:$0xff]
      %v2831 = vld [vmem:[%s306 + $0x79] sm:$0x3f]
      %v2832 = vld [vmem:[%s306 + $0x81] sm:$0xff]
      %v2833 = vld [vmem:[%s306 + $0x89] sm:$0x3f]
      %v2834 = vld [vmem:[%s306 + $0x91] sm:$0xff]
      %v2835 = vld [vmem:[%s306 + $0x99] sm:$0x3f]
      %v2836 = vld [vmem:[%s306 + $0xa1] sm:$0xff]
      %v2837 = vld [vmem:[%s306 + $0xa9] sm:$0x3f]
      %v2838 = vld [vmem:[%s306 + $0xb1] sm:$0xff]
      %v2839 = vld [vmem:[%s306 + $0xb9] sm:$0x3f]
      %v2840 = vld [vmem:[%s306 + $0xc1] sm:$0xff]
      %v2841 = vld [vmem:[%s306 + $0xc9] sm:$0x3f]
      %v2842 = vld [vmem:[%s306 + $0xd1] sm:$0xff]
      %v2843 = vld [vmem:[%s306 + $0xd9] sm:$0x3f]
      %2845 = vset.pattern.permute.xlu0 0
      %2846 = vperm.xlu0 %2845, %v2816
      %v2847 = vpop.permute.xlu0 %2846
      %2850 = vset.pattern.permute.xlu0 0
      %2851 = vperm.xlu0 %2850, %v2817
      %v2852 = vpop.permute.xlu0 %2851
      %2855 = vset.pattern.permute.xlu0 0
      %2856 = vperm.xlu0 %2855, %v2818
      %v2857 = vpop.permute.xlu0 %2856
      %2860 = vset.pattern.permute.xlu0 0
      %2861 = vperm.xlu0 %2860, %v2819
      %v2862 = vpop.permute.xlu0 %2861
      %2865 = vset.pattern.permute.xlu0 0
      %2866 = vperm.xlu0 %2865, %v2820
      %v2867 = vpop.permute.xlu0 %2866
      %2870 = vset.pattern.permute.xlu0 0
      %2871 = vperm.xlu0 %2870, %v2821
      %v2872 = vpop.permute.xlu0 %2871
      %2875 = vset.pattern.permute.xlu0 0
      %2876 = vperm.xlu0 %2875, %v2822
      %v2877 = vpop.permute.xlu0 %2876
      %2880 = vset.pattern.permute.xlu0 0
      %2881 = vperm.xlu0 %2880, %v2823
      %v2882 = vpop.permute.xlu0 %2881
      %2885 = vset.pattern.permute.xlu0 0
      %2886 = vperm.xlu0 %2885, %v2824
      %v2887 = vpop.permute.xlu0 %2886
      %2890 = vset.pattern.permute.xlu0 0
      %2891 = vperm.xlu0 %2890, %v2825
      %v2892 = vpop.permute.xlu0 %2891
      %2895 = vset.pattern.permute.xlu0 0
      %2896 = vperm.xlu0 %2895, %v2826
      %v2897 = vpop.permute.xlu0 %2896
      %2900 = vset.pattern.permute.xlu0 0
      %2901 = vperm.xlu0 %2900, %v2827
      %v2902 = vpop.permute.xlu0 %2901
      %2905 = vset.pattern.permute.xlu0 0
      %2906 = vperm.xlu0 %2905, %v2828
      %v2907 = vpop.permute.xlu0 %2906
      %2910 = vset.pattern.permute.xlu0 0
      %2911 = vperm.xlu0 %2910, %v2829
      %v2912 = vpop.permute.xlu0 %2911
      %2915 = vset.pattern.permute.xlu0 0
      %2916 = vperm.xlu0 %2915, %v2830
      %v2917 = vpop.permute.xlu0 %2916
      %2920 = vset.pattern.permute.xlu0 0
      %2921 = vperm.xlu0 %2920, %v2831
      %v2922 = vpop.permute.xlu0 %2921
      %2925 = vset.pattern.permute.xlu0 0
      %2926 = vperm.xlu0 %2925, %v2832
      %v2927 = vpop.permute.xlu0 %2926
      %2930 = vset.pattern.permute.xlu0 0
      %2931 = vperm.xlu0 %2930, %v2833
      %v2932 = vpop.permute.xlu0 %2931
      %2935 = vset.pattern.permute.xlu0 0
      %2936 = vperm.xlu0 %2935, %v2834
      %v2937 = vpop.permute.xlu0 %2936
      %2940 = vset.pattern.permute.xlu0 0
      %2941 = vperm.xlu0 %2940, %v2835
      %v2942 = vpop.permute.xlu0 %2941
      %2945 = vset.pattern.permute.xlu0 0
      %2946 = vperm.xlu0 %2945, %v2836
      %v2947 = vpop.permute.xlu0 %2946
      %2950 = vset.pattern.permute.xlu0 0
      %2951 = vperm.xlu0 %2950, %v2837
      %v2952 = vpop.permute.xlu0 %2951
      %2955 = vset.pattern.permute.xlu0 0
      %2956 = vperm.xlu0 %2955, %v2838
      %v2957 = vpop.permute.xlu0 %2956
      %2960 = vset.pattern.permute.xlu0 0
      %2961 = vperm.xlu0 %2960, %v2839
      %v2962 = vpop.permute.xlu0 %2961
      %2965 = vset.pattern.permute.xlu0 0
      %2966 = vperm.xlu0 %2965, %v2840
      %v2967 = vpop.permute.xlu0 %2966
      %2970 = vset.pattern.permute.xlu0 0
      %2971 = vperm.xlu0 %2970, %v2841
      %v2972 = vpop.permute.xlu0 %2971
      %2975 = vset.pattern.permute.xlu0 0
      %2976 = vperm.xlu0 %2975, %v2842
      %v2977 = vpop.permute.xlu0 %2976
      %2980 = vset.pattern.permute.xlu0 0
      %2981 = vperm.xlu0 %2980, %v2843
      %v2982 = vpop.permute.xlu0 %2981
      %v2984 = vmul.f32 %v2847, %v1625
      %v2985 = vmul.f32 %v2852, %v1625
      %v2986 = vmul.f32 %v2857, %v1625
      %v2987 = vmul.f32 %v2862, %v1625
      %v2988 = vmul.f32 %v2867, %v1625
      %v2989 = vmul.f32 %v2872, %v1625
      %v2990 = vmul.f32 %v2877, %v1625
      %v2991 = vmul.f32 %v2882, %v1625
      %v2992 = vmul.f32 %v2887, %v1625
      %v2993 = vmul.f32 %v2892, %v1625
      %v2994 = vmul.f32 %v2897, %v1625
      %v2995 = vmul.f32 %v2902, %v1625
      %v2996 = vmul.f32 %v2907, %v1625
      %v2997 = vmul.f32 %v2912, %v1625
      %v2998 = vmul.f32 %v2917, %v1625
      %v2999 = vmul.f32 %v2922, %v1625
      %v3000 = vmul.f32 %v2927, %v1625
      %v3001 = vmul.f32 %v2932, %v1625
      %v3002 = vmul.f32 %v2937, %v1625
      %v3003 = vmul.f32 %v2942, %v1625
      %v3004 = vmul.f32 %v2947, %v1625
      %v3005 = vmul.f32 %v2952, %v1625
      %v3006 = vmul.f32 %v2957, %v1625
      %v3007 = vmul.f32 %v2962, %v1625
      %v3008 = vmul.f32 %v2967, %v1625
      %v3009 = vmul.f32 %v2972, %v1625
      %v3010 = vmul.f32 %v2977, %v1625
      %v3011 = vmul.f32 %v2982, %v1625
      %v3012 = vadd.f32 %v2788, %v2984
      %v3013 = vadd.f32 %v2789, %v2985
      %v3014 = vadd.f32 %v2790, %v2986
      %v3015 = vadd.f32 %v2791, %v2987
      %v3016 = vadd.f32 %v2792, %v2988
      %v3017 = vadd.f32 %v2793, %v2989
      %v3018 = vadd.f32 %v2794, %v2990
      %v3019 = vadd.f32 %v2795, %v2991
      %v3020 = vadd.f32 %v2796, %v2992
      %v3021 = vadd.f32 %v2797, %v2993
      %v3022 = vadd.f32 %v2798, %v2994
      %v3023 = vadd.f32 %v2799, %v2995
      %v3024 = vadd.f32 %v2800, %v2996
      %v3025 = vadd.f32 %v2801, %v2997
      %v3026 = vadd.f32 %v2802, %v2998
      %v3027 = vadd.f32 %v2803, %v2999
      %v3028 = vadd.f32 %v2804, %v3000
      %v3029 = vadd.f32 %v2805, %v3001
      %v3030 = vadd.f32 %v2806, %v3002
      %v3031 = vadd.f32 %v2807, %v3003
      %v3032 = vadd.f32 %v2808, %v3004
      %v3033 = vadd.f32 %v2809, %v3005
      %v3034 = vadd.f32 %v2810, %v3006
      %v3035 = vadd.f32 %v2811, %v3007
      %v3036 = vadd.f32 %v2812, %v3008
      %v3037 = vadd.f32 %v2813, %v3009
      %v3038 = vadd.f32 %v2814, %v3010
      %v3039 = vadd.f32 %v2815, %v3011
      %v3040 = vmul.f32 %v1943, %v1854
      %v3041 = vmul.f32 %v1948, %v1854
      %v3042 = vmul.f32 %v1953, %v1854
      %v3043 = vmul.f32 %v1958, %v1854
      %v3044 = vmul.f32 %v1963, %v1854
      %v3045 = vmul.f32 %v1968, %v1854
      %v3046 = vmul.f32 %v1973, %v1854
      %v3047 = vmul.f32 %v1978, %v1854
      %v3048 = vmul.f32 %v1983, %v1854
      %v3049 = vmul.f32 %v1988, %v1854
      %v3050 = vmul.f32 %v1993, %v1854
      %v3051 = vmul.f32 %v1998, %v1854
      %v3052 = vmul.f32 %v2003, %v1854
      %v3053 = vmul.f32 %v2008, %v1854
      %v3054 = vmul.f32 %v2013, %v1854
      %v3055 = vmul.f32 %v2018, %v1854
      %v3056 = vmul.f32 %v2023, %v1854
      %v3057 = vmul.f32 %v2028, %v1854
      %v3058 = vmul.f32 %v2033, %v1854
      %v3059 = vmul.f32 %v2038, %v1854
      %v3060 = vmul.f32 %v2043, %v1854
      %v3061 = vmul.f32 %v2048, %v1854
      %v3062 = vmul.f32 %v2053, %v1854
      %v3063 = vmul.f32 %v2058, %v1854
      %v3064 = vmul.f32 %v2063, %v1854
      %v3065 = vmul.f32 %v2068, %v1854
      %v3066 = vmul.f32 %v2073, %v1854
      %v3067 = vmul.f32 %v2078, %v1854
      %v3068 = vadd.f32 %v3012, %v3040
      %v3069 = vadd.f32 %v3013, %v3041
      %v3070 = vadd.f32 %v3014, %v3042
      %v3071 = vadd.f32 %v3015, %v3043
      %v3072 = vadd.f32 %v3016, %v3044
      %v3073 = vadd.f32 %v3017, %v3045
      %v3074 = vadd.f32 %v3018, %v3046
      %v3075 = vadd.f32 %v3019, %v3047
      %v3076 = vadd.f32 %v3020, %v3048
      %v3077 = vadd.f32 %v3021, %v3049
      %v3078 = vadd.f32 %v3022, %v3050
      %v3079 = vadd.f32 %v3023, %v3051
      %v3080 = vadd.f32 %v3024, %v3052
      %v3081 = vadd.f32 %v3025, %v3053
      %v3082 = vadd.f32 %v3026, %v3054
      %v3083 = vadd.f32 %v3027, %v3055
      %v3084 = vadd.f32 %v3028, %v3056
      %v3085 = vadd.f32 %v3029, %v3057
      %v3086 = vadd.f32 %v3030, %v3058
      %v3087 = vadd.f32 %v3031, %v3059
      %v3088 = vadd.f32 %v3032, %v3060
      %v3089 = vadd.f32 %v3033, %v3061
      %v3090 = vadd.f32 %v3034, %v3062
      %v3091 = vadd.f32 %v3035, %v3063
      %v3092 = vadd.f32 %v3036, %v3064
      %v3093 = vadd.f32 %v3037, %v3065
      %v3094 = vadd.f32 %v3038, %v3066
      %v3095 = vadd.f32 %v3039, %v3067
      %v3096 = vmul.f32 %v2171, %v2083
      %v3097 = vmul.f32 %v2176, %v2083
      %v3098 = vmul.f32 %v2181, %v2083
      %v3099 = vmul.f32 %v2186, %v2083
      %v3100 = vmul.f32 %v2191, %v2083
      %v3101 = vmul.f32 %v2196, %v2083
      %v3102 = vmul.f32 %v2201, %v2083
      %v3103 = vmul.f32 %v2206, %v2083
      %v3104 = vmul.f32 %v2211, %v2083
      %v3105 = vmul.f32 %v2216, %v2083
      %v3106 = vmul.f32 %v2221, %v2083
      %v3107 = vmul.f32 %v2226, %v2083
      %v3108 = vmul.f32 %v2231, %v2083
      %v3109 = vmul.f32 %v2236, %v2083
      %v3110 = vmul.f32 %v2241, %v2083
      %v3111 = vmul.f32 %v2246, %v2083
      %v3112 = vmul.f32 %v2251, %v2083
      %v3113 = vmul.f32 %v2256, %v2083
      %v3114 = vmul.f32 %v2261, %v2083
      %v3115 = vmul.f32 %v2266, %v2083
      %v3116 = vmul.f32 %v2271, %v2083
      %v3117 = vmul.f32 %v2276, %v2083
      %v3118 = vmul.f32 %v2281, %v2083
      %v3119 = vmul.f32 %v2286, %v2083
      %v3120 = vmul.f32 %v2291, %v2083
      %v3121 = vmul.f32 %v2296, %v2083
      %v3122 = vmul.f32 %v2301, %v2083
      %v3123 = vmul.f32 %v2306, %v2083
      %v3124 = vadd.f32 %v3068, %v3096
      %v3125 = vadd.f32 %v3069, %v3097
      %v3126 = vadd.f32 %v3070, %v3098
      %v3127 = vadd.f32 %v3071, %v3099
      %v3128 = vadd.f32 %v3072, %v3100
      %v3129 = vadd.f32 %v3073, %v3101
      %v3130 = vadd.f32 %v3074, %v3102
      %v3131 = vadd.f32 %v3075, %v3103
      %v3132 = vadd.f32 %v3076, %v3104
      %v3133 = vadd.f32 %v3077, %v3105
      %v3134 = vadd.f32 %v3078, %v3106
      %v3135 = vadd.f32 %v3079, %v3107
      %v3136 = vadd.f32 %v3080, %v3108
      %v3137 = vadd.f32 %v3081, %v3109
      %v3138 = vadd.f32 %v3082, %v3110
      %v3139 = vadd.f32 %v3083, %v3111
      %v3140 = vadd.f32 %v3084, %v3112
      %v3141 = vadd.f32 %v3085, %v3113
      %v3142 = vadd.f32 %v3086, %v3114
      %v3143 = vadd.f32 %v3087, %v3115
      %v3144 = vadd.f32 %v3088, %v3116
      %v3145 = vadd.f32 %v3089, %v3117
      %v3146 = vadd.f32 %v3090, %v3118
      %v3147 = vadd.f32 %v3091, %v3119
      %v3148 = vadd.f32 %v3092, %v3120
      %v3149 = vadd.f32 %v3093, %v3121
      %v3150 = vadd.f32 %v3094, %v3122
      %v3151 = vadd.f32 %v3095, %v3123
      %v3152 = vld [vmem:[%s1911 + $0x1] sm:$0xff]
      %v3153 = vld [vmem:[%s1911 + $0x9] sm:$0x3f]
      %v3154 = vld [vmem:[%s1911 + $0x11] sm:$0xff]
      %v3155 = vld [vmem:[%s1911 + $0x19] sm:$0x3f]
      %v3156 = vld [vmem:[%s1911 + $0x21] sm:$0xff]
      %v3157 = vld [vmem:[%s1911 + $0x29] sm:$0x3f]
      %v3158 = vld [vmem:[%s1911 + $0x31] sm:$0xff]
      %v3159 = vld [vmem:[%s1911 + $0x39] sm:$0x3f]
      %v3160 = vld [vmem:[%s1911 + $0x41] sm:$0xff]
      %v3161 = vld [vmem:[%s1911 + $0x49] sm:$0x3f]
      %v3162 = vld [vmem:[%s1911 + $0x51] sm:$0xff]
      %v3163 = vld [vmem:[%s1911 + $0x59] sm:$0x3f]
      %v3164 = vld [vmem:[%s1911 + $0x61] sm:$0xff]
      %v3165 = vld [vmem:[%s1911 + $0x69] sm:$0x3f]
      %v3166 = vld [vmem:[%s1911 + $0x71] sm:$0xff]
      %v3167 = vld [vmem:[%s1911 + $0x79] sm:$0x3f]
      %v3168 = vld [vmem:[%s1911 + $0x81] sm:$0xff]
      %v3169 = vld [vmem:[%s1911 + $0x89] sm:$0x3f]
      %v3170 = vld [vmem:[%s1911 + $0x91] sm:$0xff]
      %v3171 = vld [vmem:[%s1911 + $0x99] sm:$0x3f]
      %v3172 = vld [vmem:[%s1911 + $0xa1] sm:$0xff]
      %v3173 = vld [vmem:[%s1911 + $0xa9] sm:$0x3f]
      %v3174 = vld [vmem:[%s1911 + $0xb1] sm:$0xff]
      %v3175 = vld [vmem:[%s1911 + $0xb9] sm:$0x3f]
      %v3176 = vld [vmem:[%s1911 + $0xc1] sm:$0xff]
      %v3177 = vld [vmem:[%s1911 + $0xc9] sm:$0x3f]
      %v3178 = vld [vmem:[%s1911 + $0xd1] sm:$0xff]
      %v3179 = vld [vmem:[%s1911 + $0xd9] sm:$0x3f]
      %3181 = vset.pattern.permute.xlu0 0
      %3182 = vperm.xlu0 %3181, %v3152
      %v3183 = vpop.permute.xlu0 %3182
      %3186 = vset.pattern.permute.xlu0 0
      %3187 = vperm.xlu0 %3186, %v3153
      %v3188 = vpop.permute.xlu0 %3187
      %3191 = vset.pattern.permute.xlu0 0
      %3192 = vperm.xlu0 %3191, %v3154
      %v3193 = vpop.permute.xlu0 %3192
      %3196 = vset.pattern.permute.xlu0 0
      %3197 = vperm.xlu0 %3196, %v3155
      %v3198 = vpop.permute.xlu0 %3197
      %3201 = vset.pattern.permute.xlu0 0
      %3202 = vperm.xlu0 %3201, %v3156
      %v3203 = vpop.permute.xlu0 %3202
      %3206 = vset.pattern.permute.xlu0 0
      %3207 = vperm.xlu0 %3206, %v3157
      %v3208 = vpop.permute.xlu0 %3207
      %3211 = vset.pattern.permute.xlu0 0
      %3212 = vperm.xlu0 %3211, %v3158
      %v3213 = vpop.permute.xlu0 %3212
      %3216 = vset.pattern.permute.xlu0 0
      %3217 = vperm.xlu0 %3216, %v3159
      %v3218 = vpop.permute.xlu0 %3217
      %3221 = vset.pattern.permute.xlu0 0
      %3222 = vperm.xlu0 %3221, %v3160
      %v3223 = vpop.permute.xlu0 %3222
      %3226 = vset.pattern.permute.xlu0 0
      %3227 = vperm.xlu0 %3226, %v3161
      %v3228 = vpop.permute.xlu0 %3227
      %3231 = vset.pattern.permute.xlu0 0
      %3232 = vperm.xlu0 %3231, %v3162
      %v3233 = vpop.permute.xlu0 %3232
      %3236 = vset.pattern.permute.xlu0 0
      %3237 = vperm.xlu0 %3236, %v3163
      %v3238 = vpop.permute.xlu0 %3237
      %3241 = vset.pattern.permute.xlu0 0
      %3242 = vperm.xlu0 %3241, %v3164
      %v3243 = vpop.permute.xlu0 %3242
      %3246 = vset.pattern.permute.xlu0 0
      %3247 = vperm.xlu0 %3246, %v3165
      %v3248 = vpop.permute.xlu0 %3247
      %3251 = vset.pattern.permute.xlu0 0
      %3252 = vperm.xlu0 %3251, %v3166
      %v3253 = vpop.permute.xlu0 %3252
      %3256 = vset.pattern.permute.xlu0 0
      %3257 = vperm.xlu0 %3256, %v3167
      %v3258 = vpop.permute.xlu0 %3257
      %3261 = vset.pattern.permute.xlu0 0
      %3262 = vperm.xlu0 %3261, %v3168
      %v3263 = vpop.permute.xlu0 %3262
      %3266 = vset.pattern.permute.xlu0 0
      %3267 = vperm.xlu0 %3266, %v3169
      %v3268 = vpop.permute.xlu0 %3267
      %3271 = vset.pattern.permute.xlu0 0
      %3272 = vperm.xlu0 %3271, %v3170
      %v3273 = vpop.permute.xlu0 %3272
      %3276 = vset.pattern.permute.xlu0 0
      %3277 = vperm.xlu0 %3276, %v3171
      %v3278 = vpop.permute.xlu0 %3277
      %3281 = vset.pattern.permute.xlu0 0
      %3282 = vperm.xlu0 %3281, %v3172
      %v3283 = vpop.permute.xlu0 %3282
      %3286 = vset.pattern.permute.xlu0 0
      %3287 = vperm.xlu0 %3286, %v3173
      %v3288 = vpop.permute.xlu0 %3287
      %3291 = vset.pattern.permute.xlu0 0
      %3292 = vperm.xlu0 %3291, %v3174
      %v3293 = vpop.permute.xlu0 %3292
      %3296 = vset.pattern.permute.xlu0 0
      %3297 = vperm.xlu0 %3296, %v3175
      %v3298 = vpop.permute.xlu0 %3297
      %3301 = vset.pattern.permute.xlu0 0
      %3302 = vperm.xlu0 %3301, %v3176
      %v3303 = vpop.permute.xlu0 %3302
      %3306 = vset.pattern.permute.xlu0 0
      %3307 = vperm.xlu0 %3306, %v3177
      %v3308 = vpop.permute.xlu0 %3307
      %3311 = vset.pattern.permute.xlu0 0
      %3312 = vperm.xlu0 %3311, %v3178
      %v3313 = vpop.permute.xlu0 %3312
      %3316 = vset.pattern.permute.xlu0 0
      %3317 = vperm.xlu0 %3316, %v3179
      %v3318 = vpop.permute.xlu0 %3317
      %v3320 = vmul.f32 %v3183, %v2311
      %v3321 = vmul.f32 %v3188, %v2311
      %v3322 = vmul.f32 %v3193, %v2311
      %v3323 = vmul.f32 %v3198, %v2311
      %v3324 = vmul.f32 %v3203, %v2311
      %v3325 = vmul.f32 %v3208, %v2311
      %v3326 = vmul.f32 %v3213, %v2311
      %v3327 = vmul.f32 %v3218, %v2311
      %v3328 = vmul.f32 %v3223, %v2311
      %v3329 = vmul.f32 %v3228, %v2311
      %v3330 = vmul.f32 %v3233, %v2311
      %v3331 = vmul.f32 %v3238, %v2311
      %v3332 = vmul.f32 %v3243, %v2311
      %v3333 = vmul.f32 %v3248, %v2311
      %v3334 = vmul.f32 %v3253, %v2311
      %v3335 = vmul.f32 %v3258, %v2311
      %v3336 = vmul.f32 %v3263, %v2311
      %v3337 = vmul.f32 %v3268, %v2311
      %v3338 = vmul.f32 %v3273, %v2311
      %v3339 = vmul.f32 %v3278, %v2311
      %v3340 = vmul.f32 %v3283, %v2311
      %v3341 = vmul.f32 %v3288, %v2311
      %v3342 = vmul.f32 %v3293, %v2311
      %v3343 = vmul.f32 %v3298, %v2311
      %v3344 = vmul.f32 %v3303, %v2311
      %v3345 = vmul.f32 %v3308, %v2311
      %v3346 = vmul.f32 %v3313, %v2311
      %v3347 = vmul.f32 %v3318, %v2311
      %v3348 = vadd.f32 %v3124, %v3320
      %v3349 = vadd.f32 %v3125, %v3321
      %v3350 = vadd.f32 %v3126, %v3322
      %v3351 = vadd.f32 %v3127, %v3323
      %v3352 = vadd.f32 %v3128, %v3324
      %v3353 = vadd.f32 %v3129, %v3325
      %v3354 = vadd.f32 %v3130, %v3326
      %v3355 = vadd.f32 %v3131, %v3327
      %v3356 = vadd.f32 %v3132, %v3328
      %v3357 = vadd.f32 %v3133, %v3329
      %v3358 = vadd.f32 %v3134, %v3330
      %v3359 = vadd.f32 %v3135, %v3331
      %v3360 = vadd.f32 %v3136, %v3332
      %v3361 = vadd.f32 %v3137, %v3333
      %v3362 = vadd.f32 %v3138, %v3334
      %v3363 = vadd.f32 %v3139, %v3335
      %v3364 = vadd.f32 %v3140, %v3336
      %v3365 = vadd.f32 %v3141, %v3337
      %v3366 = vadd.f32 %v3142, %v3338
      %v3367 = vadd.f32 %v3143, %v3339
      %v3368 = vadd.f32 %v3144, %v3340
      %v3369 = vadd.f32 %v3145, %v3341
      %v3370 = vadd.f32 %v3146, %v3342
      %v3371 = vadd.f32 %v3147, %v3343
      %v3372 = vadd.f32 %v3148, %v3344
      %v3373 = vadd.f32 %v3149, %v3345
      %v3374 = vadd.f32 %v3150, %v3346
      %v3375 = vadd.f32 %v3151, %v3347
      %v3376 = vmul.f32 %v1029, %v485
      %v3377 = vmul.f32 %v1034, %v485
      %v3378 = vmul.f32 %v1039, %v485
      %v3379 = vmul.f32 %v1044, %v485
      %v3380 = vmul.f32 %v1049, %v485
      %v3381 = vmul.f32 %v1054, %v485
      %v3382 = vmul.f32 %v1059, %v485
      %v3383 = vmul.f32 %v1064, %v485
      %v3384 = vmul.f32 %v1069, %v485
      %v3385 = vmul.f32 %v1074, %v485
      %v3386 = vmul.f32 %v1079, %v485
      %v3387 = vmul.f32 %v1084, %v485
      %v3388 = vmul.f32 %v1089, %v485
      %v3389 = vmul.f32 %v1094, %v485
      %v3390 = vmul.f32 %v1099, %v485
      %v3391 = vmul.f32 %v1104, %v485
      %v3392 = vmul.f32 %v1109, %v485
      %v3393 = vmul.f32 %v1114, %v485
      %v3394 = vmul.f32 %v1119, %v485
      %v3395 = vmul.f32 %v1124, %v485
      %v3396 = vmul.f32 %v1129, %v485
      %v3397 = vmul.f32 %v1134, %v485
      %v3398 = vmul.f32 %v1139, %v485
      %v3399 = vmul.f32 %v1144, %v485
      %v3400 = vmul.f32 %v1149, %v485
      %v3401 = vmul.f32 %v1154, %v485
      %v3402 = vmul.f32 %v1159, %v485
      %v3403 = vmul.f32 %v1164, %v485
      %v3404 = vadd.f32 %v3376, 0.0
      %v3405 = vadd.f32 %v3377, 0.0
      %v3406 = vadd.f32 %v3378, 0.0
      %v3407 = vadd.f32 %v3379, 0.0
      %v3408 = vadd.f32 %v3380, 0.0
      %v3409 = vadd.f32 %v3381, 0.0
      %v3410 = vadd.f32 %v3382, 0.0
      %v3411 = vadd.f32 %v3383, 0.0
      %v3412 = vadd.f32 %v3384, 0.0
      %v3413 = vadd.f32 %v3385, 0.0
      %v3414 = vadd.f32 %v3386, 0.0
      %v3415 = vadd.f32 %v3387, 0.0
      %v3416 = vadd.f32 %v3388, 0.0
      %v3417 = vadd.f32 %v3389, 0.0
      %v3418 = vadd.f32 %v3390, 0.0
      %v3419 = vadd.f32 %v3391, 0.0
      %v3420 = vadd.f32 %v3392, 0.0
      %v3421 = vadd.f32 %v3393, 0.0
      %v3422 = vadd.f32 %v3394, 0.0
      %v3423 = vadd.f32 %v3395, 0.0
      %v3424 = vadd.f32 %v3396, 0.0
      %v3425 = vadd.f32 %v3397, 0.0
      %v3426 = vadd.f32 %v3398, 0.0
      %v3427 = vadd.f32 %v3399, 0.0
      %v3428 = vadd.f32 %v3400, 0.0
      %v3429 = vadd.f32 %v3401, 0.0
      %v3430 = vadd.f32 %v3402, 0.0
      %v3431 = vadd.f32 %v3403, 0.0
      %v3432 = vmul.f32 %v1257, %v713
      %v3433 = vmul.f32 %v1262, %v713
      %v3434 = vmul.f32 %v1267, %v713
      %v3435 = vmul.f32 %v1272, %v713
      %v3436 = vmul.f32 %v1277, %v713
      %v3437 = vmul.f32 %v1282, %v713
      %v3438 = vmul.f32 %v1287, %v713
      %v3439 = vmul.f32 %v1292, %v713
      %v3440 = vmul.f32 %v1297, %v713
      %v3441 = vmul.f32 %v1302, %v713
      %v3442 = vmul.f32 %v1307, %v713
      %v3443 = vmul.f32 %v1312, %v713
      %v3444 = vmul.f32 %v1317, %v713
      %v3445 = vmul.f32 %v1322, %v713
      %v3446 = vmul.f32 %v1327, %v713
      %v3447 = vmul.f32 %v1332, %v713
      %v3448 = vmul.f32 %v1337, %v713
      %v3449 = vmul.f32 %v1342, %v713
      %v3450 = vmul.f32 %v1347, %v713
      %v3451 = vmul.f32 %v1352, %v713
      %v3452 = vmul.f32 %v1357, %v713
      %v3453 = vmul.f32 %v1362, %v713
      %v3454 = vmul.f32 %v1367, %v713
      %v3455 = vmul.f32 %v1372, %v713
      %v3456 = vmul.f32 %v1377, %v713
      %v3457 = vmul.f32 %v1382, %v713
      %v3458 = vmul.f32 %v1387, %v713
      %v3459 = vmul.f32 %v1392, %v713
      %v3460 = vadd.f32 %v3404, %v3432
      %v3461 = vadd.f32 %v3405, %v3433
      %v3462 = vadd.f32 %v3406, %v3434
      %v3463 = vadd.f32 %v3407, %v3435
      %v3464 = vadd.f32 %v3408, %v3436
      %v3465 = vadd.f32 %v3409, %v3437
      %v3466 = vadd.f32 %v3410, %v3438
      %v3467 = vadd.f32 %v3411, %v3439
      %v3468 = vadd.f32 %v3412, %v3440
      %v3469 = vadd.f32 %v3413, %v3441
      %v3470 = vadd.f32 %v3414, %v3442
      %v3471 = vadd.f32 %v3415, %v3443
      %v3472 = vadd.f32 %v3416, %v3444
      %v3473 = vadd.f32 %v3417, %v3445
      %v3474 = vadd.f32 %v3418, %v3446
      %v3475 = vadd.f32 %v3419, %v3447
      %v3476 = vadd.f32 %v3420, %v3448
      %v3477 = vadd.f32 %v3421, %v3449
      %v3478 = vadd.f32 %v3422, %v3450
      %v3479 = vadd.f32 %v3423, %v3451
      %v3480 = vadd.f32 %v3424, %v3452
      %v3481 = vadd.f32 %v3425, %v3453
      %v3482 = vadd.f32 %v3426, %v3454
      %v3483 = vadd.f32 %v3427, %v3455
      %v3484 = vadd.f32 %v3428, %v3456
      %v3485 = vadd.f32 %v3429, %v3457
      %v3486 = vadd.f32 %v3430, %v3458
      %v3487 = vadd.f32 %v3431, %v3459
      %v3488 = vmul.f32 %v1485, %v941
      %v3489 = vmul.f32 %v1490, %v941
      %v3490 = vmul.f32 %v1495, %v941
      %v3491 = vmul.f32 %v1500, %v941
      %v3492 = vmul.f32 %v1505, %v941
      %v3493 = vmul.f32 %v1510, %v941
      %v3494 = vmul.f32 %v1515, %v941
      %v3495 = vmul.f32 %v1520, %v941
      %v3496 = vmul.f32 %v1525, %v941
      %v3497 = vmul.f32 %v1530, %v941
      %v3498 = vmul.f32 %v1535, %v941
      %v3499 = vmul.f32 %v1540, %v941
      %v3500 = vmul.f32 %v1545, %v941
      %v3501 = vmul.f32 %v1550, %v941
      %v3502 = vmul.f32 %v1555, %v941
      %v3503 = vmul.f32 %v1560, %v941
      %v3504 = vmul.f32 %v1565, %v941
      %v3505 = vmul.f32 %v1570, %v941
      %v3506 = vmul.f32 %v1575, %v941
      %v3507 = vmul.f32 %v1580, %v941
      %v3508 = vmul.f32 %v1585, %v941
      %v3509 = vmul.f32 %v1590, %v941
      %v3510 = vmul.f32 %v1595, %v941
      %v3511 = vmul.f32 %v1600, %v941
      %v3512 = vmul.f32 %v1605, %v941
      %v3513 = vmul.f32 %v1610, %v941
      %v3514 = vmul.f32 %v1615, %v941
      %v3515 = vmul.f32 %v1620, %v941
      %v3516 = vadd.f32 %v3460, %v3488
      %v3517 = vadd.f32 %v3461, %v3489
      %v3518 = vadd.f32 %v3462, %v3490
      %v3519 = vadd.f32 %v3463, %v3491
      %v3520 = vadd.f32 %v3464, %v3492
      %v3521 = vadd.f32 %v3465, %v3493
      %v3522 = vadd.f32 %v3466, %v3494
      %v3523 = vadd.f32 %v3467, %v3495
      %v3524 = vadd.f32 %v3468, %v3496
      %v3525 = vadd.f32 %v3469, %v3497
      %v3526 = vadd.f32 %v3470, %v3498
      %v3527 = vadd.f32 %v3471, %v3499
      %v3528 = vadd.f32 %v3472, %v3500
      %v3529 = vadd.f32 %v3473, %v3501
      %v3530 = vadd.f32 %v3474, %v3502
      %v3531 = vadd.f32 %v3475, %v3503
      %v3532 = vadd.f32 %v3476, %v3504
      %v3533 = vadd.f32 %v3477, %v3505
      %v3534 = vadd.f32 %v3478, %v3506
      %v3535 = vadd.f32 %v3479, %v3507
      %v3536 = vadd.f32 %v3480, %v3508
      %v3537 = vadd.f32 %v3481, %v3509
      %v3538 = vadd.f32 %v3482, %v3510
      %v3539 = vadd.f32 %v3483, %v3511
      %v3540 = vadd.f32 %v3484, %v3512
      %v3541 = vadd.f32 %v3485, %v3513
      %v3542 = vadd.f32 %v3486, %v3514
      %v3543 = vadd.f32 %v3487, %v3515
      %v3544 = vmul.f32 %v1714, %v1169
      %v3545 = vmul.f32 %v1719, %v1169
      %v3546 = vmul.f32 %v1724, %v1169
      %v3547 = vmul.f32 %v1729, %v1169
      %v3548 = vmul.f32 %v1734, %v1169
      %v3549 = vmul.f32 %v1739, %v1169
      %v3550 = vmul.f32 %v1744, %v1169
      %v3551 = vmul.f32 %v1749, %v1169
      %v3552 = vmul.f32 %v1754, %v1169
      %v3553 = vmul.f32 %v1759, %v1169
      %v3554 = vmul.f32 %v1764, %v1169
      %v3555 = vmul.f32 %v1769, %v1169
      %v3556 = vmul.f32 %v1774, %v1169
      %v3557 = vmul.f32 %v1779, %v1169
      %v3558 = vmul.f32 %v1784, %v1169
      %v3559 = vmul.f32 %v1789, %v1169
      %v3560 = vmul.f32 %v1794, %v1169
      %v3561 = vmul.f32 %v1799, %v1169
      %v3562 = vmul.f32 %v1804, %v1169
      %v3563 = vmul.f32 %v1809, %v1169
      %v3564 = vmul.f32 %v1814, %v1169
      %v3565 = vmul.f32 %v1819, %v1169
      %v3566 = vmul.f32 %v1824, %v1169
      %v3567 = vmul.f32 %v1829, %v1169
      %v3568 = vmul.f32 %v1834, %v1169
      %v3569 = vmul.f32 %v1839, %v1169
      %v3570 = vmul.f32 %v1844, %v1169
      %v3571 = vmul.f32 %v1849, %v1169
      %v3572 = vadd.f32 %v3516, %v3544
      %v3573 = vadd.f32 %v3517, %v3545
      %v3574 = vadd.f32 %v3518, %v3546
      %v3575 = vadd.f32 %v3519, %v3547
      %v3576 = vadd.f32 %v3520, %v3548
      %v3577 = vadd.f32 %v3521, %v3549
      %v3578 = vadd.f32 %v3522, %v3550
      %v3579 = vadd.f32 %v3523, %v3551
      %v3580 = vadd.f32 %v3524, %v3552
      %v3581 = vadd.f32 %v3525, %v3553
      %v3582 = vadd.f32 %v3526, %v3554
      %v3583 = vadd.f32 %v3527, %v3555
      %v3584 = vadd.f32 %v3528, %v3556
      %v3585 = vadd.f32 %v3529, %v3557
      %v3586 = vadd.f32 %v3530, %v3558
      %v3587 = vadd.f32 %v3531, %v3559
      %v3588 = vadd.f32 %v3532, %v3560
      %v3589 = vadd.f32 %v3533, %v3561
      %v3590 = vadd.f32 %v3534, %v3562
      %v3591 = vadd.f32 %v3535, %v3563
      %v3592 = vadd.f32 %v3536, %v3564
      %v3593 = vadd.f32 %v3537, %v3565
      %v3594 = vadd.f32 %v3538, %v3566
      %v3595 = vadd.f32 %v3539, %v3567
      %v3596 = vadd.f32 %v3540, %v3568
      %v3597 = vadd.f32 %v3541, %v3569
      %v3598 = vadd.f32 %v3542, %v3570
      %v3599 = vadd.f32 %v3543, %v3571
      %v3600 = vmul.f32 %v1943, %v1397
      %v3601 = vmul.f32 %v1948, %v1397
      %v3602 = vmul.f32 %v1953, %v1397
      %v3603 = vmul.f32 %v1958, %v1397
      %v3604 = vmul.f32 %v1963, %v1397
      %v3605 = vmul.f32 %v1968, %v1397
      %v3606 = vmul.f32 %v1973, %v1397
      %v3607 = vmul.f32 %v1978, %v1397
      %v3608 = vmul.f32 %v1983, %v1397
      %v3609 = vmul.f32 %v1988, %v1397
      %v3610 = vmul.f32 %v1993, %v1397
      %v3611 = vmul.f32 %v1998, %v1397
      %v3612 = vmul.f32 %v2003, %v1397
      %v3613 = vmul.f32 %v2008, %v1397
      %v3614 = vmul.f32 %v2013, %v1397
      %v3615 = vmul.f32 %v2018, %v1397
      %v3616 = vmul.f32 %v2023, %v1397
      %v3617 = vmul.f32 %v2028, %v1397
      %v3618 = vmul.f32 %v2033, %v1397
      %v3619 = vmul.f32 %v2038, %v1397
      %v3620 = vmul.f32 %v2043, %v1397
      %v3621 = vmul.f32 %v2048, %v1397
      %v3622 = vmul.f32 %v2053, %v1397
      %v3623 = vmul.f32 %v2058, %v1397
      %v3624 = vmul.f32 %v2063, %v1397
      %v3625 = vmul.f32 %v2068, %v1397
      %v3626 = vmul.f32 %v2073, %v1397
      %v3627 = vmul.f32 %v2078, %v1397
      %v3628 = vadd.f32 %v3572, %v3600
      %v3629 = vadd.f32 %v3573, %v3601
      %v3630 = vadd.f32 %v3574, %v3602
      %v3631 = vadd.f32 %v3575, %v3603
      %v3632 = vadd.f32 %v3576, %v3604
      %v3633 = vadd.f32 %v3577, %v3605
      %v3634 = vadd.f32 %v3578, %v3606
      %v3635 = vadd.f32 %v3579, %v3607
      %v3636 = vadd.f32 %v3580, %v3608
      %v3637 = vadd.f32 %v3581, %v3609
      %v3638 = vadd.f32 %v3582, %v3610
      %v3639 = vadd.f32 %v3583, %v3611
      %v3640 = vadd.f32 %v3584, %v3612
      %v3641 = vadd.f32 %v3585, %v3613
      %v3642 = vadd.f32 %v3586, %v3614
      %v3643 = vadd.f32 %v3587, %v3615
      %v3644 = vadd.f32 %v3588, %v3616
      %v3645 = vadd.f32 %v3589, %v3617
      %v3646 = vadd.f32 %v3590, %v3618
      %v3647 = vadd.f32 %v3591, %v3619
      %v3648 = vadd.f32 %v3592, %v3620
      %v3649 = vadd.f32 %v3593, %v3621
      %v3650 = vadd.f32 %v3594, %v3622
      %v3651 = vadd.f32 %v3595, %v3623
      %v3652 = vadd.f32 %v3596, %v3624
      %v3653 = vadd.f32 %v3597, %v3625
      %v3654 = vadd.f32 %v3598, %v3626
      %v3655 = vadd.f32 %v3599, %v3627
      %v3656 = vmul.f32 %v2171, %v1625
      %v3657 = vmul.f32 %v2176, %v1625
      %v3658 = vmul.f32 %v2181, %v1625
      %v3659 = vmul.f32 %v2186, %v1625
      %v3660 = vmul.f32 %v2191, %v1625
      %v3661 = vmul.f32 %v2196, %v1625
      %v3662 = vmul.f32 %v2201, %v1625
      %v3663 = vmul.f32 %v2206, %v1625
      %v3664 = vmul.f32 %v2211, %v1625
      %v3665 = vmul.f32 %v2216, %v1625
      %v3666 = vmul.f32 %v2221, %v1625
      %v3667 = vmul.f32 %v2226, %v1625
      %v3668 = vmul.f32 %v2231, %v1625
      %v3669 = vmul.f32 %v2236, %v1625
      %v3670 = vmul.f32 %v2241, %v1625
      %v3671 = vmul.f32 %v2246, %v1625
      %v3672 = vmul.f32 %v2251, %v1625
      %v3673 = vmul.f32 %v2256, %v1625
      %v3674 = vmul.f32 %v2261, %v1625
      %v3675 = vmul.f32 %v2266, %v1625
      %v3676 = vmul.f32 %v2271, %v1625
      %v3677 = vmul.f32 %v2276, %v1625
      %v3678 = vmul.f32 %v2281, %v1625
      %v3679 = vmul.f32 %v2286, %v1625
      %v3680 = vmul.f32 %v2291, %v1625
      %v3681 = vmul.f32 %v2296, %v1625
      %v3682 = vmul.f32 %v2301, %v1625
      %v3683 = vmul.f32 %v2306, %v1625
      %v3684 = vadd.f32 %v3628, %v3656
      %v3685 = vadd.f32 %v3629, %v3657
      %v3686 = vadd.f32 %v3630, %v3658
      %v3687 = vadd.f32 %v3631, %v3659
      %v3688 = vadd.f32 %v3632, %v3660
      %v3689 = vadd.f32 %v3633, %v3661
      %v3690 = vadd.f32 %v3634, %v3662
      %v3691 = vadd.f32 %v3635, %v3663
      %v3692 = vadd.f32 %v3636, %v3664
      %v3693 = vadd.f32 %v3637, %v3665
      %v3694 = vadd.f32 %v3638, %v3666
      %v3695 = vadd.f32 %v3639, %v3667
      %v3696 = vadd.f32 %v3640, %v3668
      %v3697 = vadd.f32 %v3641, %v3669
      %v3698 = vadd.f32 %v3642, %v3670
      %v3699 = vadd.f32 %v3643, %v3671
      %v3700 = vadd.f32 %v3644, %v3672
      %v3701 = vadd.f32 %v3645, %v3673
      %v3702 = vadd.f32 %v3646, %v3674
      %v3703 = vadd.f32 %v3647, %v3675
      %v3704 = vadd.f32 %v3648, %v3676
      %v3705 = vadd.f32 %v3649, %v3677
      %v3706 = vadd.f32 %v3650, %v3678
      %v3707 = vadd.f32 %v3651, %v3679
      %v3708 = vadd.f32 %v3652, %v3680
      %v3709 = vadd.f32 %v3653, %v3681
      %v3710 = vadd.f32 %v3654, %v3682
      %v3711 = vadd.f32 %v3655, %v3683
      %s3712 = scalar_lea.vmem %s301, 16
      %v3713 = vld [vmem:[%s3712] sm:$0xff]
      %v3714 = vld [vmem:[%s3712 + $0x8] sm:$0x3f]
      %v3715 = vld [vmem:[%s3712 + $0x10] sm:$0xff]
      %v3716 = vld [vmem:[%s3712 + $0x18] sm:$0x3f]
      %v3717 = vld [vmem:[%s3712 + $0x20] sm:$0xff]
      %v3718 = vld [vmem:[%s3712 + $0x28] sm:$0x3f]
      %v3719 = vld [vmem:[%s3712 + $0x30] sm:$0xff]
      %v3720 = vld [vmem:[%s3712 + $0x38] sm:$0x3f]
      %v3721 = vld [vmem:[%s3712 + $0x40] sm:$0xff]
      %v3722 = vld [vmem:[%s3712 + $0x48] sm:$0x3f]
      %v3723 = vld [vmem:[%s3712 + $0x50] sm:$0xff]
      %v3724 = vld [vmem:[%s3712 + $0x58] sm:$0x3f]
      %v3725 = vld [vmem:[%s3712 + $0x60] sm:$0xff]
      %v3726 = vld [vmem:[%s3712 + $0x68] sm:$0x3f]
      %v3727 = vld [vmem:[%s3712 + $0x70] sm:$0xff]
      %v3728 = vld [vmem:[%s3712 + $0x78] sm:$0x3f]
      %v3729 = vld [vmem:[%s3712 + $0x80] sm:$0xff]
      %v3730 = vld [vmem:[%s3712 + $0x88] sm:$0x3f]
      %v3731 = vld [vmem:[%s3712 + $0x90] sm:$0xff]
      %v3732 = vld [vmem:[%s3712 + $0x98] sm:$0x3f]
      %v3733 = vld [vmem:[%s3712 + $0xa0] sm:$0xff]
      %v3734 = vld [vmem:[%s3712 + $0xa8] sm:$0x3f]
      %v3735 = vld [vmem:[%s3712 + $0xb0] sm:$0xff]
      %v3736 = vld [vmem:[%s3712 + $0xb8] sm:$0x3f]
      %v3737 = vld [vmem:[%s3712 + $0xc0] sm:$0xff]
      %v3738 = vld [vmem:[%s3712 + $0xc8] sm:$0x3f]
      %v3739 = vld [vmem:[%s3712 + $0xd0] sm:$0xff]
      %v3740 = vld [vmem:[%s3712 + $0xd8] sm:$0x3f]
      %3742 = vset.pattern.permute.xlu0 0
      %3743 = vperm.xlu0 %3742, %v3713
      %v3744 = vpop.permute.xlu0 %3743
      %3747 = vset.pattern.permute.xlu0 0
      %3748 = vperm.xlu0 %3747, %v3714
      %v3749 = vpop.permute.xlu0 %3748
      %3752 = vset.pattern.permute.xlu0 0
      %3753 = vperm.xlu0 %3752, %v3715
      %v3754 = vpop.permute.xlu0 %3753
      %3757 = vset.pattern.permute.xlu0 0
      %3758 = vperm.xlu0 %3757, %v3716
      %v3759 = vpop.permute.xlu0 %3758
      %3762 = vset.pattern.permute.xlu0 0
      %3763 = vperm.xlu0 %3762, %v3717
      %v3764 = vpop.permute.xlu0 %3763
      %3767 = vset.pattern.permute.xlu0 0
      %3768 = vperm.xlu0 %3767, %v3718
      %v3769 = vpop.permute.xlu0 %3768
      %3772 = vset.pattern.permute.xlu0 0
      %3773 = vperm.xlu0 %3772, %v3719
      %v3774 = vpop.permute.xlu0 %3773
      %3777 = vset.pattern.permute.xlu0 0
      %3778 = vperm.xlu0 %3777, %v3720
      %v3779 = vpop.permute.xlu0 %3778
      %3782 = vset.pattern.permute.xlu0 0
      %3783 = vperm.xlu0 %3782, %v3721
      %v3784 = vpop.permute.xlu0 %3783
      %3787 = vset.pattern.permute.xlu0 0
      %3788 = vperm.xlu0 %3787, %v3722
      %v3789 = vpop.permute.xlu0 %3788
      %3792 = vset.pattern.permute.xlu0 0
      %3793 = vperm.xlu0 %3792, %v3723
      %v3794 = vpop.permute.xlu0 %3793
      %3797 = vset.pattern.permute.xlu0 0
      %3798 = vperm.xlu0 %3797, %v3724
      %v3799 = vpop.permute.xlu0 %3798
      %3802 = vset.pattern.permute.xlu0 0
      %3803 = vperm.xlu0 %3802, %v3725
      %v3804 = vpop.permute.xlu0 %3803
      %3807 = vset.pattern.permute.xlu0 0
      %3808 = vperm.xlu0 %3807, %v3726
      %v3809 = vpop.permute.xlu0 %3808
      %3812 = vset.pattern.permute.xlu0 0
      %3813 = vperm.xlu0 %3812, %v3727
      %v3814 = vpop.permute.xlu0 %3813
      %3817 = vset.pattern.permute.xlu0 0
      %3818 = vperm.xlu0 %3817, %v3728
      %v3819 = vpop.permute.xlu0 %3818
      %3822 = vset.pattern.permute.xlu0 0
      %3823 = vperm.xlu0 %3822, %v3729
      %v3824 = vpop.permute.xlu0 %3823
      %3827 = vset.pattern.permute.xlu0 0
      %3828 = vperm.xlu0 %3827, %v3730
      %v3829 = vpop.permute.xlu0 %3828
      %3832 = vset.pattern.permute.xlu0 0
      %3833 = vperm.xlu0 %3832, %v3731
      %v3834 = vpop.permute.xlu0 %3833
      %3837 = vset.pattern.permute.xlu0 0
      %3838 = vperm.xlu0 %3837, %v3732
      %v3839 = vpop.permute.xlu0 %3838
      %3842 = vset.pattern.permute.xlu0 0
      %3843 = vperm.xlu0 %3842, %v3733
      %v3844 = vpop.permute.xlu0 %3843
      %3847 = vset.pattern.permute.xlu0 0
      %3848 = vperm.xlu0 %3847, %v3734
      %v3849 = vpop.permute.xlu0 %3848
      %3852 = vset.pattern.permute.xlu0 0
      %3853 = vperm.xlu0 %3852, %v3735
      %v3854 = vpop.permute.xlu0 %3853
      %3857 = vset.pattern.permute.xlu0 0
      %3858 = vperm.xlu0 %3857, %v3736
      %v3859 = vpop.permute.xlu0 %3858
      %3862 = vset.pattern.permute.xlu0 0
      %3863 = vperm.xlu0 %3862, %v3737
      %v3864 = vpop.permute.xlu0 %3863
      %3867 = vset.pattern.permute.xlu0 0
      %3868 = vperm.xlu0 %3867, %v3738
      %v3869 = vpop.permute.xlu0 %3868
      %3872 = vset.pattern.permute.xlu0 0
      %3873 = vperm.xlu0 %3872, %v3739
      %v3874 = vpop.permute.xlu0 %3873
      %3877 = vset.pattern.permute.xlu0 0
      %3878 = vperm.xlu0 %3877, %v3740
      %v3879 = vpop.permute.xlu0 %3878
      %v3881 = vmul.f32 %v3744, %v1854
      %v3882 = vmul.f32 %v3749, %v1854
      %v3883 = vmul.f32 %v3754, %v1854
      %v3884 = vmul.f32 %v3759, %v1854
      %v3885 = vmul.f32 %v3764, %v1854
      %v3886 = vmul.f32 %v3769, %v1854
      %v3887 = vmul.f32 %v3774, %v1854
      %v3888 = vmul.f32 %v3779, %v1854
      %v3889 = vmul.f32 %v3784, %v1854
      %v3890 = vmul.f32 %v3789, %v1854
      %v3891 = vmul.f32 %v3794, %v1854
      %v3892 = vmul.f32 %v3799, %v1854
      %v3893 = vmul.f32 %v3804, %v1854
      %v3894 = vmul.f32 %v3809, %v1854
      %v3895 = vmul.f32 %v3814, %v1854
      %v3896 = vmul.f32 %v3819, %v1854
      %v3897 = vmul.f32 %v3824, %v1854
      %v3898 = vmul.f32 %v3829, %v1854
      %v3899 = vmul.f32 %v3834, %v1854
      %v3900 = vmul.f32 %v3839, %v1854
      %v3901 = vmul.f32 %v3844, %v1854
      %v3902 = vmul.f32 %v3849, %v1854
      %v3903 = vmul.f32 %v3854, %v1854
      %v3904 = vmul.f32 %v3859, %v1854
      %v3905 = vmul.f32 %v3864, %v1854
      %v3906 = vmul.f32 %v3869, %v1854
      %v3907 = vmul.f32 %v3874, %v1854
      %v3908 = vmul.f32 %v3879, %v1854
      %v3909 = vadd.f32 %v3684, %v3881
      %v3910 = vadd.f32 %v3685, %v3882
      %v3911 = vadd.f32 %v3686, %v3883
      %v3912 = vadd.f32 %v3687, %v3884
      %v3913 = vadd.f32 %v3688, %v3885
      %v3914 = vadd.f32 %v3689, %v3886
      %v3915 = vadd.f32 %v3690, %v3887
      %v3916 = vadd.f32 %v3691, %v3888
      %v3917 = vadd.f32 %v3692, %v3889
      %v3918 = vadd.f32 %v3693, %v3890
      %v3919 = vadd.f32 %v3694, %v3891
      %v3920 = vadd.f32 %v3695, %v3892
      %v3921 = vadd.f32 %v3696, %v3893
      %v3922 = vadd.f32 %v3697, %v3894
      %v3923 = vadd.f32 %v3698, %v3895
      %v3924 = vadd.f32 %v3699, %v3896
      %v3925 = vadd.f32 %v3700, %v3897
      %v3926 = vadd.f32 %v3701, %v3898
      %v3927 = vadd.f32 %v3702, %v3899
      %v3928 = vadd.f32 %v3703, %v3900
      %v3929 = vadd.f32 %v3704, %v3901
      %v3930 = vadd.f32 %v3705, %v3902
      %v3931 = vadd.f32 %v3706, %v3903
      %v3932 = vadd.f32 %v3707, %v3904
      %v3933 = vadd.f32 %v3708, %v3905
      %v3934 = vadd.f32 %v3709, %v3906
      %v3935 = vadd.f32 %v3710, %v3907
      %v3936 = vadd.f32 %v3711, %v3908
      %s3937 = scalar_lea.vmem %s306, 16
      %v3938 = vld [vmem:[%s3937] sm:$0xff]
      %v3939 = vld [vmem:[%s3937 + $0x8] sm:$0x3f]
      %v3940 = vld [vmem:[%s3937 + $0x10] sm:$0xff]
      %v3941 = vld [vmem:[%s3937 + $0x18] sm:$0x3f]
      %v3942 = vld [vmem:[%s3937 + $0x20] sm:$0xff]
      %v3943 = vld [vmem:[%s3937 + $0x28] sm:$0x3f]
      %v3944 = vld [vmem:[%s3937 + $0x30] sm:$0xff]
      %v3945 = vld [vmem:[%s3937 + $0x38] sm:$0x3f]
      %v3946 = vld [vmem:[%s3937 + $0x40] sm:$0xff]
      %v3947 = vld [vmem:[%s3937 + $0x48] sm:$0x3f]
      %v3948 = vld [vmem:[%s3937 + $0x50] sm:$0xff]
      %v3949 = vld [vmem:[%s3937 + $0x58] sm:$0x3f]
      %v3950 = vld [vmem:[%s3937 + $0x60] sm:$0xff]
      %v3951 = vld [vmem:[%s3937 + $0x68] sm:$0x3f]
      %v3952 = vld [vmem:[%s3937 + $0x70] sm:$0xff]
      %v3953 = vld [vmem:[%s3937 + $0x78] sm:$0x3f]
      %v3954 = vld [vmem:[%s3937 + $0x80] sm:$0xff]
      %v3955 = vld [vmem:[%s3937 + $0x88] sm:$0x3f]
      %v3956 = vld [vmem:[%s3937 + $0x90] sm:$0xff]
      %v3957 = vld [vmem:[%s3937 + $0x98] sm:$0x3f]
      %v3958 = vld [vmem:[%s3937 + $0xa0] sm:$0xff]
      %v3959 = vld [vmem:[%s3937 + $0xa8] sm:$0x3f]
      %v3960 = vld [vmem:[%s3937 + $0xb0] sm:$0xff]
      %v3961 = vld [vmem:[%s3937 + $0xb8] sm:$0x3f]
      %v3962 = vld [vmem:[%s3937 + $0xc0] sm:$0xff]
      %v3963 = vld [vmem:[%s3937 + $0xc8] sm:$0x3f]
      %v3964 = vld [vmem:[%s3937 + $0xd0] sm:$0xff]
      %v3965 = vld [vmem:[%s3937 + $0xd8] sm:$0x3f]
      %3967 = vset.pattern.permute.xlu0 0
      %3968 = vperm.xlu0 %3967, %v3938
      %v3969 = vpop.permute.xlu0 %3968
      %3972 = vset.pattern.permute.xlu0 0
      %3973 = vperm.xlu0 %3972, %v3939
      %v3974 = vpop.permute.xlu0 %3973
      %3977 = vset.pattern.permute.xlu0 0
      %3978 = vperm.xlu0 %3977, %v3940
      %v3979 = vpop.permute.xlu0 %3978
      %3982 = vset.pattern.permute.xlu0 0
      %3983 = vperm.xlu0 %3982, %v3941
      %v3984 = vpop.permute.xlu0 %3983
      %3987 = vset.pattern.permute.xlu0 0
      %3988 = vperm.xlu0 %3987, %v3942
      %v3989 = vpop.permute.xlu0 %3988
      %3992 = vset.pattern.permute.xlu0 0
      %3993 = vperm.xlu0 %3992, %v3943
      %v3994 = vpop.permute.xlu0 %3993
      %3997 = vset.pattern.permute.xlu0 0
      %3998 = vperm.xlu0 %3997, %v3944
      %v3999 = vpop.permute.xlu0 %3998
      %4002 = vset.pattern.permute.xlu0 0
      %4003 = vperm.xlu0 %4002, %v3945
      %v4004 = vpop.permute.xlu0 %4003
      %4007 = vset.pattern.permute.xlu0 0
      %4008 = vperm.xlu0 %4007, %v3946
      %v4009 = vpop.permute.xlu0 %4008
      %4012 = vset.pattern.permute.xlu0 0
      %4013 = vperm.xlu0 %4012, %v3947
      %v4014 = vpop.permute.xlu0 %4013
      %4017 = vset.pattern.permute.xlu0 0
      %4018 = vperm.xlu0 %4017, %v3948
      %v4019 = vpop.permute.xlu0 %4018
      %4022 = vset.pattern.permute.xlu0 0
      %4023 = vperm.xlu0 %4022, %v3949
      %v4024 = vpop.permute.xlu0 %4023
      %4027 = vset.pattern.permute.xlu0 0
      %4028 = vperm.xlu0 %4027, %v3950
      %v4029 = vpop.permute.xlu0 %4028
      %4032 = vset.pattern.permute.xlu0 0
      %4033 = vperm.xlu0 %4032, %v3951
      %v4034 = vpop.permute.xlu0 %4033
      %4037 = vset.pattern.permute.xlu0 0
      %4038 = vperm.xlu0 %4037, %v3952
      %v4039 = vpop.permute.xlu0 %4038
      %4042 = vset.pattern.permute.xlu0 0
      %4043 = vperm.xlu0 %4042, %v3953
      %v4044 = vpop.permute.xlu0 %4043
      %4047 = vset.pattern.permute.xlu0 0
      %4048 = vperm.xlu0 %4047, %v3954
      %v4049 = vpop.permute.xlu0 %4048
      %4052 = vset.pattern.permute.xlu0 0
      %4053 = vperm.xlu0 %4052, %v3955
      %v4054 = vpop.permute.xlu0 %4053
      %4057 = vset.pattern.permute.xlu0 0
      %4058 = vperm.xlu0 %4057, %v3956
      %v4059 = vpop.permute.xlu0 %4058
      %4062 = vset.pattern.permute.xlu0 0
      %4063 = vperm.xlu0 %4062, %v3957
      %v4064 = vpop.permute.xlu0 %4063
      %4067 = vset.pattern.permute.xlu0 0
      %4068 = vperm.xlu0 %4067, %v3958
      %v4069 = vpop.permute.xlu0 %4068
      %4072 = vset.pattern.permute.xlu0 0
      %4073 = vperm.xlu0 %4072, %v3959
      %v4074 = vpop.permute.xlu0 %4073
      %4077 = vset.pattern.permute.xlu0 0
      %4078 = vperm.xlu0 %4077, %v3960
      %v4079 = vpop.permute.xlu0 %4078
      %4082 = vset.pattern.permute.xlu0 0
      %4083 = vperm.xlu0 %4082, %v3961
      %v4084 = vpop.permute.xlu0 %4083
      %4087 = vset.pattern.permute.xlu0 0
      %4088 = vperm.xlu0 %4087, %v3962
      %v4089 = vpop.permute.xlu0 %4088
      %4092 = vset.pattern.permute.xlu0 0
      %4093 = vperm.xlu0 %4092, %v3963
      %v4094 = vpop.permute.xlu0 %4093
      %4097 = vset.pattern.permute.xlu0 0
      %4098 = vperm.xlu0 %4097, %v3964
      %v4099 = vpop.permute.xlu0 %4098
      %4102 = vset.pattern.permute.xlu0 0
      %4103 = vperm.xlu0 %4102, %v3965
      %v4104 = vpop.permute.xlu0 %4103
      %v4106 = vmul.f32 %v3969, %v2083
      %v4107 = vmul.f32 %v3974, %v2083
      %v4108 = vmul.f32 %v3979, %v2083
      %v4109 = vmul.f32 %v3984, %v2083
      %v4110 = vmul.f32 %v3989, %v2083
      %v4111 = vmul.f32 %v3994, %v2083
      %v4112 = vmul.f32 %v3999, %v2083
      %v4113 = vmul.f32 %v4004, %v2083
      %v4114 = vmul.f32 %v4009, %v2083
      %v4115 = vmul.f32 %v4014, %v2083
      %v4116 = vmul.f32 %v4019, %v2083
      %v4117 = vmul.f32 %v4024, %v2083
      %v4118 = vmul.f32 %v4029, %v2083
      %v4119 = vmul.f32 %v4034, %v2083
      %v4120 = vmul.f32 %v4039, %v2083
      %v4121 = vmul.f32 %v4044, %v2083
      %v4122 = vmul.f32 %v4049, %v2083
      %v4123 = vmul.f32 %v4054, %v2083
      %v4124 = vmul.f32 %v4059, %v2083
      %v4125 = vmul.f32 %v4064, %v2083
      %v4126 = vmul.f32 %v4069, %v2083
      %v4127 = vmul.f32 %v4074, %v2083
      %v4128 = vmul.f32 %v4079, %v2083
      %v4129 = vmul.f32 %v4084, %v2083
      %v4130 = vmul.f32 %v4089, %v2083
      %v4131 = vmul.f32 %v4094, %v2083
      %v4132 = vmul.f32 %v4099, %v2083
      %v4133 = vmul.f32 %v4104, %v2083
      %v4134 = vadd.f32 %v3909, %v4106
      %v4135 = vadd.f32 %v3910, %v4107
      %v4136 = vadd.f32 %v3911, %v4108
      %v4137 = vadd.f32 %v3912, %v4109
      %v4138 = vadd.f32 %v3913, %v4110
      %v4139 = vadd.f32 %v3914, %v4111
      %v4140 = vadd.f32 %v3915, %v4112
      %v4141 = vadd.f32 %v3916, %v4113
      %v4142 = vadd.f32 %v3917, %v4114
      %v4143 = vadd.f32 %v3918, %v4115
      %v4144 = vadd.f32 %v3919, %v4116
      %v4145 = vadd.f32 %v3920, %v4117
      %v4146 = vadd.f32 %v3921, %v4118
      %v4147 = vadd.f32 %v3922, %v4119
      %v4148 = vadd.f32 %v3923, %v4120
      %v4149 = vadd.f32 %v3924, %v4121
      %v4150 = vadd.f32 %v3925, %v4122
      %v4151 = vadd.f32 %v3926, %v4123
      %v4152 = vadd.f32 %v3927, %v4124
      %v4153 = vadd.f32 %v3928, %v4125
      %v4154 = vadd.f32 %v3929, %v4126
      %v4155 = vadd.f32 %v3930, %v4127
      %v4156 = vadd.f32 %v3931, %v4128
      %v4157 = vadd.f32 %v3932, %v4129
      %v4158 = vadd.f32 %v3933, %v4130
      %v4159 = vadd.f32 %v3934, %v4131
      %v4160 = vadd.f32 %v3935, %v4132
      %v4161 = vadd.f32 %v3936, %v4133
      %v4162 = vld [vmem:[%s3712 + $0x1] sm:$0xff]
      %v4163 = vld [vmem:[%s3712 + $0x9] sm:$0x3f]
      %v4164 = vld [vmem:[%s3712 + $0x11] sm:$0xff]
      %v4165 = vld [vmem:[%s3712 + $0x19] sm:$0x3f]
      %v4166 = vld [vmem:[%s3712 + $0x21] sm:$0xff]
      %v4167 = vld [vmem:[%s3712 + $0x29] sm:$0x3f]
      %v4168 = vld [vmem:[%s3712 + $0x31] sm:$0xff]
      %v4169 = vld [vmem:[%s3712 + $0x39] sm:$0x3f]
      %v4170 = vld [vmem:[%s3712 + $0x41] sm:$0xff]
      %v4171 = vld [vmem:[%s3712 + $0x49] sm:$0x3f]
      %v4172 = vld [vmem:[%s3712 + $0x51] sm:$0xff]
      %v4173 = vld [vmem:[%s3712 + $0x59] sm:$0x3f]
      %v4174 = vld [vmem:[%s3712 + $0x61] sm:$0xff]
      %v4175 = vld [vmem:[%s3712 + $0x69] sm:$0x3f]
      %v4176 = vld [vmem:[%s3712 + $0x71] sm:$0xff]
      %v4177 = vld [vmem:[%s3712 + $0x79] sm:$0x3f]
      %v4178 = vld [vmem:[%s3712 + $0x81] sm:$0xff]
      %v4179 = vld [vmem:[%s3712 + $0x89] sm:$0x3f]
      %v4180 = vld [vmem:[%s3712 + $0x91] sm:$0xff]
      %v4181 = vld [vmem:[%s3712 + $0x99] sm:$0x3f]
      %v4182 = vld [vmem:[%s3712 + $0xa1] sm:$0xff]
      %v4183 = vld [vmem:[%s3712 + $0xa9] sm:$0x3f]
      %v4184 = vld [vmem:[%s3712 + $0xb1] sm:$0xff]
      %v4185 = vld [vmem:[%s3712 + $0xb9] sm:$0x3f]
      %v4186 = vld [vmem:[%s3712 + $0xc1] sm:$0xff]
      %v4187 = vld [vmem:[%s3712 + $0xc9] sm:$0x3f]
      %v4188 = vld [vmem:[%s3712 + $0xd1] sm:$0xff]
      %v4189 = vld [vmem:[%s3712 + $0xd9] sm:$0x3f]
      %4191 = vset.pattern.permute.xlu0 0
      %4192 = vperm.xlu0 %4191, %v4162
      %v4193 = vpop.permute.xlu0 %4192
      %4196 = vset.pattern.permute.xlu0 0
      %4197 = vperm.xlu0 %4196, %v4163
      %v4198 = vpop.permute.xlu0 %4197
      %4201 = vset.pattern.permute.xlu0 0
      %4202 = vperm.xlu0 %4201, %v4164
      %v4203 = vpop.permute.xlu0 %4202
      %4206 = vset.pattern.permute.xlu0 0
      %4207 = vperm.xlu0 %4206, %v4165
      %v4208 = vpop.permute.xlu0 %4207
      %4211 = vset.pattern.permute.xlu0 0
      %4212 = vperm.xlu0 %4211, %v4166
      %v4213 = vpop.permute.xlu0 %4212
      %4216 = vset.pattern.permute.xlu0 0
      %4217 = vperm.xlu0 %4216, %v4167
      %v4218 = vpop.permute.xlu0 %4217
      %4221 = vset.pattern.permute.xlu0 0
      %4222 = vperm.xlu0 %4221, %v4168
      %v4223 = vpop.permute.xlu0 %4222
      %4226 = vset.pattern.permute.xlu0 0
      %4227 = vperm.xlu0 %4226, %v4169
      %v4228 = vpop.permute.xlu0 %4227
      %4231 = vset.pattern.permute.xlu0 0
      %4232 = vperm.xlu0 %4231, %v4170
      %v4233 = vpop.permute.xlu0 %4232
      %4236 = vset.pattern.permute.xlu0 0
      %4237 = vperm.xlu0 %4236, %v4171
      %v4238 = vpop.permute.xlu0 %4237
      %4241 = vset.pattern.permute.xlu0 0
      %4242 = vperm.xlu0 %4241, %v4172
      %v4243 = vpop.permute.xlu0 %4242
      %4246 = vset.pattern.permute.xlu0 0
      %4247 = vperm.xlu0 %4246, %v4173
      %v4248 = vpop.permute.xlu0 %4247
      %4251 = vset.pattern.permute.xlu0 0
      %4252 = vperm.xlu0 %4251, %v4174
      %v4253 = vpop.permute.xlu0 %4252
      %4256 = vset.pattern.permute.xlu0 0
      %4257 = vperm.xlu0 %4256, %v4175
      %v4258 = vpop.permute.xlu0 %4257
      %4261 = vset.pattern.permute.xlu0 0
      %4262 = vperm.xlu0 %4261, %v4176
      %v4263 = vpop.permute.xlu0 %4262
      %4266 = vset.pattern.permute.xlu0 0
      %4267 = vperm.xlu0 %4266, %v4177
      %v4268 = vpop.permute.xlu0 %4267
      %4271 = vset.pattern.permute.xlu0 0
      %4272 = vperm.xlu0 %4271, %v4178
      %v4273 = vpop.permute.xlu0 %4272
      %4276 = vset.pattern.permute.xlu0 0
      %4277 = vperm.xlu0 %4276, %v4179
      %v4278 = vpop.permute.xlu0 %4277
      %4281 = vset.pattern.permute.xlu0 0
      %4282 = vperm.xlu0 %4281, %v4180
      %v4283 = vpop.permute.xlu0 %4282
      %4286 = vset.pattern.permute.xlu0 0
      %4287 = vperm.xlu0 %4286, %v4181
      %v4288 = vpop.permute.xlu0 %4287
      %4291 = vset.pattern.permute.xlu0 0
      %4292 = vperm.xlu0 %4291, %v4182
      %v4293 = vpop.permute.xlu0 %4292
      %4296 = vset.pattern.permute.xlu0 0
      %4297 = vperm.xlu0 %4296, %v4183
      %v4298 = vpop.permute.xlu0 %4297
      %4301 = vset.pattern.permute.xlu0 0
      %4302 = vperm.xlu0 %4301, %v4184
      %v4303 = vpop.permute.xlu0 %4302
      %4306 = vset.pattern.permute.xlu0 0
      %4307 = vperm.xlu0 %4306, %v4185
      %v4308 = vpop.permute.xlu0 %4307
      %4311 = vset.pattern.permute.xlu0 0
      %4312 = vperm.xlu0 %4311, %v4186
      %v4313 = vpop.permute.xlu0 %4312
      %4316 = vset.pattern.permute.xlu0 0
      %4317 = vperm.xlu0 %4316, %v4187
      %v4318 = vpop.permute.xlu0 %4317
      %4321 = vset.pattern.permute.xlu0 0
      %4322 = vperm.xlu0 %4321, %v4188
      %v4323 = vpop.permute.xlu0 %4322
      %4326 = vset.pattern.permute.xlu0 0
      %4327 = vperm.xlu0 %4326, %v4189
      %v4328 = vpop.permute.xlu0 %4327
      %v4330 = vmul.f32 %v4193, %v2311
      %v4331 = vmul.f32 %v4198, %v2311
      %v4332 = vmul.f32 %v4203, %v2311
      %v4333 = vmul.f32 %v4208, %v2311
      %v4334 = vmul.f32 %v4213, %v2311
      %v4335 = vmul.f32 %v4218, %v2311
      %v4336 = vmul.f32 %v4223, %v2311
      %v4337 = vmul.f32 %v4228, %v2311
      %v4338 = vmul.f32 %v4233, %v2311
      %v4339 = vmul.f32 %v4238, %v2311
      %v4340 = vmul.f32 %v4243, %v2311
      %v4341 = vmul.f32 %v4248, %v2311
      %v4342 = vmul.f32 %v4253, %v2311
      %v4343 = vmul.f32 %v4258, %v2311
      %v4344 = vmul.f32 %v4263, %v2311
      %v4345 = vmul.f32 %v4268, %v2311
      %v4346 = vmul.f32 %v4273, %v2311
      %v4347 = vmul.f32 %v4278, %v2311
      %v4348 = vmul.f32 %v4283, %v2311
      %v4349 = vmul.f32 %v4288, %v2311
      %v4350 = vmul.f32 %v4293, %v2311
      %v4351 = vmul.f32 %v4298, %v2311
      %v4352 = vmul.f32 %v4303, %v2311
      %v4353 = vmul.f32 %v4308, %v2311
      %v4354 = vmul.f32 %v4313, %v2311
      %v4355 = vmul.f32 %v4318, %v2311
      %v4356 = vmul.f32 %v4323, %v2311
      %v4357 = vmul.f32 %v4328, %v2311
      %v4358 = vadd.f32 %v4134, %v4330
      %v4359 = vadd.f32 %v4135, %v4331
      %v4360 = vadd.f32 %v4136, %v4332
      %v4361 = vadd.f32 %v4137, %v4333
      %v4362 = vadd.f32 %v4138, %v4334
      %v4363 = vadd.f32 %v4139, %v4335
      %v4364 = vadd.f32 %v4140, %v4336
      %v4365 = vadd.f32 %v4141, %v4337
      %v4366 = vadd.f32 %v4142, %v4338
      %v4367 = vadd.f32 %v4143, %v4339
      %v4368 = vadd.f32 %v4144, %v4340
      %v4369 = vadd.f32 %v4145, %v4341
      %v4370 = vadd.f32 %v4146, %v4342
      %v4371 = vadd.f32 %v4147, %v4343
      %v4372 = vadd.f32 %v4148, %v4344
      %v4373 = vadd.f32 %v4149, %v4345
      %v4374 = vadd.f32 %v4150, %v4346
      %v4375 = vadd.f32 %v4151, %v4347
      %v4376 = vadd.f32 %v4152, %v4348
      %v4377 = vadd.f32 %v4153, %v4349
      %v4378 = vadd.f32 %v4154, %v4350
      %v4379 = vadd.f32 %v4155, %v4351
      %v4380 = vadd.f32 %v4156, %v4352
      %v4381 = vadd.f32 %v4157, %v4353
      %v4382 = vadd.f32 %v4158, %v4354
      %v4383 = vadd.f32 %v4159, %v4355
      %v4384 = vadd.f32 %v4160, %v4356
      %v4385 = vadd.f32 %v4161, %v4357
      %v4386 = vmul.f32 %v1257, %v485
      %v4387 = vmul.f32 %v1262, %v485
      %v4388 = vmul.f32 %v1267, %v485
      %v4389 = vmul.f32 %v1272, %v485
      %v4390 = vmul.f32 %v1277, %v485
      %v4391 = vmul.f32 %v1282, %v485
      %v4392 = vmul.f32 %v1287, %v485
      %v4393 = vmul.f32 %v1292, %v485
      %v4394 = vmul.f32 %v1297, %v485
      %v4395 = vmul.f32 %v1302, %v485
      %v4396 = vmul.f32 %v1307, %v485
      %v4397 = vmul.f32 %v1312, %v485
      %v4398 = vmul.f32 %v1317, %v485
      %v4399 = vmul.f32 %v1322, %v485
      %v4400 = vmul.f32 %v1327, %v485
      %v4401 = vmul.f32 %v1332, %v485
      %v4402 = vmul.f32 %v1337, %v485
      %v4403 = vmul.f32 %v1342, %v485
      %v4404 = vmul.f32 %v1347, %v485
      %v4405 = vmul.f32 %v1352, %v485
      %v4406 = vmul.f32 %v1357, %v485
      %v4407 = vmul.f32 %v1362, %v485
      %v4408 = vmul.f32 %v1367, %v485
      %v4409 = vmul.f32 %v1372, %v485
      %v4410 = vmul.f32 %v1377, %v485
      %v4411 = vmul.f32 %v1382, %v485
      %v4412 = vmul.f32 %v1387, %v485
      %v4413 = vmul.f32 %v1392, %v485
      %v4414 = vadd.f32 %v4386, 0.0
      %v4415 = vadd.f32 %v4387, 0.0
      %v4416 = vadd.f32 %v4388, 0.0
      %v4417 = vadd.f32 %v4389, 0.0
      %v4418 = vadd.f32 %v4390, 0.0
      %v4419 = vadd.f32 %v4391, 0.0
      %v4420 = vadd.f32 %v4392, 0.0
      %v4421 = vadd.f32 %v4393, 0.0
      %v4422 = vadd.f32 %v4394, 0.0
      %v4423 = vadd.f32 %v4395, 0.0
      %v4424 = vadd.f32 %v4396, 0.0
      %v4425 = vadd.f32 %v4397, 0.0
      %v4426 = vadd.f32 %v4398, 0.0
      %v4427 = vadd.f32 %v4399, 0.0
      %v4428 = vadd.f32 %v4400, 0.0
      %v4429 = vadd.f32 %v4401, 0.0
      %v4430 = vadd.f32 %v4402, 0.0
      %v4431 = vadd.f32 %v4403, 0.0
      %v4432 = vadd.f32 %v4404, 0.0
      %v4433 = vadd.f32 %v4405, 0.0
      %v4434 = vadd.f32 %v4406, 0.0
      %v4435 = vadd.f32 %v4407, 0.0
      %v4436 = vadd.f32 %v4408, 0.0
      %v4437 = vadd.f32 %v4409, 0.0
      %v4438 = vadd.f32 %v4410, 0.0
      %v4439 = vadd.f32 %v4411, 0.0
      %v4440 = vadd.f32 %v4412, 0.0
      %v4441 = vadd.f32 %v4413, 0.0
      %v4442 = vmul.f32 %v1485, %v713
      %v4443 = vmul.f32 %v1490, %v713
      %v4444 = vmul.f32 %v1495, %v713
      %v4445 = vmul.f32 %v1500, %v713
      %v4446 = vmul.f32 %v1505, %v713
      %v4447 = vmul.f32 %v1510, %v713
      %v4448 = vmul.f32 %v1515, %v713
      %v4449 = vmul.f32 %v1520, %v713
      %v4450 = vmul.f32 %v1525, %v713
      %v4451 = vmul.f32 %v1530, %v713
      %v4452 = vmul.f32 %v1535, %v713
      %v4453 = vmul.f32 %v1540, %v713
      %v4454 = vmul.f32 %v1545, %v713
      %v4455 = vmul.f32 %v1550, %v713
      %v4456 = vmul.f32 %v1555, %v713
      %v4457 = vmul.f32 %v1560, %v713
      %v4458 = vmul.f32 %v1565, %v713
      %v4459 = vmul.f32 %v1570, %v713
      %v4460 = vmul.f32 %v1575, %v713
      %v4461 = vmul.f32 %v1580, %v713
      %v4462 = vmul.f32 %v1585, %v713
      %v4463 = vmul.f32 %v1590, %v713
      %v4464 = vmul.f32 %v1595, %v713
      %v4465 = vmul.f32 %v1600, %v713
      %v4466 = vmul.f32 %v1605, %v713
      %v4467 = vmul.f32 %v1610, %v713
      %v4468 = vmul.f32 %v1615, %v713
      %v4469 = vmul.f32 %v1620, %v713
      %v4470 = vadd.f32 %v4414, %v4442
      %v4471 = vadd.f32 %v4415, %v4443
      %v4472 = vadd.f32 %v4416, %v4444
      %v4473 = vadd.f32 %v4417, %v4445
      %v4474 = vadd.f32 %v4418, %v4446
      %v4475 = vadd.f32 %v4419, %v4447
      %v4476 = vadd.f32 %v4420, %v4448
      %v4477 = vadd.f32 %v4421, %v4449
      %v4478 = vadd.f32 %v4422, %v4450
      %v4479 = vadd.f32 %v4423, %v4451
      %v4480 = vadd.f32 %v4424, %v4452
      %v4481 = vadd.f32 %v4425, %v4453
      %v4482 = vadd.f32 %v4426, %v4454
      %v4483 = vadd.f32 %v4427, %v4455
      %v4484 = vadd.f32 %v4428, %v4456
      %v4485 = vadd.f32 %v4429, %v4457
      %v4486 = vadd.f32 %v4430, %v4458
      %v4487 = vadd.f32 %v4431, %v4459
      %v4488 = vadd.f32 %v4432, %v4460
      %v4489 = vadd.f32 %v4433, %v4461
      %v4490 = vadd.f32 %v4434, %v4462
      %v4491 = vadd.f32 %v4435, %v4463
      %v4492 = vadd.f32 %v4436, %v4464
      %v4493 = vadd.f32 %v4437, %v4465
      %v4494 = vadd.f32 %v4438, %v4466
      %v4495 = vadd.f32 %v4439, %v4467
      %v4496 = vadd.f32 %v4440, %v4468
      %v4497 = vadd.f32 %v4441, %v4469
      %v4498 = vmul.f32 %v2847, %v941
      %v4499 = vmul.f32 %v2852, %v941
      %v4500 = vmul.f32 %v2857, %v941
      %v4501 = vmul.f32 %v2862, %v941
      %v4502 = vmul.f32 %v2867, %v941
      %v4503 = vmul.f32 %v2872, %v941
      %v4504 = vmul.f32 %v2877, %v941
      %v4505 = vmul.f32 %v2882, %v941
      %v4506 = vmul.f32 %v2887, %v941
      %v4507 = vmul.f32 %v2892, %v941
      %v4508 = vmul.f32 %v2897, %v941
      %v4509 = vmul.f32 %v2902, %v941
      %v4510 = vmul.f32 %v2907, %v941
      %v4511 = vmul.f32 %v2912, %v941
      %v4512 = vmul.f32 %v2917, %v941
      %v4513 = vmul.f32 %v2922, %v941
      %v4514 = vmul.f32 %v2927, %v941
      %v4515 = vmul.f32 %v2932, %v941
      %v4516 = vmul.f32 %v2937, %v941
      %v4517 = vmul.f32 %v2942, %v941
      %v4518 = vmul.f32 %v2947, %v941
      %v4519 = vmul.f32 %v2952, %v941
      %v4520 = vmul.f32 %v2957, %v941
      %v4521 = vmul.f32 %v2962, %v941
      %v4522 = vmul.f32 %v2967, %v941
      %v4523 = vmul.f32 %v2972, %v941
      %v4524 = vmul.f32 %v2977, %v941
      %v4525 = vmul.f32 %v2982, %v941
      %v4526 = vadd.f32 %v4470, %v4498
      %v4527 = vadd.f32 %v4471, %v4499
      %v4528 = vadd.f32 %v4472, %v4500
      %v4529 = vadd.f32 %v4473, %v4501
      %v4530 = vadd.f32 %v4474, %v4502
      %v4531 = vadd.f32 %v4475, %v4503
      %v4532 = vadd.f32 %v4476, %v4504
      %v4533 = vadd.f32 %v4477, %v4505
      %v4534 = vadd.f32 %v4478, %v4506
      %v4535 = vadd.f32 %v4479, %v4507
      %v4536 = vadd.f32 %v4480, %v4508
      %v4537 = vadd.f32 %v4481, %v4509
      %v4538 = vadd.f32 %v4482, %v4510
      %v4539 = vadd.f32 %v4483, %v4511
      %v4540 = vadd.f32 %v4484, %v4512
      %v4541 = vadd.f32 %v4485, %v4513
      %v4542 = vadd.f32 %v4486, %v4514
      %v4543 = vadd.f32 %v4487, %v4515
      %v4544 = vadd.f32 %v4488, %v4516
      %v4545 = vadd.f32 %v4489, %v4517
      %v4546 = vadd.f32 %v4490, %v4518
      %v4547 = vadd.f32 %v4491, %v4519
      %v4548 = vadd.f32 %v4492, %v4520
      %v4549 = vadd.f32 %v4493, %v4521
      %v4550 = vadd.f32 %v4494, %v4522
      %v4551 = vadd.f32 %v4495, %v4523
      %v4552 = vadd.f32 %v4496, %v4524
      %v4553 = vadd.f32 %v4497, %v4525
      %v4554 = vmul.f32 %v1943, %v1169
      %v4555 = vmul.f32 %v1948, %v1169
      %v4556 = vmul.f32 %v1953, %v1169
      %v4557 = vmul.f32 %v1958, %v1169
      %v4558 = vmul.f32 %v1963, %v1169
      %v4559 = vmul.f32 %v1968, %v1169
      %v4560 = vmul.f32 %v1973, %v1169
      %v4561 = vmul.f32 %v1978, %v1169
      %v4562 = vmul.f32 %v1983, %v1169
      %v4563 = vmul.f32 %v1988, %v1169
      %v4564 = vmul.f32 %v1993, %v1169
      %v4565 = vmul.f32 %v1998, %v1169
      %v4566 = vmul.f32 %v2003, %v1169
      %v4567 = vmul.f32 %v2008, %v1169
      %v4568 = vmul.f32 %v2013, %v1169
      %v4569 = vmul.f32 %v2018, %v1169
      %v4570 = vmul.f32 %v2023, %v1169
      %v4571 = vmul.f32 %v2028, %v1169
      %v4572 = vmul.f32 %v2033, %v1169
      %v4573 = vmul.f32 %v2038, %v1169
      %v4574 = vmul.f32 %v2043, %v1169
      %v4575 = vmul.f32 %v2048, %v1169
      %v4576 = vmul.f32 %v2053, %v1169
      %v4577 = vmul.f32 %v2058, %v1169
      %v4578 = vmul.f32 %v2063, %v1169
      %v4579 = vmul.f32 %v2068, %v1169
      %v4580 = vmul.f32 %v2073, %v1169
      %v4581 = vmul.f32 %v2078, %v1169
      %v4582 = vadd.f32 %v4526, %v4554
      %v4583 = vadd.f32 %v4527, %v4555
      %v4584 = vadd.f32 %v4528, %v4556
      %v4585 = vadd.f32 %v4529, %v4557
      %v4586 = vadd.f32 %v4530, %v4558
      %v4587 = vadd.f32 %v4531, %v4559
      %v4588 = vadd.f32 %v4532, %v4560
      %v4589 = vadd.f32 %v4533, %v4561
      %v4590 = vadd.f32 %v4534, %v4562
      %v4591 = vadd.f32 %v4535, %v4563
      %v4592 = vadd.f32 %v4536, %v4564
      %v4593 = vadd.f32 %v4537, %v4565
      %v4594 = vadd.f32 %v4538, %v4566
      %v4595 = vadd.f32 %v4539, %v4567
      %v4596 = vadd.f32 %v4540, %v4568
      %v4597 = vadd.f32 %v4541, %v4569
      %v4598 = vadd.f32 %v4542, %v4570
      %v4599 = vadd.f32 %v4543, %v4571
      %v4600 = vadd.f32 %v4544, %v4572
      %v4601 = vadd.f32 %v4545, %v4573
      %v4602 = vadd.f32 %v4546, %v4574
      %v4603 = vadd.f32 %v4547, %v4575
      %v4604 = vadd.f32 %v4548, %v4576
      %v4605 = vadd.f32 %v4549, %v4577
      %v4606 = vadd.f32 %v4550, %v4578
      %v4607 = vadd.f32 %v4551, %v4579
      %v4608 = vadd.f32 %v4552, %v4580
      %v4609 = vadd.f32 %v4553, %v4581
      %v4610 = vmul.f32 %v2171, %v1397
      %v4611 = vmul.f32 %v2176, %v1397
      %v4612 = vmul.f32 %v2181, %v1397
      %v4613 = vmul.f32 %v2186, %v1397
      %v4614 = vmul.f32 %v2191, %v1397
      %v4615 = vmul.f32 %v2196, %v1397
      %v4616 = vmul.f32 %v2201, %v1397
      %v4617 = vmul.f32 %v2206, %v1397
      %v4618 = vmul.f32 %v2211, %v1397
      %v4619 = vmul.f32 %v2216, %v1397
      %v4620 = vmul.f32 %v2221, %v1397
      %v4621 = vmul.f32 %v2226, %v1397
      %v4622 = vmul.f32 %v2231, %v1397
      %v4623 = vmul.f32 %v2236, %v1397
      %v4624 = vmul.f32 %v2241, %v1397
      %v4625 = vmul.f32 %v2246, %v1397
      %v4626 = vmul.f32 %v2251, %v1397
      %v4627 = vmul.f32 %v2256, %v1397
      %v4628 = vmul.f32 %v2261, %v1397
      %v4629 = vmul.f32 %v2266, %v1397
      %v4630 = vmul.f32 %v2271, %v1397
      %v4631 = vmul.f32 %v2276, %v1397
      %v4632 = vmul.f32 %v2281, %v1397
      %v4633 = vmul.f32 %v2286, %v1397
      %v4634 = vmul.f32 %v2291, %v1397
      %v4635 = vmul.f32 %v2296, %v1397
      %v4636 = vmul.f32 %v2301, %v1397
      %v4637 = vmul.f32 %v2306, %v1397
      %v4638 = vadd.f32 %v4582, %v4610
      %v4639 = vadd.f32 %v4583, %v4611
      %v4640 = vadd.f32 %v4584, %v4612
      %v4641 = vadd.f32 %v4585, %v4613
      %v4642 = vadd.f32 %v4586, %v4614
      %v4643 = vadd.f32 %v4587, %v4615
      %v4644 = vadd.f32 %v4588, %v4616
      %v4645 = vadd.f32 %v4589, %v4617
      %v4646 = vadd.f32 %v4590, %v4618
      %v4647 = vadd.f32 %v4591, %v4619
      %v4648 = vadd.f32 %v4592, %v4620
      %v4649 = vadd.f32 %v4593, %v4621
      %v4650 = vadd.f32 %v4594, %v4622
      %v4651 = vadd.f32 %v4595, %v4623
      %v4652 = vadd.f32 %v4596, %v4624
      %v4653 = vadd.f32 %v4597, %v4625
      %v4654 = vadd.f32 %v4598, %v4626
      %v4655 = vadd.f32 %v4599, %v4627
      %v4656 = vadd.f32 %v4600, %v4628
      %v4657 = vadd.f32 %v4601, %v4629
      %v4658 = vadd.f32 %v4602, %v4630
      %v4659 = vadd.f32 %v4603, %v4631
      %v4660 = vadd.f32 %v4604, %v4632
      %v4661 = vadd.f32 %v4605, %v4633
      %v4662 = vadd.f32 %v4606, %v4634
      %v4663 = vadd.f32 %v4607, %v4635
      %v4664 = vadd.f32 %v4608, %v4636
      %v4665 = vadd.f32 %v4609, %v4637
      %v4666 = vmul.f32 %v3183, %v1625
      %v4667 = vmul.f32 %v3188, %v1625
      %v4668 = vmul.f32 %v3193, %v1625
      %v4669 = vmul.f32 %v3198, %v1625
      %v4670 = vmul.f32 %v3203, %v1625
      %v4671 = vmul.f32 %v3208, %v1625
      %v4672 = vmul.f32 %v3213, %v1625
      %v4673 = vmul.f32 %v3218, %v1625
      %v4674 = vmul.f32 %v3223, %v1625
      %v4675 = vmul.f32 %v3228, %v1625
      %v4676 = vmul.f32 %v3233, %v1625
      %v4677 = vmul.f32 %v3238, %v1625
      %v4678 = vmul.f32 %v3243, %v1625
      %v4679 = vmul.f32 %v3248, %v1625
      %v4680 = vmul.f32 %v3253, %v1625
      %v4681 = vmul.f32 %v3258, %v1625
      %v4682 = vmul.f32 %v3263, %v1625
      %v4683 = vmul.f32 %v3268, %v1625
      %v4684 = vmul.f32 %v3273, %v1625
      %v4685 = vmul.f32 %v3278, %v1625
      %v4686 = vmul.f32 %v3283, %v1625
      %v4687 = vmul.f32 %v3288, %v1625
      %v4688 = vmul.f32 %v3293, %v1625
      %v4689 = vmul.f32 %v3298, %v1625
      %v4690 = vmul.f32 %v3303, %v1625
      %v4691 = vmul.f32 %v3308, %v1625
      %v4692 = vmul.f32 %v3313, %v1625
      %v4693 = vmul.f32 %v3318, %v1625
      %v4694 = vadd.f32 %v4638, %v4666
      %v4695 = vadd.f32 %v4639, %v4667
      %v4696 = vadd.f32 %v4640, %v4668
      %v4697 = vadd.f32 %v4641, %v4669
      %v4698 = vadd.f32 %v4642, %v4670
      %v4699 = vadd.f32 %v4643, %v4671
      %v4700 = vadd.f32 %v4644, %v4672
      %v4701 = vadd.f32 %v4645, %v4673
      %v4702 = vadd.f32 %v4646, %v4674
      %v4703 = vadd.f32 %v4647, %v4675
      %v4704 = vadd.f32 %v4648, %v4676
      %v4705 = vadd.f32 %v4649, %v4677
      %v4706 = vadd.f32 %v4650, %v4678
      %v4707 = vadd.f32 %v4651, %v4679
      %v4708 = vadd.f32 %v4652, %v4680
      %v4709 = vadd.f32 %v4653, %v4681
      %v4710 = vadd.f32 %v4654, %v4682
      %v4711 = vadd.f32 %v4655, %v4683
      %v4712 = vadd.f32 %v4656, %v4684
      %v4713 = vadd.f32 %v4657, %v4685
      %v4714 = vadd.f32 %v4658, %v4686
      %v4715 = vadd.f32 %v4659, %v4687
      %v4716 = vadd.f32 %v4660, %v4688
      %v4717 = vadd.f32 %v4661, %v4689
      %v4718 = vadd.f32 %v4662, %v4690
      %v4719 = vadd.f32 %v4663, %v4691
      %v4720 = vadd.f32 %v4664, %v4692
      %v4721 = vadd.f32 %v4665, %v4693
      %v4722 = vmul.f32 %v3969, %v1854
      %v4723 = vmul.f32 %v3974, %v1854
      %v4724 = vmul.f32 %v3979, %v1854
      %v4725 = vmul.f32 %v3984, %v1854
      %v4726 = vmul.f32 %v3989, %v1854
      %v4727 = vmul.f32 %v3994, %v1854
      %v4728 = vmul.f32 %v3999, %v1854
      %v4729 = vmul.f32 %v4004, %v1854
      %v4730 = vmul.f32 %v4009, %v1854
      %v4731 = vmul.f32 %v4014, %v1854
      %v4732 = vmul.f32 %v4019, %v1854
      %v4733 = vmul.f32 %v4024, %v1854
      %v4734 = vmul.f32 %v4029, %v1854
      %v4735 = vmul.f32 %v4034, %v1854
      %v4736 = vmul.f32 %v4039, %v1854
      %v4737 = vmul.f32 %v4044, %v1854
      %v4738 = vmul.f32 %v4049, %v1854
      %v4739 = vmul.f32 %v4054, %v1854
      %v4740 = vmul.f32 %v4059, %v1854
      %v4741 = vmul.f32 %v4064, %v1854
      %v4742 = vmul.f32 %v4069, %v1854
      %v4743 = vmul.f32 %v4074, %v1854
      %v4744 = vmul.f32 %v4079, %v1854
      %v4745 = vmul.f32 %v4084, %v1854
      %v4746 = vmul.f32 %v4089, %v1854
      %v4747 = vmul.f32 %v4094, %v1854
      %v4748 = vmul.f32 %v4099, %v1854
      %v4749 = vmul.f32 %v4104, %v1854
      %v4750 = vadd.f32 %v4694, %v4722
      %v4751 = vadd.f32 %v4695, %v4723
      %v4752 = vadd.f32 %v4696, %v4724
      %v4753 = vadd.f32 %v4697, %v4725
      %v4754 = vadd.f32 %v4698, %v4726
      %v4755 = vadd.f32 %v4699, %v4727
      %v4756 = vadd.f32 %v4700, %v4728
      %v4757 = vadd.f32 %v4701, %v4729
      %v4758 = vadd.f32 %v4702, %v4730
      %v4759 = vadd.f32 %v4703, %v4731
      %v4760 = vadd.f32 %v4704, %v4732
      %v4761 = vadd.f32 %v4705, %v4733
      %v4762 = vadd.f32 %v4706, %v4734
      %v4763 = vadd.f32 %v4707, %v4735
      %v4764 = vadd.f32 %v4708, %v4736
      %v4765 = vadd.f32 %v4709, %v4737
      %v4766 = vadd.f32 %v4710, %v4738
      %v4767 = vadd.f32 %v4711, %v4739
      %v4768 = vadd.f32 %v4712, %v4740
      %v4769 = vadd.f32 %v4713, %v4741
      %v4770 = vadd.f32 %v4714, %v4742
      %v4771 = vadd.f32 %v4715, %v4743
      %v4772 = vadd.f32 %v4716, %v4744
      %v4773 = vadd.f32 %v4717, %v4745
      %v4774 = vadd.f32 %v4718, %v4746
      %v4775 = vadd.f32 %v4719, %v4747
      %v4776 = vadd.f32 %v4720, %v4748
      %v4777 = vadd.f32 %v4721, %v4749
      %v4778 = vmul.f32 %v4193, %v2083
      %v4779 = vmul.f32 %v4198, %v2083
      %v4780 = vmul.f32 %v4203, %v2083
      %v4781 = vmul.f32 %v4208, %v2083
      %v4782 = vmul.f32 %v4213, %v2083
      %v4783 = vmul.f32 %v4218, %v2083
      %v4784 = vmul.f32 %v4223, %v2083
      %v4785 = vmul.f32 %v4228, %v2083
      %v4786 = vmul.f32 %v4233, %v2083
      %v4787 = vmul.f32 %v4238, %v2083
      %v4788 = vmul.f32 %v4243, %v2083
      %v4789 = vmul.f32 %v4248, %v2083
      %v4790 = vmul.f32 %v4253, %v2083
      %v4791 = vmul.f32 %v4258, %v2083
      %v4792 = vmul.f32 %v4263, %v2083
      %v4793 = vmul.f32 %v4268, %v2083
      %v4794 = vmul.f32 %v4273, %v2083
      %v4795 = vmul.f32 %v4278, %v2083
      %v4796 = vmul.f32 %v4283, %v2083
      %v4797 = vmul.f32 %v4288, %v2083
      %v4798 = vmul.f32 %v4293, %v2083
      %v4799 = vmul.f32 %v4298, %v2083
      %v4800 = vmul.f32 %v4303, %v2083
      %v4801 = vmul.f32 %v4308, %v2083
      %v4802 = vmul.f32 %v4313, %v2083
      %v4803 = vmul.f32 %v4318, %v2083
      %v4804 = vmul.f32 %v4323, %v2083
      %v4805 = vmul.f32 %v4328, %v2083
      %v4806 = vadd.f32 %v4750, %v4778
      %v4807 = vadd.f32 %v4751, %v4779
      %v4808 = vadd.f32 %v4752, %v4780
      %v4809 = vadd.f32 %v4753, %v4781
      %v4810 = vadd.f32 %v4754, %v4782
      %v4811 = vadd.f32 %v4755, %v4783
      %v4812 = vadd.f32 %v4756, %v4784
      %v4813 = vadd.f32 %v4757, %v4785
      %v4814 = vadd.f32 %v4758, %v4786
      %v4815 = vadd.f32 %v4759, %v4787
      %v4816 = vadd.f32 %v4760, %v4788
      %v4817 = vadd.f32 %v4761, %v4789
      %v4818 = vadd.f32 %v4762, %v4790
      %v4819 = vadd.f32 %v4763, %v4791
      %v4820 = vadd.f32 %v4764, %v4792
      %v4821 = vadd.f32 %v4765, %v4793
      %v4822 = vadd.f32 %v4766, %v4794
      %v4823 = vadd.f32 %v4767, %v4795
      %v4824 = vadd.f32 %v4768, %v4796
      %v4825 = vadd.f32 %v4769, %v4797
      %v4826 = vadd.f32 %v4770, %v4798
      %v4827 = vadd.f32 %v4771, %v4799
      %v4828 = vadd.f32 %v4772, %v4800
      %v4829 = vadd.f32 %v4773, %v4801
      %v4830 = vadd.f32 %v4774, %v4802
      %v4831 = vadd.f32 %v4775, %v4803
      %v4832 = vadd.f32 %v4776, %v4804
      %v4833 = vadd.f32 %v4777, %v4805
      %v4834 = vld [vmem:[%s3937 + $0x1] sm:$0xff]
      %v4835 = vld [vmem:[%s3937 + $0x9] sm:$0x3f]
      %v4836 = vld [vmem:[%s3937 + $0x11] sm:$0xff]
      %v4837 = vld [vmem:[%s3937 + $0x19] sm:$0x3f]
      %v4838 = vld [vmem:[%s3937 + $0x21] sm:$0xff]
      %v4839 = vld [vmem:[%s3937 + $0x29] sm:$0x3f]
      %v4840 = vld [vmem:[%s3937 + $0x31] sm:$0xff]
      %v4841 = vld [vmem:[%s3937 + $0x39] sm:$0x3f]
      %v4842 = vld [vmem:[%s3937 + $0x41] sm:$0xff]
      %v4843 = vld [vmem:[%s3937 + $0x49] sm:$0x3f]
      %v4844 = vld [vmem:[%s3937 + $0x51] sm:$0xff]
      %v4845 = vld [vmem:[%s3937 + $0x59] sm:$0x3f]
      %v4846 = vld [vmem:[%s3937 + $0x61] sm:$0xff]
      %v4847 = vld [vmem:[%s3937 + $0x69] sm:$0x3f]
      %v4848 = vld [vmem:[%s3937 + $0x71] sm:$0xff]
      %v4849 = vld [vmem:[%s3937 + $0x79] sm:$0x3f]
      %v4850 = vld [vmem:[%s3937 + $0x81] sm:$0xff]
      %v4851 = vld [vmem:[%s3937 + $0x89] sm:$0x3f]
      %v4852 = vld [vmem:[%s3937 + $0x91] sm:$0xff]
      %v4853 = vld [vmem:[%s3937 + $0x99] sm:$0x3f]
      %v4854 = vld [vmem:[%s3937 + $0xa1] sm:$0xff]
      %v4855 = vld [vmem:[%s3937 + $0xa9] sm:$0x3f]
      %v4856 = vld [vmem:[%s3937 + $0xb1] sm:$0xff]
      %v4857 = vld [vmem:[%s3937 + $0xb9] sm:$0x3f]
      %v4858 = vld [vmem:[%s3937 + $0xc1] sm:$0xff]
      %v4859 = vld [vmem:[%s3937 + $0xc9] sm:$0x3f]
      %v4860 = vld [vmem:[%s3937 + $0xd1] sm:$0xff]
      %v4861 = vld [vmem:[%s3937 + $0xd9] sm:$0x3f]
      %4863 = vset.pattern.permute.xlu0 0
      %4864 = vperm.xlu0 %4863, %v4834
      %v4865 = vpop.permute.xlu0 %4864
      %4868 = vset.pattern.permute.xlu0 0
      %4869 = vperm.xlu0 %4868, %v4835
      %v4870 = vpop.permute.xlu0 %4869
      %4873 = vset.pattern.permute.xlu0 0
      %4874 = vperm.xlu0 %4873, %v4836
      %v4875 = vpop.permute.xlu0 %4874
      %4878 = vset.pattern.permute.xlu0 0
      %4879 = vperm.xlu0 %4878, %v4837
      %v4880 = vpop.permute.xlu0 %4879
      %4883 = vset.pattern.permute.xlu0 0
      %4884 = vperm.xlu0 %4883, %v4838
      %v4885 = vpop.permute.xlu0 %4884
      %4888 = vset.pattern.permute.xlu0 0
      %4889 = vperm.xlu0 %4888, %v4839
      %v4890 = vpop.permute.xlu0 %4889
      %4893 = vset.pattern.permute.xlu0 0
      %4894 = vperm.xlu0 %4893, %v4840
      %v4895 = vpop.permute.xlu0 %4894
      %4898 = vset.pattern.permute.xlu0 0
      %4899 = vperm.xlu0 %4898, %v4841
      %v4900 = vpop.permute.xlu0 %4899
      %4903 = vset.pattern.permute.xlu0 0
      %4904 = vperm.xlu0 %4903, %v4842
      %v4905 = vpop.permute.xlu0 %4904
      %4908 = vset.pattern.permute.xlu0 0
      %4909 = vperm.xlu0 %4908, %v4843
      %v4910 = vpop.permute.xlu0 %4909
      %4913 = vset.pattern.permute.xlu0 0
      %4914 = vperm.xlu0 %4913, %v4844
      %v4915 = vpop.permute.xlu0 %4914
      %4918 = vset.pattern.permute.xlu0 0
      %4919 = vperm.xlu0 %4918, %v4845
      %v4920 = vpop.permute.xlu0 %4919
      %4923 = vset.pattern.permute.xlu0 0
      %4924 = vperm.xlu0 %4923, %v4846
      %v4925 = vpop.permute.xlu0 %4924
      %4928 = vset.pattern.permute.xlu0 0
      %4929 = vperm.xlu0 %4928, %v4847
      %v4930 = vpop.permute.xlu0 %4929
      %4933 = vset.pattern.permute.xlu0 0
      %4934 = vperm.xlu0 %4933, %v4848
      %v4935 = vpop.permute.xlu0 %4934
      %4938 = vset.pattern.permute.xlu0 0
      %4939 = vperm.xlu0 %4938, %v4849
      %v4940 = vpop.permute.xlu0 %4939
      %4943 = vset.pattern.permute.xlu0 0
      %4944 = vperm.xlu0 %4943, %v4850
      %v4945 = vpop.permute.xlu0 %4944
      %4948 = vset.pattern.permute.xlu0 0
      %4949 = vperm.xlu0 %4948, %v4851
      %v4950 = vpop.permute.xlu0 %4949
      %4953 = vset.pattern.permute.xlu0 0
      %4954 = vperm.xlu0 %4953, %v4852
      %v4955 = vpop.permute.xlu0 %4954
      %4958 = vset.pattern.permute.xlu0 0
      %4959 = vperm.xlu0 %4958, %v4853
      %v4960 = vpop.permute.xlu0 %4959
      %4963 = vset.pattern.permute.xlu0 0
      %4964 = vperm.xlu0 %4963, %v4854
      %v4965 = vpop.permute.xlu0 %4964
      %4968 = vset.pattern.permute.xlu0 0
      %4969 = vperm.xlu0 %4968, %v4855
      %v4970 = vpop.permute.xlu0 %4969
      %4973 = vset.pattern.permute.xlu0 0
      %4974 = vperm.xlu0 %4973, %v4856
      %v4975 = vpop.permute.xlu0 %4974
      %4978 = vset.pattern.permute.xlu0 0
      %4979 = vperm.xlu0 %4978, %v4857
      %v4980 = vpop.permute.xlu0 %4979
      %4983 = vset.pattern.permute.xlu0 0
      %4984 = vperm.xlu0 %4983, %v4858
      %v4985 = vpop.permute.xlu0 %4984
      %4988 = vset.pattern.permute.xlu0 0
      %4989 = vperm.xlu0 %4988, %v4859
      %v4990 = vpop.permute.xlu0 %4989
      %4993 = vset.pattern.permute.xlu0 0
      %4994 = vperm.xlu0 %4993, %v4860
      %v4995 = vpop.permute.xlu0 %4994
      %4998 = vset.pattern.permute.xlu0 0
      %4999 = vperm.xlu0 %4998, %v4861
      %v5000 = vpop.permute.xlu0 %4999
      %v5002 = vmul.f32 %v4865, %v2311
      %v5003 = vmul.f32 %v4870, %v2311
      %v5004 = vmul.f32 %v4875, %v2311
      %v5005 = vmul.f32 %v4880, %v2311
      %v5006 = vmul.f32 %v4885, %v2311
      %v5007 = vmul.f32 %v4890, %v2311
      %v5008 = vmul.f32 %v4895, %v2311
      %v5009 = vmul.f32 %v4900, %v2311
      %v5010 = vmul.f32 %v4905, %v2311
      %v5011 = vmul.f32 %v4910, %v2311
      %v5012 = vmul.f32 %v4915, %v2311
      %v5013 = vmul.f32 %v4920, %v2311
      %v5014 = vmul.f32 %v4925, %v2311
      %v5015 = vmul.f32 %v4930, %v2311
      %v5016 = vmul.f32 %v4935, %v2311
      %v5017 = vmul.f32 %v4940, %v2311
      %v5018 = vmul.f32 %v4945, %v2311
      %v5019 = vmul.f32 %v4950, %v2311
      %v5020 = vmul.f32 %v4955, %v2311
      %v5021 = vmul.f32 %v4960, %v2311
      %v5022 = vmul.f32 %v4965, %v2311
      %v5023 = vmul.f32 %v4970, %v2311
      %v5024 = vmul.f32 %v4975, %v2311
      %v5025 = vmul.f32 %v4980, %v2311
      %v5026 = vmul.f32 %v4985, %v2311
      %v5027 = vmul.f32 %v4990, %v2311
      %v5028 = vmul.f32 %v4995, %v2311
      %v5029 = vmul.f32 %v5000, %v2311
      %v5030 = vadd.f32 %v4806, %v5002
      %v5031 = vadd.f32 %v4807, %v5003
      %v5032 = vadd.f32 %v4808, %v5004
      %v5033 = vadd.f32 %v4809, %v5005
      %v5034 = vadd.f32 %v4810, %v5006
      %v5035 = vadd.f32 %v4811, %v5007
      %v5036 = vadd.f32 %v4812, %v5008
      %v5037 = vadd.f32 %v4813, %v5009
      %v5038 = vadd.f32 %v4814, %v5010
      %v5039 = vadd.f32 %v4815, %v5011
      %v5040 = vadd.f32 %v4816, %v5012
      %v5041 = vadd.f32 %v4817, %v5013
      %v5042 = vadd.f32 %v4818, %v5014
      %v5043 = vadd.f32 %v4819, %v5015
      %v5044 = vadd.f32 %v4820, %v5016
      %v5045 = vadd.f32 %v4821, %v5017
      %v5046 = vadd.f32 %v4822, %v5018
      %v5047 = vadd.f32 %v4823, %v5019
      %v5048 = vadd.f32 %v4824, %v5020
      %v5049 = vadd.f32 %v4825, %v5021
      %v5050 = vadd.f32 %v4826, %v5022
      %v5051 = vadd.f32 %v4827, %v5023
      %v5052 = vadd.f32 %v4828, %v5024
      %v5053 = vadd.f32 %v4829, %v5025
      %v5054 = vadd.f32 %v4830, %v5026
      %v5055 = vadd.f32 %v4831, %v5027
      %v5056 = vadd.f32 %v4832, %v5028
      %v5057 = vadd.f32 %v4833, %v5029
      %v5058 = vmax.f32 %v2340, %v3348
      %v5059 = vmax.f32 %v2341, %v3349
      %v5060 = vmax.f32 %v2342, %v3350
      %v5061 = vmax.f32 %v2343, %v3351
      %v5062 = vmax.f32 %v2344, %v3352
      %v5063 = vmax.f32 %v2345, %v3353
      %v5064 = vmax.f32 %v2346, %v3354
      %v5065 = vmax.f32 %v2347, %v3355
      %v5066 = vmax.f32 %v2348, %v3356
      %v5067 = vmax.f32 %v2349, %v3357
      %v5068 = vmax.f32 %v2350, %v3358
      %v5069 = vmax.f32 %v2351, %v3359
      %v5070 = vmax.f32 %v2352, %v3360
      %v5071 = vmax.f32 %v2353, %v3361
      %v5072 = vmax.f32 %v2354, %v3362
      %v5073 = vmax.f32 %v2355, %v3363
      %v5074 = vmax.f32 %v2356, %v3364
      %v5075 = vmax.f32 %v2357, %v3365
      %v5076 = vmax.f32 %v2358, %v3366
      %v5077 = vmax.f32 %v2359, %v3367
      %v5078 = vmax.f32 %v2360, %v3368
      %v5079 = vmax.f32 %v2361, %v3369
      %v5080 = vmax.f32 %v2362, %v3370
      %v5081 = vmax.f32 %v2363, %v3371
      %v5082 = vmax.f32 %v2364, %v3372
      %v5083 = vmax.f32 %v2365, %v3373
      %v5084 = vmax.f32 %v2366, %v3374
      %v5085 = vmax.f32 %v2367, %v3375
      %v5086 = vmax.f32 %v4358, %v5030
      %v5087 = vmax.f32 %v4359, %v5031
      %v5088 = vmax.f32 %v4360, %v5032
      %v5089 = vmax.f32 %v4361, %v5033
      %v5090 = vmax.f32 %v4362, %v5034
      %v5091 = vmax.f32 %v4363, %v5035
      %v5092 = vmax.f32 %v4364, %v5036
      %v5093 = vmax.f32 %v4365, %v5037
      %v5094 = vmax.f32 %v4366, %v5038
      %v5095 = vmax.f32 %v4367, %v5039
      %v5096 = vmax.f32 %v4368, %v5040
      %v5097 = vmax.f32 %v4369, %v5041
      %v5098 = vmax.f32 %v4370, %v5042
      %v5099 = vmax.f32 %v4371, %v5043
      %v5100 = vmax.f32 %v4372, %v5044
      %v5101 = vmax.f32 %v4373, %v5045
      %v5102 = vmax.f32 %v4374, %v5046
      %v5103 = vmax.f32 %v4375, %v5047
      %v5104 = vmax.f32 %v4376, %v5048
      %v5105 = vmax.f32 %v4377, %v5049
      %v5106 = vmax.f32 %v4378, %v5050
      %v5107 = vmax.f32 %v4379, %v5051
      %v5108 = vmax.f32 %v4380, %v5052
      %v5109 = vmax.f32 %v4381, %v5053
      %v5110 = vmax.f32 %v4382, %v5054
      %v5111 = vmax.f32 %v4383, %v5055
      %v5112 = vmax.f32 %v4384, %v5056
      %v5113 = vmax.f32 %v4385, %v5057
      %v5114 = vmax.f32 %v5058, %v5086
      %v5115 = vmax.f32 %v5059, %v5087
      %v5116 = vmax.f32 %v5060, %v5088
      %v5117 = vmax.f32 %v5061, %v5089
      %v5118 = vmax.f32 %v5062, %v5090
      %v5119 = vmax.f32 %v5063, %v5091
      %v5120 = vmax.f32 %v5064, %v5092
      %v5121 = vmax.f32 %v5065, %v5093
      %v5122 = vmax.f32 %v5066, %v5094
      %v5123 = vmax.f32 %v5067, %v5095
      %v5124 = vmax.f32 %v5068, %v5096
      %v5125 = vmax.f32 %v5069, %v5097
      %v5126 = vmax.f32 %v5070, %v5098
      %v5127 = vmax.f32 %v5071, %v5099
      %v5128 = vmax.f32 %v5072, %v5100
      %v5129 = vmax.f32 %v5073, %v5101
      %v5130 = vmax.f32 %v5074, %v5102
      %v5131 = vmax.f32 %v5075, %v5103
      %v5132 = vmax.f32 %v5076, %v5104
      %v5133 = vmax.f32 %v5077, %v5105
      %v5134 = vmax.f32 %v5078, %v5106
      %v5135 = vmax.f32 %v5079, %v5107
      %v5136 = vmax.f32 %v5080, %v5108
      %v5137 = vmax.f32 %v5081, %v5109
      %v5138 = vmax.f32 %v5082, %v5110
      %v5139 = vmax.f32 %v5083, %v5111
      %v5140 = vmax.f32 %v5084, %v5112
      %v5141 = vmax.f32 %v5085, %v5113
      %v5142 = vld [vmem:[%s5] sm:$0x1]
      %v5144 = vlaneseq
      %v5145 = vshrl.u32 %v5144, 7
      %v5146 = vsub.s32 0, %v5145
      %v5147 = vrot.slane %v5142, %v5146
      %v5149 = vadd.f32 %v5114, %v5147
      %v5150 = vadd.f32 %v5115, %v5147
      %v5151 = vadd.f32 %v5116, %v5147
      %v5152 = vadd.f32 %v5117, %v5147
      %v5153 = vadd.f32 %v5118, %v5147
      %v5154 = vadd.f32 %v5119, %v5147
      %v5155 = vadd.f32 %v5120, %v5147
      %v5156 = vadd.f32 %v5121, %v5147
      %v5157 = vadd.f32 %v5122, %v5147
      %v5158 = vadd.f32 %v5123, %v5147
      %v5159 = vadd.f32 %v5124, %v5147
      %v5160 = vadd.f32 %v5125, %v5147
      %v5161 = vadd.f32 %v5126, %v5147
      %v5162 = vadd.f32 %v5127, %v5147
      %v5163 = vadd.f32 %v5128, %v5147
      %v5164 = vadd.f32 %v5129, %v5147
      %v5165 = vadd.f32 %v5130, %v5147
      %v5166 = vadd.f32 %v5131, %v5147
      %v5167 = vadd.f32 %v5132, %v5147
      %v5168 = vadd.f32 %v5133, %v5147
      %v5169 = vadd.f32 %v5134, %v5147
      %v5170 = vadd.f32 %v5135, %v5147
      %v5171 = vadd.f32 %v5136, %v5147
      %v5172 = vadd.f32 %v5137, %v5147
      %v5173 = vadd.f32 %v5138, %v5147
      %v5174 = vadd.f32 %v5139, %v5147
      %v5175 = vadd.f32 %v5140, %v5147
      %v5176 = vadd.f32 %v5141, %v5147
      %v5177 = vmax.f32 %v5149, 0.0
      %v5178 = vmax.f32 %v5150, 0.0
      %v5179 = vmax.f32 %v5151, 0.0
      %v5180 = vmax.f32 %v5152, 0.0
      %v5181 = vmax.f32 %v5153, 0.0
      %v5182 = vmax.f32 %v5154, 0.0
      %v5183 = vmax.f32 %v5155, 0.0
      %v5184 = vmax.f32 %v5156, 0.0
      %v5185 = vmax.f32 %v5157, 0.0
      %v5186 = vmax.f32 %v5158, 0.0
      %v5187 = vmax.f32 %v5159, 0.0
      %v5188 = vmax.f32 %v5160, 0.0
      %v5189 = vmax.f32 %v5161, 0.0
      %v5190 = vmax.f32 %v5162, 0.0
      %v5191 = vmax.f32 %v5163, 0.0
      %v5192 = vmax.f32 %v5164, 0.0
      %v5193 = vmax.f32 %v5165, 0.0
      %v5194 = vmax.f32 %v5166, 0.0
      %v5195 = vmax.f32 %v5167, 0.0
      %v5196 = vmax.f32 %v5168, 0.0
      %v5197 = vmax.f32 %v5169, 0.0
      %v5198 = vmax.f32 %v5170, 0.0
      %v5199 = vmax.f32 %v5171, 0.0
      %v5200 = vmax.f32 %v5172, 0.0
      %v5201 = vmax.f32 %v5173, 0.0
      %v5202 = vmax.f32 %v5174, 0.0
      %v5203 = vmax.f32 %v5175, 0.0
      %v5204 = vmax.f32 %v5176, 0.0
      %vm5205 = vcmask 80896
      %5206 = vst.msk [vmem:[%s311] sm:$0xff] %vm5205, %v5177
      %vm5207 = vcmask 78848
      %5208 = vst.msk [vmem:[%s311 + $0x8] sm:$0x3f] %vm5207, %v5178
      %5209 = vst.msk [vmem:[%s311 + $0x10] sm:$0xff] %vm5205, %v5179
      %5210 = vst.msk [vmem:[%s311 + $0x18] sm:$0x3f] %vm5207, %v5180
      %5211 = vst.msk [vmem:[%s311 + $0x20] sm:$0xff] %vm5205, %v5181
      %5212 = vst.msk [vmem:[%s311 + $0x28] sm:$0x3f] %vm5207, %v5182
      %5213 = vst.msk [vmem:[%s311 + $0x30] sm:$0xff] %vm5205, %v5183
      %5214 = vst.msk [vmem:[%s311 + $0x38] sm:$0x3f] %vm5207, %v5184
      %5215 = vst.msk [vmem:[%s311 + $0x40] sm:$0xff] %vm5205, %v5185
      %5216 = vst.msk [vmem:[%s311 + $0x48] sm:$0x3f] %vm5207, %v5186
      %5217 = vst.msk [vmem:[%s311 + $0x50] sm:$0xff] %vm5205, %v5187
      %5218 = vst.msk [vmem:[%s311 + $0x58] sm:$0x3f] %vm5207, %v5188
      %5219 = vst.msk [vmem:[%s311 + $0x60] sm:$0xff] %vm5205, %v5189
      %5220 = vst.msk [vmem:[%s311 + $0x68] sm:$0x3f] %vm5207, %v5190
      %5221 = vst.msk [vmem:[%s311 + $0x70] sm:$0xff] %vm5205, %v5191
      %5222 = vst.msk [vmem:[%s311 + $0x78] sm:$0x3f] %vm5207, %v5192
      %5223 = vst.msk [vmem:[%s311 + $0x80] sm:$0xff] %vm5205, %v5193
      %5224 = vst.msk [vmem:[%s311 + $0x88] sm:$0x3f] %vm5207, %v5194
      %5225 = vst.msk [vmem:[%s311 + $0x90] sm:$0xff] %vm5205, %v5195
      %5226 = vst.msk [vmem:[%s311 + $0x98] sm:$0x3f] %vm5207, %v5196
      %5227 = vst.msk [vmem:[%s311 + $0xa0] sm:$0xff] %vm5205, %v5197
      %5228 = vst.msk [vmem:[%s311 + $0xa8] sm:$0x3f] %vm5207, %v5198
      %5229 = vst.msk [vmem:[%s311 + $0xb0] sm:$0xff] %vm5205, %v5199
      %5230 = vst.msk [vmem:[%s311 + $0xb8] sm:$0x3f] %vm5207, %v5200
      %5231 = vst.msk [vmem:[%s311 + $0xc0] sm:$0xff] %vm5205, %v5201
      %5232 = vst.msk [vmem:[%s311 + $0xc8] sm:$0x3f] %vm5207, %v5202
      %5233 = vst.msk [vmem:[%s311 + $0xd0] sm:$0xff] %vm5205, %v5203
      %5234 = vst.msk [vmem:[%s311 + $0xd8] sm:$0x3f] %vm5207, %v5204
      %p5235 = scmp.lt.s32.totalorder %s17, 1
      %s5236 = scalar_select %p5235, %s17, 1
      %s5237 = smul.addr %s5236, 28
      %s5238 = smul.addr %s5237, 8
      %s5239 = scalar_lea.vmem %s6, %s5238
      // Predicated region
      $region45: #{convnet_forward.3} parent=43 // pred_check
        %p5240 = pneg %p181
      $region46: #{convnet_forward.3} parent=43 // pred_check_branch
        %5242 = sbr.rel (%p5240) target = $region48
      $region47: #{convnet_forward.3} parent=43 // pred_region
        _
      $region48: #{convnet_forward.3} parent=43 // pred_fallthru
        _
    $region44: #{convnet_forward.3} parent=5 // pred_fallthru
      _
    %p5243 = scmp.le.s32.totalorder 2, %s12
    // Predicated region
    $region49: #{convnet_forward.3} parent=5 // pred_check
      %p5244 = pneg %p5243
    $region50: #{convnet_forward.3} parent=5 // pred_check_branch
      %5246 = sbr.rel (%p5244) target = $region52
    $region51: #{convnet_forward.3} parent=5 // pred_region
      %s5247 = ssub.s32 %s12, 2
      // Predicated region
      $region53: #{convnet_forward.3} parent=51 // pred_check
        %p5248 = pneg %p187
      $region54: #{convnet_forward.3} parent=51 // pred_check_branch
        %5250 = sbr.rel (%p5248) target = $region56
      $region55: #{convnet_forward.3} parent=51 // pred_region
        %p5251 = scmp.lt.s32.totalorder %s18, 1
        %s5252 = scalar_select %p5251, %s18, 1
        %s5253 = smul.addr %s5252, 28
        %s5254 = smul.addr %s5253, 8
        %s5255 = scalar_lea.vmem %s6, %s5254
      $region56: #{convnet_forward.3} parent=51 // pred_fallthru
        _
    $region52: #{convnet_forward.3} parent=5 // pred_fallthru
      _
  $region6: #{convnet_forward.3} parent=0 // loop_footer
    %s16 = sadd.s32 1, %s12
  $region7: #{convnet_forward.3} parent=0 // loop_footer_branch
    %11 = sbr.rel target = $region3
  $region8: #{convnet_forward.3} parent=0 // loop_exit
    _

</llo_original>
